<compile_context>
chip_gen: v7x
topology: tpu7x:2x2x1
jax: 0.10.0
libtpu: 0.0.40
codegen_flags: <defaults>
</compile_context>

<pallas_src>
import functools

import jax
import jax.numpy as jnp
from jax.experimental import pallas as pl
from jax.experimental.pallas import tpu as pltpu


def _round_up(x, m):
    return (x + m - 1) // m * m


# ---------------------------------------------------------------------------
# Fused Pallas kernel: n_layers x (conv k x k, stride 1, pad k//2 -> ReLU -> maxpool 2x2)
# ---------------------------------------------------------------------------
def _make_tokenizer_kernel(layer_dims, k):
    """layer_dims: static tuple of (Hin, Win, Cin, Cout) per layer."""
    n_layers = len(layer_dims)
    pad = k // 2

    def kernel(*refs):
        x_ref = refs[0]                                   # (1, H0, W0, C0p) bf16
        w_refs = refs[1:1 + n_layers]                     # (k, k, Cin, Cout) bf16
        b_refs = refs[1 + n_layers:1 + 2 * n_layers]      # (1, Cout) f32
        out_ref = refs[1 + 2 * n_layers]                  # (1, Hf*Wf, Cf) f32
        pad_refs = refs[2 + 2 * n_layers:2 + 3 * n_layers]  # padded-activation scratch

        act = x_ref[0]                                    # (H0, W0, C0p) bf16
        for l, (H, W, Cin, Cout) in enumerate(layer_dims):
            p_ref = pad_refs[l]                           # (H+2p, W+2p, Cin) bf16
            # Zero the halo, then place the current activation in the interior.
            p_ref[...] = jnp.zeros_like(p_ref)
            p_ref[pad:pad + H, pad:pad + W, :] = act

            # Conv output size with PyTorch Conv2d(padding=k//2) semantics
            # (handles even kernel sizes too: Hc = H + 1 for even k).
            Hc = H + 2 * pad - k + 1
            Wc = W + 2 * pad - k + 1

            w_l = w_refs[l][...]                          # (k, k, Cin, Cout) bf16
            acc = None                                    # f32 accumulator over taps
            for dy in range(k):
                for dx in range(k):
                    tap = p_ref[dy:dy + Hc, dx:dx + Wc, :].reshape(Hc * Wc, Cin)
                    part = jnp.dot(tap, w_l[dy, dx],
                                   preferred_element_type=jnp.float32)
                    acc = part if acc is None else acc + part

            # bias + ReLU in f32
            acc = jnp.maximum(acc + b_refs[l][...], 0.0)  # (Hc*Wc, Cout)

            # Fused MaxPool2d(2, 2) with floor semantics (crop odd trailing row/col).
            Ho, Wo = Hc // 2, Wc // 2
            y = acc.reshape(Hc, Wc, Cout)[:2 * Ho, :2 * Wo, :]
            y = jnp.max(y.reshape(2 * Ho, Wo, 2, Cout), axis=2)   # pool along W
            y = jnp.max(y.reshape(Ho, 2, Wo, Cout), axis=1)       # pool along H

            if l + 1 < n_layers:
                act = y.astype(jnp.bfloat16)              # stays in VMEM, no HBM trip
            else:
                # Final tokens for this image: (Ho*Wo, Cout) == (seq, hidden).
                out_ref[0] = y.reshape(Ho * Wo, Cout).astype(out_ref.dtype)

    return kernel


# ---------------------------------------------------------------------------
# Module forward (thin wrapper; all compute in one pallas_call)
# ---------------------------------------------------------------------------
def conv_patch_embedding(x_nchw, params, kernel_size):
    """params: list of (w, b) with w: (Cout, Cin, k, k), b: (Cout,), PyTorch layout."""
    k = int(kernel_size)
    pad = k // 2

    # NCHW -> NHWC (channels on the lane dim for the MXU taps).
    x = jnp.transpose(x_nchw, (0, 2, 3, 1))
    B, H0, W0, C0 = x.shape

    # Zero-pad the first layer's input channels to a multiple of 8 (aligned K).
    C0p = _round_up(C0, 8)
    if C0p != C0:
        x = jnp.pad(x, ((0, 0), (0, 0), (0, 0), (0, C0p - C0)))

    # Static shape walk + operand prep (weights -> (k, k, Cin, Cout) bf16).
    layer_dims = []
    w_list, b_list = [], []
    h, w_sp, cin = H0, W0, C0p
    for li, (wgt, b) in enumerate(params):
        cout, cin_real = wgt.shape[0], wgt.shape[1]
        wk = jnp.transpose(wgt, (2, 3, 1, 0))             # (k, k, Cin, Cout)
        if li == 0 and C0p != cin_real:
            wk = jnp.pad(wk, ((0, 0), (0, 0), (0, C0p - cin_real), (0, 0)))
        w_list.append(wk.astype(jnp.bfloat16))
        b_list.append(b.reshape(1, cout).astype(jnp.float32))

        layer_dims.append((h, w_sp, cin, cout))
        hc = h + 2 * pad - k + 1
        wc = w_sp + 2 * pad - k + 1
        h, w_sp, cin = hc // 2, wc // 2, cout

    Hf, Wf, Cf = h, w_sp, cin
    kernel = _make_tokenizer_kernel(tuple(layer_dims), k)

    in_specs = [pl.BlockSpec((1, H0, W0, C0p), lambda b: (b, 0, 0, 0))]
    in_specs += [pl.BlockSpec(wl.shape, lambda b: (0, 0, 0, 0)) for wl in w_list]
    in_specs += [pl.BlockSpec(bl.shape, lambda b: (0, 0)) for bl in b_list]

    # Per-layer padded-activation scratch (bf16, lives entirely in VMEM).
    scratch_shapes = [
        pltpu.VMEM((hh + 2 * pad, ww + 2 * pad, ci), jnp.bfloat16)
        for (hh, ww, ci, co) in layer_dims
    ]

    out = pl.pallas_call(
        kernel,
        out_shape=jax.ShapeDtypeStruct((B, Hf * Wf, Cf), jnp.float32),
        grid=(B,),
        in_specs=in_specs,
        out_specs=pl.BlockSpec((1, Hf * Wf, Cf), lambda b: (b, 0, 0)),
        scratch_shapes=scratch_shapes,
        compiler_params=pltpu.CompilerParams(dimension_semantics=("parallel",)),
    )(x.astype(jnp.bfloat16), *w_list, *b_list)

    # Already in PyTorch's (B, H*W, C) token layout — no extra reshape/transpose glue.
    return out


# ---------------------------------------------------------------------------
# Deterministic parameter init (mimics nn.Conv2d default uniform bounds)
# ---------------------------------------------------------------------------
def init_params(key, n_layers, kernel_size, hidden_dim):
    params = []
    in_channels = 3
    for i in range(n_layers):
        out_channels = hidden_dim if i == n_layers - 1 else hidden_dim // 2
        key, kw, kb = jax.random.split(key, 3)
        fan_in = in_channels * kernel_size * kernel_size
        bound = 1.0 / jnp.sqrt(fan_in)
        w = jax.random.uniform(
            kw, (out_channels, in_channels, kernel_size, kernel_size),
            minval=-bound, maxval=bound, dtype=jnp.float32)
        b = jax.random.uniform(
            kb, (out_channels,), minval=-bound, maxval=bound, dtype=jnp.float32)
        params.append((w, b))
        in_channels = out_channels
    return params


# ---------------------------------------------------------------------------
# Pure-JAX reference (f32) for a sanity check of the fused kernel
# ---------------------------------------------------------------------------
def _reference_forward(x_nchw, params, kernel_size):
    k = kernel_size
    x = x_nchw
    for w, b in params:
        x = jax.lax.conv_general_dilated(
            x, w, window_strides=(1, 1),
            padding=[(k // 2, k // 2), (k // 2, k // 2)],
            dimension_numbers=("NCHW", "OIHW", "NCHW"))
        x = jnp.maximum(x + b[None, :, None, None], 0.0)
        x = jax.lax.reduce_window(
            x, -jnp.inf, jax.lax.max,
            window_dimensions=(1, 1, 2, 2), window_strides=(1, 1, 2, 2),
            padding="VALID")
    B, C, H, W = x.shape
    return jnp.transpose(x.reshape(B, C, H * W), (0, 2, 1))


if __name__ == "__main__":
    n_layers, kernel_size, hidden_dim = 2, 3, 32
    key = jax.random.PRNGKey(0)
    key, kx = jax.random.split(key)

    x = jax.random.normal(kx, (2, 3, 16, 16), dtype=jnp.float32)  # NCHW like PyTorch
    params = init_params(key, n_layers, kernel_size, hidden_dim)

    fwd = jax.jit(functools.partial(conv_patch_embedding, kernel_size=kernel_size))
    out = jax.block_until_ready(fwd(x, params))

    # Two 2x down-samplings of 16x16 -> 4x4 spatial, hidden_dim channels.
    assert out.shape == (2, 4 * 4, hidden_dim), out.shape

    # Numerical sanity check vs. f32 XLA reference (bf16 MXU inputs -> loose tolerance).
    ref = _reference_forward(x, params, kernel_size)
    assert jnp.allclose(out, ref, atol=1e-1, rtol=1e-1), float(
        jnp.max(jnp.abs(out - ref)))

    print("KERNEL_OK")
</pallas_src>

<mosaic_0001>
module attributes {stable_mosaic.version = 11 : i64} {
  func.func @kernel(%arg0: i32, %arg1: memref<1x16x16x8xbf16, #tpu.memory_space<vmem>>, %arg2: memref<3x3x8x16xbf16, #tpu.memory_space<vmem>>, %arg3: memref<3x3x16x32xbf16, #tpu.memory_space<vmem>>, %arg4: memref<1x16xf32, #tpu.memory_space<vmem>>, %arg5: memref<1x32xf32, #tpu.memory_space<vmem>>, %arg6: memref<1x16x32xf32, #tpu.memory_space<vmem>>, %arg7: memref<18x18x8xbf16, #tpu.memory_space<vmem>>, %arg8: memref<10x10x16xbf16, #tpu.memory_space<vmem>>) attributes {dimension_semantics = [#tpu.dimension_semantics<parallel>], iteration_bounds = array<i64: 2>, scalar_prefetch = 0 : i64, scratch_operands = 2 : i64, tpu.core_type = #tpu.core_type<tc>, window_params = [{transform_indices = @transform_0, window_bounds = array<i64: 1, 16, 16, 8>}, {pipeline_mode = #tpu.pipeline_mode<synchronous>, transform_indices = @transform_1, window_bounds = array<i64: 3, 3, 8, 16>}, {pipeline_mode = #tpu.pipeline_mode<synchronous>, transform_indices = @transform_2, window_bounds = array<i64: 3, 3, 16, 32>}, {pipeline_mode = #tpu.pipeline_mode<synchronous>, transform_indices = @transform_3, window_bounds = array<i64: 1, 16>}, {pipeline_mode = #tpu.pipeline_mode<synchronous>, transform_indices = @transform_4, window_bounds = array<i64: 1, 32>}, {transform_indices = @transform_5, window_bounds = array<i64: 1, 16, 32>}]} {
    %c0 = arith.constant 0 : index
    %c0_0 = arith.constant 0 : index
    %c0_1 = arith.constant 0 : index
    %c0_2 = arith.constant 0 : index
    %0 = vector.load %arg1[%c0, %c0_0, %c0_1, %c0_2] : memref<1x16x16x8xbf16, #tpu.memory_space<vmem>>, vector<1x16x16x8xbf16>
    %1 = vector.shape_cast %0 : vector<1x16x16x8xbf16> to vector<16x16x8xbf16>
    %cst = arith.constant 0.000000e+00 : bf16
    %2 = vector.broadcast %cst : bf16 to vector<18x18x8xbf16>
    %c0_3 = arith.constant 0 : index
    %c0_4 = arith.constant 0 : index
    %c0_5 = arith.constant 0 : index
    %3 = vector.load %arg7[%c0_3, %c0_4, %c0_5] : memref<18x18x8xbf16, #tpu.memory_space<vmem>>, vector<18x18x8xbf16>
    tpu.vector_store %arg7[%c0_3, %c0_4, %c0_5], %2 {strides = array<i32>} : memref<18x18x8xbf16, #tpu.memory_space<vmem>>, vector<18x18x8xbf16>,
    %c1 = arith.constant 1 : index
    %c1_6 = arith.constant 1 : index
    %c0_7 = arith.constant 0 : index
    %4 = vector.load %arg7[%c1, %c1_6, %c0_7] : memref<18x18x8xbf16, #tpu.memory_space<vmem>>, vector<16x16x8xbf16>
    tpu.vector_store %arg7[%c1, %c1_6, %c0_7], %1 {strides = array<i32>} : memref<18x18x8xbf16, #tpu.memory_space<vmem>>, vector<16x16x8xbf16>,
    %c0_8 = arith.constant 0 : index
    %c0_9 = arith.constant 0 : index
    %c0_10 = arith.constant 0 : index
    %c0_11 = arith.constant 0 : index
    %5 = vector.load %arg2[%c0_8, %c0_9, %c0_10, %c0_11] : memref<3x3x8x16xbf16, #tpu.memory_space<vmem>>, vector<3x3x8x16xbf16>
    %c0_12 = arith.constant 0 : index
    %c0_13 = arith.constant 0 : index
    %c0_14 = arith.constant 0 : index
    %6 = vector.load %arg7[%c0_12, %c0_13, %c0_14] : memref<18x18x8xbf16, #tpu.memory_space<vmem>>, vector<16x16x8xbf16>
    %7 = vector.shape_cast %6 : vector<16x16x8xbf16> to vector<256x8xbf16>
    %8 = vector.extract_strided_slice %5 {offsets = [0, 0, 0, 0], sizes = [1, 1, 8, 16], strides = [1, 1, 1, 1]} : vector<3x3x8x16xbf16> to vector<1x1x8x16xbf16>
    %9 = vector.shape_cast %8 : vector<1x1x8x16xbf16> to vector<8x16xbf16>
    %cst_15 = arith.constant dense<0.000000e+00> : vector<256x16xf32>
    %10 = tpu.matmul %7, %9, %cst_15 {dimension_numbers = #tpu.dot_dimension_numbers<[1], [0], [0], [1], [0, 0, 1, 1], [], []>} : vector<256x8xbf16>, vector<8x16xbf16>, vector<256x16xf32> -> vector<256x16xf32>
    %c0_16 = arith.constant 0 : index
    %c1_17 = arith.constant 1 : index
    %c0_18 = arith.constant 0 : index
    %11 = vector.load %arg7[%c0_16, %c1_17, %c0_18] : memref<18x18x8xbf16, #tpu.memory_space<vmem>>, vector<16x16x8xbf16>
    %12 = vector.shape_cast %11 : vector<16x16x8xbf16> to vector<256x8xbf16>
    %13 = vector.extract_strided_slice %5 {offsets = [0, 1, 0, 0], sizes = [1, 1, 8, 16], strides = [1, 1, 1, 1]} : vector<3x3x8x16xbf16> to vector<1x1x8x16xbf16>
    %14 = vector.shape_cast %13 : vector<1x1x8x16xbf16> to vector<8x16xbf16>
    %cst_19 = arith.constant dense<0.000000e+00> : vector<256x16xf32>
    %15 = tpu.matmul %12, %14, %cst_19 {dimension_numbers = #tpu.dot_dimension_numbers<[1], [0], [0], [1], [0, 0, 1, 1], [], []>} : vector<256x8xbf16>, vector<8x16xbf16>, vector<256x16xf32> -> vector<256x16xf32>
    %16 = arith.addf %10, %15 : vector<256x16xf32>
    %c0_20 = arith.constant 0 : index
    %c2 = arith.constant 2 : index
    %c0_21 = arith.constant 0 : index
    %17 = vector.load %arg7[%c0_20, %c2, %c0_21] : memref<18x18x8xbf16, #tpu.memory_space<vmem>>, vector<16x16x8xbf16>
    %18 = vector.shape_cast %17 : vector<16x16x8xbf16> to vector<256x8xbf16>
    %19 = vector.extract_strided_slice %5 {offsets = [0, 2, 0, 0], sizes = [1, 1, 8, 16], strides = [1, 1, 1, 1]} : vector<3x3x8x16xbf16> to vector<1x1x8x16xbf16>
    %20 = vector.shape_cast %19 : vector<1x1x8x16xbf16> to vector<8x16xbf16>
    %cst_22 = arith.constant dense<0.000000e+00> : vector<256x16xf32>
    %21 = tpu.matmul %18, %20, %cst_22 {dimension_numbers = #tpu.dot_dimension_numbers<[1], [0], [0], [1], [0, 0, 1, 1], [], []>} : vector<256x8xbf16>, vector<8x16xbf16>, vector<256x16xf32> -> vector<256x16xf32>
    %22 = arith.addf %16, %21 : vector<256x16xf32>
    %c1_23 = arith.constant 1 : index
    %c0_24 = arith.constant 0 : index
    %c0_25 = arith.constant 0 : index
    %23 = vector.load %arg7[%c1_23, %c0_24, %c0_25] : memref<18x18x8xbf16, #tpu.memory_space<vmem>>, vector<16x16x8xbf16>
    %24 = vector.shape_cast %23 : vector<16x16x8xbf16> to vector<256x8xbf16>
    %25 = vector.extract_strided_slice %5 {offsets = [1, 0, 0, 0], sizes = [1, 1, 8, 16], strides = [1, 1, 1, 1]} : vector<3x3x8x16xbf16> to vector<1x1x8x16xbf16>
    %26 = vector.shape_cast %25 : vector<1x1x8x16xbf16> to vector<8x16xbf16>
    %cst_26 = arith.constant dense<0.000000e+00> : vector<256x16xf32>
    %27 = tpu.matmul %24, %26, %cst_26 {dimension_numbers = #tpu.dot_dimension_numbers<[1], [0], [0], [1], [0, 0, 1, 1], [], []>} : vector<256x8xbf16>, vector<8x16xbf16>, vector<256x16xf32> -> vector<256x16xf32>
    %28 = arith.addf %22, %27 : vector<256x16xf32>
    %c1_27 = arith.constant 1 : index
    %c1_28 = arith.constant 1 : index
    %c0_29 = arith.constant 0 : index
    %29 = vector.load %arg7[%c1_27, %c1_28, %c0_29] : memref<18x18x8xbf16, #tpu.memory_space<vmem>>, vector<16x16x8xbf16>
    %30 = vector.shape_cast %29 : vector<16x16x8xbf16> to vector<256x8xbf16>
    %31 = vector.extract_strided_slice %5 {offsets = [1, 1, 0, 0], sizes = [1, 1, 8, 16], strides = [1, 1, 1, 1]} : vector<3x3x8x16xbf16> to vector<1x1x8x16xbf16>
    %32 = vector.shape_cast %31 : vector<1x1x8x16xbf16> to vector<8x16xbf16>
    %cst_30 = arith.constant dense<0.000000e+00> : vector<256x16xf32>
    %33 = tpu.matmul %30, %32, %cst_30 {dimension_numbers = #tpu.dot_dimension_numbers<[1], [0], [0], [1], [0, 0, 1, 1], [], []>} : vector<256x8xbf16>, vector<8x16xbf16>, vector<256x16xf32> -> vector<256x16xf32>
    %34 = arith.addf %28, %33 : vector<256x16xf32>
    %c1_31 = arith.constant 1 : index
    %c2_32 = arith.constant 2 : index
    %c0_33 = arith.constant 0 : index
    %35 = vector.load %arg7[%c1_31, %c2_32, %c0_33] : memref<18x18x8xbf16, #tpu.memory_space<vmem>>, vector<16x16x8xbf16>
    %36 = vector.shape_cast %35 : vector<16x16x8xbf16> to vector<256x8xbf16>
    %37 = vector.extract_strided_slice %5 {offsets = [1, 2, 0, 0], sizes = [1, 1, 8, 16], strides = [1, 1, 1, 1]} : vector<3x3x8x16xbf16> to vector<1x1x8x16xbf16>
    %38 = vector.shape_cast %37 : vector<1x1x8x16xbf16> to vector<8x16xbf16>
    %cst_34 = arith.constant dense<0.000000e+00> : vector<256x16xf32>
    %39 = tpu.matmul %36, %38, %cst_34 {dimension_numbers = #tpu.dot_dimension_numbers<[1], [0], [0], [1], [0, 0, 1, 1], [], []>} : vector<256x8xbf16>, vector<8x16xbf16>, vector<256x16xf32> -> vector<256x16xf32>
    %40 = arith.addf %34, %39 : vector<256x16xf32>
    %c2_35 = arith.constant 2 : index
    %c0_36 = arith.constant 0 : index
    %c0_37 = arith.constant 0 : index
    %41 = vector.load %arg7[%c2_35, %c0_36, %c0_37] : memref<18x18x8xbf16, #tpu.memory_space<vmem>>, vector<16x16x8xbf16>
    %42 = vector.shape_cast %41 : vector<16x16x8xbf16> to vector<256x8xbf16>
    %43 = vector.extract_strided_slice %5 {offsets = [2, 0, 0, 0], sizes = [1, 1, 8, 16], strides = [1, 1, 1, 1]} : vector<3x3x8x16xbf16> to vector<1x1x8x16xbf16>
    %44 = vector.shape_cast %43 : vector<1x1x8x16xbf16> to vector<8x16xbf16>
    %cst_38 = arith.constant dense<0.000000e+00> : vector<256x16xf32>
    %45 = tpu.matmul %42, %44, %cst_38 {dimension_numbers = #tpu.dot_dimension_numbers<[1], [0], [0], [1], [0, 0, 1, 1], [], []>} : vector<256x8xbf16>, vector<8x16xbf16>, vector<256x16xf32> -> vector<256x16xf32>
    %46 = arith.addf %40, %45 : vector<256x16xf32>
    %c2_39 = arith.constant 2 : index
    %c1_40 = arith.constant 1 : index
    %c0_41 = arith.constant 0 : index
    %47 = vector.load %arg7[%c2_39, %c1_40, %c0_41] : memref<18x18x8xbf16, #tpu.memory_space<vmem>>, vector<16x16x8xbf16>
    %48 = vector.shape_cast %47 : vector<16x16x8xbf16> to vector<256x8xbf16>
    %49 = vector.extract_strided_slice %5 {offsets = [2, 1, 0, 0], sizes = [1, 1, 8, 16], strides = [1, 1, 1, 1]} : vector<3x3x8x16xbf16> to vector<1x1x8x16xbf16>
    %50 = vector.shape_cast %49 : vector<1x1x8x16xbf16> to vector<8x16xbf16>
    %cst_42 = arith.constant dense<0.000000e+00> : vector<256x16xf32>
    %51 = tpu.matmul %48, %50, %cst_42 {dimension_numbers = #tpu.dot_dimension_numbers<[1], [0], [0], [1], [0, 0, 1, 1], [], []>} : vector<256x8xbf16>, vector<8x16xbf16>, vector<256x16xf32> -> vector<256x16xf32>
    %52 = arith.addf %46, %51 : vector<256x16xf32>
    %c2_43 = arith.constant 2 : index
    %c2_44 = arith.constant 2 : index
    %c0_45 = arith.constant 0 : index
    %53 = vector.load %arg7[%c2_43, %c2_44, %c0_45] : memref<18x18x8xbf16, #tpu.memory_space<vmem>>, vector<16x16x8xbf16>
    %54 = vector.shape_cast %53 : vector<16x16x8xbf16> to vector<256x8xbf16>
    %55 = vector.extract_strided_slice %5 {offsets = [2, 2, 0, 0], sizes = [1, 1, 8, 16], strides = [1, 1, 1, 1]} : vector<3x3x8x16xbf16> to vector<1x1x8x16xbf16>
    %56 = vector.shape_cast %55 : vector<1x1x8x16xbf16> to vector<8x16xbf16>
    %cst_46 = arith.constant dense<0.000000e+00> : vector<256x16xf32>
    %57 = tpu.matmul %54, %56, %cst_46 {dimension_numbers = #tpu.dot_dimension_numbers<[1], [0], [0], [1], [0, 0, 1, 1], [], []>} : vector<256x8xbf16>, vector<8x16xbf16>, vector<256x16xf32> -> vector<256x16xf32>
    %58 = arith.addf %52, %57 : vector<256x16xf32>
    %c0_47 = arith.constant 0 : index
    %c0_48 = arith.constant 0 : index
    %59 = vector.load %arg4[%c0_47, %c0_48] : memref<1x16xf32, #tpu.memory_space<vmem>>, vector<1x16xf32>
    %60 = vector.broadcast %59 : vector<1x16xf32> to vector<256x16xf32>
    %61 = arith.addf %58, %60 : vector<256x16xf32>
    %cst_49 = arith.constant 0.000000e+00 : f32
    %62 = vector.broadcast %cst_49 : f32 to vector<256x16xf32>
    %63 = arith.maximumf %61, %62 : vector<256x16xf32>
    %64 = vector.shape_cast %63 : vector<256x16xf32> to vector<16x16x16xf32>
    %65 = vector.shape_cast %64 : vector<16x16x16xf32> to vector<16x8x2x16xf32>
    %cst_50 = arith.constant dense<0xFF800000> : vector<16x8x16xf32>
    %66 = vector.multi_reduction <maximumf>, %65, %cst_50 [2] : vector<16x8x2x16xf32> to vector<16x8x16xf32>
    %67 = vector.shape_cast %66 : vector<16x8x16xf32> to vector<8x2x8x16xf32>
    %cst_51 = arith.constant dense<0xFF800000> : vector<8x8x16xf32>
    %68 = vector.multi_reduction <maximumf>, %67, %cst_51 [1] : vector<8x2x8x16xf32> to vector<8x8x16xf32>
    %69 = arith.truncf %68 : vector<8x8x16xf32> to vector<8x8x16xbf16>
    %cst_52 = arith.constant 0.000000e+00 : bf16
    %70 = vector.broadcast %cst_52 : bf16 to vector<10x10x16xbf16>
    %c0_53 = arith.constant 0 : index
    %c0_54 = arith.constant 0 : index
    %c0_55 = arith.constant 0 : index
    %71 = vector.load %arg8[%c0_53, %c0_54, %c0_55] : memref<10x10x16xbf16, #tpu.memory_space<vmem>>, vector<10x10x16xbf16>
    tpu.vector_store %arg8[%c0_53, %c0_54, %c0_55], %70 {strides = array<i32>} : memref<10x10x16xbf16, #tpu.memory_space<vmem>>, vector<10x10x16xbf16>,
    %c1_56 = arith.constant 1 : index
    %c1_57 = arith.constant 1 : index
    %c0_58 = arith.constant 0 : index
    %72 = vector.load %arg8[%c1_56, %c1_57, %c0_58] : memref<10x10x16xbf16, #tpu.memory_space<vmem>>, vector<8x8x16xbf16>
    tpu.vector_store %arg8[%c1_56, %c1_57, %c0_58], %69 {strides = array<i32>} : memref<10x10x16xbf16, #tpu.memory_space<vmem>>, vector<8x8x16xbf16>,
    %c0_59 = arith.constant 0 : index
    %c0_60 = arith.constant 0 : index
    %c0_61 = arith.constant 0 : index
    %c0_62 = arith.constant 0 : index
    %73 = vector.load %arg3[%c0_59, %c0_60, %c0_61, %c0_62] : memref<3x3x16x32xbf16, #tpu.memory_space<vmem>>, vector<3x3x16x32xbf16>
    %c0_63 = arith.constant 0 : index
    %c0_64 = arith.constant 0 : index
    %c0_65 = arith.constant 0 : index
    %74 = vector.load %arg8[%c0_63, %c0_64, %c0_65] : memref<10x10x16xbf16, #tpu.memory_space<vmem>>, vector<8x8x16xbf16>
    %75 = vector.shape_cast %74 : vector<8x8x16xbf16> to vector<64x16xbf16>
    %76 = vector.extract_strided_slice %73 {offsets = [0, 0, 0, 0], sizes = [1, 1, 16, 32], strides = [1, 1, 1, 1]} : vector<3x3x16x32xbf16> to vector<1x1x16x32xbf16>
    %77 = vector.shape_cast %76 : vector<1x1x16x32xbf16> to vector<16x32xbf16>
    %cst_66 = arith.constant dense<0.000000e+00> : vector<64x32xf32>
    %78 = tpu.matmul %75, %77, %cst_66 {dimension_numbers = #tpu.dot_dimension_numbers<[1], [0], [0], [1], [0, 0, 1, 1], [], []>} : vector<64x16xbf16>, vector<16x32xbf16>, vector<64x32xf32> -> vector<64x32xf32>
    %c0_67 = arith.constant 0 : index
    %c1_68 = arith.constant 1 : index
    %c0_69 = arith.constant 0 : index
    %79 = vector.load %arg8[%c0_67, %c1_68, %c0_69] : memref<10x10x16xbf16, #tpu.memory_space<vmem>>, vector<8x8x16xbf16>
    %80 = vector.shape_cast %79 : vector<8x8x16xbf16> to vector<64x16xbf16>
    %81 = vector.extract_strided_slice %73 {offsets = [0, 1, 0, 0], sizes = [1, 1, 16, 32], strides = [1, 1, 1, 1]} : vector<3x3x16x32xbf16> to vector<1x1x16x32xbf16>
    %82 = vector.shape_cast %81 : vector<1x1x16x32xbf16> to vector<16x32xbf16>
    %cst_70 = arith.constant dense<0.000000e+00> : vector<64x32xf32>
    %83 = tpu.matmul %80, %82, %cst_70 {dimension_numbers = #tpu.dot_dimension_numbers<[1], [0], [0], [1], [0, 0, 1, 1], [], []>} : vector<64x16xbf16>, vector<16x32xbf16>, vector<64x32xf32> -> vector<64x32xf32>
    %84 = arith.addf %78, %83 : vector<64x32xf32>
    %c0_71 = arith.constant 0 : index
    %c2_72 = arith.constant 2 : index
    %c0_73 = arith.constant 0 : index
    %85 = vector.load %arg8[%c0_71, %c2_72, %c0_73] : memref<10x10x16xbf16, #tpu.memory_space<vmem>>, vector<8x8x16xbf16>
    %86 = vector.shape_cast %85 : vector<8x8x16xbf16> to vector<64x16xbf16>
    %87 = vector.extract_strided_slice %73 {offsets = [0, 2, 0, 0], sizes = [1, 1, 16, 32], strides = [1, 1, 1, 1]} : vector<3x3x16x32xbf16> to vector<1x1x16x32xbf16>
    %88 = vector.shape_cast %87 : vector<1x1x16x32xbf16> to vector<16x32xbf16>
    %cst_74 = arith.constant dense<0.000000e+00> : vector<64x32xf32>
    %89 = tpu.matmul %86, %88, %cst_74 {dimension_numbers = #tpu.dot_dimension_numbers<[1], [0], [0], [1], [0, 0, 1, 1], [], []>} : vector<64x16xbf16>, vector<16x32xbf16>, vector<64x32xf32> -> vector<64x32xf32>
    %90 = arith.addf %84, %89 : vector<64x32xf32>
    %c1_75 = arith.constant 1 : index
    %c0_76 = arith.constant 0 : index
    %c0_77 = arith.constant 0 : index
    %91 = vector.load %arg8[%c1_75, %c0_76, %c0_77] : memref<10x10x16xbf16, #tpu.memory_space<vmem>>, vector<8x8x16xbf16>
    %92 = vector.shape_cast %91 : vector<8x8x16xbf16> to vector<64x16xbf16>
    %93 = vector.extract_strided_slice %73 {offsets = [1, 0, 0, 0], sizes = [1, 1, 16, 32], strides = [1, 1, 1, 1]} : vector<3x3x16x32xbf16> to vector<1x1x16x32xbf16>
    %94 = vector.shape_cast %93 : vector<1x1x16x32xbf16> to vector<16x32xbf16>
    %cst_78 = arith.constant dense<0.000000e+00> : vector<64x32xf32>
    %95 = tpu.matmul %92, %94, %cst_78 {dimension_numbers = #tpu.dot_dimension_numbers<[1], [0], [0], [1], [0, 0, 1, 1], [], []>} : vector<64x16xbf16>, vector<16x32xbf16>, vector<64x32xf32> -> vector<64x32xf32>
    %96 = arith.addf %90, %95 : vector<64x32xf32>
    %c1_79 = arith.constant 1 : index
    %c1_80 = arith.constant 1 : index
    %c0_81 = arith.constant 0 : index
    %97 = vector.load %arg8[%c1_79, %c1_80, %c0_81] : memref<10x10x16xbf16, #tpu.memory_space<vmem>>, vector<8x8x16xbf16>
    %98 = vector.shape_cast %97 : vector<8x8x16xbf16> to vector<64x16xbf16>
    %99 = vector.extract_strided_slice %73 {offsets = [1, 1, 0, 0], sizes = [1, 1, 16, 32], strides = [1, 1, 1, 1]} : vector<3x3x16x32xbf16> to vector<1x1x16x32xbf16>
    %100 = vector.shape_cast %99 : vector<1x1x16x32xbf16> to vector<16x32xbf16>
    %cst_82 = arith.constant dense<0.000000e+00> : vector<64x32xf32>
    %101 = tpu.matmul %98, %100, %cst_82 {dimension_numbers = #tpu.dot_dimension_numbers<[1], [0], [0], [1], [0, 0, 1, 1], [], []>} : vector<64x16xbf16>, vector<16x32xbf16>, vector<64x32xf32> -> vector<64x32xf32>
    %102 = arith.addf %96, %101 : vector<64x32xf32>
    %c1_83 = arith.constant 1 : index
    %c2_84 = arith.constant 2 : index
    %c0_85 = arith.constant 0 : index
    %103 = vector.load %arg8[%c1_83, %c2_84, %c0_85] : memref<10x10x16xbf16, #tpu.memory_space<vmem>>, vector<8x8x16xbf16>
    %104 = vector.shape_cast %103 : vector<8x8x16xbf16> to vector<64x16xbf16>
    %105 = vector.extract_strided_slice %73 {offsets = [1, 2, 0, 0], sizes = [1, 1, 16, 32], strides = [1, 1, 1, 1]} : vector<3x3x16x32xbf16> to vector<1x1x16x32xbf16>
    %106 = vector.shape_cast %105 : vector<1x1x16x32xbf16> to vector<16x32xbf16>
    %cst_86 = arith.constant dense<0.000000e+00> : vector<64x32xf32>
    %107 = tpu.matmul %104, %106, %cst_86 {dimension_numbers = #tpu.dot_dimension_numbers<[1], [0], [0], [1], [0, 0, 1, 1], [], []>} : vector<64x16xbf16>, vector<16x32xbf16>, vector<64x32xf32> -> vector<64x32xf32>
    %108 = arith.addf %102, %107 : vector<64x32xf32>
    %c2_87 = arith.constant 2 : index
    %c0_88 = arith.constant 0 : index
    %c0_89 = arith.constant 0 : index
    %109 = vector.load %arg8[%c2_87, %c0_88, %c0_89] : memref<10x10x16xbf16, #tpu.memory_space<vmem>>, vector<8x8x16xbf16>
    %110 = vector.shape_cast %109 : vector<8x8x16xbf16> to vector<64x16xbf16>
    %111 = vector.extract_strided_slice %73 {offsets = [2, 0, 0, 0], sizes = [1, 1, 16, 32], strides = [1, 1, 1, 1]} : vector<3x3x16x32xbf16> to vector<1x1x16x32xbf16>
    %112 = vector.shape_cast %111 : vector<1x1x16x32xbf16> to vector<16x32xbf16>
    %cst_90 = arith.constant dense<0.000000e+00> : vector<64x32xf32>
    %113 = tpu.matmul %110, %112, %cst_90 {dimension_numbers = #tpu.dot_dimension_numbers<[1], [0], [0], [1], [0, 0, 1, 1], [], []>} : vector<64x16xbf16>, vector<16x32xbf16>, vector<64x32xf32> -> vector<64x32xf32>
    %114 = arith.addf %108, %113 : vector<64x32xf32>
    %c2_91 = arith.constant 2 : index
    %c1_92 = arith.constant 1 : index
    %c0_93 = arith.constant 0 : index
    %115 = vector.load %arg8[%c2_91, %c1_92, %c0_93] : memref<10x10x16xbf16, #tpu.memory_space<vmem>>, vector<8x8x16xbf16>
    %116 = vector.shape_cast %115 : vector<8x8x16xbf16> to vector<64x16xbf16>
    %117 = vector.extract_strided_slice %73 {offsets = [2, 1, 0, 0], sizes = [1, 1, 16, 32], strides = [1, 1, 1, 1]} : vector<3x3x16x32xbf16> to vector<1x1x16x32xbf16>
    %118 = vector.shape_cast %117 : vector<1x1x16x32xbf16> to vector<16x32xbf16>
    %cst_94 = arith.constant dense<0.000000e+00> : vector<64x32xf32>
    %119 = tpu.matmul %116, %118, %cst_94 {dimension_numbers = #tpu.dot_dimension_numbers<[1], [0], [0], [1], [0, 0, 1, 1], [], []>} : vector<64x16xbf16>, vector<16x32xbf16>, vector<64x32xf32> -> vector<64x32xf32>
    %120 = arith.addf %114, %119 : vector<64x32xf32>
    %c2_95 = arith.constant 2 : index
    %c2_96 = arith.constant 2 : index
    %c0_97 = arith.constant 0 : index
    %121 = vector.load %arg8[%c2_95, %c2_96, %c0_97] : memref<10x10x16xbf16, #tpu.memory_space<vmem>>, vector<8x8x16xbf16>
    %122 = vector.shape_cast %121 : vector<8x8x16xbf16> to vector<64x16xbf16>
    %123 = vector.extract_strided_slice %73 {offsets = [2, 2, 0, 0], sizes = [1, 1, 16, 32], strides = [1, 1, 1, 1]} : vector<3x3x16x32xbf16> to vector<1x1x16x32xbf16>
    %124 = vector.shape_cast %123 : vector<1x1x16x32xbf16> to vector<16x32xbf16>
    %cst_98 = arith.constant dense<0.000000e+00> : vector<64x32xf32>
    %125 = tpu.matmul %122, %124, %cst_98 {dimension_numbers = #tpu.dot_dimension_numbers<[1], [0], [0], [1], [0, 0, 1, 1], [], []>} : vector<64x16xbf16>, vector<16x32xbf16>, vector<64x32xf32> -> vector<64x32xf32>
    %126 = arith.addf %120, %125 : vector<64x32xf32>
    %c0_99 = arith.constant 0 : index
    %c0_100 = arith.constant 0 : index
    %127 = vector.load %arg5[%c0_99, %c0_100] : memref<1x32xf32, #tpu.memory_space<vmem>>, vector<1x32xf32>
    %128 = vector.broadcast %127 : vector<1x32xf32> to vector<64x32xf32>
    %129 = arith.addf %126, %128 : vector<64x32xf32>
    %cst_101 = arith.constant 0.000000e+00 : f32
    %130 = vector.broadcast %cst_101 : f32 to vector<64x32xf32>
    %131 = arith.maximumf %129, %130 : vector<64x32xf32>
    %132 = vector.shape_cast %131 : vector<64x32xf32> to vector<8x8x32xf32>
    %133 = vector.shape_cast %132 : vector<8x8x32xf32> to vector<8x4x2x32xf32>
    %cst_102 = arith.constant dense<0xFF800000> : vector<8x4x32xf32>
    %134 = vector.multi_reduction <maximumf>, %133, %cst_102 [2] : vector<8x4x2x32xf32> to vector<8x4x32xf32>
    %135 = vector.shape_cast %134 : vector<8x4x32xf32> to vector<4x2x4x32xf32>
    %cst_103 = arith.constant dense<0xFF800000> : vector<4x4x32xf32>
    %136 = vector.multi_reduction <maximumf>, %135, %cst_103 [1] : vector<4x2x4x32xf32> to vector<4x4x32xf32>
    %137 = vector.shape_cast %136 : vector<4x4x32xf32> to vector<16x32xf32>
    %c0_104 = arith.constant 0 : index
    %c0_105 = arith.constant 0 : index
    %c0_106 = arith.constant 0 : index
    %138 = vector.load %arg6[%c0_104, %c0_105, %c0_106] : memref<1x16x32xf32, #tpu.memory_space<vmem>>, vector<1x16x32xf32>
    %139 = vector.shape_cast %138 : vector<1x16x32xf32> to vector<16x32xf32>
    %140 = vector.shape_cast %137 : vector<16x32xf32> to vector<1x16x32xf32>
    tpu.vector_store %arg6[%c0_104, %c0_105, %c0_106], %140 {strides = array<i32>} : memref<1x16x32xf32, #tpu.memory_space<vmem>>, vector<1x16x32xf32>,
    return
  }
  func.func @transform_0(%arg0: i32) -> (i32, i32, i32, i32) {
    %c0_i32 = arith.constant 0 : i32
    %c0_i32_0 = arith.constant 0 : i32
    %c0_i32_1 = arith.constant 0 : i32
    %c0_i32_2 = arith.constant 0 : i32
    return %arg0, %c0_i32, %c0_i32_0, %c0_i32_1 : i32, i32, i32, i32
  }
  func.func @transform_1(%arg0: i32) -> (i32, i32, i32, i32) {
    %c0_i32 = arith.constant 0 : i32
    %c0_i32_0 = arith.constant 0 : i32
    %c0_i32_1 = arith.constant 0 : i32
    %c0_i32_2 = arith.constant 0 : i32
    %c0_i32_3 = arith.constant 0 : i32
    return %c0_i32, %c0_i32_0, %c0_i32_1, %c0_i32_2 : i32, i32, i32, i32
  }
  func.func @transform_2(%arg0: i32) -> (i32, i32, i32, i32) {
    %c0_i32 = arith.constant 0 : i32
    %c0_i32_0 = arith.constant 0 : i32
    %c0_i32_1 = arith.constant 0 : i32
    %c0_i32_2 = arith.constant 0 : i32
    %c0_i32_3 = arith.constant 0 : i32
    return %c0_i32, %c0_i32_0, %c0_i32_1, %c0_i32_2 : i32, i32, i32, i32
  }
  func.func @transform_3(%arg0: i32) -> (i32, i32) {
    %c0_i32 = arith.constant 0 : i32
    %c0_i32_0 = arith.constant 0 : i32
    %c0_i32_1 = arith.constant 0 : i32
    return %c0_i32, %c0_i32_0 : i32, i32
  }
  func.func @transform_4(%arg0: i32) -> (i32, i32) {
    %c0_i32 = arith.constant 0 : i32
    %c0_i32_0 = arith.constant 0 : i32
    %c0_i32_1 = arith.constant 0 : i32
    return %c0_i32, %c0_i32_0 : i32, i32
  }
  func.func @transform_5(%arg0: i32) -> (i32, i32, i32) {
    %c0_i32 = arith.constant 0 : i32
    %c0_i32_0 = arith.constant 0 : i32
    %c0_i32_1 = arith.constant 0 : i32
    return %arg0, %c0_i32, %c0_i32_0 : i32, i32, i32
  }
}

</mosaic_0001>

<llo_original>
// kernel: conv_patch_embedding.1
$region0: #{conv_patch_embedding.1}
  #allocation0 [shape = 'u32[]', space=smem, size = 0x4, offset = 0x4, fixed_abs, tag = 'smem constant byte address 0x4 - core index']
  #allocation1 [shape = 'u32[144,128]{1,0:T(1,128)}', space=vmem, size = 0x12000, scoped, tag = 'internal scratch']
  #allocation2 [shape = 'bf16[18,18,8]{2,1,0:T(8,128)(2,1)}', space=vmem, size = 0x1b000, scoped, tag = 'scratch operand']
  #allocation3 [shape = 'bf16[10,10,16]{2,1,0:T(8,128)(2,1)}', space=vmem, size = 0xa000, scoped, tag = 'scratch operand']
  %s0 = inlined_call_operand.vmem [shape: bf16[2,16,16,8], index: 0, kind: input, shape index: {}]
  %s1 = inlined_call_operand.vmem [shape: bf16[3,3,8,16], index: 1, kind: input, shape index: {}]
  %s2 = inlined_call_operand.vmem [shape: bf16[3,3,16,32], index: 2, kind: input, shape index: {}]
  %s3 = inlined_call_operand.vmem [shape: f32[1,16], index: 3, kind: input, shape index: {}]
  %s4 = inlined_call_operand.vmem [shape: f32[1,32], index: 4, kind: input, shape index: {}]
  %s5 = inlined_call_operand.hbm [shape: f32[2,16,32], index: 5, kind: output, shape index: {}]
  %s6 = sld [smem:[#allocation0]]
  $region53: #{conv_patch_embedding.1} parent=0
    _
  %s8 = ssub.s32 1, %s6
  %s9 = scalar_select 0, %s8, %s6
  $region1: #{conv_patch_embedding.1} parent=0
    #allocation4 [shape = 'u8[16384]{0}', space=vmem, size = 0x4000, scoped, tag = 'output window, operand 0']
    #allocation5 [shape = 's32[2]{0}', space=sflag, size = 0x8, scoped, tag = 'scoped memory for conv_patch_embedding.1']
    %10 = vsyncpa [#allocation5], 0
    %s11 = scalar_lea.sflag [#allocation5], 1
    %12 = vsyncpa %s11, 0
    loop: start=0, step=1, limit=4
    $region2: #{conv_patch_embedding.1} parent=1 // loop_pre_header
      _
    $region3: #{conv_patch_embedding.1} parent=1 // loop_header
      %s14 = sphi 0, %s18
      %p15 = scmp.ge.s32.totalorder %s14, 4
      %s24 = sphi 0, %s26
      %s27 = sphi 0, %s24
      %s28 = sphi 0, %s27
      %s44 = sphi 0, %s28
      %s48 = sphi 0, %s48
      %s50 = sphi 0, %s48
      %s51 = sphi 0, %s50
      %s65 = sphi 0, %s51
      %s69 = sphi 0, %s69
      %s71 = sphi 0, %s69
      %s72 = sphi 0, %s71
      %s86 = sphi 0, %s72
      %s90 = sphi 0, %s90
      %s92 = sphi 0, %s90
      %s93 = sphi 0, %s92
      %s107 = sphi 0, %s93
      %s111 = sphi 0, %s111
      %s113 = sphi 0, %s111
      %s114 = sphi 0, %s113
      %s128 = sphi 0, %s114
      %s134 = sphi 0, %s136
      %s137 = sphi 0, %s134
      %s138 = sphi 0, %s137
      %s154 = sphi 0, %s138
    $region4: #{conv_patch_embedding.1} parent=1 // loop_header_branch
      %17 = sbr.rel (%p15) target = $region8
    $region5: #{conv_patch_embedding.1} parent=1 // loop_body
      %s19 = ssub.s32 %s14, 1
      %s20 = ssub.s32 %s14, 2
      %s21 = sadd.s32 %s14, 1
      %s22 = ssub.s32 %s14, %s21
      %p23 = scmp.eq.s32.totalorder %s22, 0
      %s25 = sadd.s32 %s24, 1
      %s26 = scalar_select %p23, %s24, %s25
      %p29 = pneg %p23
      %p30 = scmp.eq.s32.totalorder %s14, 1
      %p31 = por %p29, %p30
      %p32 = scmp.ne.s32.totalorder %s24, %s27
      %p33 = scmp.eq.s32.totalorder %s14, 0
      %p34 = por %p32, %p33
      %p35 = scmp.ne.s32.totalorder %s24, %s27
      %p36 = scmp.eq.s32.totalorder %s19, 1
      %p37 = por %p35, %p36
      %p38 = scmp.ne.s32.totalorder %s27, %s28
      %p39 = scmp.eq.s32.totalorder %s19, 0
      %p40 = por %p38, %p39
      %p41 = scmp.ne.s32.totalorder %s27, %s28
      %p42 = scmp.eq.s32.totalorder %s20, 1
      %p43 = por %p41, %p42
      %p45 = scmp.ne.s32.totalorder %s28, %s44
      %p46 = scmp.eq.s32.totalorder %s20, 0
      %p47 = por %p45, %p46
      %s49 = sadd.s32 %s48, 1
      %p52 = scmp.eq.s32.totalorder %s14, 1
      %p53 = scmp.ne.s32.totalorder %s48, %s50
      %p54 = scmp.eq.s32.totalorder %s14, 0
      %p55 = por %p53, %p54
      %p56 = scmp.ne.s32.totalorder %s48, %s50
      %p57 = scmp.eq.s32.totalorder %s19, 1
      %p58 = por %p56, %p57
      %p59 = scmp.ne.s32.totalorder %s50, %s51
      %p60 = scmp.eq.s32.totalorder %s19, 0
      %p61 = por %p59, %p60
      %p62 = scmp.ne.s32.totalorder %s50, %s51
      %p63 = scmp.eq.s32.totalorder %s20, 1
      %p64 = por %p62, %p63
      %p66 = scmp.ne.s32.totalorder %s51, %s65
      %p67 = scmp.eq.s32.totalorder %s20, 0
      %p68 = por %p66, %p67
      %s70 = sadd.s32 %s69, 1
      %p73 = scmp.eq.s32.totalorder %s14, 1
      %p74 = scmp.ne.s32.totalorder %s69, %s71
      %p75 = scmp.eq.s32.totalorder %s14, 0
      %p76 = por %p74, %p75
      %p77 = scmp.ne.s32.totalorder %s69, %s71
      %p78 = scmp.eq.s32.totalorder %s19, 1
      %p79 = por %p77, %p78
      %p80 = scmp.ne.s32.totalorder %s71, %s72
      %p81 = scmp.eq.s32.totalorder %s19, 0
      %p82 = por %p80, %p81
      %p83 = scmp.ne.s32.totalorder %s71, %s72
      %p84 = scmp.eq.s32.totalorder %s20, 1
      %p85 = por %p83, %p84
      %p87 = scmp.ne.s32.totalorder %s72, %s86
      %p88 = scmp.eq.s32.totalorder %s20, 0
      %p89 = por %p87, %p88
      %s91 = sadd.s32 %s90, 1
      %p94 = scmp.eq.s32.totalorder %s14, 1
      %p95 = scmp.ne.s32.totalorder %s90, %s92
      %p96 = scmp.eq.s32.totalorder %s14, 0
      %p97 = por %p95, %p96
      %p98 = scmp.ne.s32.totalorder %s90, %s92
      %p99 = scmp.eq.s32.totalorder %s19, 1
      %p100 = por %p98, %p99
      %p101 = scmp.ne.s32.totalorder %s92, %s93
      %p102 = scmp.eq.s32.totalorder %s19, 0
      %p103 = por %p101, %p102
      %p104 = scmp.ne.s32.totalorder %s92, %s93
      %p105 = scmp.eq.s32.totalorder %s20, 1
      %p106 = por %p104, %p105
      %p108 = scmp.ne.s32.totalorder %s93, %s107
      %p109 = scmp.eq.s32.totalorder %s20, 0
      %p110 = por %p108, %p109
      %s112 = sadd.s32 %s111, 1
      %p115 = scmp.eq.s32.totalorder %s14, 1
      %p116 = scmp.ne.s32.totalorder %s111, %s113
      %p117 = scmp.eq.s32.totalorder %s14, 0
      %p118 = por %p116, %p117
      %p119 = scmp.ne.s32.totalorder %s111, %s113
      %p120 = scmp.eq.s32.totalorder %s19, 1
      %p121 = por %p119, %p120
      %p122 = scmp.ne.s32.totalorder %s113, %s114
      %p123 = scmp.eq.s32.totalorder %s19, 0
      %p124 = por %p122, %p123
      %p125 = scmp.ne.s32.totalorder %s113, %s114
      %p126 = scmp.eq.s32.totalorder %s20, 1
      %p127 = por %p125, %p126
      %p129 = scmp.ne.s32.totalorder %s114, %s128
      %p130 = scmp.eq.s32.totalorder %s20, 0
      %p131 = por %p129, %p130
      %s132 = ssub.s32 %s14, %s21
      %p133 = scmp.eq.s32.totalorder %s132, 0
      %s135 = sadd.s32 %s134, 1
      %s136 = scalar_select %p133, %s134, %s135
      %p139 = pneg %p133
      %p140 = scmp.eq.s32.totalorder %s14, 1
      %p141 = por %p139, %p140
      %p142 = scmp.ne.s32.totalorder %s134, %s137
      %p143 = scmp.eq.s32.totalorder %s14, 0
      %p144 = por %p142, %p143
      %p145 = scmp.ne.s32.totalorder %s134, %s137
      %p146 = scmp.eq.s32.totalorder %s19, 1
      %p147 = por %p145, %p146
      %p148 = scmp.ne.s32.totalorder %s137, %s138
      %p149 = scmp.eq.s32.totalorder %s19, 0
      %p150 = por %p148, %p149
      %p151 = scmp.ne.s32.totalorder %s137, %s138
      %p152 = scmp.eq.s32.totalorder %s20, 1
      %p153 = por %p151, %p152
      %p155 = scmp.ne.s32.totalorder %s138, %s154
      %p156 = scmp.eq.s32.totalorder %s20, 0
      %p157 = por %p155, %p156
      %p158 = scmp.le.s32.totalorder 1, %s14
      %p159 = scmp.lt.s32.totalorder %s14, 3
      %p160 = pnand %p158, %p159
      %p161 = pneg %p160
      // Predicated region
      $region9: #{conv_patch_embedding.1} parent=5 // pred_check
        _
      $region10: #{conv_patch_embedding.1} parent=5 // pred_check_branch
        %163 = sbr.rel (%p160) target = $region12
      $region11: #{conv_patch_embedding.1} parent=5 // pred_region
        %s164 = ssub.s32 %s14, 1
        // Predicated region
        $region13: #{conv_patch_embedding.1} parent=11 // pred_check
          %p165 = pneg %p61
        $region14: #{conv_patch_embedding.1} parent=11 // pred_check_branch
          %167 = sbr.rel (%p165) target = $region16
        $region15: #{conv_patch_embedding.1} parent=11 // pred_region
          _
        $region16: #{conv_patch_embedding.1} parent=11 // pred_fallthru
          _
        // Predicated region
        $region17: #{conv_patch_embedding.1} parent=11 // pred_check
          %p168 = pneg %p82
        $region18: #{conv_patch_embedding.1} parent=11 // pred_check_branch
          %170 = sbr.rel (%p168) target = $region20
        $region19: #{conv_patch_embedding.1} parent=11 // pred_region
          _
        $region20: #{conv_patch_embedding.1} parent=11 // pred_fallthru
          _
        // Predicated region
        $region21: #{conv_patch_embedding.1} parent=11 // pred_check
          %p171 = pneg %p103
        $region22: #{conv_patch_embedding.1} parent=11 // pred_check_branch
          %173 = sbr.rel (%p171) target = $region24
        $region23: #{conv_patch_embedding.1} parent=11 // pred_region
          _
        $region24: #{conv_patch_embedding.1} parent=11 // pred_fallthru
          _
        // Predicated region
        $region25: #{conv_patch_embedding.1} parent=11 // pred_check
          %p174 = pneg %p124
        $region26: #{conv_patch_embedding.1} parent=11 // pred_check_branch
          %176 = sbr.rel (%p174) target = $region28
        $region27: #{conv_patch_embedding.1} parent=11 // pred_region
          _
        $region28: #{conv_patch_embedding.1} parent=11 // pred_fallthru
          _
      $region12: #{conv_patch_embedding.1} parent=5 // pred_fallthru
        _
      %p177 = scmp.lt.s32.totalorder %s14, 2
      // Predicated region
      $region29: #{conv_patch_embedding.1} parent=5 // pred_check
        %p178 = pneg %p177
      $region30: #{conv_patch_embedding.1} parent=5 // pred_check_branch
        %180 = sbr.rel (%p178) target = $region32
      $region31: #{conv_patch_embedding.1} parent=5 // pred_region
        // Predicated region
        $region33: #{conv_patch_embedding.1} parent=31 // pred_check
          %p181 = pneg %p34
        $region34: #{conv_patch_embedding.1} parent=31 // pred_check_branch
          %183 = sbr.rel (%p181) target = $region36
        $region35: #{conv_patch_embedding.1} parent=31 // pred_region
          %p184 = scmp.lt.s32.totalorder %s14, 1
          %s185 = scalar_select %p184, %s14, 1
          %s186 = smul.addr %s185, 32
          %s187 = smul.addr %s186, 4
          %s188 = scalar_lea.vmem %s0, %s187
        $region36: #{conv_patch_embedding.1} parent=31 // pred_fallthru
          _
      $region32: #{conv_patch_embedding.1} parent=5 // pred_fallthru
        _
      %p189 = scmp.le.s32.totalorder 1, %s14
      %p190 = scmp.lt.s32.totalorder %s14, 3
      %p191 = pnand %p189, %p190
      %p192 = pneg %p191
      // Predicated region
      $region37: #{conv_patch_embedding.1} parent=5 // pred_check
        _
      $region38: #{conv_patch_embedding.1} parent=5 // pred_check_branch
        %194 = sbr.rel (%p191) target = $region40
      $region39: #{conv_patch_embedding.1} parent=5 // pred_region
        %s195 = ssub.s32 %s14, 1
        %p196 = scmp.lt.s32.totalorder %s19, 1
        %s197 = scalar_select %p196, %s19, 1
        %s198 = smul.addr %s197, 32
        %s199 = smul.addr %s198, 4
        %s200 = scalar_lea.vmem %s0, %s199
        %p201 = pneg %p40
        %p202 = pneg %p37
        %p203 = pneg %p61
        %p204 = pneg %p58
        %p205 = pneg %p82
        %p206 = pneg %p79
        %p207 = pneg %p103
        %p208 = pneg %p100
        %p209 = pneg %p124
        %p210 = pneg %p121
        %p211 = pneg %p150
        %p212 = pneg %p147
        %s213 = sand.u32 %s137, 1
        %s214 = scalar_lea.sflag [#allocation5], %s213
        %s215 = sand.u32 %s137, 1
        %s216 = smul.addr %s215, 16
        %s217 = scalar_lea.vmem [#allocation4], %s216
        %p218 = scmp.lt.s32.totalorder %s19, 1
        %s219 = scalar_select %p218, %s19, 1
        %s220 = smul.addr %s219, 32
        %s221 = smul.addr %s220, 4
        %s222 = scalar_lea.vmem %s0, %s221
        %v224 = vld [vmem:[%s222] sm:$0xf]
        %v225 = vld [vmem:[%s222 + $0x4] sm:$0xf]
        %v226 = vld [vmem:[%s222 + $0x8] sm:$0xf]
        %v227 = vld [vmem:[%s222 + $0xc] sm:$0xf]
        %v228 = vld [vmem:[%s222 + $0x10] sm:$0xf]
        %v229 = vld [vmem:[%s222 + $0x14] sm:$0xf]
        %v230 = vld [vmem:[%s222 + $0x18] sm:$0xf]
        %v231 = vld [vmem:[%s222 + $0x1c] sm:$0xf]
        %v232 = vld [vmem:[%s222 + $0x20] sm:$0xf]
        %v233 = vld [vmem:[%s222 + $0x24] sm:$0xf]
        %v234 = vld [vmem:[%s222 + $0x28] sm:$0xf]
        %v235 = vld [vmem:[%s222 + $0x2c] sm:$0xf]
        %v236 = vld [vmem:[%s222 + $0x30] sm:$0xf]
        %v237 = vld [vmem:[%s222 + $0x34] sm:$0xf]
        %v238 = vld [vmem:[%s222 + $0x38] sm:$0xf]
        %v239 = vld [vmem:[%s222 + $0x3c] sm:$0xf]
        %v240 = vld [vmem:[%s222 + $0x40] sm:$0xf]
        %v241 = vld [vmem:[%s222 + $0x44] sm:$0xf]
        %v242 = vld [vmem:[%s222 + $0x48] sm:$0xf]
        %v243 = vld [vmem:[%s222 + $0x4c] sm:$0xf]
        %v244 = vld [vmem:[%s222 + $0x50] sm:$0xf]
        %v245 = vld [vmem:[%s222 + $0x54] sm:$0xf]
        %v246 = vld [vmem:[%s222 + $0x58] sm:$0xf]
        %v247 = vld [vmem:[%s222 + $0x5c] sm:$0xf]
        %v248 = vld [vmem:[%s222 + $0x60] sm:$0xf]
        %v249 = vld [vmem:[%s222 + $0x64] sm:$0xf]
        %v250 = vld [vmem:[%s222 + $0x68] sm:$0xf]
        %v251 = vld [vmem:[%s222 + $0x6c] sm:$0xf]
        %v252 = vld [vmem:[%s222 + $0x70] sm:$0xf]
        %v253 = vld [vmem:[%s222 + $0x74] sm:$0xf]
        %v254 = vld [vmem:[%s222 + $0x78] sm:$0xf]
        %v255 = vld [vmem:[%s222 + $0x7c] sm:$0xf]
        %vm256 = vcmask 60416
        %257 = vst.msk [vmem:[#allocation2] sm:$0xf] %vm256, 0
        %258 = vst.msk [vmem:[#allocation2 + $0x4] sm:$0xf] %vm256, 0
        %vm259 = vcmask 57344
        %260 = vst.msk [vmem:[#allocation2 + $0x8] sm:$0x1] %vm259, 0
        %261 = vst.msk [vmem:[#allocation2 + $0xc] sm:$0xf] %vm256, 0
        %262 = vst.msk [vmem:[#allocation2 + $0x10] sm:$0xf] %vm256, 0
        %263 = vst.msk [vmem:[#allocation2 + $0x14] sm:$0x1] %vm259, 0
        %264 = vst.msk [vmem:[#allocation2 + $0x18] sm:$0xf] %vm256, 0
        %265 = vst.msk [vmem:[#allocation2 + $0x1c] sm:$0xf] %vm256, 0
        %266 = vst.msk [vmem:[#allocation2 + $0x20] sm:$0x1] %vm259, 0
        %267 = vst.msk [vmem:[#allocation2 + $0x24] sm:$0xf] %vm256, 0
        %268 = vst.msk [vmem:[#allocation2 + $0x28] sm:$0xf] %vm256, 0
        %269 = vst.msk [vmem:[#allocation2 + $0x2c] sm:$0x1] %vm259, 0
        %270 = vst.msk [vmem:[#allocation2 + $0x30] sm:$0xf] %vm256, 0
        %271 = vst.msk [vmem:[#allocation2 + $0x34] sm:$0xf] %vm256, 0
        %272 = vst.msk [vmem:[#allocation2 + $0x38] sm:$0x1] %vm259, 0
        %273 = vst.msk [vmem:[#allocation2 + $0x3c] sm:$0xf] %vm256, 0
        %274 = vst.msk [vmem:[#allocation2 + $0x40] sm:$0xf] %vm256, 0
        %275 = vst.msk [vmem:[#allocation2 + $0x44] sm:$0x1] %vm259, 0
        %276 = vst.msk [vmem:[#allocation2 + $0x48] sm:$0xf] %vm256, 0
        %277 = vst.msk [vmem:[#allocation2 + $0x4c] sm:$0xf] %vm256, 0
        %278 = vst.msk [vmem:[#allocation2 + $0x50] sm:$0x1] %vm259, 0
        %279 = vst.msk [vmem:[#allocation2 + $0x54] sm:$0xf] %vm256, 0
        %280 = vst.msk [vmem:[#allocation2 + $0x58] sm:$0xf] %vm256, 0
        %281 = vst.msk [vmem:[#allocation2 + $0x5c] sm:$0x1] %vm259, 0
        %282 = vst.msk [vmem:[#allocation2 + $0x60] sm:$0xf] %vm256, 0
        %283 = vst.msk [vmem:[#allocation2 + $0x64] sm:$0xf] %vm256, 0
        %284 = vst.msk [vmem:[#allocation2 + $0x68] sm:$0x1] %vm259, 0
        %285 = vst.msk [vmem:[#allocation2 + $0x6c] sm:$0xf] %vm256, 0
        %286 = vst.msk [vmem:[#allocation2 + $0x70] sm:$0xf] %vm256, 0
        %287 = vst.msk [vmem:[#allocation2 + $0x74] sm:$0x1] %vm259, 0
        %288 = vst.msk [vmem:[#allocation2 + $0x78] sm:$0xf] %vm256, 0
        %289 = vst.msk [vmem:[#allocation2 + $0x7c] sm:$0xf] %vm256, 0
        %290 = vst.msk [vmem:[#allocation2 + $0x80] sm:$0x1] %vm259, 0
        %291 = vst.msk [vmem:[#allocation2 + $0x84] sm:$0xf] %vm256, 0
        %292 = vst.msk [vmem:[#allocation2 + $0x88] sm:$0xf] %vm256, 0
        %293 = vst.msk [vmem:[#allocation2 + $0x8c] sm:$0x1] %vm259, 0
        %294 = vst.msk [vmem:[#allocation2 + $0x90] sm:$0xf] %vm256, 0
        %295 = vst.msk [vmem:[#allocation2 + $0x94] sm:$0xf] %vm256, 0
        %296 = vst.msk [vmem:[#allocation2 + $0x98] sm:$0x1] %vm259, 0
        %297 = vst.msk [vmem:[#allocation2 + $0x9c] sm:$0xf] %vm256, 0
        %298 = vst.msk [vmem:[#allocation2 + $0xa0] sm:$0xf] %vm256, 0
        %299 = vst.msk [vmem:[#allocation2 + $0xa4] sm:$0x1] %vm259, 0
        %300 = vst.msk [vmem:[#allocation2 + $0xa8] sm:$0xf] %vm256, 0
        %301 = vst.msk [vmem:[#allocation2 + $0xac] sm:$0xf] %vm256, 0
        %302 = vst.msk [vmem:[#allocation2 + $0xb0] sm:$0x1] %vm259, 0
        %303 = vst.msk [vmem:[#allocation2 + $0xb4] sm:$0xf] %vm256, 0
        %304 = vst.msk [vmem:[#allocation2 + $0xb8] sm:$0xf] %vm256, 0
        %305 = vst.msk [vmem:[#allocation2 + $0xbc] sm:$0x1] %vm259, 0
        %306 = vst.msk [vmem:[#allocation2 + $0xc0] sm:$0xf] %vm256, 0
        %307 = vst.msk [vmem:[#allocation2 + $0xc4] sm:$0xf] %vm256, 0
        %308 = vst.msk [vmem:[#allocation2 + $0xc8] sm:$0x1] %vm259, 0
        %309 = vst.msk [vmem:[#allocation2 + $0xcc] sm:$0xf] %vm256, 0
        %310 = vst.msk [vmem:[#allocation2 + $0xd0] sm:$0xf] %vm256, 0
        %311 = vst.msk [vmem:[#allocation2 + $0xd4] sm:$0x1] %vm259, 0
        %vm312 = vsmask.f32 256
        %vm313 = vsmask.f32 4368
        %vm314 = vmor %vm312, %vm313
        %v316 = vshrl.u32 %v224, 16
        %v318 = vrot.slane %v316, 7
        %v319 = vshll.u32 %v224, 16
        %v321 = vor.u32 %v318, %v319
        %v322 = vrot.slane %v318, 4
        %v324 = vshrl.u32 %v225, 16
        %v326 = vrot.slane %v324, 7
        %v327 = vshll.u32 %v225, 16
        %v329 = vor.u32 %v326, %v327
        %v330 = vsel %vm314, %v322, %v329
        %v331 = vrot.slane %v326, 4
        %v333 = vshrl.u32 %v226, 16
        %v335 = vrot.slane %v333, 7
        %v336 = vshll.u32 %v226, 16
        %v338 = vor.u32 %v335, %v336
        %v339 = vrot.slane %v335, 4
        %v341 = vshrl.u32 %v227, 16
        %v343 = vrot.slane %v341, 7
        %v344 = vshll.u32 %v227, 16
        %v346 = vor.u32 %v343, %v344
        %v347 = vsel %vm314, %v339, %v346
        %v348 = vrot.slane %v343, 4
        %v350 = vshrl.u32 %v228, 16
        %v352 = vrot.slane %v350, 7
        %v353 = vshll.u32 %v228, 16
        %v355 = vor.u32 %v352, %v353
        %v356 = vrot.slane %v352, 4
        %v358 = vshrl.u32 %v229, 16
        %v360 = vrot.slane %v358, 7
        %v361 = vshll.u32 %v229, 16
        %v363 = vor.u32 %v360, %v361
        %v364 = vsel %vm314, %v356, %v363
        %v365 = vrot.slane %v360, 4
        %v367 = vshrl.u32 %v230, 16
        %v369 = vrot.slane %v367, 7
        %v370 = vshll.u32 %v230, 16
        %v372 = vor.u32 %v369, %v370
        %v373 = vrot.slane %v369, 4
        %v375 = vshrl.u32 %v231, 16
        %v377 = vrot.slane %v375, 7
        %v378 = vshll.u32 %v231, 16
        %v380 = vor.u32 %v377, %v378
        %v381 = vsel %vm314, %v373, %v380
        %v382 = vrot.slane %v377, 4
        %v384 = vshrl.u32 %v232, 16
        %v386 = vrot.slane %v384, 7
        %v387 = vshll.u32 %v232, 16
        %v389 = vor.u32 %v386, %v387
        %v390 = vrot.slane %v386, 4
        %v392 = vshrl.u32 %v233, 16
        %v394 = vrot.slane %v392, 7
        %v395 = vshll.u32 %v233, 16
        %v397 = vor.u32 %v394, %v395
        %v398 = vsel %vm314, %v390, %v397
        %v399 = vrot.slane %v394, 4
        %v401 = vshrl.u32 %v234, 16
        %v403 = vrot.slane %v401, 7
        %v404 = vshll.u32 %v234, 16
        %v406 = vor.u32 %v403, %v404
        %v407 = vrot.slane %v403, 4
        %v409 = vshrl.u32 %v235, 16
        %v411 = vrot.slane %v409, 7
        %v412 = vshll.u32 %v235, 16
        %v414 = vor.u32 %v411, %v412
        %v415 = vsel %vm314, %v407, %v414
        %v416 = vrot.slane %v411, 4
        %v418 = vshrl.u32 %v236, 16
        %v420 = vrot.slane %v418, 7
        %v421 = vshll.u32 %v236, 16
        %v423 = vor.u32 %v420, %v421
        %v424 = vrot.slane %v420, 4
        %v426 = vshrl.u32 %v237, 16
        %v428 = vrot.slane %v426, 7
        %v429 = vshll.u32 %v237, 16
        %v431 = vor.u32 %v428, %v429
        %v432 = vsel %vm314, %v424, %v431
        %v433 = vrot.slane %v428, 4
        %v435 = vshrl.u32 %v238, 16
        %v437 = vrot.slane %v435, 7
        %v438 = vshll.u32 %v238, 16
        %v440 = vor.u32 %v437, %v438
        %v441 = vrot.slane %v437, 4
        %v443 = vshrl.u32 %v239, 16
        %v445 = vrot.slane %v443, 7
        %v446 = vshll.u32 %v239, 16
        %v448 = vor.u32 %v445, %v446
        %v449 = vsel %vm314, %v441, %v448
        %v450 = vrot.slane %v445, 4
        %v452 = vshrl.u32 %v240, 16
        %v454 = vrot.slane %v452, 7
        %v455 = vshll.u32 %v240, 16
        %v457 = vor.u32 %v454, %v455
        %v458 = vrot.slane %v454, 4
        %v460 = vshrl.u32 %v241, 16
        %v462 = vrot.slane %v460, 7
        %v463 = vshll.u32 %v241, 16
        %v465 = vor.u32 %v462, %v463
        %v466 = vsel %vm314, %v458, %v465
        %v467 = vrot.slane %v462, 4
        %v469 = vshrl.u32 %v242, 16
        %v471 = vrot.slane %v469, 7
        %v472 = vshll.u32 %v242, 16
        %v474 = vor.u32 %v471, %v472
        %v475 = vrot.slane %v471, 4
        %v477 = vshrl.u32 %v243, 16
        %v479 = vrot.slane %v477, 7
        %v480 = vshll.u32 %v243, 16
        %v482 = vor.u32 %v479, %v480
        %v483 = vsel %vm314, %v475, %v482
        %v484 = vrot.slane %v479, 4
        %v486 = vshrl.u32 %v244, 16
        %v488 = vrot.slane %v486, 7
        %v489 = vshll.u32 %v244, 16
        %v491 = vor.u32 %v488, %v489
        %v492 = vrot.slane %v488, 4
        %v494 = vshrl.u32 %v245, 16
        %v496 = vrot.slane %v494, 7
        %v497 = vshll.u32 %v245, 16
        %v499 = vor.u32 %v496, %v497
        %v500 = vsel %vm314, %v492, %v499
        %v501 = vrot.slane %v496, 4
        %v503 = vshrl.u32 %v246, 16
        %v505 = vrot.slane %v503, 7
        %v506 = vshll.u32 %v246, 16
        %v508 = vor.u32 %v505, %v506
        %v509 = vrot.slane %v505, 4
        %v511 = vshrl.u32 %v247, 16
        %v513 = vrot.slane %v511, 7
        %v514 = vshll.u32 %v247, 16
        %v516 = vor.u32 %v513, %v514
        %v517 = vsel %vm314, %v509, %v516
        %v518 = vrot.slane %v513, 4
        %v520 = vshrl.u32 %v248, 16
        %v522 = vrot.slane %v520, 7
        %v523 = vshll.u32 %v248, 16
        %v525 = vor.u32 %v522, %v523
        %v526 = vrot.slane %v522, 4
        %v528 = vshrl.u32 %v249, 16
        %v530 = vrot.slane %v528, 7
        %v531 = vshll.u32 %v249, 16
        %v533 = vor.u32 %v530, %v531
        %v534 = vsel %vm314, %v526, %v533
        %v535 = vrot.slane %v530, 4
        %v537 = vshrl.u32 %v250, 16
        %v539 = vrot.slane %v537, 7
        %v540 = vshll.u32 %v250, 16
        %v542 = vor.u32 %v539, %v540
        %v543 = vrot.slane %v539, 4
        %v545 = vshrl.u32 %v251, 16
        %v547 = vrot.slane %v545, 7
        %v548 = vshll.u32 %v251, 16
        %v550 = vor.u32 %v547, %v548
        %v551 = vsel %vm314, %v543, %v550
        %v552 = vrot.slane %v547, 4
        %v554 = vshrl.u32 %v252, 16
        %v556 = vrot.slane %v554, 7
        %v557 = vshll.u32 %v252, 16
        %v559 = vor.u32 %v556, %v557
        %v560 = vrot.slane %v556, 4
        %v562 = vshrl.u32 %v253, 16
        %v564 = vrot.slane %v562, 7
        %v565 = vshll.u32 %v253, 16
        %v567 = vor.u32 %v564, %v565
        %v568 = vsel %vm314, %v560, %v567
        %v569 = vrot.slane %v564, 4
        %v571 = vshrl.u32 %v254, 16
        %v573 = vrot.slane %v571, 7
        %v574 = vshll.u32 %v254, 16
        %v576 = vor.u32 %v573, %v574
        %v577 = vrot.slane %v573, 4
        %v579 = vshrl.u32 %v255, 16
        %v581 = vrot.slane %v579, 7
        %v582 = vshll.u32 %v255, 16
        %v584 = vor.u32 %v581, %v582
        %v585 = vsel %vm314, %v577, %v584
        %v586 = vrot.slane %v581, 4
        %s635 = scalar_lea.vmem [#allocation2], 12
        %vm636 = vcmask 60416
        %vm637 = vsmask.f32 7938
        %vm638 = vmand %vm636, %vm637
        %v639 = vld [vmem:[%s635] sm:$0xf]
        %v640 = vsel %vm638, %v321, %v639
        %641 = vst [vmem:[%s635] sm:$0xf] %v640
        %642 = vst.msk [vmem:[%s635 + $0x4] sm:$0xf] %vm256, %v330
        %vm643 = vcmask 57344
        %vm644 = vmand %vm643, %vm312
        %v645 = vld [vmem:[%s635 + $0x8] sm:$0x1]
        %v646 = vsel %vm644, %v331, %v645
        %647 = vst [vmem:[%s635 + $0x8] sm:$0x1] %v646
        %v648 = vld [vmem:[%s635 + $0xc] sm:$0xf]
        %v649 = vsel %vm638, %v338, %v648
        %650 = vst [vmem:[%s635 + $0xc] sm:$0xf] %v649
        %651 = vst.msk [vmem:[%s635 + $0x10] sm:$0xf] %vm256, %v347
        %v652 = vld [vmem:[%s635 + $0x14] sm:$0x1]
        %v653 = vsel %vm644, %v348, %v652
        %654 = vst [vmem:[%s635 + $0x14] sm:$0x1] %v653
        %v655 = vld [vmem:[%s635 + $0x18] sm:$0xf]
        %v656 = vsel %vm638, %v355, %v655
        %657 = vst [vmem:[%s635 + $0x18] sm:$0xf] %v656
        %658 = vst.msk [vmem:[%s635 + $0x1c] sm:$0xf] %vm256, %v364
        %v659 = vld [vmem:[%s635 + $0x20] sm:$0x1]
        %v660 = vsel %vm644, %v365, %v659
        %661 = vst [vmem:[%s635 + $0x20] sm:$0x1] %v660
        %v662 = vld [vmem:[%s635 + $0x24] sm:$0xf]
        %v663 = vsel %vm638, %v372, %v662
        %664 = vst [vmem:[%s635 + $0x24] sm:$0xf] %v663
        %665 = vst.msk [vmem:[%s635 + $0x28] sm:$0xf] %vm256, %v381
        %v666 = vld [vmem:[%s635 + $0x2c] sm:$0x1]
        %v667 = vsel %vm644, %v382, %v666
        %668 = vst [vmem:[%s635 + $0x2c] sm:$0x1] %v667
        %v669 = vld [vmem:[%s635 + $0x30] sm:$0xf]
        %v670 = vsel %vm638, %v389, %v669
        %671 = vst [vmem:[%s635 + $0x30] sm:$0xf] %v670
        %672 = vst.msk [vmem:[%s635 + $0x34] sm:$0xf] %vm256, %v398
        %v673 = vld [vmem:[%s635 + $0x38] sm:$0x1]
        %v674 = vsel %vm644, %v399, %v673
        %675 = vst [vmem:[%s635 + $0x38] sm:$0x1] %v674
        %v676 = vld [vmem:[%s635 + $0x3c] sm:$0xf]
        %v677 = vsel %vm638, %v406, %v676
        %678 = vst [vmem:[%s635 + $0x3c] sm:$0xf] %v677
        %679 = vst.msk [vmem:[%s635 + $0x40] sm:$0xf] %vm256, %v415
        %v680 = vld [vmem:[%s635 + $0x44] sm:$0x1]
        %v681 = vsel %vm644, %v416, %v680
        %682 = vst [vmem:[%s635 + $0x44] sm:$0x1] %v681
        %v683 = vld [vmem:[%s635 + $0x48] sm:$0xf]
        %v684 = vsel %vm638, %v423, %v683
        %685 = vst [vmem:[%s635 + $0x48] sm:$0xf] %v684
        %686 = vst.msk [vmem:[%s635 + $0x4c] sm:$0xf] %vm256, %v432
        %v687 = vld [vmem:[%s635 + $0x50] sm:$0x1]
        %v688 = vsel %vm644, %v433, %v687
        %689 = vst [vmem:[%s635 + $0x50] sm:$0x1] %v688
        %v690 = vld [vmem:[%s635 + $0x54] sm:$0xf]
        %v691 = vsel %vm638, %v440, %v690
        %692 = vst [vmem:[%s635 + $0x54] sm:$0xf] %v691
        %693 = vst.msk [vmem:[%s635 + $0x58] sm:$0xf] %vm256, %v449
        %v694 = vld [vmem:[%s635 + $0x5c] sm:$0x1]
        %v695 = vsel %vm644, %v450, %v694
        %696 = vst [vmem:[%s635 + $0x5c] sm:$0x1] %v695
        %v697 = vld [vmem:[%s635 + $0x60] sm:$0xf]
        %v698 = vsel %vm638, %v457, %v697
        %699 = vst [vmem:[%s635 + $0x60] sm:$0xf] %v698
        %700 = vst.msk [vmem:[%s635 + $0x64] sm:$0xf] %vm256, %v466
        %v701 = vld [vmem:[%s635 + $0x68] sm:$0x1]
        %v702 = vsel %vm644, %v467, %v701
        %703 = vst [vmem:[%s635 + $0x68] sm:$0x1] %v702
        %v704 = vld [vmem:[%s635 + $0x6c] sm:$0xf]
        %v705 = vsel %vm638, %v474, %v704
        %706 = vst [vmem:[%s635 + $0x6c] sm:$0xf] %v705
        %707 = vst.msk [vmem:[%s635 + $0x70] sm:$0xf] %vm256, %v483
        %v708 = vld [vmem:[%s635 + $0x74] sm:$0x1]
        %v709 = vsel %vm644, %v484, %v708
        %710 = vst [vmem:[%s635 + $0x74] sm:$0x1] %v709
        %v711 = vld [vmem:[%s635 + $0x78] sm:$0xf]
        %v712 = vsel %vm638, %v491, %v711
        %713 = vst [vmem:[%s635 + $0x78] sm:$0xf] %v712
        %714 = vst.msk [vmem:[%s635 + $0x7c] sm:$0xf] %vm256, %v500
        %v715 = vld [vmem:[%s635 + $0x80] sm:$0x1]
        %v716 = vsel %vm644, %v501, %v715
        %717 = vst [vmem:[%s635 + $0x80] sm:$0x1] %v716
        %v718 = vld [vmem:[%s635 + $0x84] sm:$0xf]
        %v719 = vsel %vm638, %v508, %v718
        %720 = vst [vmem:[%s635 + $0x84] sm:$0xf] %v719
        %721 = vst.msk [vmem:[%s635 + $0x88] sm:$0xf] %vm256, %v517
        %v722 = vld [vmem:[%s635 + $0x8c] sm:$0x1]
        %v723 = vsel %vm644, %v518, %v722
        %724 = vst [vmem:[%s635 + $0x8c] sm:$0x1] %v723
        %v725 = vld [vmem:[%s635 + $0x90] sm:$0xf]
        %v726 = vsel %vm638, %v525, %v725
        %727 = vst [vmem:[%s635 + $0x90] sm:$0xf] %v726
        %728 = vst.msk [vmem:[%s635 + $0x94] sm:$0xf] %vm256, %v534
        %v729 = vld [vmem:[%s635 + $0x98] sm:$0x1]
        %v730 = vsel %vm644, %v535, %v729
        %731 = vst [vmem:[%s635 + $0x98] sm:$0x1] %v730
        %v732 = vld [vmem:[%s635 + $0x9c] sm:$0xf]
        %v733 = vsel %vm638, %v542, %v732
        %734 = vst [vmem:[%s635 + $0x9c] sm:$0xf] %v733
        %735 = vst.msk [vmem:[%s635 + $0xa0] sm:$0xf] %vm256, %v551
        %v736 = vld [vmem:[%s635 + $0xa4] sm:$0x1]
        %v737 = vsel %vm644, %v552, %v736
        %738 = vst [vmem:[%s635 + $0xa4] sm:$0x1] %v737
        %v739 = vld [vmem:[%s635 + $0xa8] sm:$0xf]
        %v740 = vsel %vm638, %v559, %v739
        %741 = vst [vmem:[%s635 + $0xa8] sm:$0xf] %v740
        %742 = vst.msk [vmem:[%s635 + $0xac] sm:$0xf] %vm256, %v568
        %v743 = vld [vmem:[%s635 + $0xb0] sm:$0x1]
        %v744 = vsel %vm644, %v569, %v743
        %745 = vst [vmem:[%s635 + $0xb0] sm:$0x1] %v744
        %v746 = vld [vmem:[%s635 + $0xb4] sm:$0xf]
        %v747 = vsel %vm638, %v576, %v746
        %748 = vst [vmem:[%s635 + $0xb4] sm:$0xf] %v747
        %749 = vst.msk [vmem:[%s635 + $0xb8] sm:$0xf] %vm256, %v585
        %v750 = vld [vmem:[%s635 + $0xbc] sm:$0x1]
        %v751 = vsel %vm644, %v586, %v750
        %752 = vst [vmem:[%s635 + $0xbc] sm:$0x1] %v751
        %v753 = vld [vmem:[%s1] sm:$0xf]
        %v754 = vld [vmem:[%s1 + $0x4] sm:$0xf]
        %v755 = vld [vmem:[%s1 + $0x8] sm:$0xf]
        %v756 = vld [vmem:[%s1 + $0xc] sm:$0xf]
        %v757 = vld [vmem:[%s1 + $0x10] sm:$0xf]
        %v758 = vld [vmem:[%s1 + $0x14] sm:$0xf]
        %v759 = vld [vmem:[%s1 + $0x18] sm:$0xf]
        %v760 = vld [vmem:[%s1 + $0x1c] sm:$0xf]
        %v761 = vld [vmem:[%s1 + $0x20] sm:$0xf]
        %v762 = vld [vmem:[#allocation2] sm:$0xf]
        %v763 = vld [vmem:[#allocation2 + $0x4] sm:$0xf]
        %v764 = vld [vmem:[#allocation2 + $0xc] sm:$0xf]
        %v765 = vld [vmem:[#allocation2 + $0x10] sm:$0xf]
        %v766 = vld [vmem:[#allocation2 + $0x18] sm:$0xf]
        %v767 = vld [vmem:[#allocation2 + $0x1c] sm:$0xf]
        %v768 = vld [vmem:[#allocation2 + $0x24] sm:$0xf]
        %v769 = vld [vmem:[#allocation2 + $0x28] sm:$0xf]
        %v770 = vld [vmem:[#allocation2 + $0x30] sm:$0xf]
        %v771 = vld [vmem:[#allocation2 + $0x34] sm:$0xf]
        %v772 = vld [vmem:[#allocation2 + $0x3c] sm:$0xf]
        %v773 = vld [vmem:[#allocation2 + $0x40] sm:$0xf]
        %v774 = vld [vmem:[#allocation2 + $0x48] sm:$0xf]
        %v775 = vld [vmem:[#allocation2 + $0x4c] sm:$0xf]
        %v776 = vld [vmem:[#allocation2 + $0x54] sm:$0xf]
        %v777 = vld [vmem:[#allocation2 + $0x58] sm:$0xf]
        %v778 = vld [vmem:[#allocation2 + $0x60] sm:$0xf]
        %v779 = vld [vmem:[#allocation2 + $0x64] sm:$0xf]
        %v780 = vld [vmem:[#allocation2 + $0x6c] sm:$0xf]
        %v781 = vld [vmem:[#allocation2 + $0x70] sm:$0xf]
        %v782 = vld [vmem:[#allocation2 + $0x78] sm:$0xf]
        %v783 = vld [vmem:[#allocation2 + $0x7c] sm:$0xf]
        %v784 = vld [vmem:[#allocation2 + $0x84] sm:$0xf]
        %v785 = vld [vmem:[#allocation2 + $0x88] sm:$0xf]
        %v786 = vld [vmem:[#allocation2 + $0x90] sm:$0xf]
        %v787 = vld [vmem:[#allocation2 + $0x94] sm:$0xf]
        %v788 = vld [vmem:[#allocation2 + $0x9c] sm:$0xf]
        %v789 = vld [vmem:[#allocation2 + $0xa0] sm:$0xf]
        %v790 = vld [vmem:[#allocation2 + $0xa8] sm:$0xf]
        %v791 = vld [vmem:[#allocation2 + $0xac] sm:$0xf]
        %v792 = vld [vmem:[#allocation2 + $0xb4] sm:$0xf]
        %v793 = vld [vmem:[#allocation2 + $0xb8] sm:$0xf]
        %v794 = vld [vmem:[#allocation2 + $0x8] sm:$0x1]
        %v795 = vld [vmem:[#allocation2 + $0x14] sm:$0x1]
        %v796 = vld [vmem:[#allocation2 + $0x20] sm:$0x1]
        %v797 = vld [vmem:[#allocation2 + $0x2c] sm:$0x1]
        %v798 = vld [vmem:[#allocation2 + $0x38] sm:$0x1]
        %v799 = vld [vmem:[#allocation2 + $0x44] sm:$0x1]
        %v800 = vld [vmem:[#allocation2 + $0x50] sm:$0x1]
        %v801 = vld [vmem:[#allocation2 + $0x5c] sm:$0x1]
        %v802 = vld [vmem:[#allocation2 + $0x68] sm:$0x1]
        %v803 = vld [vmem:[#allocation2 + $0x74] sm:$0x1]
        %v804 = vld [vmem:[#allocation2 + $0x80] sm:$0x1]
        %v805 = vld [vmem:[#allocation2 + $0x8c] sm:$0x1]
        %v806 = vld [vmem:[#allocation2 + $0x98] sm:$0x1]
        %v807 = vld [vmem:[#allocation2 + $0xa4] sm:$0x1]
        %v808 = vld [vmem:[#allocation2 + $0xb0] sm:$0x1]
        %v809 = vld [vmem:[#allocation2 + $0xbc] sm:$0x1]
        %vm810 = vsmask.f32 3328
        %vm811 = vsmask.f32 7440
        %vm812 = vmor %vm810, %vm811
        %v814 = vshrl.u32 %v762, 16
        %v816 = vrot.slane %v814, 4
        %v817 = vshll.u32 %v762, 16
        %v819 = vrot.slane %v817, 5
        %v820 = vor.u32 %v816, %v819
        %v821 = vrot.slane %v820, 4
        %v823 = vshll.u32 %v763, 16
        %v825 = vrot.slane %v823, 5
        %v826 = vsel %vm812, %v821, %v825
        %v827 = vshrl.u32 %v763, 16
        %v829 = vrot.slane %v827, 4
        %v830 = vor.u32 %v829, %v825
        %v831 = vrot.slane %v830, 4
        %v833 = vshll.u32 %v794, 16
        %v835 = vrot.slane %v833, 5
        %v836 = vsel %vm812, %v831, %v835
        %v838 = vshrl.u32 %v764, 16
        %v840 = vrot.slane %v838, 4
        %v841 = vshll.u32 %v764, 16
        %v843 = vrot.slane %v841, 5
        %v844 = vor.u32 %v840, %v843
        %v845 = vrot.slane %v844, 4
        %v847 = vshll.u32 %v765, 16
        %v849 = vrot.slane %v847, 5
        %v850 = vsel %vm812, %v845, %v849
        %v851 = vshrl.u32 %v765, 16
        %v853 = vrot.slane %v851, 4
        %v854 = vor.u32 %v853, %v849
        %v855 = vrot.slane %v854, 4
        %v857 = vshll.u32 %v795, 16
        %v859 = vrot.slane %v857, 5
        %v860 = vsel %vm812, %v855, %v859
        %v862 = vshrl.u32 %v766, 16
        %v864 = vrot.slane %v862, 4
        %v865 = vshll.u32 %v766, 16
        %v867 = vrot.slane %v865, 5
        %v868 = vor.u32 %v864, %v867
        %v869 = vrot.slane %v868, 4
        %v871 = vshll.u32 %v767, 16
        %v873 = vrot.slane %v871, 5
        %v874 = vsel %vm812, %v869, %v873
        %v875 = vshrl.u32 %v767, 16
        %v877 = vrot.slane %v875, 4
        %v878 = vor.u32 %v877, %v873
        %v879 = vrot.slane %v878, 4
        %v881 = vshll.u32 %v796, 16
        %v883 = vrot.slane %v881, 5
        %v884 = vsel %vm812, %v879, %v883
        %v886 = vshrl.u32 %v768, 16
        %v888 = vrot.slane %v886, 4
        %v889 = vshll.u32 %v768, 16
        %v891 = vrot.slane %v889, 5
        %v892 = vor.u32 %v888, %v891
        %v893 = vrot.slane %v892, 4
        %v895 = vshll.u32 %v769, 16
        %v897 = vrot.slane %v895, 5
        %v898 = vsel %vm812, %v893, %v897
        %v899 = vshrl.u32 %v769, 16
        %v901 = vrot.slane %v899, 4
        %v902 = vor.u32 %v901, %v897
        %v903 = vrot.slane %v902, 4
        %v905 = vshll.u32 %v797, 16
        %v907 = vrot.slane %v905, 5
        %v908 = vsel %vm812, %v903, %v907
        %v910 = vshrl.u32 %v770, 16
        %v912 = vrot.slane %v910, 4
        %v913 = vshll.u32 %v770, 16
        %v915 = vrot.slane %v913, 5
        %v916 = vor.u32 %v912, %v915
        %v917 = vrot.slane %v916, 4
        %v919 = vshll.u32 %v771, 16
        %v921 = vrot.slane %v919, 5
        %v922 = vsel %vm812, %v917, %v921
        %v923 = vshrl.u32 %v771, 16
        %v925 = vrot.slane %v923, 4
        %v926 = vor.u32 %v925, %v921
        %v927 = vrot.slane %v926, 4
        %v929 = vshll.u32 %v798, 16
        %v931 = vrot.slane %v929, 5
        %v932 = vsel %vm812, %v927, %v931
        %v934 = vshrl.u32 %v772, 16
        %v936 = vrot.slane %v934, 4
        %v937 = vshll.u32 %v772, 16
        %v939 = vrot.slane %v937, 5
        %v940 = vor.u32 %v936, %v939
        %v941 = vrot.slane %v940, 4
        %v943 = vshll.u32 %v773, 16
        %v945 = vrot.slane %v943, 5
        %v946 = vsel %vm812, %v941, %v945
        %v947 = vshrl.u32 %v773, 16
        %v949 = vrot.slane %v947, 4
        %v950 = vor.u32 %v949, %v945
        %v951 = vrot.slane %v950, 4
        %v953 = vshll.u32 %v799, 16
        %v955 = vrot.slane %v953, 5
        %v956 = vsel %vm812, %v951, %v955
        %v958 = vshrl.u32 %v774, 16
        %v960 = vrot.slane %v958, 4
        %v961 = vshll.u32 %v774, 16
        %v963 = vrot.slane %v961, 5
        %v964 = vor.u32 %v960, %v963
        %v965 = vrot.slane %v964, 4
        %v967 = vshll.u32 %v775, 16
        %v969 = vrot.slane %v967, 5
        %v970 = vsel %vm812, %v965, %v969
        %v971 = vshrl.u32 %v775, 16
        %v973 = vrot.slane %v971, 4
        %v974 = vor.u32 %v973, %v969
        %v975 = vrot.slane %v974, 4
        %v977 = vshll.u32 %v800, 16
        %v979 = vrot.slane %v977, 5
        %v980 = vsel %vm812, %v975, %v979
        %v982 = vshrl.u32 %v776, 16
        %v984 = vrot.slane %v982, 4
        %v985 = vshll.u32 %v776, 16
        %v987 = vrot.slane %v985, 5
        %v988 = vor.u32 %v984, %v987
        %v989 = vrot.slane %v988, 4
        %v991 = vshll.u32 %v777, 16
        %v993 = vrot.slane %v991, 5
        %v994 = vsel %vm812, %v989, %v993
        %v995 = vshrl.u32 %v777, 16
        %v997 = vrot.slane %v995, 4
        %v998 = vor.u32 %v997, %v993
        %v999 = vrot.slane %v998, 4
        %v1001 = vshll.u32 %v801, 16
        %v1003 = vrot.slane %v1001, 5
        %v1004 = vsel %vm812, %v999, %v1003
        %v1006 = vshrl.u32 %v778, 16
        %v1008 = vrot.slane %v1006, 4
        %v1009 = vshll.u32 %v778, 16
        %v1011 = vrot.slane %v1009, 5
        %v1012 = vor.u32 %v1008, %v1011
        %v1013 = vrot.slane %v1012, 4
        %v1015 = vshll.u32 %v779, 16
        %v1017 = vrot.slane %v1015, 5
        %v1018 = vsel %vm812, %v1013, %v1017
        %v1019 = vshrl.u32 %v779, 16
        %v1021 = vrot.slane %v1019, 4
        %v1022 = vor.u32 %v1021, %v1017
        %v1023 = vrot.slane %v1022, 4
        %v1025 = vshll.u32 %v802, 16
        %v1027 = vrot.slane %v1025, 5
        %v1028 = vsel %vm812, %v1023, %v1027
        %v1030 = vshrl.u32 %v780, 16
        %v1032 = vrot.slane %v1030, 4
        %v1033 = vshll.u32 %v780, 16
        %v1035 = vrot.slane %v1033, 5
        %v1036 = vor.u32 %v1032, %v1035
        %v1037 = vrot.slane %v1036, 4
        %v1039 = vshll.u32 %v781, 16
        %v1041 = vrot.slane %v1039, 5
        %v1042 = vsel %vm812, %v1037, %v1041
        %v1043 = vshrl.u32 %v781, 16
        %v1045 = vrot.slane %v1043, 4
        %v1046 = vor.u32 %v1045, %v1041
        %v1047 = vrot.slane %v1046, 4
        %v1049 = vshll.u32 %v803, 16
        %v1051 = vrot.slane %v1049, 5
        %v1052 = vsel %vm812, %v1047, %v1051
        %v1054 = vshrl.u32 %v782, 16
        %v1056 = vrot.slane %v1054, 4
        %v1057 = vshll.u32 %v782, 16
        %v1059 = vrot.slane %v1057, 5
        %v1060 = vor.u32 %v1056, %v1059
        %v1061 = vrot.slane %v1060, 4
        %v1063 = vshll.u32 %v783, 16
        %v1065 = vrot.slane %v1063, 5
        %v1066 = vsel %vm812, %v1061, %v1065
        %v1067 = vshrl.u32 %v783, 16
        %v1069 = vrot.slane %v1067, 4
        %v1070 = vor.u32 %v1069, %v1065
        %v1071 = vrot.slane %v1070, 4
        %v1073 = vshll.u32 %v804, 16
        %v1075 = vrot.slane %v1073, 5
        %v1076 = vsel %vm812, %v1071, %v1075
        %v1078 = vshrl.u32 %v784, 16
        %v1080 = vrot.slane %v1078, 4
        %v1081 = vshll.u32 %v784, 16
        %v1083 = vrot.slane %v1081, 5
        %v1084 = vor.u32 %v1080, %v1083
        %v1085 = vrot.slane %v1084, 4
        %v1087 = vshll.u32 %v785, 16
        %v1089 = vrot.slane %v1087, 5
        %v1090 = vsel %vm812, %v1085, %v1089
        %v1091 = vshrl.u32 %v785, 16
        %v1093 = vrot.slane %v1091, 4
        %v1094 = vor.u32 %v1093, %v1089
        %v1095 = vrot.slane %v1094, 4
        %v1097 = vshll.u32 %v805, 16
        %v1099 = vrot.slane %v1097, 5
        %v1100 = vsel %vm812, %v1095, %v1099
        %v1102 = vshrl.u32 %v786, 16
        %v1104 = vrot.slane %v1102, 4
        %v1105 = vshll.u32 %v786, 16
        %v1107 = vrot.slane %v1105, 5
        %v1108 = vor.u32 %v1104, %v1107
        %v1109 = vrot.slane %v1108, 4
        %v1111 = vshll.u32 %v787, 16
        %v1113 = vrot.slane %v1111, 5
        %v1114 = vsel %vm812, %v1109, %v1113
        %v1115 = vshrl.u32 %v787, 16
        %v1117 = vrot.slane %v1115, 4
        %v1118 = vor.u32 %v1117, %v1113
        %v1119 = vrot.slane %v1118, 4
        %v1121 = vshll.u32 %v806, 16
        %v1123 = vrot.slane %v1121, 5
        %v1124 = vsel %vm812, %v1119, %v1123
        %v1126 = vshrl.u32 %v788, 16
        %v1128 = vrot.slane %v1126, 4
        %v1129 = vshll.u32 %v788, 16
        %v1131 = vrot.slane %v1129, 5
        %v1132 = vor.u32 %v1128, %v1131
        %v1133 = vrot.slane %v1132, 4
        %v1135 = vshll.u32 %v789, 16
        %v1137 = vrot.slane %v1135, 5
        %v1138 = vsel %vm812, %v1133, %v1137
        %v1139 = vshrl.u32 %v789, 16
        %v1141 = vrot.slane %v1139, 4
        %v1142 = vor.u32 %v1141, %v1137
        %v1143 = vrot.slane %v1142, 4
        %v1145 = vshll.u32 %v807, 16
        %v1147 = vrot.slane %v1145, 5
        %v1148 = vsel %vm812, %v1143, %v1147
        %v1150 = vshrl.u32 %v790, 16
        %v1152 = vrot.slane %v1150, 4
        %v1153 = vshll.u32 %v790, 16
        %v1155 = vrot.slane %v1153, 5
        %v1156 = vor.u32 %v1152, %v1155
        %v1157 = vrot.slane %v1156, 4
        %v1159 = vshll.u32 %v791, 16
        %v1161 = vrot.slane %v1159, 5
        %v1162 = vsel %vm812, %v1157, %v1161
        %v1163 = vshrl.u32 %v791, 16
        %v1165 = vrot.slane %v1163, 4
        %v1166 = vor.u32 %v1165, %v1161
        %v1167 = vrot.slane %v1166, 4
        %v1169 = vshll.u32 %v808, 16
        %v1171 = vrot.slane %v1169, 5
        %v1172 = vsel %vm812, %v1167, %v1171
        %v1174 = vshrl.u32 %v792, 16
        %v1176 = vrot.slane %v1174, 4
        %v1177 = vshll.u32 %v792, 16
        %v1179 = vrot.slane %v1177, 5
        %v1180 = vor.u32 %v1176, %v1179
        %v1181 = vrot.slane %v1180, 4
        %v1183 = vshll.u32 %v793, 16
        %v1185 = vrot.slane %v1183, 5
        %v1186 = vsel %vm812, %v1181, %v1185
        %v1187 = vshrl.u32 %v793, 16
        %v1189 = vrot.slane %v1187, 4
        %v1190 = vor.u32 %v1189, %v1185
        %v1191 = vrot.slane %v1190, 4
        %v1193 = vshll.u32 %v809, 16
        %v1195 = vrot.slane %v1193, 5
        %v1196 = vsel %vm812, %v1191, %v1195
        %v1197 = vunpack.c.l.b16 %v826
        %v1198 = vunpack.c.l.b16 %v836
        %v1199 = vunpack.c.l.b16 %v850
        %v1200 = vunpack.c.l.b16 %v860
        %v1201 = vunpack.c.l.b16 %v874
        %v1202 = vunpack.c.l.b16 %v884
        %v1203 = vunpack.c.l.b16 %v898
        %v1204 = vunpack.c.l.b16 %v908
        %v1205 = vunpack.c.l.b16 %v922
        %v1206 = vunpack.c.l.b16 %v932
        %v1207 = vunpack.c.l.b16 %v946
        %v1208 = vunpack.c.l.b16 %v956
        %v1209 = vunpack.c.l.b16 %v970
        %v1210 = vunpack.c.l.b16 %v980
        %v1211 = vunpack.c.l.b16 %v994
        %v1212 = vunpack.c.l.b16 %v1004
        %v1213 = vunpack.c.l.b16 %v1018
        %v1214 = vunpack.c.l.b16 %v1028
        %v1215 = vunpack.c.l.b16 %v1042
        %v1216 = vunpack.c.l.b16 %v1052
        %v1217 = vunpack.c.l.b16 %v1066
        %v1218 = vunpack.c.l.b16 %v1076
        %v1219 = vunpack.c.l.b16 %v1090
        %v1220 = vunpack.c.l.b16 %v1100
        %v1221 = vunpack.c.l.b16 %v1114
        %v1222 = vunpack.c.l.b16 %v1124
        %v1223 = vunpack.c.l.b16 %v1138
        %v1224 = vunpack.c.l.b16 %v1148
        %v1225 = vunpack.c.l.b16 %v1162
        %v1226 = vunpack.c.l.b16 %v1172
        %v1227 = vunpack.c.l.b16 %v1186
        %v1228 = vunpack.c.l.b16 %v1196
        %v1229 = vpack.c.b16 %v1198, %v1197
        %v1230 = vpack.c.b16 %v1200, %v1199
        %v1231 = vpack.c.b16 %v1202, %v1201
        %v1232 = vpack.c.b16 %v1204, %v1203
        %v1233 = vpack.c.b16 %v1206, %v1205
        %v1234 = vpack.c.b16 %v1208, %v1207
        %v1235 = vpack.c.b16 %v1210, %v1209
        %v1236 = vpack.c.b16 %v1212, %v1211
        %v1237 = vpack.c.b16 %v1214, %v1213
        %v1238 = vpack.c.b16 %v1216, %v1215
        %v1239 = vpack.c.b16 %v1218, %v1217
        %v1240 = vpack.c.b16 %v1220, %v1219
        %v1241 = vpack.c.b16 %v1222, %v1221
        %v1242 = vpack.c.b16 %v1224, %v1223
        %v1243 = vpack.c.b16 %v1226, %v1225
        %v1244 = vpack.c.b16 %v1228, %v1227
        %vm1245 = vcmask 64512
        %v1247 = vsel %vm1245, %v1229, 0
        %v1250 = vsel %vm1245, %v1230, 0
        %v1253 = vsel %vm1245, %v1231, 0
        %v1256 = vsel %vm1245, %v1232, 0
        %v1259 = vsel %vm1245, %v1233, 0
        %v1262 = vsel %vm1245, %v1234, 0
        %v1265 = vsel %vm1245, %v1235, 0
        %v1268 = vsel %vm1245, %v1236, 0
        %v1271 = vsel %vm1245, %v1237, 0
        %v1274 = vsel %vm1245, %v1238, 0
        %v1277 = vsel %vm1245, %v1239, 0
        %v1280 = vsel %vm1245, %v1240, 0
        %v1283 = vsel %vm1245, %v1241, 0
        %v1286 = vsel %vm1245, %v1242, 0
        %v1289 = vsel %vm1245, %v1243, 0
        %v1292 = vsel %vm1245, %v1244, 0
        %vm1294 = vcmask 1043456
        %v1296 = vsel %vm1294, %v754, 0
        %1298 = vmatprep.subr.bf16.mxu0 0
        %1299 = vmatpush1.bf16.msra.mxu0 %v1296
        %1300 = vmatprep.subr.bf16.mxu0 0
        %1301 = vmatpush1.bf16.msra.mxu0 0
        %1302 = vmatprep.subr.bf16.mxu0 0
        %1303 = vmatpush1.bf16.msra.mxu0 0
        %1304 = vmatprep.subr.bf16.mxu0 0
        %1305 = vmatpush1.bf16.msra.mxu0 0
        %1306 = vmatprep.subr.bf16.mxu0 0
        %1307 = vmatpush1.bf16.msra.mxu0 0
        %1308 = vmatprep.subr.bf16.mxu0 0
        %1309 = vmatpush1.bf16.msra.mxu0 0
        %1310 = vmatprep.subr.bf16.mxu0 0
        %1311 = vmatpush1.bf16.msra.mxu0 0
        %1312 = vmatprep.subr.bf16.mxu0 0
        %1313 = vmatpush1.bf16.msra.mxu0 0
        %1314 = vmatprep.subr.bf16.mxu0 0
        %1315 = vmatpush1.bf16.msra.mxu0 0
        %1316 = vmatprep.subr.bf16.mxu0 0
        %1317 = vmatpush1.bf16.msra.mxu0 0
        %1318 = vmatprep.subr.bf16.mxu0 0
        %1319 = vmatpush1.bf16.msra.mxu0 0
        %1320 = vmatprep.subr.bf16.mxu0 0
        %1321 = vmatpush1.bf16.msra.mxu0 0
        %1322 = vmatprep.subr.bf16.mxu0 0
        %1323 = vmatpush1.bf16.msra.mxu0 0
        %1324 = vmatprep.subr.bf16.mxu0 0
        %1325 = vmatpush1.bf16.msra.mxu0 0
        %1326 = vmatprep.subr.bf16.mxu0 0
        %1327 = vmatpush1.bf16.msra.mxu0 0
        %1328 = vmatprep.subr.bf16.mxu0 0
        %1329 = vmatpush1.bf16.msra.mxu0 0
        %1330 = vmatprep.mubr.bf16.mxu0 0
        %1331 = vmatmul.mubr.bf16.gmra.mrb[0].mxu0 %v1247
        %v1332 = vpop.f32.mrb[0].mxu0
        %v1333 = vadd.f32 0.0, %v1332
        %v1334 = vpop.f32.mrb[0].mxu0
        %v1335 = vpop.f32.mrb[0].mxu0
        %v1336 = vadd.f32 0.0, %v1335
        %v1337 = vpop.f32.mrb[0].mxu0
        %1338 = vmatprep.mubr.bf16.mxu0 0
        %1339 = vmatmul.mubr.bf16.gmra.mrb[0].mxu0 %v1250
        %v1340 = vpop.f32.mrb[0].mxu0
        %v1341 = vadd.f32 0.0, %v1340
        %v1342 = vpop.f32.mrb[0].mxu0
        %v1343 = vpop.f32.mrb[0].mxu0
        %v1344 = vadd.f32 0.0, %v1343
        %v1345 = vpop.f32.mrb[0].mxu0
        %1346 = vmatprep.mubr.bf16.mxu0 0
        %1347 = vmatmul.mubr.bf16.gmra.mrb[0].mxu0 %v1253
        %v1348 = vpop.f32.mrb[0].mxu0
        %v1349 = vadd.f32 0.0, %v1348
        %v1350 = vpop.f32.mrb[0].mxu0
        %v1351 = vpop.f32.mrb[0].mxu0
        %v1352 = vadd.f32 0.0, %v1351
        %v1353 = vpop.f32.mrb[0].mxu0
        %1354 = vmatprep.mubr.bf16.mxu0 0
        %1355 = vmatmul.mubr.bf16.gmra.mrb[0].mxu0 %v1256
        %v1356 = vpop.f32.mrb[0].mxu0
        %v1357 = vadd.f32 0.0, %v1356
        %v1358 = vpop.f32.mrb[0].mxu0
        %v1359 = vpop.f32.mrb[0].mxu0
        %v1360 = vadd.f32 0.0, %v1359
        %v1361 = vpop.f32.mrb[0].mxu0
        %1362 = vmatprep.mubr.bf16.mxu0 0
        %1363 = vmatmul.mubr.bf16.gmra.mrb[0].mxu0 %v1259
        %v1364 = vpop.f32.mrb[0].mxu0
        %v1365 = vadd.f32 0.0, %v1364
        %v1366 = vpop.f32.mrb[0].mxu0
        %v1367 = vpop.f32.mrb[0].mxu0
        %v1368 = vadd.f32 0.0, %v1367
        %v1369 = vpop.f32.mrb[0].mxu0
        %1370 = vmatprep.mubr.bf16.mxu0 0
        %1371 = vmatmul.mubr.bf16.gmra.mrb[0].mxu0 %v1262
        %v1372 = vpop.f32.mrb[0].mxu0
        %v1373 = vadd.f32 0.0, %v1372
        %v1374 = vpop.f32.mrb[0].mxu0
        %v1375 = vpop.f32.mrb[0].mxu0
        %v1376 = vadd.f32 0.0, %v1375
        %v1377 = vpop.f32.mrb[0].mxu0
        %1378 = vmatprep.mubr.bf16.mxu0 0
        %1379 = vmatmul.mubr.bf16.gmra.mrb[0].mxu0 %v1265
        %v1380 = vpop.f32.mrb[0].mxu0
        %v1381 = vadd.f32 0.0, %v1380
        %v1382 = vpop.f32.mrb[0].mxu0
        %v1383 = vpop.f32.mrb[0].mxu0
        %v1384 = vadd.f32 0.0, %v1383
        %v1385 = vpop.f32.mrb[0].mxu0
        %1386 = vmatprep.mubr.bf16.mxu0 0
        %1387 = vmatmul.mubr.bf16.gmra.mrb[0].mxu0 %v1268
        %v1388 = vpop.f32.mrb[0].mxu0
        %v1389 = vadd.f32 0.0, %v1388
        %v1390 = vpop.f32.mrb[0].mxu0
        %v1391 = vpop.f32.mrb[0].mxu0
        %v1392 = vadd.f32 0.0, %v1391
        %v1393 = vpop.f32.mrb[0].mxu0
        %1394 = vmatprep.mubr.bf16.mxu0 0
        %1395 = vmatmul.mubr.bf16.gmra.mrb[0].mxu0 %v1271
        %v1396 = vpop.f32.mrb[0].mxu0
        %v1397 = vadd.f32 0.0, %v1396
        %v1398 = vpop.f32.mrb[0].mxu0
        %v1399 = vpop.f32.mrb[0].mxu0
        %v1400 = vadd.f32 0.0, %v1399
        %v1401 = vpop.f32.mrb[0].mxu0
        %1402 = vmatprep.mubr.bf16.mxu0 0
        %1403 = vmatmul.mubr.bf16.gmra.mrb[0].mxu0 %v1274
        %v1404 = vpop.f32.mrb[0].mxu0
        %v1405 = vadd.f32 0.0, %v1404
        %v1406 = vpop.f32.mrb[0].mxu0
        %v1407 = vpop.f32.mrb[0].mxu0
        %v1408 = vadd.f32 0.0, %v1407
        %v1409 = vpop.f32.mrb[0].mxu0
        %1410 = vmatprep.mubr.bf16.mxu0 0
        %1411 = vmatmul.mubr.bf16.gmra.mrb[0].mxu0 %v1277
        %v1412 = vpop.f32.mrb[0].mxu0
        %v1413 = vadd.f32 0.0, %v1412
        %v1414 = vpop.f32.mrb[0].mxu0
        %v1415 = vpop.f32.mrb[0].mxu0
        %v1416 = vadd.f32 0.0, %v1415
        %v1417 = vpop.f32.mrb[0].mxu0
        %1418 = vmatprep.mubr.bf16.mxu0 0
        %1419 = vmatmul.mubr.bf16.gmra.mrb[0].mxu0 %v1280
        %v1420 = vpop.f32.mrb[0].mxu0
        %v1421 = vadd.f32 0.0, %v1420
        %v1422 = vpop.f32.mrb[0].mxu0
        %v1423 = vpop.f32.mrb[0].mxu0
        %v1424 = vadd.f32 0.0, %v1423
        %v1425 = vpop.f32.mrb[0].mxu0
        %1426 = vmatprep.mubr.bf16.mxu0 0
        %1427 = vmatmul.mubr.bf16.gmra.mrb[0].mxu0 %v1283
        %v1428 = vpop.f32.mrb[0].mxu0
        %v1429 = vadd.f32 0.0, %v1428
        %v1430 = vpop.f32.mrb[0].mxu0
        %v1431 = vpop.f32.mrb[0].mxu0
        %v1432 = vadd.f32 0.0, %v1431
        %v1433 = vpop.f32.mrb[0].mxu0
        %1434 = vmatprep.mubr.bf16.mxu0 0
        %1435 = vmatmul.mubr.bf16.gmra.mrb[0].mxu0 %v1286
        %v1436 = vpop.f32.mrb[0].mxu0
        %v1437 = vadd.f32 0.0, %v1436
        %v1438 = vpop.f32.mrb[0].mxu0
        %v1439 = vpop.f32.mrb[0].mxu0
        %v1440 = vadd.f32 0.0, %v1439
        %v1441 = vpop.f32.mrb[0].mxu0
        %1442 = vmatprep.mubr.bf16.mxu0 0
        %1443 = vmatmul.mubr.bf16.gmra.mrb[0].mxu0 %v1289
        %v1444 = vpop.f32.mrb[0].mxu0
        %v1445 = vadd.f32 0.0, %v1444
        %v1446 = vpop.f32.mrb[0].mxu0
        %v1447 = vpop.f32.mrb[0].mxu0
        %v1448 = vadd.f32 0.0, %v1447
        %v1449 = vpop.f32.mrb[0].mxu0
        %1450 = vmatprep.mubr.bf16.mxu0 0
        %1451 = vmatmul.mubr.bf16.gmra.mrb[0].mxu0 %v1292
        %v1452 = vpop.f32.mrb[0].mxu0
        %v1453 = vadd.f32 0.0, %v1452
        %v1454 = vpop.f32.mrb[0].mxu0
        %v1455 = vpop.f32.mrb[0].mxu0
        %v1456 = vadd.f32 0.0, %v1455
        %v1457 = vpop.f32.mrb[0].mxu0
        %1458 = vdwg.mxu0
        %v1491 = vunpack.c.l.b16 %v762
        %v1492 = vunpack.c.l.b16 %v763
        %v1493 = vunpack.c.l.b16 %v764
        %v1494 = vunpack.c.l.b16 %v765
        %v1495 = vunpack.c.l.b16 %v766
        %v1496 = vunpack.c.l.b16 %v767
        %v1497 = vunpack.c.l.b16 %v768
        %v1498 = vunpack.c.l.b16 %v769
        %v1499 = vunpack.c.l.b16 %v770
        %v1500 = vunpack.c.l.b16 %v771
        %v1501 = vunpack.c.l.b16 %v772
        %v1502 = vunpack.c.l.b16 %v773
        %v1503 = vunpack.c.l.b16 %v774
        %v1504 = vunpack.c.l.b16 %v775
        %v1505 = vunpack.c.l.b16 %v776
        %v1506 = vunpack.c.l.b16 %v777
        %v1507 = vunpack.c.l.b16 %v778
        %v1508 = vunpack.c.l.b16 %v779
        %v1509 = vunpack.c.l.b16 %v780
        %v1510 = vunpack.c.l.b16 %v781
        %v1511 = vunpack.c.l.b16 %v782
        %v1512 = vunpack.c.l.b16 %v783
        %v1513 = vunpack.c.l.b16 %v784
        %v1514 = vunpack.c.l.b16 %v785
        %v1515 = vunpack.c.l.b16 %v786
        %v1516 = vunpack.c.l.b16 %v787
        %v1517 = vunpack.c.l.b16 %v788
        %v1518 = vunpack.c.l.b16 %v789
        %v1519 = vunpack.c.l.b16 %v790
        %v1520 = vunpack.c.l.b16 %v791
        %v1521 = vunpack.c.l.b16 %v792
        %v1522 = vunpack.c.l.b16 %v793
        %v1523 = vpack.c.b16 %v1492, %v1491
        %v1524 = vpack.c.b16 %v1494, %v1493
        %v1525 = vpack.c.b16 %v1496, %v1495
        %v1526 = vpack.c.b16 %v1498, %v1497
        %v1527 = vpack.c.b16 %v1500, %v1499
        %v1528 = vpack.c.b16 %v1502, %v1501
        %v1529 = vpack.c.b16 %v1504, %v1503
        %v1530 = vpack.c.b16 %v1506, %v1505
        %v1531 = vpack.c.b16 %v1508, %v1507
        %v1532 = vpack.c.b16 %v1510, %v1509
        %v1533 = vpack.c.b16 %v1512, %v1511
        %v1534 = vpack.c.b16 %v1514, %v1513
        %v1535 = vpack.c.b16 %v1516, %v1515
        %v1536 = vpack.c.b16 %v1518, %v1517
        %v1537 = vpack.c.b16 %v1520, %v1519
        %v1538 = vpack.c.b16 %v1522, %v1521
        %v1540 = vsel %vm1245, %v1523, 0
        %v1543 = vsel %vm1245, %v1524, 0
        %v1546 = vsel %vm1245, %v1525, 0
        %v1549 = vsel %vm1245, %v1526, 0
        %v1552 = vsel %vm1245, %v1527, 0
        %v1555 = vsel %vm1245, %v1528, 0
        %v1558 = vsel %vm1245, %v1529, 0
        %v1561 = vsel %vm1245, %v1530, 0
        %v1564 = vsel %vm1245, %v1531, 0
        %v1567 = vsel %vm1245, %v1532, 0
        %v1570 = vsel %vm1245, %v1533, 0
        %v1573 = vsel %vm1245, %v1534, 0
        %v1576 = vsel %vm1245, %v1535, 0
        %v1579 = vsel %vm1245, %v1536, 0
        %v1582 = vsel %vm1245, %v1537, 0
        %v1585 = vsel %vm1245, %v1538, 0
        %v1588 = vsel %vm1294, %v753, 0
        %1590 = vmatprep.subr.bf16.mxu0 0
        %1591 = vmatpush1.bf16.msra.mxu0 %v1588
        %1592 = vmatprep.subr.bf16.mxu0 0
        %1593 = vmatpush1.bf16.msra.mxu0 0
        %1594 = vmatprep.subr.bf16.mxu0 0
        %1595 = vmatpush1.bf16.msra.mxu0 0
        %1596 = vmatprep.subr.bf16.mxu0 0
        %1597 = vmatpush1.bf16.msra.mxu0 0
        %1598 = vmatprep.subr.bf16.mxu0 0
        %1599 = vmatpush1.bf16.msra.mxu0 0
        %1600 = vmatprep.subr.bf16.mxu0 0
        %1601 = vmatpush1.bf16.msra.mxu0 0
        %1602 = vmatprep.subr.bf16.mxu0 0
        %1603 = vmatpush1.bf16.msra.mxu0 0
        %1604 = vmatprep.subr.bf16.mxu0 0
        %1605 = vmatpush1.bf16.msra.mxu0 0
        %1606 = vmatprep.subr.bf16.mxu0 0
        %1607 = vmatpush1.bf16.msra.mxu0 0
        %1608 = vmatprep.subr.bf16.mxu0 0
        %1609 = vmatpush1.bf16.msra.mxu0 0
        %1610 = vmatprep.subr.bf16.mxu0 0
        %1611 = vmatpush1.bf16.msra.mxu0 0
        %1612 = vmatprep.subr.bf16.mxu0 0
        %1613 = vmatpush1.bf16.msra.mxu0 0
        %1614 = vmatprep.subr.bf16.mxu0 0
        %1615 = vmatpush1.bf16.msra.mxu0 0
        %1616 = vmatprep.subr.bf16.mxu0 0
        %1617 = vmatpush1.bf16.msra.mxu0 0
        %1618 = vmatprep.subr.bf16.mxu0 0
        %1619 = vmatpush1.bf16.msra.mxu0 0
        %1620 = vmatprep.subr.bf16.mxu0 0
        %1621 = vmatpush1.bf16.msra.mxu0 0
        %1622 = vmatprep.mubr.bf16.mxu0 0
        %1623 = vmatmul.mubr.bf16.gmra.mrb[0].mxu0 %v1540
        %v1624 = vpop.f32.mrb[0].mxu0
        %v1625 = vadd.f32 %v1333, %v1624
        %v1626 = vpop.f32.mrb[0].mxu0
        %v1627 = vpop.f32.mrb[0].mxu0
        %v1628 = vadd.f32 %v1336, %v1627
        %v1629 = vpop.f32.mrb[0].mxu0
        %1630 = vmatprep.mubr.bf16.mxu0 0
        %1631 = vmatmul.mubr.bf16.gmra.mrb[0].mxu0 %v1543
        %v1632 = vpop.f32.mrb[0].mxu0
        %v1633 = vadd.f32 %v1341, %v1632
        %v1634 = vpop.f32.mrb[0].mxu0
        %v1635 = vpop.f32.mrb[0].mxu0
        %v1636 = vadd.f32 %v1344, %v1635
        %v1637 = vpop.f32.mrb[0].mxu0
        %1638 = vmatprep.mubr.bf16.mxu0 0
        %1639 = vmatmul.mubr.bf16.gmra.mrb[0].mxu0 %v1546
        %v1640 = vpop.f32.mrb[0].mxu0
        %v1641 = vadd.f32 %v1349, %v1640
        %v1642 = vpop.f32.mrb[0].mxu0
        %v1643 = vpop.f32.mrb[0].mxu0
        %v1644 = vadd.f32 %v1352, %v1643
        %v1645 = vpop.f32.mrb[0].mxu0
        %1646 = vmatprep.mubr.bf16.mxu0 0
        %1647 = vmatmul.mubr.bf16.gmra.mrb[0].mxu0 %v1549
        %v1648 = vpop.f32.mrb[0].mxu0
        %v1649 = vadd.f32 %v1357, %v1648
        %v1650 = vpop.f32.mrb[0].mxu0
        %v1651 = vpop.f32.mrb[0].mxu0
        %v1652 = vadd.f32 %v1360, %v1651
        %v1653 = vpop.f32.mrb[0].mxu0
        %1654 = vmatprep.mubr.bf16.mxu0 0
        %1655 = vmatmul.mubr.bf16.gmra.mrb[0].mxu0 %v1552
        %v1656 = vpop.f32.mrb[0].mxu0
        %v1657 = vadd.f32 %v1365, %v1656
        %v1658 = vpop.f32.mrb[0].mxu0
        %v1659 = vpop.f32.mrb[0].mxu0
        %v1660 = vadd.f32 %v1368, %v1659
        %v1661 = vpop.f32.mrb[0].mxu0
        %1662 = vmatprep.mubr.bf16.mxu0 0
        %1663 = vmatmul.mubr.bf16.gmra.mrb[0].mxu0 %v1555
        %v1664 = vpop.f32.mrb[0].mxu0
        %v1665 = vadd.f32 %v1373, %v1664
        %v1666 = vpop.f32.mrb[0].mxu0
        %v1667 = vpop.f32.mrb[0].mxu0
        %v1668 = vadd.f32 %v1376, %v1667
        %v1669 = vpop.f32.mrb[0].mxu0
        %1670 = vmatprep.mubr.bf16.mxu0 0
        %1671 = vmatmul.mubr.bf16.gmra.mrb[0].mxu0 %v1558
        %v1672 = vpop.f32.mrb[0].mxu0
        %v1673 = vadd.f32 %v1381, %v1672
        %v1674 = vpop.f32.mrb[0].mxu0
        %v1675 = vpop.f32.mrb[0].mxu0
        %v1676 = vadd.f32 %v1384, %v1675
        %v1677 = vpop.f32.mrb[0].mxu0
        %1678 = vmatprep.mubr.bf16.mxu0 0
        %1679 = vmatmul.mubr.bf16.gmra.mrb[0].mxu0 %v1561
        %v1680 = vpop.f32.mrb[0].mxu0
        %v1681 = vadd.f32 %v1389, %v1680
        %v1682 = vpop.f32.mrb[0].mxu0
        %v1683 = vpop.f32.mrb[0].mxu0
        %v1684 = vadd.f32 %v1392, %v1683
        %v1685 = vpop.f32.mrb[0].mxu0
        %1686 = vmatprep.mubr.bf16.mxu0 0
        %1687 = vmatmul.mubr.bf16.gmra.mrb[0].mxu0 %v1564
        %v1688 = vpop.f32.mrb[0].mxu0
        %v1689 = vadd.f32 %v1397, %v1688
        %v1690 = vpop.f32.mrb[0].mxu0
        %v1691 = vpop.f32.mrb[0].mxu0
        %v1692 = vadd.f32 %v1400, %v1691
        %v1693 = vpop.f32.mrb[0].mxu0
        %1694 = vmatprep.mubr.bf16.mxu0 0
        %1695 = vmatmul.mubr.bf16.gmra.mrb[0].mxu0 %v1567
        %v1696 = vpop.f32.mrb[0].mxu0
        %v1697 = vadd.f32 %v1405, %v1696
        %v1698 = vpop.f32.mrb[0].mxu0
        %v1699 = vpop.f32.mrb[0].mxu0
        %v1700 = vadd.f32 %v1408, %v1699
        %v1701 = vpop.f32.mrb[0].mxu0
        %1702 = vmatprep.mubr.bf16.mxu0 0
        %1703 = vmatmul.mubr.bf16.gmra.mrb[0].mxu0 %v1570
        %v1704 = vpop.f32.mrb[0].mxu0
        %v1705 = vadd.f32 %v1413, %v1704
        %v1706 = vpop.f32.mrb[0].mxu0
        %v1707 = vpop.f32.mrb[0].mxu0
        %v1708 = vadd.f32 %v1416, %v1707
        %v1709 = vpop.f32.mrb[0].mxu0
        %1710 = vmatprep.mubr.bf16.mxu0 0
        %1711 = vmatmul.mubr.bf16.gmra.mrb[0].mxu0 %v1573
        %v1712 = vpop.f32.mrb[0].mxu0
        %v1713 = vadd.f32 %v1421, %v1712
        %v1714 = vpop.f32.mrb[0].mxu0
        %v1715 = vpop.f32.mrb[0].mxu0
        %v1716 = vadd.f32 %v1424, %v1715
        %v1717 = vpop.f32.mrb[0].mxu0
        %1718 = vmatprep.mubr.bf16.mxu0 0
        %1719 = vmatmul.mubr.bf16.gmra.mrb[0].mxu0 %v1576
        %v1720 = vpop.f32.mrb[0].mxu0
        %v1721 = vadd.f32 %v1429, %v1720
        %v1722 = vpop.f32.mrb[0].mxu0
        %v1723 = vpop.f32.mrb[0].mxu0
        %v1724 = vadd.f32 %v1432, %v1723
        %v1725 = vpop.f32.mrb[0].mxu0
        %1726 = vmatprep.mubr.bf16.mxu0 0
        %1727 = vmatmul.mubr.bf16.gmra.mrb[0].mxu0 %v1579
        %v1728 = vpop.f32.mrb[0].mxu0
        %v1729 = vadd.f32 %v1437, %v1728
        %v1730 = vpop.f32.mrb[0].mxu0
        %v1731 = vpop.f32.mrb[0].mxu0
        %v1732 = vadd.f32 %v1440, %v1731
        %v1733 = vpop.f32.mrb[0].mxu0
        %1734 = vmatprep.mubr.bf16.mxu0 0
        %1735 = vmatmul.mubr.bf16.gmra.mrb[0].mxu0 %v1582
        %v1736 = vpop.f32.mrb[0].mxu0
        %v1737 = vadd.f32 %v1445, %v1736
        %v1738 = vpop.f32.mrb[0].mxu0
        %v1739 = vpop.f32.mrb[0].mxu0
        %v1740 = vadd.f32 %v1448, %v1739
        %v1741 = vpop.f32.mrb[0].mxu0
        %1742 = vmatprep.mubr.bf16.mxu0 0
        %1743 = vmatmul.mubr.bf16.gmra.mrb[0].mxu0 %v1585
        %v1744 = vpop.f32.mrb[0].mxu0
        %v1745 = vadd.f32 %v1453, %v1744
        %v1746 = vpop.f32.mrb[0].mxu0
        %v1747 = vpop.f32.mrb[0].mxu0
        %v1748 = vadd.f32 %v1456, %v1747
        %v1749 = vpop.f32.mrb[0].mxu0
        %1750 = vdwg.mxu0
        %v1751 = vld [vmem:[#allocation2] sm:$0xe]
        %v1752 = vld [vmem:[#allocation2 + $0xc] sm:$0xe]
        %v1753 = vld [vmem:[#allocation2 + $0x18] sm:$0xe]
        %v1754 = vld [vmem:[#allocation2 + $0x24] sm:$0xe]
        %v1755 = vld [vmem:[#allocation2 + $0x30] sm:$0xe]
        %v1756 = vld [vmem:[#allocation2 + $0x3c] sm:$0xe]
        %v1757 = vld [vmem:[#allocation2 + $0x48] sm:$0xe]
        %v1758 = vld [vmem:[#allocation2 + $0x54] sm:$0xe]
        %v1759 = vld [vmem:[#allocation2 + $0x60] sm:$0xe]
        %v1760 = vld [vmem:[#allocation2 + $0x6c] sm:$0xe]
        %v1761 = vld [vmem:[#allocation2 + $0x78] sm:$0xe]
        %v1762 = vld [vmem:[#allocation2 + $0x84] sm:$0xe]
        %v1763 = vld [vmem:[#allocation2 + $0x90] sm:$0xe]
        %v1764 = vld [vmem:[#allocation2 + $0x9c] sm:$0xe]
        %v1765 = vld [vmem:[#allocation2 + $0xa8] sm:$0xe]
        %v1766 = vld [vmem:[#allocation2 + $0xb4] sm:$0xe]
        %vm1799 = vcmask 1042432
        %vm1800 = vcmask 1046532
        %vm1801 = vmor %vm1799, %vm1800
        %v1802 = vrot.slane %v1751, 5
        %v1803 = vrot.slane %v1802, 4
        %v1804 = vrot.slane %v763, 5
        %v1805 = vsel %vm1801, %v1803, %v1804
        %v1806 = vrot.slane %v1804, 4
        %v1807 = vrot.slane %v794, 5
        %v1808 = vsel %vm1801, %v1806, %v1807
        %v1809 = vrot.slane %v1752, 5
        %v1810 = vrot.slane %v1809, 4
        %v1811 = vrot.slane %v765, 5
        %v1812 = vsel %vm1801, %v1810, %v1811
        %v1813 = vrot.slane %v1811, 4
        %v1814 = vrot.slane %v795, 5
        %v1815 = vsel %vm1801, %v1813, %v1814
        %v1816 = vrot.slane %v1753, 5
        %v1817 = vrot.slane %v1816, 4
        %v1818 = vrot.slane %v767, 5
        %v1819 = vsel %vm1801, %v1817, %v1818
        %v1820 = vrot.slane %v1818, 4
        %v1821 = vrot.slane %v796, 5
        %v1822 = vsel %vm1801, %v1820, %v1821
        %v1823 = vrot.slane %v1754, 5
        %v1824 = vrot.slane %v1823, 4
        %v1825 = vrot.slane %v769, 5
        %v1826 = vsel %vm1801, %v1824, %v1825
        %v1827 = vrot.slane %v1825, 4
        %v1828 = vrot.slane %v797, 5
        %v1829 = vsel %vm1801, %v1827, %v1828
        %v1830 = vrot.slane %v1755, 5
        %v1831 = vrot.slane %v1830, 4
        %v1832 = vrot.slane %v771, 5
        %v1833 = vsel %vm1801, %v1831, %v1832
        %v1834 = vrot.slane %v1832, 4
        %v1835 = vrot.slane %v798, 5
        %v1836 = vsel %vm1801, %v1834, %v1835
        %v1837 = vrot.slane %v1756, 5
        %v1838 = vrot.slane %v1837, 4
        %v1839 = vrot.slane %v773, 5
        %v1840 = vsel %vm1801, %v1838, %v1839
        %v1841 = vrot.slane %v1839, 4
        %v1842 = vrot.slane %v799, 5
        %v1843 = vsel %vm1801, %v1841, %v1842
        %v1844 = vrot.slane %v1757, 5
        %v1845 = vrot.slane %v1844, 4
        %v1846 = vrot.slane %v775, 5
        %v1847 = vsel %vm1801, %v1845, %v1846
        %v1848 = vrot.slane %v1846, 4
        %v1849 = vrot.slane %v800, 5
        %v1850 = vsel %vm1801, %v1848, %v1849
        %v1851 = vrot.slane %v1758, 5
        %v1852 = vrot.slane %v1851, 4
        %v1853 = vrot.slane %v777, 5
        %v1854 = vsel %vm1801, %v1852, %v1853
        %v1855 = vrot.slane %v1853, 4
        %v1856 = vrot.slane %v801, 5
        %v1857 = vsel %vm1801, %v1855, %v1856
        %v1858 = vrot.slane %v1759, 5
        %v1859 = vrot.slane %v1858, 4
        %v1860 = vrot.slane %v779, 5
        %v1861 = vsel %vm1801, %v1859, %v1860
        %v1862 = vrot.slane %v1860, 4
        %v1863 = vrot.slane %v802, 5
        %v1864 = vsel %vm1801, %v1862, %v1863
        %v1865 = vrot.slane %v1760, 5
        %v1866 = vrot.slane %v1865, 4
        %v1867 = vrot.slane %v781, 5
        %v1868 = vsel %vm1801, %v1866, %v1867
        %v1869 = vrot.slane %v1867, 4
        %v1870 = vrot.slane %v803, 5
        %v1871 = vsel %vm1801, %v1869, %v1870
        %v1872 = vrot.slane %v1761, 5
        %v1873 = vrot.slane %v1872, 4
        %v1874 = vrot.slane %v783, 5
        %v1875 = vsel %vm1801, %v1873, %v1874
        %v1876 = vrot.slane %v1874, 4
        %v1877 = vrot.slane %v804, 5
        %v1878 = vsel %vm1801, %v1876, %v1877
        %v1879 = vrot.slane %v1762, 5
        %v1880 = vrot.slane %v1879, 4
        %v1881 = vrot.slane %v785, 5
        %v1882 = vsel %vm1801, %v1880, %v1881
        %v1883 = vrot.slane %v1881, 4
        %v1884 = vrot.slane %v805, 5
        %v1885 = vsel %vm1801, %v1883, %v1884
        %v1886 = vrot.slane %v1763, 5
        %v1887 = vrot.slane %v1886, 4
        %v1888 = vrot.slane %v787, 5
        %v1889 = vsel %vm1801, %v1887, %v1888
        %v1890 = vrot.slane %v1888, 4
        %v1891 = vrot.slane %v806, 5
        %v1892 = vsel %vm1801, %v1890, %v1891
        %v1893 = vrot.slane %v1764, 5
        %v1894 = vrot.slane %v1893, 4
        %v1895 = vrot.slane %v789, 5
        %v1896 = vsel %vm1801, %v1894, %v1895
        %v1897 = vrot.slane %v1895, 4
        %v1898 = vrot.slane %v807, 5
        %v1899 = vsel %vm1801, %v1897, %v1898
        %v1900 = vrot.slane %v1765, 5
        %v1901 = vrot.slane %v1900, 4
        %v1902 = vrot.slane %v791, 5
        %v1903 = vsel %vm1801, %v1901, %v1902
        %v1904 = vrot.slane %v1902, 4
        %v1905 = vrot.slane %v808, 5
        %v1906 = vsel %vm1801, %v1904, %v1905
        %v1907 = vrot.slane %v1766, 5
        %v1908 = vrot.slane %v1907, 4
        %v1909 = vrot.slane %v793, 5
        %v1910 = vsel %vm1801, %v1908, %v1909
        %v1911 = vrot.slane %v1909, 4
        %v1912 = vrot.slane %v809, 5
        %v1913 = vsel %vm1801, %v1911, %v1912
        %v1914 = vunpack.c.l.b16 %v1805
        %v1915 = vunpack.c.l.b16 %v1808
        %v1916 = vunpack.c.l.b16 %v1812
        %v1917 = vunpack.c.l.b16 %v1815
        %v1918 = vunpack.c.l.b16 %v1819
        %v1919 = vunpack.c.l.b16 %v1822
        %v1920 = vunpack.c.l.b16 %v1826
        %v1921 = vunpack.c.l.b16 %v1829
        %v1922 = vunpack.c.l.b16 %v1833
        %v1923 = vunpack.c.l.b16 %v1836
        %v1924 = vunpack.c.l.b16 %v1840
        %v1925 = vunpack.c.l.b16 %v1843
        %v1926 = vunpack.c.l.b16 %v1847
        %v1927 = vunpack.c.l.b16 %v1850
        %v1928 = vunpack.c.l.b16 %v1854
        %v1929 = vunpack.c.l.b16 %v1857
        %v1930 = vunpack.c.l.b16 %v1861
        %v1931 = vunpack.c.l.b16 %v1864
        %v1932 = vunpack.c.l.b16 %v1868
        %v1933 = vunpack.c.l.b16 %v1871
        %v1934 = vunpack.c.l.b16 %v1875
        %v1935 = vunpack.c.l.b16 %v1878
        %v1936 = vunpack.c.l.b16 %v1882
        %v1937 = vunpack.c.l.b16 %v1885
        %v1938 = vunpack.c.l.b16 %v1889
        %v1939 = vunpack.c.l.b16 %v1892
        %v1940 = vunpack.c.l.b16 %v1896
        %v1941 = vunpack.c.l.b16 %v1899
        %v1942 = vunpack.c.l.b16 %v1903
        %v1943 = vunpack.c.l.b16 %v1906
        %v1944 = vunpack.c.l.b16 %v1910
        %v1945 = vunpack.c.l.b16 %v1913
        %v1946 = vpack.c.b16 %v1915, %v1914
        %v1947 = vpack.c.b16 %v1917, %v1916
        %v1948 = vpack.c.b16 %v1919, %v1918
        %v1949 = vpack.c.b16 %v1921, %v1920
        %v1950 = vpack.c.b16 %v1923, %v1922
        %v1951 = vpack.c.b16 %v1925, %v1924
        %v1952 = vpack.c.b16 %v1927, %v1926
        %v1953 = vpack.c.b16 %v1929, %v1928
        %v1954 = vpack.c.b16 %v1931, %v1930
        %v1955 = vpack.c.b16 %v1933, %v1932
        %v1956 = vpack.c.b16 %v1935, %v1934
        %v1957 = vpack.c.b16 %v1937, %v1936
        %v1958 = vpack.c.b16 %v1939, %v1938
        %v1959 = vpack.c.b16 %v1941, %v1940
        %v1960 = vpack.c.b16 %v1943, %v1942
        %v1961 = vpack.c.b16 %v1945, %v1944
        %v1963 = vsel %vm1245, %v1946, 0
        %v1966 = vsel %vm1245, %v1947, 0
        %v1969 = vsel %vm1245, %v1948, 0
        %v1972 = vsel %vm1245, %v1949, 0
        %v1975 = vsel %vm1245, %v1950, 0
        %v1978 = vsel %vm1245, %v1951, 0
        %v1981 = vsel %vm1245, %v1952, 0
        %v1984 = vsel %vm1245, %v1953, 0
        %v1987 = vsel %vm1245, %v1954, 0
        %v1990 = vsel %vm1245, %v1955, 0
        %v1993 = vsel %vm1245, %v1956, 0
        %v1996 = vsel %vm1245, %v1957, 0
        %v1999 = vsel %vm1245, %v1958, 0
        %v2002 = vsel %vm1245, %v1959, 0
        %v2005 = vsel %vm1245, %v1960, 0
        %v2008 = vsel %vm1245, %v1961, 0
        %v2011 = vsel %vm1294, %v755, 0
        %2013 = vmatprep.subr.bf16.mxu0 0
        %2014 = vmatpush1.bf16.msra.mxu0 %v2011
        %2015 = vmatprep.subr.bf16.mxu0 0
        %2016 = vmatpush1.bf16.msra.mxu0 0
        %2017 = vmatprep.subr.bf16.mxu0 0
        %2018 = vmatpush1.bf16.msra.mxu0 0
        %2019 = vmatprep.subr.bf16.mxu0 0
        %2020 = vmatpush1.bf16.msra.mxu0 0
        %2021 = vmatprep.subr.bf16.mxu0 0
        %2022 = vmatpush1.bf16.msra.mxu0 0
        %2023 = vmatprep.subr.bf16.mxu0 0
        %2024 = vmatpush1.bf16.msra.mxu0 0
        %2025 = vmatprep.subr.bf16.mxu0 0
        %2026 = vmatpush1.bf16.msra.mxu0 0
        %2027 = vmatprep.subr.bf16.mxu0 0
        %2028 = vmatpush1.bf16.msra.mxu0 0
        %2029 = vmatprep.subr.bf16.mxu0 0
        %2030 = vmatpush1.bf16.msra.mxu0 0
        %2031 = vmatprep.subr.bf16.mxu0 0
        %2032 = vmatpush1.bf16.msra.mxu0 0
        %2033 = vmatprep.subr.bf16.mxu0 0
        %2034 = vmatpush1.bf16.msra.mxu0 0
        %2035 = vmatprep.subr.bf16.mxu0 0
        %2036 = vmatpush1.bf16.msra.mxu0 0
        %2037 = vmatprep.subr.bf16.mxu0 0
        %2038 = vmatpush1.bf16.msra.mxu0 0
        %2039 = vmatprep.subr.bf16.mxu0 0
        %2040 = vmatpush1.bf16.msra.mxu0 0
        %2041 = vmatprep.subr.bf16.mxu0 0
        %2042 = vmatpush1.bf16.msra.mxu0 0
        %2043 = vmatprep.subr.bf16.mxu0 0
        %2044 = vmatpush1.bf16.msra.mxu0 0
        %2045 = vmatprep.mubr.bf16.mxu0 0
        %2046 = vmatmul.mubr.bf16.gmra.mrb[0].mxu0 %v1963
        %v2047 = vpop.f32.mrb[0].mxu0
        %v2048 = vadd.f32 0.0, %v2047
        %v2049 = vpop.f32.mrb[0].mxu0
        %v2050 = vpop.f32.mrb[0].mxu0
        %v2051 = vadd.f32 0.0, %v2050
        %v2052 = vpop.f32.mrb[0].mxu0
        %2053 = vmatprep.mubr.bf16.mxu0 0
        %2054 = vmatmul.mubr.bf16.gmra.mrb[0].mxu0 %v1966
        %v2055 = vpop.f32.mrb[0].mxu0
        %v2056 = vadd.f32 0.0, %v2055
        %v2057 = vpop.f32.mrb[0].mxu0
        %v2058 = vpop.f32.mrb[0].mxu0
        %v2059 = vadd.f32 0.0, %v2058
        %v2060 = vpop.f32.mrb[0].mxu0
        %2061 = vmatprep.mubr.bf16.mxu0 0
        %2062 = vmatmul.mubr.bf16.gmra.mrb[0].mxu0 %v1969
        %v2063 = vpop.f32.mrb[0].mxu0
        %v2064 = vadd.f32 0.0, %v2063
        %v2065 = vpop.f32.mrb[0].mxu0
        %v2066 = vpop.f32.mrb[0].mxu0
        %v2067 = vadd.f32 0.0, %v2066
        %v2068 = vpop.f32.mrb[0].mxu0
        %2069 = vmatprep.mubr.bf16.mxu0 0
        %2070 = vmatmul.mubr.bf16.gmra.mrb[0].mxu0 %v1972
        %v2071 = vpop.f32.mrb[0].mxu0
        %v2072 = vadd.f32 0.0, %v2071
        %v2073 = vpop.f32.mrb[0].mxu0
        %v2074 = vpop.f32.mrb[0].mxu0
        %v2075 = vadd.f32 0.0, %v2074
        %v2076 = vpop.f32.mrb[0].mxu0
        %2077 = vmatprep.mubr.bf16.mxu0 0
        %2078 = vmatmul.mubr.bf16.gmra.mrb[0].mxu0 %v1975
        %v2079 = vpop.f32.mrb[0].mxu0
        %v2080 = vadd.f32 0.0, %v2079
        %v2081 = vpop.f32.mrb[0].mxu0
        %v2082 = vpop.f32.mrb[0].mxu0
        %v2083 = vadd.f32 0.0, %v2082
        %v2084 = vpop.f32.mrb[0].mxu0
        %2085 = vmatprep.mubr.bf16.mxu0 0
        %2086 = vmatmul.mubr.bf16.gmra.mrb[0].mxu0 %v1978
        %v2087 = vpop.f32.mrb[0].mxu0
        %v2088 = vadd.f32 0.0, %v2087
        %v2089 = vpop.f32.mrb[0].mxu0
        %v2090 = vpop.f32.mrb[0].mxu0
        %v2091 = vadd.f32 0.0, %v2090
        %v2092 = vpop.f32.mrb[0].mxu0
        %2093 = vmatprep.mubr.bf16.mxu0 0
        %2094 = vmatmul.mubr.bf16.gmra.mrb[0].mxu0 %v1981
        %v2095 = vpop.f32.mrb[0].mxu0
        %v2096 = vadd.f32 0.0, %v2095
        %v2097 = vpop.f32.mrb[0].mxu0
        %v2098 = vpop.f32.mrb[0].mxu0
        %v2099 = vadd.f32 0.0, %v2098
        %v2100 = vpop.f32.mrb[0].mxu0
        %2101 = vmatprep.mubr.bf16.mxu0 0
        %2102 = vmatmul.mubr.bf16.gmra.mrb[0].mxu0 %v1984
        %v2103 = vpop.f32.mrb[0].mxu0
        %v2104 = vadd.f32 0.0, %v2103
        %v2105 = vpop.f32.mrb[0].mxu0
        %v2106 = vpop.f32.mrb[0].mxu0
        %v2107 = vadd.f32 0.0, %v2106
        %v2108 = vpop.f32.mrb[0].mxu0
        %2109 = vmatprep.mubr.bf16.mxu0 0
        %2110 = vmatmul.mubr.bf16.gmra.mrb[0].mxu0 %v1987
        %v2111 = vpop.f32.mrb[0].mxu0
        %v2112 = vadd.f32 0.0, %v2111
        %v2113 = vpop.f32.mrb[0].mxu0
        %v2114 = vpop.f32.mrb[0].mxu0
        %v2115 = vadd.f32 0.0, %v2114
        %v2116 = vpop.f32.mrb[0].mxu0
        %2117 = vmatprep.mubr.bf16.mxu0 0
        %2118 = vmatmul.mubr.bf16.gmra.mrb[0].mxu0 %v1990
        %v2119 = vpop.f32.mrb[0].mxu0
        %v2120 = vadd.f32 0.0, %v2119
        %v2121 = vpop.f32.mrb[0].mxu0
        %v2122 = vpop.f32.mrb[0].mxu0
        %v2123 = vadd.f32 0.0, %v2122
        %v2124 = vpop.f32.mrb[0].mxu0
        %2125 = vmatprep.mubr.bf16.mxu0 0
        %2126 = vmatmul.mubr.bf16.gmra.mrb[0].mxu0 %v1993
        %v2127 = vpop.f32.mrb[0].mxu0
        %v2128 = vadd.f32 0.0, %v2127
        %v2129 = vpop.f32.mrb[0].mxu0
        %v2130 = vpop.f32.mrb[0].mxu0
        %v2131 = vadd.f32 0.0, %v2130
        %v2132 = vpop.f32.mrb[0].mxu0
        %2133 = vmatprep.mubr.bf16.mxu0 0
        %2134 = vmatmul.mubr.bf16.gmra.mrb[0].mxu0 %v1996
        %v2135 = vpop.f32.mrb[0].mxu0
        %v2136 = vadd.f32 0.0, %v2135
        %v2137 = vpop.f32.mrb[0].mxu0
        %v2138 = vpop.f32.mrb[0].mxu0
        %v2139 = vadd.f32 0.0, %v2138
        %v2140 = vpop.f32.mrb[0].mxu0
        %2141 = vmatprep.mubr.bf16.mxu0 0
        %2142 = vmatmul.mubr.bf16.gmra.mrb[0].mxu0 %v1999
        %v2143 = vpop.f32.mrb[0].mxu0
        %v2144 = vadd.f32 0.0, %v2143
        %v2145 = vpop.f32.mrb[0].mxu0
        %v2146 = vpop.f32.mrb[0].mxu0
        %v2147 = vadd.f32 0.0, %v2146
        %v2148 = vpop.f32.mrb[0].mxu0
        %2149 = vmatprep.mubr.bf16.mxu0 0
        %2150 = vmatmul.mubr.bf16.gmra.mrb[0].mxu0 %v2002
        %v2151 = vpop.f32.mrb[0].mxu0
        %v2152 = vadd.f32 0.0, %v2151
        %v2153 = vpop.f32.mrb[0].mxu0
        %v2154 = vpop.f32.mrb[0].mxu0
        %v2155 = vadd.f32 0.0, %v2154
        %v2156 = vpop.f32.mrb[0].mxu0
        %2157 = vmatprep.mubr.bf16.mxu0 0
        %2158 = vmatmul.mubr.bf16.gmra.mrb[0].mxu0 %v2005
        %v2159 = vpop.f32.mrb[0].mxu0
        %v2160 = vadd.f32 0.0, %v2159
        %v2161 = vpop.f32.mrb[0].mxu0
        %v2162 = vpop.f32.mrb[0].mxu0
        %v2163 = vadd.f32 0.0, %v2162
        %v2164 = vpop.f32.mrb[0].mxu0
        %2165 = vmatprep.mubr.bf16.mxu0 0
        %2166 = vmatmul.mubr.bf16.gmra.mrb[0].mxu0 %v2008
        %v2167 = vpop.f32.mrb[0].mxu0
        %v2168 = vadd.f32 0.0, %v2167
        %v2169 = vpop.f32.mrb[0].mxu0
        %v2170 = vpop.f32.mrb[0].mxu0
        %v2171 = vadd.f32 0.0, %v2170
        %v2172 = vpop.f32.mrb[0].mxu0
        %2173 = vdwg.mxu0
        %v2174 = vadd.f32 %v1625, %v2048
        %v2175 = vadd.f32 %v1628, %v2051
        %v2176 = vadd.f32 %v1633, %v2056
        %v2177 = vadd.f32 %v1636, %v2059
        %v2178 = vadd.f32 %v1641, %v2064
        %v2179 = vadd.f32 %v1644, %v2067
        %v2180 = vadd.f32 %v1649, %v2072
        %v2181 = vadd.f32 %v1652, %v2075
        %v2182 = vadd.f32 %v1657, %v2080
        %v2183 = vadd.f32 %v1660, %v2083
        %v2184 = vadd.f32 %v1665, %v2088
        %v2185 = vadd.f32 %v1668, %v2091
        %v2186 = vadd.f32 %v1673, %v2096
        %v2187 = vadd.f32 %v1676, %v2099
        %v2188 = vadd.f32 %v1681, %v2104
        %v2189 = vadd.f32 %v1684, %v2107
        %v2190 = vadd.f32 %v1689, %v2112
        %v2191 = vadd.f32 %v1692, %v2115
        %v2192 = vadd.f32 %v1697, %v2120
        %v2193 = vadd.f32 %v1700, %v2123
        %v2194 = vadd.f32 %v1705, %v2128
        %v2195 = vadd.f32 %v1708, %v2131
        %v2196 = vadd.f32 %v1713, %v2136
        %v2197 = vadd.f32 %v1716, %v2139
        %v2198 = vadd.f32 %v1721, %v2144
        %v2199 = vadd.f32 %v1724, %v2147
        %v2200 = vadd.f32 %v1729, %v2152
        %v2201 = vadd.f32 %v1732, %v2155
        %v2202 = vadd.f32 %v1737, %v2160
        %v2203 = vadd.f32 %v1740, %v2163
        %v2204 = vadd.f32 %v1745, %v2168
        %v2205 = vadd.f32 %v1748, %v2171
        %v2206 = vld [vmem:[%s635] sm:$0xf]
        %v2207 = vld [vmem:[%s635 + $0x4] sm:$0xf]
        %v2208 = vld [vmem:[%s635 + $0xc] sm:$0xf]
        %v2209 = vld [vmem:[%s635 + $0x10] sm:$0xf]
        %v2210 = vld [vmem:[%s635 + $0x18] sm:$0xf]
        %v2211 = vld [vmem:[%s635 + $0x1c] sm:$0xf]
        %v2212 = vld [vmem:[%s635 + $0x24] sm:$0xf]
        %v2213 = vld [vmem:[%s635 + $0x28] sm:$0xf]
        %v2214 = vld [vmem:[%s635 + $0x30] sm:$0xf]
        %v2215 = vld [vmem:[%s635 + $0x34] sm:$0xf]
        %v2216 = vld [vmem:[%s635 + $0x3c] sm:$0xf]
        %v2217 = vld [vmem:[%s635 + $0x40] sm:$0xf]
        %v2218 = vld [vmem:[%s635 + $0x48] sm:$0xf]
        %v2219 = vld [vmem:[%s635 + $0x4c] sm:$0xf]
        %v2220 = vld [vmem:[%s635 + $0x54] sm:$0xf]
        %v2221 = vld [vmem:[%s635 + $0x58] sm:$0xf]
        %v2222 = vld [vmem:[%s635 + $0x60] sm:$0xf]
        %v2223 = vld [vmem:[%s635 + $0x64] sm:$0xf]
        %v2224 = vld [vmem:[%s635 + $0x6c] sm:$0xf]
        %v2225 = vld [vmem:[%s635 + $0x70] sm:$0xf]
        %v2226 = vld [vmem:[%s635 + $0x78] sm:$0xf]
        %v2227 = vld [vmem:[%s635 + $0x7c] sm:$0xf]
        %v2228 = vld [vmem:[%s635 + $0x84] sm:$0xf]
        %v2229 = vld [vmem:[%s635 + $0x88] sm:$0xf]
        %v2230 = vld [vmem:[%s635 + $0x90] sm:$0xf]
        %v2231 = vld [vmem:[%s635 + $0x94] sm:$0xf]
        %v2232 = vld [vmem:[%s635 + $0x9c] sm:$0xf]
        %v2233 = vld [vmem:[%s635 + $0xa0] sm:$0xf]
        %v2234 = vld [vmem:[%s635 + $0xa8] sm:$0xf]
        %v2235 = vld [vmem:[%s635 + $0xac] sm:$0xf]
        %v2236 = vld [vmem:[%s635 + $0xb4] sm:$0xf]
        %v2237 = vld [vmem:[%s635 + $0xb8] sm:$0xf]
        %v2270 = vunpack.c.l.b16 %v2206
        %v2271 = vunpack.c.l.b16 %v2207
        %v2272 = vunpack.c.l.b16 %v2208
        %v2273 = vunpack.c.l.b16 %v2209
        %v2274 = vunpack.c.l.b16 %v2210
        %v2275 = vunpack.c.l.b16 %v2211
        %v2276 = vunpack.c.l.b16 %v2212
        %v2277 = vunpack.c.l.b16 %v2213
        %v2278 = vunpack.c.l.b16 %v2214
        %v2279 = vunpack.c.l.b16 %v2215
        %v2280 = vunpack.c.l.b16 %v2216
        %v2281 = vunpack.c.l.b16 %v2217
        %v2282 = vunpack.c.l.b16 %v2218
        %v2283 = vunpack.c.l.b16 %v2219
        %v2284 = vunpack.c.l.b16 %v2220
        %v2285 = vunpack.c.l.b16 %v2221
        %v2286 = vunpack.c.l.b16 %v2222
        %v2287 = vunpack.c.l.b16 %v2223
        %v2288 = vunpack.c.l.b16 %v2224
        %v2289 = vunpack.c.l.b16 %v2225
        %v2290 = vunpack.c.l.b16 %v2226
        %v2291 = vunpack.c.l.b16 %v2227
        %v2292 = vunpack.c.l.b16 %v2228
        %v2293 = vunpack.c.l.b16 %v2229
        %v2294 = vunpack.c.l.b16 %v2230
        %v2295 = vunpack.c.l.b16 %v2231
        %v2296 = vunpack.c.l.b16 %v2232
        %v2297 = vunpack.c.l.b16 %v2233
        %v2298 = vunpack.c.l.b16 %v2234
        %v2299 = vunpack.c.l.b16 %v2235
        %v2300 = vunpack.c.l.b16 %v2236
        %v2301 = vunpack.c.l.b16 %v2237
        %v2302 = vpack.c.b16 %v2271, %v2270
        %v2303 = vpack.c.b16 %v2273, %v2272
        %v2304 = vpack.c.b16 %v2275, %v2274
        %v2305 = vpack.c.b16 %v2277, %v2276
        %v2306 = vpack.c.b16 %v2279, %v2278
        %v2307 = vpack.c.b16 %v2281, %v2280
        %v2308 = vpack.c.b16 %v2283, %v2282
        %v2309 = vpack.c.b16 %v2285, %v2284
        %v2310 = vpack.c.b16 %v2287, %v2286
        %v2311 = vpack.c.b16 %v2289, %v2288
        %v2312 = vpack.c.b16 %v2291, %v2290
        %v2313 = vpack.c.b16 %v2293, %v2292
        %v2314 = vpack.c.b16 %v2295, %v2294
        %v2315 = vpack.c.b16 %v2297, %v2296
        %v2316 = vpack.c.b16 %v2299, %v2298
        %v2317 = vpack.c.b16 %v2301, %v2300
        %v2319 = vsel %vm1245, %v2302, 0
        %v2322 = vsel %vm1245, %v2303, 0
        %v2325 = vsel %vm1245, %v2304, 0
        %v2328 = vsel %vm1245, %v2305, 0
        %v2331 = vsel %vm1245, %v2306, 0
        %v2334 = vsel %vm1245, %v2307, 0
        %v2337 = vsel %vm1245, %v2308, 0
        %v2340 = vsel %vm1245, %v2309, 0
        %v2343 = vsel %vm1245, %v2310, 0
        %v2346 = vsel %vm1245, %v2311, 0
        %v2349 = vsel %vm1245, %v2312, 0
        %v2352 = vsel %vm1245, %v2313, 0
        %v2355 = vsel %vm1245, %v2314, 0
        %v2358 = vsel %vm1245, %v2315, 0
        %v2361 = vsel %vm1245, %v2316, 0
        %v2364 = vsel %vm1245, %v2317, 0
        %v2367 = vsel %vm1294, %v756, 0
        %2369 = vmatprep.subr.bf16.mxu0 0
        %2370 = vmatpush1.bf16.msra.mxu0 %v2367
        %2371 = vmatprep.subr.bf16.mxu0 0
        %2372 = vmatpush1.bf16.msra.mxu0 0
        %2373 = vmatprep.subr.bf16.mxu0 0
        %2374 = vmatpush1.bf16.msra.mxu0 0
        %2375 = vmatprep.subr.bf16.mxu0 0
        %2376 = vmatpush1.bf16.msra.mxu0 0
        %2377 = vmatprep.subr.bf16.mxu0 0
        %2378 = vmatpush1.bf16.msra.mxu0 0
        %2379 = vmatprep.subr.bf16.mxu0 0
        %2380 = vmatpush1.bf16.msra.mxu0 0
        %2381 = vmatprep.subr.bf16.mxu0 0
        %2382 = vmatpush1.bf16.msra.mxu0 0
        %2383 = vmatprep.subr.bf16.mxu0 0
        %2384 = vmatpush1.bf16.msra.mxu0 0
        %2385 = vmatprep.subr.bf16.mxu0 0
        %2386 = vmatpush1.bf16.msra.mxu0 0
        %2387 = vmatprep.subr.bf16.mxu0 0
        %2388 = vmatpush1.bf16.msra.mxu0 0
        %2389 = vmatprep.subr.bf16.mxu0 0
        %2390 = vmatpush1.bf16.msra.mxu0 0
        %2391 = vmatprep.subr.bf16.mxu0 0
        %2392 = vmatpush1.bf16.msra.mxu0 0
        %2393 = vmatprep.subr.bf16.mxu0 0
        %2394 = vmatpush1.bf16.msra.mxu0 0
        %2395 = vmatprep.subr.bf16.mxu0 0
        %2396 = vmatpush1.bf16.msra.mxu0 0
        %2397 = vmatprep.subr.bf16.mxu0 0
        %2398 = vmatpush1.bf16.msra.mxu0 0
        %2399 = vmatprep.subr.bf16.mxu0 0
        %2400 = vmatpush1.bf16.msra.mxu0 0
        %2401 = vmatprep.mubr.bf16.mxu0 0
        %2402 = vmatmul.mubr.bf16.gmra.mrb[0].mxu0 %v2319
        %v2403 = vpop.f32.mrb[0].mxu0
        %v2404 = vadd.f32 0.0, %v2403
        %v2405 = vpop.f32.mrb[0].mxu0
        %v2406 = vpop.f32.mrb[0].mxu0
        %v2407 = vadd.f32 0.0, %v2406
        %v2408 = vpop.f32.mrb[0].mxu0
        %2409 = vmatprep.mubr.bf16.mxu0 0
        %2410 = vmatmul.mubr.bf16.gmra.mrb[0].mxu0 %v2322
        %v2411 = vpop.f32.mrb[0].mxu0
        %v2412 = vadd.f32 0.0, %v2411
        %v2413 = vpop.f32.mrb[0].mxu0
        %v2414 = vpop.f32.mrb[0].mxu0
        %v2415 = vadd.f32 0.0, %v2414
        %v2416 = vpop.f32.mrb[0].mxu0
        %2417 = vmatprep.mubr.bf16.mxu0 0
        %2418 = vmatmul.mubr.bf16.gmra.mrb[0].mxu0 %v2325
        %v2419 = vpop.f32.mrb[0].mxu0
        %v2420 = vadd.f32 0.0, %v2419
        %v2421 = vpop.f32.mrb[0].mxu0
        %v2422 = vpop.f32.mrb[0].mxu0
        %v2423 = vadd.f32 0.0, %v2422
        %v2424 = vpop.f32.mrb[0].mxu0
        %2425 = vmatprep.mubr.bf16.mxu0 0
        %2426 = vmatmul.mubr.bf16.gmra.mrb[0].mxu0 %v2328
        %v2427 = vpop.f32.mrb[0].mxu0
        %v2428 = vadd.f32 0.0, %v2427
        %v2429 = vpop.f32.mrb[0].mxu0
        %v2430 = vpop.f32.mrb[0].mxu0
        %v2431 = vadd.f32 0.0, %v2430
        %v2432 = vpop.f32.mrb[0].mxu0
        %2433 = vmatprep.mubr.bf16.mxu0 0
        %2434 = vmatmul.mubr.bf16.gmra.mrb[0].mxu0 %v2331
        %v2435 = vpop.f32.mrb[0].mxu0
        %v2436 = vadd.f32 0.0, %v2435
        %v2437 = vpop.f32.mrb[0].mxu0
        %v2438 = vpop.f32.mrb[0].mxu0
        %v2439 = vadd.f32 0.0, %v2438
        %v2440 = vpop.f32.mrb[0].mxu0
        %2441 = vmatprep.mubr.bf16.mxu0 0
        %2442 = vmatmul.mubr.bf16.gmra.mrb[0].mxu0 %v2334
        %v2443 = vpop.f32.mrb[0].mxu0
        %v2444 = vadd.f32 0.0, %v2443
        %v2445 = vpop.f32.mrb[0].mxu0
        %v2446 = vpop.f32.mrb[0].mxu0
        %v2447 = vadd.f32 0.0, %v2446
        %v2448 = vpop.f32.mrb[0].mxu0
        %2449 = vmatprep.mubr.bf16.mxu0 0
        %2450 = vmatmul.mubr.bf16.gmra.mrb[0].mxu0 %v2337
        %v2451 = vpop.f32.mrb[0].mxu0
        %v2452 = vadd.f32 0.0, %v2451
        %v2453 = vpop.f32.mrb[0].mxu0
        %v2454 = vpop.f32.mrb[0].mxu0
        %v2455 = vadd.f32 0.0, %v2454
        %v2456 = vpop.f32.mrb[0].mxu0
        %2457 = vmatprep.mubr.bf16.mxu0 0
        %2458 = vmatmul.mubr.bf16.gmra.mrb[0].mxu0 %v2340
        %v2459 = vpop.f32.mrb[0].mxu0
        %v2460 = vadd.f32 0.0, %v2459
        %v2461 = vpop.f32.mrb[0].mxu0
        %v2462 = vpop.f32.mrb[0].mxu0
        %v2463 = vadd.f32 0.0, %v2462
        %v2464 = vpop.f32.mrb[0].mxu0
        %2465 = vmatprep.mubr.bf16.mxu0 0
        %2466 = vmatmul.mubr.bf16.gmra.mrb[0].mxu0 %v2343
        %v2467 = vpop.f32.mrb[0].mxu0
        %v2468 = vadd.f32 0.0, %v2467
        %v2469 = vpop.f32.mrb[0].mxu0
        %v2470 = vpop.f32.mrb[0].mxu0
        %v2471 = vadd.f32 0.0, %v2470
        %v2472 = vpop.f32.mrb[0].mxu0
        %2473 = vmatprep.mubr.bf16.mxu0 0
        %2474 = vmatmul.mubr.bf16.gmra.mrb[0].mxu0 %v2346
        %v2475 = vpop.f32.mrb[0].mxu0
        %v2476 = vadd.f32 0.0, %v2475
        %v2477 = vpop.f32.mrb[0].mxu0
        %v2478 = vpop.f32.mrb[0].mxu0
        %v2479 = vadd.f32 0.0, %v2478
        %v2480 = vpop.f32.mrb[0].mxu0
        %2481 = vmatprep.mubr.bf16.mxu0 0
        %2482 = vmatmul.mubr.bf16.gmra.mrb[0].mxu0 %v2349
        %v2483 = vpop.f32.mrb[0].mxu0
        %v2484 = vadd.f32 0.0, %v2483
        %v2485 = vpop.f32.mrb[0].mxu0
        %v2486 = vpop.f32.mrb[0].mxu0
        %v2487 = vadd.f32 0.0, %v2486
        %v2488 = vpop.f32.mrb[0].mxu0
        %2489 = vmatprep.mubr.bf16.mxu0 0
        %2490 = vmatmul.mubr.bf16.gmra.mrb[0].mxu0 %v2352
        %v2491 = vpop.f32.mrb[0].mxu0
        %v2492 = vadd.f32 0.0, %v2491
        %v2493 = vpop.f32.mrb[0].mxu0
        %v2494 = vpop.f32.mrb[0].mxu0
        %v2495 = vadd.f32 0.0, %v2494
        %v2496 = vpop.f32.mrb[0].mxu0
        %2497 = vmatprep.mubr.bf16.mxu0 0
        %2498 = vmatmul.mubr.bf16.gmra.mrb[0].mxu0 %v2355
        %v2499 = vpop.f32.mrb[0].mxu0
        %v2500 = vadd.f32 0.0, %v2499
        %v2501 = vpop.f32.mrb[0].mxu0
        %v2502 = vpop.f32.mrb[0].mxu0
        %v2503 = vadd.f32 0.0, %v2502
        %v2504 = vpop.f32.mrb[0].mxu0
        %2505 = vmatprep.mubr.bf16.mxu0 0
        %2506 = vmatmul.mubr.bf16.gmra.mrb[0].mxu0 %v2358
        %v2507 = vpop.f32.mrb[0].mxu0
        %v2508 = vadd.f32 0.0, %v2507
        %v2509 = vpop.f32.mrb[0].mxu0
        %v2510 = vpop.f32.mrb[0].mxu0
        %v2511 = vadd.f32 0.0, %v2510
        %v2512 = vpop.f32.mrb[0].mxu0
        %2513 = vmatprep.mubr.bf16.mxu0 0
        %2514 = vmatmul.mubr.bf16.gmra.mrb[0].mxu0 %v2361
        %v2515 = vpop.f32.mrb[0].mxu0
        %v2516 = vadd.f32 0.0, %v2515
        %v2517 = vpop.f32.mrb[0].mxu0
        %v2518 = vpop.f32.mrb[0].mxu0
        %v2519 = vadd.f32 0.0, %v2518
        %v2520 = vpop.f32.mrb[0].mxu0
        %2521 = vmatprep.mubr.bf16.mxu0 0
        %2522 = vmatmul.mubr.bf16.gmra.mrb[0].mxu0 %v2364
        %v2523 = vpop.f32.mrb[0].mxu0
        %v2524 = vadd.f32 0.0, %v2523
        %v2525 = vpop.f32.mrb[0].mxu0
        %v2526 = vpop.f32.mrb[0].mxu0
        %v2527 = vadd.f32 0.0, %v2526
        %v2528 = vpop.f32.mrb[0].mxu0
        %2529 = vdwg.mxu0
        %v2530 = vadd.f32 %v2174, %v2404
        %v2531 = vadd.f32 %v2175, %v2407
        %v2532 = vadd.f32 %v2176, %v2412
        %v2533 = vadd.f32 %v2177, %v2415
        %v2534 = vadd.f32 %v2178, %v2420
        %v2535 = vadd.f32 %v2179, %v2423
        %v2536 = vadd.f32 %v2180, %v2428
        %v2537 = vadd.f32 %v2181, %v2431
        %v2538 = vadd.f32 %v2182, %v2436
        %v2539 = vadd.f32 %v2183, %v2439
        %v2540 = vadd.f32 %v2184, %v2444
        %v2541 = vadd.f32 %v2185, %v2447
        %v2542 = vadd.f32 %v2186, %v2452
        %v2543 = vadd.f32 %v2187, %v2455
        %v2544 = vadd.f32 %v2188, %v2460
        %v2545 = vadd.f32 %v2189, %v2463
        %v2546 = vadd.f32 %v2190, %v2468
        %v2547 = vadd.f32 %v2191, %v2471
        %v2548 = vadd.f32 %v2192, %v2476
        %v2549 = vadd.f32 %v2193, %v2479
        %v2550 = vadd.f32 %v2194, %v2484
        %v2551 = vadd.f32 %v2195, %v2487
        %v2552 = vadd.f32 %v2196, %v2492
        %v2553 = vadd.f32 %v2197, %v2495
        %v2554 = vadd.f32 %v2198, %v2500
        %v2555 = vadd.f32 %v2199, %v2503
        %v2556 = vadd.f32 %v2200, %v2508
        %v2557 = vadd.f32 %v2201, %v2511
        %v2558 = vadd.f32 %v2202, %v2516
        %v2559 = vadd.f32 %v2203, %v2519
        %v2560 = vadd.f32 %v2204, %v2524
        %v2561 = vadd.f32 %v2205, %v2527
        %v2562 = vld [vmem:[%s635] sm:$0xf]
        %v2563 = vld [vmem:[%s635 + $0x4] sm:$0xf]
        %v2564 = vld [vmem:[%s635 + $0x8] sm:$0x1]
        %v2565 = vld [vmem:[%s635 + $0xc] sm:$0xf]
        %v2566 = vld [vmem:[%s635 + $0x10] sm:$0xf]
        %v2567 = vld [vmem:[%s635 + $0x14] sm:$0x1]
        %v2568 = vld [vmem:[%s635 + $0x18] sm:$0xf]
        %v2569 = vld [vmem:[%s635 + $0x1c] sm:$0xf]
        %v2570 = vld [vmem:[%s635 + $0x20] sm:$0x1]
        %v2571 = vld [vmem:[%s635 + $0x24] sm:$0xf]
        %v2572 = vld [vmem:[%s635 + $0x28] sm:$0xf]
        %v2573 = vld [vmem:[%s635 + $0x2c] sm:$0x1]
        %v2574 = vld [vmem:[%s635 + $0x30] sm:$0xf]
        %v2575 = vld [vmem:[%s635 + $0x34] sm:$0xf]
        %v2576 = vld [vmem:[%s635 + $0x38] sm:$0x1]
        %v2577 = vld [vmem:[%s635 + $0x3c] sm:$0xf]
        %v2578 = vld [vmem:[%s635 + $0x40] sm:$0xf]
        %v2579 = vld [vmem:[%s635 + $0x44] sm:$0x1]
        %v2580 = vld [vmem:[%s635 + $0x48] sm:$0xf]
        %v2581 = vld [vmem:[%s635 + $0x4c] sm:$0xf]
        %v2582 = vld [vmem:[%s635 + $0x50] sm:$0x1]
        %v2583 = vld [vmem:[%s635 + $0x54] sm:$0xf]
        %v2584 = vld [vmem:[%s635 + $0x58] sm:$0xf]
        %v2585 = vld [vmem:[%s635 + $0x5c] sm:$0x1]
        %v2586 = vld [vmem:[%s635 + $0x60] sm:$0xf]
        %v2587 = vld [vmem:[%s635 + $0x64] sm:$0xf]
        %v2588 = vld [vmem:[%s635 + $0x68] sm:$0x1]
        %v2589 = vld [vmem:[%s635 + $0x6c] sm:$0xf]
        %v2590 = vld [vmem:[%s635 + $0x70] sm:$0xf]
        %v2591 = vld [vmem:[%s635 + $0x74] sm:$0x1]
        %v2592 = vld [vmem:[%s635 + $0x78] sm:$0xf]
        %v2593 = vld [vmem:[%s635 + $0x7c] sm:$0xf]
        %v2594 = vld [vmem:[%s635 + $0x80] sm:$0x1]
        %v2595 = vld [vmem:[%s635 + $0x84] sm:$0xf]
        %v2596 = vld [vmem:[%s635 + $0x88] sm:$0xf]
        %v2597 = vld [vmem:[%s635 + $0x8c] sm:$0x1]
        %v2598 = vld [vmem:[%s635 + $0x90] sm:$0xf]
        %v2599 = vld [vmem:[%s635 + $0x94] sm:$0xf]
        %v2600 = vld [vmem:[%s635 + $0x98] sm:$0x1]
        %v2601 = vld [vmem:[%s635 + $0x9c] sm:$0xf]
        %v2602 = vld [vmem:[%s635 + $0xa0] sm:$0xf]
        %v2603 = vld [vmem:[%s635 + $0xa4] sm:$0x1]
        %v2604 = vld [vmem:[%s635 + $0xa8] sm:$0xf]
        %v2605 = vld [vmem:[%s635 + $0xac] sm:$0xf]
        %v2606 = vld [vmem:[%s635 + $0xb0] sm:$0x1]
        %v2607 = vld [vmem:[%s635 + $0xb4] sm:$0xf]
        %v2608 = vld [vmem:[%s635 + $0xb8] sm:$0xf]
        %v2609 = vld [vmem:[%s635 + $0xbc] sm:$0x1]
        %v2611 = vshrl.u32 %v2562, 16
        %v2613 = vrot.slane %v2611, 4
        %v2614 = vshll.u32 %v2562, 16
        %v2616 = vrot.slane %v2614, 5
        %v2617 = vor.u32 %v2613, %v2616
        %v2618 = vrot.slane %v2617, 4
        %v2620 = vshll.u32 %v2563, 16
        %v2622 = vrot.slane %v2620, 5
        %v2623 = vsel %vm812, %v2618, %v2622
        %v2624 = vshrl.u32 %v2563, 16
        %v2626 = vrot.slane %v2624, 4
        %v2627 = vor.u32 %v2626, %v2622
        %v2628 = vrot.slane %v2627, 4
        %v2630 = vshll.u32 %v2564, 16
        %v2632 = vrot.slane %v2630, 5
        %v2633 = vsel %vm812, %v2628, %v2632
        %v2635 = vshrl.u32 %v2565, 16
        %v2637 = vrot.slane %v2635, 4
        %v2638 = vshll.u32 %v2565, 16
        %v2640 = vrot.slane %v2638, 5
        %v2641 = vor.u32 %v2637, %v2640
        %v2642 = vrot.slane %v2641, 4
        %v2644 = vshll.u32 %v2566, 16
        %v2646 = vrot.slane %v2644, 5
        %v2647 = vsel %vm812, %v2642, %v2646
        %v2648 = vshrl.u32 %v2566, 16
        %v2650 = vrot.slane %v2648, 4
        %v2651 = vor.u32 %v2650, %v2646
        %v2652 = vrot.slane %v2651, 4
        %v2654 = vshll.u32 %v2567, 16
        %v2656 = vrot.slane %v2654, 5
        %v2657 = vsel %vm812, %v2652, %v2656
        %v2659 = vshrl.u32 %v2568, 16
        %v2661 = vrot.slane %v2659, 4
        %v2662 = vshll.u32 %v2568, 16
        %v2664 = vrot.slane %v2662, 5
        %v2665 = vor.u32 %v2661, %v2664
        %v2666 = vrot.slane %v2665, 4
        %v2668 = vshll.u32 %v2569, 16
        %v2670 = vrot.slane %v2668, 5
        %v2671 = vsel %vm812, %v2666, %v2670
        %v2672 = vshrl.u32 %v2569, 16
        %v2674 = vrot.slane %v2672, 4
        %v2675 = vor.u32 %v2674, %v2670
        %v2676 = vrot.slane %v2675, 4
        %v2678 = vshll.u32 %v2570, 16
        %v2680 = vrot.slane %v2678, 5
        %v2681 = vsel %vm812, %v2676, %v2680
        %v2683 = vshrl.u32 %v2571, 16
        %v2685 = vrot.slane %v2683, 4
        %v2686 = vshll.u32 %v2571, 16
        %v2688 = vrot.slane %v2686, 5
        %v2689 = vor.u32 %v2685, %v2688
        %v2690 = vrot.slane %v2689, 4
        %v2692 = vshll.u32 %v2572, 16
        %v2694 = vrot.slane %v2692, 5
        %v2695 = vsel %vm812, %v2690, %v2694
        %v2696 = vshrl.u32 %v2572, 16
        %v2698 = vrot.slane %v2696, 4
        %v2699 = vor.u32 %v2698, %v2694
        %v2700 = vrot.slane %v2699, 4
        %v2702 = vshll.u32 %v2573, 16
        %v2704 = vrot.slane %v2702, 5
        %v2705 = vsel %vm812, %v2700, %v2704
        %v2707 = vshrl.u32 %v2574, 16
        %v2709 = vrot.slane %v2707, 4
        %v2710 = vshll.u32 %v2574, 16
        %v2712 = vrot.slane %v2710, 5
        %v2713 = vor.u32 %v2709, %v2712
        %v2714 = vrot.slane %v2713, 4
        %v2716 = vshll.u32 %v2575, 16
        %v2718 = vrot.slane %v2716, 5
        %v2719 = vsel %vm812, %v2714, %v2718
        %v2720 = vshrl.u32 %v2575, 16
        %v2722 = vrot.slane %v2720, 4
        %v2723 = vor.u32 %v2722, %v2718
        %v2724 = vrot.slane %v2723, 4
        %v2726 = vshll.u32 %v2576, 16
        %v2728 = vrot.slane %v2726, 5
        %v2729 = vsel %vm812, %v2724, %v2728
        %v2731 = vshrl.u32 %v2577, 16
        %v2733 = vrot.slane %v2731, 4
        %v2734 = vshll.u32 %v2577, 16
        %v2736 = vrot.slane %v2734, 5
        %v2737 = vor.u32 %v2733, %v2736
        %v2738 = vrot.slane %v2737, 4
        %v2740 = vshll.u32 %v2578, 16
        %v2742 = vrot.slane %v2740, 5
        %v2743 = vsel %vm812, %v2738, %v2742
        %v2744 = vshrl.u32 %v2578, 16
        %v2746 = vrot.slane %v2744, 4
        %v2747 = vor.u32 %v2746, %v2742
        %v2748 = vrot.slane %v2747, 4
        %v2750 = vshll.u32 %v2579, 16
        %v2752 = vrot.slane %v2750, 5
        %v2753 = vsel %vm812, %v2748, %v2752
        %v2755 = vshrl.u32 %v2580, 16
        %v2757 = vrot.slane %v2755, 4
        %v2758 = vshll.u32 %v2580, 16
        %v2760 = vrot.slane %v2758, 5
        %v2761 = vor.u32 %v2757, %v2760
        %v2762 = vrot.slane %v2761, 4
        %v2764 = vshll.u32 %v2581, 16
        %v2766 = vrot.slane %v2764, 5
        %v2767 = vsel %vm812, %v2762, %v2766
        %v2768 = vshrl.u32 %v2581, 16
        %v2770 = vrot.slane %v2768, 4
        %v2771 = vor.u32 %v2770, %v2766
        %v2772 = vrot.slane %v2771, 4
        %v2774 = vshll.u32 %v2582, 16
        %v2776 = vrot.slane %v2774, 5
        %v2777 = vsel %vm812, %v2772, %v2776
        %v2779 = vshrl.u32 %v2583, 16
        %v2781 = vrot.slane %v2779, 4
        %v2782 = vshll.u32 %v2583, 16
        %v2784 = vrot.slane %v2782, 5
        %v2785 = vor.u32 %v2781, %v2784
        %v2786 = vrot.slane %v2785, 4
        %v2788 = vshll.u32 %v2584, 16
        %v2790 = vrot.slane %v2788, 5
        %v2791 = vsel %vm812, %v2786, %v2790
        %v2792 = vshrl.u32 %v2584, 16
        %v2794 = vrot.slane %v2792, 4
        %v2795 = vor.u32 %v2794, %v2790
        %v2796 = vrot.slane %v2795, 4
        %v2798 = vshll.u32 %v2585, 16
        %v2800 = vrot.slane %v2798, 5
        %v2801 = vsel %vm812, %v2796, %v2800
        %v2803 = vshrl.u32 %v2586, 16
        %v2805 = vrot.slane %v2803, 4
        %v2806 = vshll.u32 %v2586, 16
        %v2808 = vrot.slane %v2806, 5
        %v2809 = vor.u32 %v2805, %v2808
        %v2810 = vrot.slane %v2809, 4
        %v2812 = vshll.u32 %v2587, 16
        %v2814 = vrot.slane %v2812, 5
        %v2815 = vsel %vm812, %v2810, %v2814
        %v2816 = vshrl.u32 %v2587, 16
        %v2818 = vrot.slane %v2816, 4
        %v2819 = vor.u32 %v2818, %v2814
        %v2820 = vrot.slane %v2819, 4
        %v2822 = vshll.u32 %v2588, 16
        %v2824 = vrot.slane %v2822, 5
        %v2825 = vsel %vm812, %v2820, %v2824
        %v2827 = vshrl.u32 %v2589, 16
        %v2829 = vrot.slane %v2827, 4
        %v2830 = vshll.u32 %v2589, 16
        %v2832 = vrot.slane %v2830, 5
        %v2833 = vor.u32 %v2829, %v2832
        %v2834 = vrot.slane %v2833, 4
        %v2836 = vshll.u32 %v2590, 16
        %v2838 = vrot.slane %v2836, 5
        %v2839 = vsel %vm812, %v2834, %v2838
        %v2840 = vshrl.u32 %v2590, 16
        %v2842 = vrot.slane %v2840, 4
        %v2843 = vor.u32 %v2842, %v2838
        %v2844 = vrot.slane %v2843, 4
        %v2846 = vshll.u32 %v2591, 16
        %v2848 = vrot.slane %v2846, 5
        %v2849 = vsel %vm812, %v2844, %v2848
        %v2851 = vshrl.u32 %v2592, 16
        %v2853 = vrot.slane %v2851, 4
        %v2854 = vshll.u32 %v2592, 16
        %v2856 = vrot.slane %v2854, 5
        %v2857 = vor.u32 %v2853, %v2856
        %v2858 = vrot.slane %v2857, 4
        %v2860 = vshll.u32 %v2593, 16
        %v2862 = vrot.slane %v2860, 5
        %v2863 = vsel %vm812, %v2858, %v2862
        %v2864 = vshrl.u32 %v2593, 16
        %v2866 = vrot.slane %v2864, 4
        %v2867 = vor.u32 %v2866, %v2862
        %v2868 = vrot.slane %v2867, 4
        %v2870 = vshll.u32 %v2594, 16
        %v2872 = vrot.slane %v2870, 5
        %v2873 = vsel %vm812, %v2868, %v2872
        %v2875 = vshrl.u32 %v2595, 16
        %v2877 = vrot.slane %v2875, 4
        %v2878 = vshll.u32 %v2595, 16
        %v2880 = vrot.slane %v2878, 5
        %v2881 = vor.u32 %v2877, %v2880
        %v2882 = vrot.slane %v2881, 4
        %v2884 = vshll.u32 %v2596, 16
        %v2886 = vrot.slane %v2884, 5
        %v2887 = vsel %vm812, %v2882, %v2886
        %v2888 = vshrl.u32 %v2596, 16
        %v2890 = vrot.slane %v2888, 4
        %v2891 = vor.u32 %v2890, %v2886
        %v2892 = vrot.slane %v2891, 4
        %v2894 = vshll.u32 %v2597, 16
        %v2896 = vrot.slane %v2894, 5
        %v2897 = vsel %vm812, %v2892, %v2896
        %v2899 = vshrl.u32 %v2598, 16
        %v2901 = vrot.slane %v2899, 4
        %v2902 = vshll.u32 %v2598, 16
        %v2904 = vrot.slane %v2902, 5
        %v2905 = vor.u32 %v2901, %v2904
        %v2906 = vrot.slane %v2905, 4
        %v2908 = vshll.u32 %v2599, 16
        %v2910 = vrot.slane %v2908, 5
        %v2911 = vsel %vm812, %v2906, %v2910
        %v2912 = vshrl.u32 %v2599, 16
        %v2914 = vrot.slane %v2912, 4
        %v2915 = vor.u32 %v2914, %v2910
        %v2916 = vrot.slane %v2915, 4
        %v2918 = vshll.u32 %v2600, 16
        %v2920 = vrot.slane %v2918, 5
        %v2921 = vsel %vm812, %v2916, %v2920
        %v2923 = vshrl.u32 %v2601, 16
        %v2925 = vrot.slane %v2923, 4
        %v2926 = vshll.u32 %v2601, 16
        %v2928 = vrot.slane %v2926, 5
        %v2929 = vor.u32 %v2925, %v2928
        %v2930 = vrot.slane %v2929, 4
        %v2932 = vshll.u32 %v2602, 16
        %v2934 = vrot.slane %v2932, 5
        %v2935 = vsel %vm812, %v2930, %v2934
        %v2936 = vshrl.u32 %v2602, 16
        %v2938 = vrot.slane %v2936, 4
        %v2939 = vor.u32 %v2938, %v2934
        %v2940 = vrot.slane %v2939, 4
        %v2942 = vshll.u32 %v2603, 16
        %v2944 = vrot.slane %v2942, 5
        %v2945 = vsel %vm812, %v2940, %v2944
        %v2947 = vshrl.u32 %v2604, 16
        %v2949 = vrot.slane %v2947, 4
        %v2950 = vshll.u32 %v2604, 16
        %v2952 = vrot.slane %v2950, 5
        %v2953 = vor.u32 %v2949, %v2952
        %v2954 = vrot.slane %v2953, 4
        %v2956 = vshll.u32 %v2605, 16
        %v2958 = vrot.slane %v2956, 5
        %v2959 = vsel %vm812, %v2954, %v2958
        %v2960 = vshrl.u32 %v2605, 16
        %v2962 = vrot.slane %v2960, 4
        %v2963 = vor.u32 %v2962, %v2958
        %v2964 = vrot.slane %v2963, 4
        %v2966 = vshll.u32 %v2606, 16
        %v2968 = vrot.slane %v2966, 5
        %v2969 = vsel %vm812, %v2964, %v2968
        %v2971 = vshrl.u32 %v2607, 16
        %v2973 = vrot.slane %v2971, 4
        %v2974 = vshll.u32 %v2607, 16
        %v2976 = vrot.slane %v2974, 5
        %v2977 = vor.u32 %v2973, %v2976
        %v2978 = vrot.slane %v2977, 4
        %v2980 = vshll.u32 %v2608, 16
        %v2982 = vrot.slane %v2980, 5
        %v2983 = vsel %vm812, %v2978, %v2982
        %v2984 = vshrl.u32 %v2608, 16
        %v2986 = vrot.slane %v2984, 4
        %v2987 = vor.u32 %v2986, %v2982
        %v2988 = vrot.slane %v2987, 4
        %v2990 = vshll.u32 %v2609, 16
        %v2992 = vrot.slane %v2990, 5
        %v2993 = vsel %vm812, %v2988, %v2992
        %v2994 = vunpack.c.l.b16 %v2623
        %v2995 = vunpack.c.l.b16 %v2633
        %v2996 = vunpack.c.l.b16 %v2647
        %v2997 = vunpack.c.l.b16 %v2657
        %v2998 = vunpack.c.l.b16 %v2671
        %v2999 = vunpack.c.l.b16 %v2681
        %v3000 = vunpack.c.l.b16 %v2695
        %v3001 = vunpack.c.l.b16 %v2705
        %v3002 = vunpack.c.l.b16 %v2719
        %v3003 = vunpack.c.l.b16 %v2729
        %v3004 = vunpack.c.l.b16 %v2743
        %v3005 = vunpack.c.l.b16 %v2753
        %v3006 = vunpack.c.l.b16 %v2767
        %v3007 = vunpack.c.l.b16 %v2777
        %v3008 = vunpack.c.l.b16 %v2791
        %v3009 = vunpack.c.l.b16 %v2801
        %v3010 = vunpack.c.l.b16 %v2815
        %v3011 = vunpack.c.l.b16 %v2825
        %v3012 = vunpack.c.l.b16 %v2839
        %v3013 = vunpack.c.l.b16 %v2849
        %v3014 = vunpack.c.l.b16 %v2863
        %v3015 = vunpack.c.l.b16 %v2873
        %v3016 = vunpack.c.l.b16 %v2887
        %v3017 = vunpack.c.l.b16 %v2897
        %v3018 = vunpack.c.l.b16 %v2911
        %v3019 = vunpack.c.l.b16 %v2921
        %v3020 = vunpack.c.l.b16 %v2935
        %v3021 = vunpack.c.l.b16 %v2945
        %v3022 = vunpack.c.l.b16 %v2959
        %v3023 = vunpack.c.l.b16 %v2969
        %v3024 = vunpack.c.l.b16 %v2983
        %v3025 = vunpack.c.l.b16 %v2993
        %v3026 = vpack.c.b16 %v2995, %v2994
        %v3027 = vpack.c.b16 %v2997, %v2996
        %v3028 = vpack.c.b16 %v2999, %v2998
        %v3029 = vpack.c.b16 %v3001, %v3000
        %v3030 = vpack.c.b16 %v3003, %v3002
        %v3031 = vpack.c.b16 %v3005, %v3004
        %v3032 = vpack.c.b16 %v3007, %v3006
        %v3033 = vpack.c.b16 %v3009, %v3008
        %v3034 = vpack.c.b16 %v3011, %v3010
        %v3035 = vpack.c.b16 %v3013, %v3012
        %v3036 = vpack.c.b16 %v3015, %v3014
        %v3037 = vpack.c.b16 %v3017, %v3016
        %v3038 = vpack.c.b16 %v3019, %v3018
        %v3039 = vpack.c.b16 %v3021, %v3020
        %v3040 = vpack.c.b16 %v3023, %v3022
        %v3041 = vpack.c.b16 %v3025, %v3024
        %v3043 = vsel %vm1245, %v3026, 0
        %v3046 = vsel %vm1245, %v3027, 0
        %v3049 = vsel %vm1245, %v3028, 0
        %v3052 = vsel %vm1245, %v3029, 0
        %v3055 = vsel %vm1245, %v3030, 0
        %v3058 = vsel %vm1245, %v3031, 0
        %v3061 = vsel %vm1245, %v3032, 0
        %v3064 = vsel %vm1245, %v3033, 0
        %v3067 = vsel %vm1245, %v3034, 0
        %v3070 = vsel %vm1245, %v3035, 0
        %v3073 = vsel %vm1245, %v3036, 0
        %v3076 = vsel %vm1245, %v3037, 0
        %v3079 = vsel %vm1245, %v3038, 0
        %v3082 = vsel %vm1245, %v3039, 0
        %v3085 = vsel %vm1245, %v3040, 0
        %v3088 = vsel %vm1245, %v3041, 0
        %v3091 = vsel %vm1294, %v757, 0
        %3093 = vmatprep.subr.bf16.mxu0 0
        %3094 = vmatpush1.bf16.msra.mxu0 %v3091
        %3095 = vmatprep.subr.bf16.mxu0 0
        %3096 = vmatpush1.bf16.msra.mxu0 0
        %3097 = vmatprep.subr.bf16.mxu0 0
        %3098 = vmatpush1.bf16.msra.mxu0 0
        %3099 = vmatprep.subr.bf16.mxu0 0
        %3100 = vmatpush1.bf16.msra.mxu0 0
        %3101 = vmatprep.subr.bf16.mxu0 0
        %3102 = vmatpush1.bf16.msra.mxu0 0
        %3103 = vmatprep.subr.bf16.mxu0 0
        %3104 = vmatpush1.bf16.msra.mxu0 0
        %3105 = vmatprep.subr.bf16.mxu0 0
        %3106 = vmatpush1.bf16.msra.mxu0 0
        %3107 = vmatprep.subr.bf16.mxu0 0
        %3108 = vmatpush1.bf16.msra.mxu0 0
        %3109 = vmatprep.subr.bf16.mxu0 0
        %3110 = vmatpush1.bf16.msra.mxu0 0
        %3111 = vmatprep.subr.bf16.mxu0 0
        %3112 = vmatpush1.bf16.msra.mxu0 0
        %3113 = vmatprep.subr.bf16.mxu0 0
        %3114 = vmatpush1.bf16.msra.mxu0 0
        %3115 = vmatprep.subr.bf16.mxu0 0
        %3116 = vmatpush1.bf16.msra.mxu0 0
        %3117 = vmatprep.subr.bf16.mxu0 0
        %3118 = vmatpush1.bf16.msra.mxu0 0
        %3119 = vmatprep.subr.bf16.mxu0 0
        %3120 = vmatpush1.bf16.msra.mxu0 0
        %3121 = vmatprep.subr.bf16.mxu0 0
        %3122 = vmatpush1.bf16.msra.mxu0 0
        %3123 = vmatprep.subr.bf16.mxu0 0
        %3124 = vmatpush1.bf16.msra.mxu0 0
        %3125 = vmatprep.mubr.bf16.mxu0 0
        %3126 = vmatmul.mubr.bf16.gmra.mrb[0].mxu0 %v3043
        %v3127 = vpop.f32.mrb[0].mxu0
        %v3128 = vadd.f32 0.0, %v3127
        %v3129 = vpop.f32.mrb[0].mxu0
        %v3130 = vpop.f32.mrb[0].mxu0
        %v3131 = vadd.f32 0.0, %v3130
        %v3132 = vpop.f32.mrb[0].mxu0
        %3133 = vmatprep.mubr.bf16.mxu0 0
        %3134 = vmatmul.mubr.bf16.gmra.mrb[0].mxu0 %v3046
        %v3135 = vpop.f32.mrb[0].mxu0
        %v3136 = vadd.f32 0.0, %v3135
        %v3137 = vpop.f32.mrb[0].mxu0
        %v3138 = vpop.f32.mrb[0].mxu0
        %v3139 = vadd.f32 0.0, %v3138
        %v3140 = vpop.f32.mrb[0].mxu0
        %3141 = vmatprep.mubr.bf16.mxu0 0
        %3142 = vmatmul.mubr.bf16.gmra.mrb[0].mxu0 %v3049
        %v3143 = vpop.f32.mrb[0].mxu0
        %v3144 = vadd.f32 0.0, %v3143
        %v3145 = vpop.f32.mrb[0].mxu0
        %v3146 = vpop.f32.mrb[0].mxu0
        %v3147 = vadd.f32 0.0, %v3146
        %v3148 = vpop.f32.mrb[0].mxu0
        %3149 = vmatprep.mubr.bf16.mxu0 0
        %3150 = vmatmul.mubr.bf16.gmra.mrb[0].mxu0 %v3052
        %v3151 = vpop.f32.mrb[0].mxu0
        %v3152 = vadd.f32 0.0, %v3151
        %v3153 = vpop.f32.mrb[0].mxu0
        %v3154 = vpop.f32.mrb[0].mxu0
        %v3155 = vadd.f32 0.0, %v3154
        %v3156 = vpop.f32.mrb[0].mxu0
        %3157 = vmatprep.mubr.bf16.mxu0 0
        %3158 = vmatmul.mubr.bf16.gmra.mrb[0].mxu0 %v3055
        %v3159 = vpop.f32.mrb[0].mxu0
        %v3160 = vadd.f32 0.0, %v3159
        %v3161 = vpop.f32.mrb[0].mxu0
        %v3162 = vpop.f32.mrb[0].mxu0
        %v3163 = vadd.f32 0.0, %v3162
        %v3164 = vpop.f32.mrb[0].mxu0
        %3165 = vmatprep.mubr.bf16.mxu0 0
        %3166 = vmatmul.mubr.bf16.gmra.mrb[0].mxu0 %v3058
        %v3167 = vpop.f32.mrb[0].mxu0
        %v3168 = vadd.f32 0.0, %v3167
        %v3169 = vpop.f32.mrb[0].mxu0
        %v3170 = vpop.f32.mrb[0].mxu0
        %v3171 = vadd.f32 0.0, %v3170
        %v3172 = vpop.f32.mrb[0].mxu0
        %3173 = vmatprep.mubr.bf16.mxu0 0
        %3174 = vmatmul.mubr.bf16.gmra.mrb[0].mxu0 %v3061
        %v3175 = vpop.f32.mrb[0].mxu0
        %v3176 = vadd.f32 0.0, %v3175
        %v3177 = vpop.f32.mrb[0].mxu0
        %v3178 = vpop.f32.mrb[0].mxu0
        %v3179 = vadd.f32 0.0, %v3178
        %v3180 = vpop.f32.mrb[0].mxu0
        %3181 = vmatprep.mubr.bf16.mxu0 0
        %3182 = vmatmul.mubr.bf16.gmra.mrb[0].mxu0 %v3064
        %v3183 = vpop.f32.mrb[0].mxu0
        %v3184 = vadd.f32 0.0, %v3183
        %v3185 = vpop.f32.mrb[0].mxu0
        %v3186 = vpop.f32.mrb[0].mxu0
        %v3187 = vadd.f32 0.0, %v3186
        %v3188 = vpop.f32.mrb[0].mxu0
        %3189 = vmatprep.mubr.bf16.mxu0 0
        %3190 = vmatmul.mubr.bf16.gmra.mrb[0].mxu0 %v3067
        %v3191 = vpop.f32.mrb[0].mxu0
        %v3192 = vadd.f32 0.0, %v3191
        %v3193 = vpop.f32.mrb[0].mxu0
        %v3194 = vpop.f32.mrb[0].mxu0
        %v3195 = vadd.f32 0.0, %v3194
        %v3196 = vpop.f32.mrb[0].mxu0
        %3197 = vmatprep.mubr.bf16.mxu0 0
        %3198 = vmatmul.mubr.bf16.gmra.mrb[0].mxu0 %v3070
        %v3199 = vpop.f32.mrb[0].mxu0
        %v3200 = vadd.f32 0.0, %v3199
        %v3201 = vpop.f32.mrb[0].mxu0
        %v3202 = vpop.f32.mrb[0].mxu0
        %v3203 = vadd.f32 0.0, %v3202
        %v3204 = vpop.f32.mrb[0].mxu0
        %3205 = vmatprep.mubr.bf16.mxu0 0
        %3206 = vmatmul.mubr.bf16.gmra.mrb[0].mxu0 %v3073
        %v3207 = vpop.f32.mrb[0].mxu0
        %v3208 = vadd.f32 0.0, %v3207
        %v3209 = vpop.f32.mrb[0].mxu0
        %v3210 = vpop.f32.mrb[0].mxu0
        %v3211 = vadd.f32 0.0, %v3210
        %v3212 = vpop.f32.mrb[0].mxu0
        %3213 = vmatprep.mubr.bf16.mxu0 0
        %3214 = vmatmul.mubr.bf16.gmra.mrb[0].mxu0 %v3076
        %v3215 = vpop.f32.mrb[0].mxu0
        %v3216 = vadd.f32 0.0, %v3215
        %v3217 = vpop.f32.mrb[0].mxu0
        %v3218 = vpop.f32.mrb[0].mxu0
        %v3219 = vadd.f32 0.0, %v3218
        %v3220 = vpop.f32.mrb[0].mxu0
        %3221 = vmatprep.mubr.bf16.mxu0 0
        %3222 = vmatmul.mubr.bf16.gmra.mrb[0].mxu0 %v3079
        %v3223 = vpop.f32.mrb[0].mxu0
        %v3224 = vadd.f32 0.0, %v3223
        %v3225 = vpop.f32.mrb[0].mxu0
        %v3226 = vpop.f32.mrb[0].mxu0
        %v3227 = vadd.f32 0.0, %v3226
        %v3228 = vpop.f32.mrb[0].mxu0
        %3229 = vmatprep.mubr.bf16.mxu0 0
        %3230 = vmatmul.mubr.bf16.gmra.mrb[0].mxu0 %v3082
        %v3231 = vpop.f32.mrb[0].mxu0
        %v3232 = vadd.f32 0.0, %v3231
        %v3233 = vpop.f32.mrb[0].mxu0
        %v3234 = vpop.f32.mrb[0].mxu0
        %v3235 = vadd.f32 0.0, %v3234
        %v3236 = vpop.f32.mrb[0].mxu0
        %3237 = vmatprep.mubr.bf16.mxu0 0
        %3238 = vmatmul.mubr.bf16.gmra.mrb[0].mxu0 %v3085
        %v3239 = vpop.f32.mrb[0].mxu0
        %v3240 = vadd.f32 0.0, %v3239
        %v3241 = vpop.f32.mrb[0].mxu0
        %v3242 = vpop.f32.mrb[0].mxu0
        %v3243 = vadd.f32 0.0, %v3242
        %v3244 = vpop.f32.mrb[0].mxu0
        %3245 = vmatprep.mubr.bf16.mxu0 0
        %3246 = vmatmul.mubr.bf16.gmra.mrb[0].mxu0 %v3088
        %v3247 = vpop.f32.mrb[0].mxu0
        %v3248 = vadd.f32 0.0, %v3247
        %v3249 = vpop.f32.mrb[0].mxu0
        %v3250 = vpop.f32.mrb[0].mxu0
        %v3251 = vadd.f32 0.0, %v3250
        %v3252 = vpop.f32.mrb[0].mxu0
        %3253 = vdwg.mxu0
        %v3254 = vadd.f32 %v2530, %v3128
        %v3255 = vadd.f32 %v2531, %v3131
        %v3256 = vadd.f32 %v2532, %v3136
        %v3257 = vadd.f32 %v2533, %v3139
        %v3258 = vadd.f32 %v2534, %v3144
        %v3259 = vadd.f32 %v2535, %v3147
        %v3260 = vadd.f32 %v2536, %v3152
        %v3261 = vadd.f32 %v2537, %v3155
        %v3262 = vadd.f32 %v2538, %v3160
        %v3263 = vadd.f32 %v2539, %v3163
        %v3264 = vadd.f32 %v2540, %v3168
        %v3265 = vadd.f32 %v2541, %v3171
        %v3266 = vadd.f32 %v2542, %v3176
        %v3267 = vadd.f32 %v2543, %v3179
        %v3268 = vadd.f32 %v2544, %v3184
        %v3269 = vadd.f32 %v2545, %v3187
        %v3270 = vadd.f32 %v2546, %v3192
        %v3271 = vadd.f32 %v2547, %v3195
        %v3272 = vadd.f32 %v2548, %v3200
        %v3273 = vadd.f32 %v2549, %v3203
        %v3274 = vadd.f32 %v2550, %v3208
        %v3275 = vadd.f32 %v2551, %v3211
        %v3276 = vadd.f32 %v2552, %v3216
        %v3277 = vadd.f32 %v2553, %v3219
        %v3278 = vadd.f32 %v2554, %v3224
        %v3279 = vadd.f32 %v2555, %v3227
        %v3280 = vadd.f32 %v2556, %v3232
        %v3281 = vadd.f32 %v2557, %v3235
        %v3282 = vadd.f32 %v2558, %v3240
        %v3283 = vadd.f32 %v2559, %v3243
        %v3284 = vadd.f32 %v2560, %v3248
        %v3285 = vadd.f32 %v2561, %v3251
        %v3286 = vld [vmem:[%s635] sm:$0xe]
        %v3287 = vld [vmem:[%s635 + $0xc] sm:$0xe]
        %v3288 = vld [vmem:[%s635 + $0x18] sm:$0xe]
        %v3289 = vld [vmem:[%s635 + $0x24] sm:$0xe]
        %v3290 = vld [vmem:[%s635 + $0x30] sm:$0xe]
        %v3291 = vld [vmem:[%s635 + $0x3c] sm:$0xe]
        %v3292 = vld [vmem:[%s635 + $0x48] sm:$0xe]
        %v3293 = vld [vmem:[%s635 + $0x54] sm:$0xe]
        %v3294 = vld [vmem:[%s635 + $0x60] sm:$0xe]
        %v3295 = vld [vmem:[%s635 + $0x6c] sm:$0xe]
        %v3296 = vld [vmem:[%s635 + $0x78] sm:$0xe]
        %v3297 = vld [vmem:[%s635 + $0x84] sm:$0xe]
        %v3298 = vld [vmem:[%s635 + $0x90] sm:$0xe]
        %v3299 = vld [vmem:[%s635 + $0x9c] sm:$0xe]
        %v3300 = vld [vmem:[%s635 + $0xa8] sm:$0xe]
        %v3301 = vld [vmem:[%s635 + $0xb4] sm:$0xe]
        %v3350 = vrot.slane %v3286, 5
        %v3351 = vrot.slane %v3350, 4
        %v3352 = vrot.slane %v2563, 5
        %v3353 = vsel %vm1801, %v3351, %v3352
        %v3354 = vrot.slane %v3352, 4
        %v3355 = vrot.slane %v2564, 5
        %v3356 = vsel %vm1801, %v3354, %v3355
        %v3357 = vrot.slane %v3287, 5
        %v3358 = vrot.slane %v3357, 4
        %v3359 = vrot.slane %v2566, 5
        %v3360 = vsel %vm1801, %v3358, %v3359
        %v3361 = vrot.slane %v3359, 4
        %v3362 = vrot.slane %v2567, 5
        %v3363 = vsel %vm1801, %v3361, %v3362
        %v3364 = vrot.slane %v3288, 5
        %v3365 = vrot.slane %v3364, 4
        %v3366 = vrot.slane %v2569, 5
        %v3367 = vsel %vm1801, %v3365, %v3366
        %v3368 = vrot.slane %v3366, 4
        %v3369 = vrot.slane %v2570, 5
        %v3370 = vsel %vm1801, %v3368, %v3369
        %v3371 = vrot.slane %v3289, 5
        %v3372 = vrot.slane %v3371, 4
        %v3373 = vrot.slane %v2572, 5
        %v3374 = vsel %vm1801, %v3372, %v3373
        %v3375 = vrot.slane %v3373, 4
        %v3376 = vrot.slane %v2573, 5
        %v3377 = vsel %vm1801, %v3375, %v3376
        %v3378 = vrot.slane %v3290, 5
        %v3379 = vrot.slane %v3378, 4
        %v3380 = vrot.slane %v2575, 5
        %v3381 = vsel %vm1801, %v3379, %v3380
        %v3382 = vrot.slane %v3380, 4
        %v3383 = vrot.slane %v2576, 5
        %v3384 = vsel %vm1801, %v3382, %v3383
        %v3385 = vrot.slane %v3291, 5
        %v3386 = vrot.slane %v3385, 4
        %v3387 = vrot.slane %v2578, 5
        %v3388 = vsel %vm1801, %v3386, %v3387
        %v3389 = vrot.slane %v3387, 4
        %v3390 = vrot.slane %v2579, 5
        %v3391 = vsel %vm1801, %v3389, %v3390
        %v3392 = vrot.slane %v3292, 5
        %v3393 = vrot.slane %v3392, 4
        %v3394 = vrot.slane %v2581, 5
        %v3395 = vsel %vm1801, %v3393, %v3394
        %v3396 = vrot.slane %v3394, 4
        %v3397 = vrot.slane %v2582, 5
        %v3398 = vsel %vm1801, %v3396, %v3397
        %v3399 = vrot.slane %v3293, 5
        %v3400 = vrot.slane %v3399, 4
        %v3401 = vrot.slane %v2584, 5
        %v3402 = vsel %vm1801, %v3400, %v3401
        %v3403 = vrot.slane %v3401, 4
        %v3404 = vrot.slane %v2585, 5
        %v3405 = vsel %vm1801, %v3403, %v3404
        %v3406 = vrot.slane %v3294, 5
        %v3407 = vrot.slane %v3406, 4
        %v3408 = vrot.slane %v2587, 5
        %v3409 = vsel %vm1801, %v3407, %v3408
        %v3410 = vrot.slane %v3408, 4
        %v3411 = vrot.slane %v2588, 5
        %v3412 = vsel %vm1801, %v3410, %v3411
        %v3413 = vrot.slane %v3295, 5
        %v3414 = vrot.slane %v3413, 4
        %v3415 = vrot.slane %v2590, 5
        %v3416 = vsel %vm1801, %v3414, %v3415
        %v3417 = vrot.slane %v3415, 4
        %v3418 = vrot.slane %v2591, 5
        %v3419 = vsel %vm1801, %v3417, %v3418
        %v3420 = vrot.slane %v3296, 5
        %v3421 = vrot.slane %v3420, 4
        %v3422 = vrot.slane %v2593, 5
        %v3423 = vsel %vm1801, %v3421, %v3422
        %v3424 = vrot.slane %v3422, 4
        %v3425 = vrot.slane %v2594, 5
        %v3426 = vsel %vm1801, %v3424, %v3425
        %v3427 = vrot.slane %v3297, 5
        %v3428 = vrot.slane %v3427, 4
        %v3429 = vrot.slane %v2596, 5
        %v3430 = vsel %vm1801, %v3428, %v3429
        %v3431 = vrot.slane %v3429, 4
        %v3432 = vrot.slane %v2597, 5
        %v3433 = vsel %vm1801, %v3431, %v3432
        %v3434 = vrot.slane %v3298, 5
        %v3435 = vrot.slane %v3434, 4
        %v3436 = vrot.slane %v2599, 5
        %v3437 = vsel %vm1801, %v3435, %v3436
        %v3438 = vrot.slane %v3436, 4
        %v3439 = vrot.slane %v2600, 5
        %v3440 = vsel %vm1801, %v3438, %v3439
        %v3441 = vrot.slane %v3299, 5
        %v3442 = vrot.slane %v3441, 4
        %v3443 = vrot.slane %v2602, 5
        %v3444 = vsel %vm1801, %v3442, %v3443
        %v3445 = vrot.slane %v3443, 4
        %v3446 = vrot.slane %v2603, 5
        %v3447 = vsel %vm1801, %v3445, %v3446
        %v3448 = vrot.slane %v3300, 5
        %v3449 = vrot.slane %v3448, 4
        %v3450 = vrot.slane %v2605, 5
        %v3451 = vsel %vm1801, %v3449, %v3450
        %v3452 = vrot.slane %v3450, 4
        %v3453 = vrot.slane %v2606, 5
        %v3454 = vsel %vm1801, %v3452, %v3453
        %v3455 = vrot.slane %v3301, 5
        %v3456 = vrot.slane %v3455, 4
        %v3457 = vrot.slane %v2608, 5
        %v3458 = vsel %vm1801, %v3456, %v3457
        %v3459 = vrot.slane %v3457, 4
        %v3460 = vrot.slane %v2609, 5
        %v3461 = vsel %vm1801, %v3459, %v3460
        %v3462 = vunpack.c.l.b16 %v3353
        %v3463 = vunpack.c.l.b16 %v3356
        %v3464 = vunpack.c.l.b16 %v3360
        %v3465 = vunpack.c.l.b16 %v3363
        %v3466 = vunpack.c.l.b16 %v3367
        %v3467 = vunpack.c.l.b16 %v3370
        %v3468 = vunpack.c.l.b16 %v3374
        %v3469 = vunpack.c.l.b16 %v3377
        %v3470 = vunpack.c.l.b16 %v3381
        %v3471 = vunpack.c.l.b16 %v3384
        %v3472 = vunpack.c.l.b16 %v3388
        %v3473 = vunpack.c.l.b16 %v3391
        %v3474 = vunpack.c.l.b16 %v3395
        %v3475 = vunpack.c.l.b16 %v3398
        %v3476 = vunpack.c.l.b16 %v3402
        %v3477 = vunpack.c.l.b16 %v3405
        %v3478 = vunpack.c.l.b16 %v3409
        %v3479 = vunpack.c.l.b16 %v3412
        %v3480 = vunpack.c.l.b16 %v3416
        %v3481 = vunpack.c.l.b16 %v3419
        %v3482 = vunpack.c.l.b16 %v3423
        %v3483 = vunpack.c.l.b16 %v3426
        %v3484 = vunpack.c.l.b16 %v3430
        %v3485 = vunpack.c.l.b16 %v3433
        %v3486 = vunpack.c.l.b16 %v3437
        %v3487 = vunpack.c.l.b16 %v3440
        %v3488 = vunpack.c.l.b16 %v3444
        %v3489 = vunpack.c.l.b16 %v3447
        %v3490 = vunpack.c.l.b16 %v3451
        %v3491 = vunpack.c.l.b16 %v3454
        %v3492 = vunpack.c.l.b16 %v3458
        %v3493 = vunpack.c.l.b16 %v3461
        %v3494 = vpack.c.b16 %v3463, %v3462
        %v3495 = vpack.c.b16 %v3465, %v3464
        %v3496 = vpack.c.b16 %v3467, %v3466
        %v3497 = vpack.c.b16 %v3469, %v3468
        %v3498 = vpack.c.b16 %v3471, %v3470
        %v3499 = vpack.c.b16 %v3473, %v3472
        %v3500 = vpack.c.b16 %v3475, %v3474
        %v3501 = vpack.c.b16 %v3477, %v3476
        %v3502 = vpack.c.b16 %v3479, %v3478
        %v3503 = vpack.c.b16 %v3481, %v3480
        %v3504 = vpack.c.b16 %v3483, %v3482
        %v3505 = vpack.c.b16 %v3485, %v3484
        %v3506 = vpack.c.b16 %v3487, %v3486
        %v3507 = vpack.c.b16 %v3489, %v3488
        %v3508 = vpack.c.b16 %v3491, %v3490
        %v3509 = vpack.c.b16 %v3493, %v3492
        %v3511 = vsel %vm1245, %v3494, 0
        %v3514 = vsel %vm1245, %v3495, 0
        %v3517 = vsel %vm1245, %v3496, 0
        %v3520 = vsel %vm1245, %v3497, 0
        %v3523 = vsel %vm1245, %v3498, 0
        %v3526 = vsel %vm1245, %v3499, 0
        %v3529 = vsel %vm1245, %v3500, 0
        %v3532 = vsel %vm1245, %v3501, 0
        %v3535 = vsel %vm1245, %v3502, 0
        %v3538 = vsel %vm1245, %v3503, 0
        %v3541 = vsel %vm1245, %v3504, 0
        %v3544 = vsel %vm1245, %v3505, 0
        %v3547 = vsel %vm1245, %v3506, 0
        %v3550 = vsel %vm1245, %v3507, 0
        %v3553 = vsel %vm1245, %v3508, 0
        %v3556 = vsel %vm1245, %v3509, 0
        %v3559 = vsel %vm1294, %v758, 0
        %3561 = vmatprep.subr.bf16.mxu0 0
        %3562 = vmatpush1.bf16.msra.mxu0 %v3559
        %3563 = vmatprep.subr.bf16.mxu0 0
        %3564 = vmatpush1.bf16.msra.mxu0 0
        %3565 = vmatprep.subr.bf16.mxu0 0
        %3566 = vmatpush1.bf16.msra.mxu0 0
        %3567 = vmatprep.subr.bf16.mxu0 0
        %3568 = vmatpush1.bf16.msra.mxu0 0
        %3569 = vmatprep.subr.bf16.mxu0 0
        %3570 = vmatpush1.bf16.msra.mxu0 0
        %3571 = vmatprep.subr.bf16.mxu0 0
        %3572 = vmatpush1.bf16.msra.mxu0 0
        %3573 = vmatprep.subr.bf16.mxu0 0
        %3574 = vmatpush1.bf16.msra.mxu0 0
        %3575 = vmatprep.subr.bf16.mxu0 0
        %3576 = vmatpush1.bf16.msra.mxu0 0
        %3577 = vmatprep.subr.bf16.mxu0 0
        %3578 = vmatpush1.bf16.msra.mxu0 0
        %3579 = vmatprep.subr.bf16.mxu0 0
        %3580 = vmatpush1.bf16.msra.mxu0 0
        %3581 = vmatprep.subr.bf16.mxu0 0
        %3582 = vmatpush1.bf16.msra.mxu0 0
        %3583 = vmatprep.subr.bf16.mxu0 0
        %3584 = vmatpush1.bf16.msra.mxu0 0
        %3585 = vmatprep.subr.bf16.mxu0 0
        %3586 = vmatpush1.bf16.msra.mxu0 0
        %3587 = vmatprep.subr.bf16.mxu0 0
        %3588 = vmatpush1.bf16.msra.mxu0 0
        %3589 = vmatprep.subr.bf16.mxu0 0
        %3590 = vmatpush1.bf16.msra.mxu0 0
        %3591 = vmatprep.subr.bf16.mxu0 0
        %3592 = vmatpush1.bf16.msra.mxu0 0
        %3593 = vmatprep.mubr.bf16.mxu0 0
        %3594 = vmatmul.mubr.bf16.gmra.mrb[0].mxu0 %v3511
        %v3595 = vpop.f32.mrb[0].mxu0
        %v3596 = vadd.f32 0.0, %v3595
        %v3597 = vpop.f32.mrb[0].mxu0
        %v3598 = vpop.f32.mrb[0].mxu0
        %v3599 = vadd.f32 0.0, %v3598
        %v3600 = vpop.f32.mrb[0].mxu0
        %3601 = vmatprep.mubr.bf16.mxu0 0
        %3602 = vmatmul.mubr.bf16.gmra.mrb[0].mxu0 %v3514
        %v3603 = vpop.f32.mrb[0].mxu0
        %v3604 = vadd.f32 0.0, %v3603
        %v3605 = vpop.f32.mrb[0].mxu0
        %v3606 = vpop.f32.mrb[0].mxu0
        %v3607 = vadd.f32 0.0, %v3606
        %v3608 = vpop.f32.mrb[0].mxu0
        %3609 = vmatprep.mubr.bf16.mxu0 0
        %3610 = vmatmul.mubr.bf16.gmra.mrb[0].mxu0 %v3517
        %v3611 = vpop.f32.mrb[0].mxu0
        %v3612 = vadd.f32 0.0, %v3611
        %v3613 = vpop.f32.mrb[0].mxu0
        %v3614 = vpop.f32.mrb[0].mxu0
        %v3615 = vadd.f32 0.0, %v3614
        %v3616 = vpop.f32.mrb[0].mxu0
        %3617 = vmatprep.mubr.bf16.mxu0 0
        %3618 = vmatmul.mubr.bf16.gmra.mrb[0].mxu0 %v3520
        %v3619 = vpop.f32.mrb[0].mxu0
        %v3620 = vadd.f32 0.0, %v3619
        %v3621 = vpop.f32.mrb[0].mxu0
        %v3622 = vpop.f32.mrb[0].mxu0
        %v3623 = vadd.f32 0.0, %v3622
        %v3624 = vpop.f32.mrb[0].mxu0
        %3625 = vmatprep.mubr.bf16.mxu0 0
        %3626 = vmatmul.mubr.bf16.gmra.mrb[0].mxu0 %v3523
        %v3627 = vpop.f32.mrb[0].mxu0
        %v3628 = vadd.f32 0.0, %v3627
        %v3629 = vpop.f32.mrb[0].mxu0
        %v3630 = vpop.f32.mrb[0].mxu0
        %v3631 = vadd.f32 0.0, %v3630
        %v3632 = vpop.f32.mrb[0].mxu0
        %3633 = vmatprep.mubr.bf16.mxu0 0
        %3634 = vmatmul.mubr.bf16.gmra.mrb[0].mxu0 %v3526
        %v3635 = vpop.f32.mrb[0].mxu0
        %v3636 = vadd.f32 0.0, %v3635
        %v3637 = vpop.f32.mrb[0].mxu0
        %v3638 = vpop.f32.mrb[0].mxu0
        %v3639 = vadd.f32 0.0, %v3638
        %v3640 = vpop.f32.mrb[0].mxu0
        %3641 = vmatprep.mubr.bf16.mxu0 0
        %3642 = vmatmul.mubr.bf16.gmra.mrb[0].mxu0 %v3529
        %v3643 = vpop.f32.mrb[0].mxu0
        %v3644 = vadd.f32 0.0, %v3643
        %v3645 = vpop.f32.mrb[0].mxu0
        %v3646 = vpop.f32.mrb[0].mxu0
        %v3647 = vadd.f32 0.0, %v3646
        %v3648 = vpop.f32.mrb[0].mxu0
        %3649 = vmatprep.mubr.bf16.mxu0 0
        %3650 = vmatmul.mubr.bf16.gmra.mrb[0].mxu0 %v3532
        %v3651 = vpop.f32.mrb[0].mxu0
        %v3652 = vadd.f32 0.0, %v3651
        %v3653 = vpop.f32.mrb[0].mxu0
        %v3654 = vpop.f32.mrb[0].mxu0
        %v3655 = vadd.f32 0.0, %v3654
        %v3656 = vpop.f32.mrb[0].mxu0
        %3657 = vmatprep.mubr.bf16.mxu0 0
        %3658 = vmatmul.mubr.bf16.gmra.mrb[0].mxu0 %v3535
        %v3659 = vpop.f32.mrb[0].mxu0
        %v3660 = vadd.f32 0.0, %v3659
        %v3661 = vpop.f32.mrb[0].mxu0
        %v3662 = vpop.f32.mrb[0].mxu0
        %v3663 = vadd.f32 0.0, %v3662
        %v3664 = vpop.f32.mrb[0].mxu0
        %3665 = vmatprep.mubr.bf16.mxu0 0
        %3666 = vmatmul.mubr.bf16.gmra.mrb[0].mxu0 %v3538
        %v3667 = vpop.f32.mrb[0].mxu0
        %v3668 = vadd.f32 0.0, %v3667
        %v3669 = vpop.f32.mrb[0].mxu0
        %v3670 = vpop.f32.mrb[0].mxu0
        %v3671 = vadd.f32 0.0, %v3670
        %v3672 = vpop.f32.mrb[0].mxu0
        %3673 = vmatprep.mubr.bf16.mxu0 0
        %3674 = vmatmul.mubr.bf16.gmra.mrb[0].mxu0 %v3541
        %v3675 = vpop.f32.mrb[0].mxu0
        %v3676 = vadd.f32 0.0, %v3675
        %v3677 = vpop.f32.mrb[0].mxu0
        %v3678 = vpop.f32.mrb[0].mxu0
        %v3679 = vadd.f32 0.0, %v3678
        %v3680 = vpop.f32.mrb[0].mxu0
        %3681 = vmatprep.mubr.bf16.mxu0 0
        %3682 = vmatmul.mubr.bf16.gmra.mrb[0].mxu0 %v3544
        %v3683 = vpop.f32.mrb[0].mxu0
        %v3684 = vadd.f32 0.0, %v3683
        %v3685 = vpop.f32.mrb[0].mxu0
        %v3686 = vpop.f32.mrb[0].mxu0
        %v3687 = vadd.f32 0.0, %v3686
        %v3688 = vpop.f32.mrb[0].mxu0
        %3689 = vmatprep.mubr.bf16.mxu0 0
        %3690 = vmatmul.mubr.bf16.gmra.mrb[0].mxu0 %v3547
        %v3691 = vpop.f32.mrb[0].mxu0
        %v3692 = vadd.f32 0.0, %v3691
        %v3693 = vpop.f32.mrb[0].mxu0
        %v3694 = vpop.f32.mrb[0].mxu0
        %v3695 = vadd.f32 0.0, %v3694
        %v3696 = vpop.f32.mrb[0].mxu0
        %3697 = vmatprep.mubr.bf16.mxu0 0
        %3698 = vmatmul.mubr.bf16.gmra.mrb[0].mxu0 %v3550
        %v3699 = vpop.f32.mrb[0].mxu0
        %v3700 = vadd.f32 0.0, %v3699
        %v3701 = vpop.f32.mrb[0].mxu0
        %v3702 = vpop.f32.mrb[0].mxu0
        %v3703 = vadd.f32 0.0, %v3702
        %v3704 = vpop.f32.mrb[0].mxu0
        %3705 = vmatprep.mubr.bf16.mxu0 0
        %3706 = vmatmul.mubr.bf16.gmra.mrb[0].mxu0 %v3553
        %v3707 = vpop.f32.mrb[0].mxu0
        %v3708 = vadd.f32 0.0, %v3707
        %v3709 = vpop.f32.mrb[0].mxu0
        %v3710 = vpop.f32.mrb[0].mxu0
        %v3711 = vadd.f32 0.0, %v3710
        %v3712 = vpop.f32.mrb[0].mxu0
        %3713 = vmatprep.mubr.bf16.mxu0 0
        %3714 = vmatmul.mubr.bf16.gmra.mrb[0].mxu0 %v3556
        %v3715 = vpop.f32.mrb[0].mxu0
        %v3716 = vadd.f32 0.0, %v3715
        %v3717 = vpop.f32.mrb[0].mxu0
        %v3718 = vpop.f32.mrb[0].mxu0
        %v3719 = vadd.f32 0.0, %v3718
        %v3720 = vpop.f32.mrb[0].mxu0
        %3721 = vdwg.mxu0
        %v3722 = vadd.f32 %v3254, %v3596
        %v3723 = vadd.f32 %v3255, %v3599
        %v3724 = vadd.f32 %v3256, %v3604
        %v3725 = vadd.f32 %v3257, %v3607
        %v3726 = vadd.f32 %v3258, %v3612
        %v3727 = vadd.f32 %v3259, %v3615
        %v3728 = vadd.f32 %v3260, %v3620
        %v3729 = vadd.f32 %v3261, %v3623
        %v3730 = vadd.f32 %v3262, %v3628
        %v3731 = vadd.f32 %v3263, %v3631
        %v3732 = vadd.f32 %v3264, %v3636
        %v3733 = vadd.f32 %v3265, %v3639
        %v3734 = vadd.f32 %v3266, %v3644
        %v3735 = vadd.f32 %v3267, %v3647
        %v3736 = vadd.f32 %v3268, %v3652
        %v3737 = vadd.f32 %v3269, %v3655
        %v3738 = vadd.f32 %v3270, %v3660
        %v3739 = vadd.f32 %v3271, %v3663
        %v3740 = vadd.f32 %v3272, %v3668
        %v3741 = vadd.f32 %v3273, %v3671
        %v3742 = vadd.f32 %v3274, %v3676
        %v3743 = vadd.f32 %v3275, %v3679
        %v3744 = vadd.f32 %v3276, %v3684
        %v3745 = vadd.f32 %v3277, %v3687
        %v3746 = vadd.f32 %v3278, %v3692
        %v3747 = vadd.f32 %v3279, %v3695
        %v3748 = vadd.f32 %v3280, %v3700
        %v3749 = vadd.f32 %v3281, %v3703
        %v3750 = vadd.f32 %v3282, %v3708
        %v3751 = vadd.f32 %v3283, %v3711
        %v3752 = vadd.f32 %v3284, %v3716
        %v3753 = vadd.f32 %v3285, %v3719
        %s3754 = scalar_lea.vmem [#allocation2], 24
        %v3755 = vld [vmem:[%s3754] sm:$0xf]
        %v3756 = vld [vmem:[%s3754 + $0x4] sm:$0xf]
        %v3757 = vld [vmem:[%s3754 + $0xc] sm:$0xf]
        %v3758 = vld [vmem:[%s3754 + $0x10] sm:$0xf]
        %v3759 = vld [vmem:[%s3754 + $0x18] sm:$0xf]
        %v3760 = vld [vmem:[%s3754 + $0x1c] sm:$0xf]
        %v3761 = vld [vmem:[%s3754 + $0x24] sm:$0xf]
        %v3762 = vld [vmem:[%s3754 + $0x28] sm:$0xf]
        %v3763 = vld [vmem:[%s3754 + $0x30] sm:$0xf]
        %v3764 = vld [vmem:[%s3754 + $0x34] sm:$0xf]
        %v3765 = vld [vmem:[%s3754 + $0x3c] sm:$0xf]
        %v3766 = vld [vmem:[%s3754 + $0x40] sm:$0xf]
        %v3767 = vld [vmem:[%s3754 + $0x48] sm:$0xf]
        %v3768 = vld [vmem:[%s3754 + $0x4c] sm:$0xf]
        %v3769 = vld [vmem:[%s3754 + $0x54] sm:$0xf]
        %v3770 = vld [vmem:[%s3754 + $0x58] sm:$0xf]
        %v3771 = vld [vmem:[%s3754 + $0x60] sm:$0xf]
        %v3772 = vld [vmem:[%s3754 + $0x64] sm:$0xf]
        %v3773 = vld [vmem:[%s3754 + $0x6c] sm:$0xf]
        %v3774 = vld [vmem:[%s3754 + $0x70] sm:$0xf]
        %v3775 = vld [vmem:[%s3754 + $0x78] sm:$0xf]
        %v3776 = vld [vmem:[%s3754 + $0x7c] sm:$0xf]
        %v3777 = vld [vmem:[%s3754 + $0x84] sm:$0xf]
        %v3778 = vld [vmem:[%s3754 + $0x88] sm:$0xf]
        %v3779 = vld [vmem:[%s3754 + $0x90] sm:$0xf]
        %v3780 = vld [vmem:[%s3754 + $0x94] sm:$0xf]
        %v3781 = vld [vmem:[%s3754 + $0x9c] sm:$0xf]
        %v3782 = vld [vmem:[%s3754 + $0xa0] sm:$0xf]
        %v3783 = vld [vmem:[%s3754 + $0xa8] sm:$0xf]
        %v3784 = vld [vmem:[%s3754 + $0xac] sm:$0xf]
        %v3785 = vld [vmem:[%s3754 + $0xb4] sm:$0xf]
        %v3786 = vld [vmem:[%s3754 + $0xb8] sm:$0xf]
        %v3819 = vunpack.c.l.b16 %v3755
        %v3820 = vunpack.c.l.b16 %v3756
        %v3821 = vunpack.c.l.b16 %v3757
        %v3822 = vunpack.c.l.b16 %v3758
        %v3823 = vunpack.c.l.b16 %v3759
        %v3824 = vunpack.c.l.b16 %v3760
        %v3825 = vunpack.c.l.b16 %v3761
        %v3826 = vunpack.c.l.b16 %v3762
        %v3827 = vunpack.c.l.b16 %v3763
        %v3828 = vunpack.c.l.b16 %v3764
        %v3829 = vunpack.c.l.b16 %v3765
        %v3830 = vunpack.c.l.b16 %v3766
        %v3831 = vunpack.c.l.b16 %v3767
        %v3832 = vunpack.c.l.b16 %v3768
        %v3833 = vunpack.c.l.b16 %v3769
        %v3834 = vunpack.c.l.b16 %v3770
        %v3835 = vunpack.c.l.b16 %v3771
        %v3836 = vunpack.c.l.b16 %v3772
        %v3837 = vunpack.c.l.b16 %v3773
        %v3838 = vunpack.c.l.b16 %v3774
        %v3839 = vunpack.c.l.b16 %v3775
        %v3840 = vunpack.c.l.b16 %v3776
        %v3841 = vunpack.c.l.b16 %v3777
        %v3842 = vunpack.c.l.b16 %v3778
        %v3843 = vunpack.c.l.b16 %v3779
        %v3844 = vunpack.c.l.b16 %v3780
        %v3845 = vunpack.c.l.b16 %v3781
        %v3846 = vunpack.c.l.b16 %v3782
        %v3847 = vunpack.c.l.b16 %v3783
        %v3848 = vunpack.c.l.b16 %v3784
        %v3849 = vunpack.c.l.b16 %v3785
        %v3850 = vunpack.c.l.b16 %v3786
        %v3851 = vpack.c.b16 %v3820, %v3819
        %v3852 = vpack.c.b16 %v3822, %v3821
        %v3853 = vpack.c.b16 %v3824, %v3823
        %v3854 = vpack.c.b16 %v3826, %v3825
        %v3855 = vpack.c.b16 %v3828, %v3827
        %v3856 = vpack.c.b16 %v3830, %v3829
        %v3857 = vpack.c.b16 %v3832, %v3831
        %v3858 = vpack.c.b16 %v3834, %v3833
        %v3859 = vpack.c.b16 %v3836, %v3835
        %v3860 = vpack.c.b16 %v3838, %v3837
        %v3861 = vpack.c.b16 %v3840, %v3839
        %v3862 = vpack.c.b16 %v3842, %v3841
        %v3863 = vpack.c.b16 %v3844, %v3843
        %v3864 = vpack.c.b16 %v3846, %v3845
        %v3865 = vpack.c.b16 %v3848, %v3847
        %v3866 = vpack.c.b16 %v3850, %v3849
        %v3868 = vsel %vm1245, %v3851, 0
        %v3871 = vsel %vm1245, %v3852, 0
        %v3874 = vsel %vm1245, %v3853, 0
        %v3877 = vsel %vm1245, %v3854, 0
        %v3880 = vsel %vm1245, %v3855, 0
        %v3883 = vsel %vm1245, %v3856, 0
        %v3886 = vsel %vm1245, %v3857, 0
        %v3889 = vsel %vm1245, %v3858, 0
        %v3892 = vsel %vm1245, %v3859, 0
        %v3895 = vsel %vm1245, %v3860, 0
        %v3898 = vsel %vm1245, %v3861, 0
        %v3901 = vsel %vm1245, %v3862, 0
        %v3904 = vsel %vm1245, %v3863, 0
        %v3907 = vsel %vm1245, %v3864, 0
        %v3910 = vsel %vm1245, %v3865, 0
        %v3913 = vsel %vm1245, %v3866, 0
        %v3916 = vsel %vm1294, %v759, 0
        %3918 = vmatprep.subr.bf16.mxu0 0
        %3919 = vmatpush1.bf16.msra.mxu0 %v3916
        %3920 = vmatprep.subr.bf16.mxu0 0
        %3921 = vmatpush1.bf16.msra.mxu0 0
        %3922 = vmatprep.subr.bf16.mxu0 0
        %3923 = vmatpush1.bf16.msra.mxu0 0
        %3924 = vmatprep.subr.bf16.mxu0 0
        %3925 = vmatpush1.bf16.msra.mxu0 0
        %3926 = vmatprep.subr.bf16.mxu0 0
        %3927 = vmatpush1.bf16.msra.mxu0 0
        %3928 = vmatprep.subr.bf16.mxu0 0
        %3929 = vmatpush1.bf16.msra.mxu0 0
        %3930 = vmatprep.subr.bf16.mxu0 0
        %3931 = vmatpush1.bf16.msra.mxu0 0
        %3932 = vmatprep.subr.bf16.mxu0 0
        %3933 = vmatpush1.bf16.msra.mxu0 0
        %3934 = vmatprep.subr.bf16.mxu0 0
        %3935 = vmatpush1.bf16.msra.mxu0 0
        %3936 = vmatprep.subr.bf16.mxu0 0
        %3937 = vmatpush1.bf16.msra.mxu0 0
        %3938 = vmatprep.subr.bf16.mxu0 0
        %3939 = vmatpush1.bf16.msra.mxu0 0
        %3940 = vmatprep.subr.bf16.mxu0 0
        %3941 = vmatpush1.bf16.msra.mxu0 0
        %3942 = vmatprep.subr.bf16.mxu0 0
        %3943 = vmatpush1.bf16.msra.mxu0 0
        %3944 = vmatprep.subr.bf16.mxu0 0
        %3945 = vmatpush1.bf16.msra.mxu0 0
        %3946 = vmatprep.subr.bf16.mxu0 0
        %3947 = vmatpush1.bf16.msra.mxu0 0
        %3948 = vmatprep.subr.bf16.mxu0 0
        %3949 = vmatpush1.bf16.msra.mxu0 0
        %3950 = vmatprep.mubr.bf16.mxu0 0
        %3951 = vmatmul.mubr.bf16.gmra.mrb[0].mxu0 %v3868
        %v3952 = vpop.f32.mrb[0].mxu0
        %v3953 = vadd.f32 0.0, %v3952
        %v3954 = vpop.f32.mrb[0].mxu0
        %v3955 = vpop.f32.mrb[0].mxu0
        %v3956 = vadd.f32 0.0, %v3955
        %v3957 = vpop.f32.mrb[0].mxu0
        %3958 = vmatprep.mubr.bf16.mxu0 0
        %3959 = vmatmul.mubr.bf16.gmra.mrb[0].mxu0 %v3871
        %v3960 = vpop.f32.mrb[0].mxu0
        %v3961 = vadd.f32 0.0, %v3960
        %v3962 = vpop.f32.mrb[0].mxu0
        %v3963 = vpop.f32.mrb[0].mxu0
        %v3964 = vadd.f32 0.0, %v3963
        %v3965 = vpop.f32.mrb[0].mxu0
        %3966 = vmatprep.mubr.bf16.mxu0 0
        %3967 = vmatmul.mubr.bf16.gmra.mrb[0].mxu0 %v3874
        %v3968 = vpop.f32.mrb[0].mxu0
        %v3969 = vadd.f32 0.0, %v3968
        %v3970 = vpop.f32.mrb[0].mxu0
        %v3971 = vpop.f32.mrb[0].mxu0
        %v3972 = vadd.f32 0.0, %v3971
        %v3973 = vpop.f32.mrb[0].mxu0
        %3974 = vmatprep.mubr.bf16.mxu0 0
        %3975 = vmatmul.mubr.bf16.gmra.mrb[0].mxu0 %v3877
        %v3976 = vpop.f32.mrb[0].mxu0
        %v3977 = vadd.f32 0.0, %v3976
        %v3978 = vpop.f32.mrb[0].mxu0
        %v3979 = vpop.f32.mrb[0].mxu0
        %v3980 = vadd.f32 0.0, %v3979
        %v3981 = vpop.f32.mrb[0].mxu0
        %3982 = vmatprep.mubr.bf16.mxu0 0
        %3983 = vmatmul.mubr.bf16.gmra.mrb[0].mxu0 %v3880
        %v3984 = vpop.f32.mrb[0].mxu0
        %v3985 = vadd.f32 0.0, %v3984
        %v3986 = vpop.f32.mrb[0].mxu0
        %v3987 = vpop.f32.mrb[0].mxu0
        %v3988 = vadd.f32 0.0, %v3987
        %v3989 = vpop.f32.mrb[0].mxu0
        %3990 = vmatprep.mubr.bf16.mxu0 0
        %3991 = vmatmul.mubr.bf16.gmra.mrb[0].mxu0 %v3883
        %v3992 = vpop.f32.mrb[0].mxu0
        %v3993 = vadd.f32 0.0, %v3992
        %v3994 = vpop.f32.mrb[0].mxu0
        %v3995 = vpop.f32.mrb[0].mxu0
        %v3996 = vadd.f32 0.0, %v3995
        %v3997 = vpop.f32.mrb[0].mxu0
        %3998 = vmatprep.mubr.bf16.mxu0 0
        %3999 = vmatmul.mubr.bf16.gmra.mrb[0].mxu0 %v3886
        %v4000 = vpop.f32.mrb[0].mxu0
        %v4001 = vadd.f32 0.0, %v4000
        %v4002 = vpop.f32.mrb[0].mxu0
        %v4003 = vpop.f32.mrb[0].mxu0
        %v4004 = vadd.f32 0.0, %v4003
        %v4005 = vpop.f32.mrb[0].mxu0
        %4006 = vmatprep.mubr.bf16.mxu0 0
        %4007 = vmatmul.mubr.bf16.gmra.mrb[0].mxu0 %v3889
        %v4008 = vpop.f32.mrb[0].mxu0
        %v4009 = vadd.f32 0.0, %v4008
        %v4010 = vpop.f32.mrb[0].mxu0
        %v4011 = vpop.f32.mrb[0].mxu0
        %v4012 = vadd.f32 0.0, %v4011
        %v4013 = vpop.f32.mrb[0].mxu0
        %4014 = vmatprep.mubr.bf16.mxu0 0
        %4015 = vmatmul.mubr.bf16.gmra.mrb[0].mxu0 %v3892
        %v4016 = vpop.f32.mrb[0].mxu0
        %v4017 = vadd.f32 0.0, %v4016
        %v4018 = vpop.f32.mrb[0].mxu0
        %v4019 = vpop.f32.mrb[0].mxu0
        %v4020 = vadd.f32 0.0, %v4019
        %v4021 = vpop.f32.mrb[0].mxu0
        %4022 = vmatprep.mubr.bf16.mxu0 0
        %4023 = vmatmul.mubr.bf16.gmra.mrb[0].mxu0 %v3895
        %v4024 = vpop.f32.mrb[0].mxu0
        %v4025 = vadd.f32 0.0, %v4024
        %v4026 = vpop.f32.mrb[0].mxu0
        %v4027 = vpop.f32.mrb[0].mxu0
        %v4028 = vadd.f32 0.0, %v4027
        %v4029 = vpop.f32.mrb[0].mxu0
        %4030 = vmatprep.mubr.bf16.mxu0 0
        %4031 = vmatmul.mubr.bf16.gmra.mrb[0].mxu0 %v3898
        %v4032 = vpop.f32.mrb[0].mxu0
        %v4033 = vadd.f32 0.0, %v4032
        %v4034 = vpop.f32.mrb[0].mxu0
        %v4035 = vpop.f32.mrb[0].mxu0
        %v4036 = vadd.f32 0.0, %v4035
        %v4037 = vpop.f32.mrb[0].mxu0
        %4038 = vmatprep.mubr.bf16.mxu0 0
        %4039 = vmatmul.mubr.bf16.gmra.mrb[0].mxu0 %v3901
        %v4040 = vpop.f32.mrb[0].mxu0
        %v4041 = vadd.f32 0.0, %v4040
        %v4042 = vpop.f32.mrb[0].mxu0
        %v4043 = vpop.f32.mrb[0].mxu0
        %v4044 = vadd.f32 0.0, %v4043
        %v4045 = vpop.f32.mrb[0].mxu0
        %4046 = vmatprep.mubr.bf16.mxu0 0
        %4047 = vmatmul.mubr.bf16.gmra.mrb[0].mxu0 %v3904
        %v4048 = vpop.f32.mrb[0].mxu0
        %v4049 = vadd.f32 0.0, %v4048
        %v4050 = vpop.f32.mrb[0].mxu0
        %v4051 = vpop.f32.mrb[0].mxu0
        %v4052 = vadd.f32 0.0, %v4051
        %v4053 = vpop.f32.mrb[0].mxu0
        %4054 = vmatprep.mubr.bf16.mxu0 0
        %4055 = vmatmul.mubr.bf16.gmra.mrb[0].mxu0 %v3907
        %v4056 = vpop.f32.mrb[0].mxu0
        %v4057 = vadd.f32 0.0, %v4056
        %v4058 = vpop.f32.mrb[0].mxu0
        %v4059 = vpop.f32.mrb[0].mxu0
        %v4060 = vadd.f32 0.0, %v4059
        %v4061 = vpop.f32.mrb[0].mxu0
        %4062 = vmatprep.mubr.bf16.mxu0 0
        %4063 = vmatmul.mubr.bf16.gmra.mrb[0].mxu0 %v3910
        %v4064 = vpop.f32.mrb[0].mxu0
        %v4065 = vadd.f32 0.0, %v4064
        %v4066 = vpop.f32.mrb[0].mxu0
        %v4067 = vpop.f32.mrb[0].mxu0
        %v4068 = vadd.f32 0.0, %v4067
        %v4069 = vpop.f32.mrb[0].mxu0
        %4070 = vmatprep.mubr.bf16.mxu0 0
        %4071 = vmatmul.mubr.bf16.gmra.mrb[0].mxu0 %v3913
        %v4072 = vpop.f32.mrb[0].mxu0
        %v4073 = vadd.f32 0.0, %v4072
        %v4074 = vpop.f32.mrb[0].mxu0
        %v4075 = vpop.f32.mrb[0].mxu0
        %v4076 = vadd.f32 0.0, %v4075
        %v4077 = vpop.f32.mrb[0].mxu0
        %4078 = vdwg.mxu0
        %v4079 = vadd.f32 %v3722, %v3953
        %v4080 = vadd.f32 %v3723, %v3956
        %v4081 = vadd.f32 %v3724, %v3961
        %v4082 = vadd.f32 %v3725, %v3964
        %v4083 = vadd.f32 %v3726, %v3969
        %v4084 = vadd.f32 %v3727, %v3972
        %v4085 = vadd.f32 %v3728, %v3977
        %v4086 = vadd.f32 %v3729, %v3980
        %v4087 = vadd.f32 %v3730, %v3985
        %v4088 = vadd.f32 %v3731, %v3988
        %v4089 = vadd.f32 %v3732, %v3993
        %v4090 = vadd.f32 %v3733, %v3996
        %v4091 = vadd.f32 %v3734, %v4001
        %v4092 = vadd.f32 %v3735, %v4004
        %v4093 = vadd.f32 %v3736, %v4009
        %v4094 = vadd.f32 %v3737, %v4012
        %v4095 = vadd.f32 %v3738, %v4017
        %v4096 = vadd.f32 %v3739, %v4020
        %v4097 = vadd.f32 %v3740, %v4025
        %v4098 = vadd.f32 %v3741, %v4028
        %v4099 = vadd.f32 %v3742, %v4033
        %v4100 = vadd.f32 %v3743, %v4036
        %v4101 = vadd.f32 %v3744, %v4041
        %v4102 = vadd.f32 %v3745, %v4044
        %v4103 = vadd.f32 %v3746, %v4049
        %v4104 = vadd.f32 %v3747, %v4052
        %v4105 = vadd.f32 %v3748, %v4057
        %v4106 = vadd.f32 %v3749, %v4060
        %v4107 = vadd.f32 %v3750, %v4065
        %v4108 = vadd.f32 %v3751, %v4068
        %v4109 = vadd.f32 %v3752, %v4073
        %v4110 = vadd.f32 %v3753, %v4076
        %v4111 = vld [vmem:[%s3754] sm:$0xf]
        %v4112 = vld [vmem:[%s3754 + $0x4] sm:$0xf]
        %v4113 = vld [vmem:[%s3754 + $0x8] sm:$0x1]
        %v4114 = vld [vmem:[%s3754 + $0xc] sm:$0xf]
        %v4115 = vld [vmem:[%s3754 + $0x10] sm:$0xf]
        %v4116 = vld [vmem:[%s3754 + $0x14] sm:$0x1]
        %v4117 = vld [vmem:[%s3754 + $0x18] sm:$0xf]
        %v4118 = vld [vmem:[%s3754 + $0x1c] sm:$0xf]
        %v4119 = vld [vmem:[%s3754 + $0x20] sm:$0x1]
        %v4120 = vld [vmem:[%s3754 + $0x24] sm:$0xf]
        %v4121 = vld [vmem:[%s3754 + $0x28] sm:$0xf]
        %v4122 = vld [vmem:[%s3754 + $0x2c] sm:$0x1]
        %v4123 = vld [vmem:[%s3754 + $0x30] sm:$0xf]
        %v4124 = vld [vmem:[%s3754 + $0x34] sm:$0xf]
        %v4125 = vld [vmem:[%s3754 + $0x38] sm:$0x1]
        %v4126 = vld [vmem:[%s3754 + $0x3c] sm:$0xf]
        %v4127 = vld [vmem:[%s3754 + $0x40] sm:$0xf]
        %v4128 = vld [vmem:[%s3754 + $0x44] sm:$0x1]
        %v4129 = vld [vmem:[%s3754 + $0x48] sm:$0xf]
        %v4130 = vld [vmem:[%s3754 + $0x4c] sm:$0xf]
        %v4131 = vld [vmem:[%s3754 + $0x50] sm:$0x1]
        %v4132 = vld [vmem:[%s3754 + $0x54] sm:$0xf]
        %v4133 = vld [vmem:[%s3754 + $0x58] sm:$0xf]
        %v4134 = vld [vmem:[%s3754 + $0x5c] sm:$0x1]
        %v4135 = vld [vmem:[%s3754 + $0x60] sm:$0xf]
        %v4136 = vld [vmem:[%s3754 + $0x64] sm:$0xf]
        %v4137 = vld [vmem:[%s3754 + $0x68] sm:$0x1]
        %v4138 = vld [vmem:[%s3754 + $0x6c] sm:$0xf]
        %v4139 = vld [vmem:[%s3754 + $0x70] sm:$0xf]
        %v4140 = vld [vmem:[%s3754 + $0x74] sm:$0x1]
        %v4141 = vld [vmem:[%s3754 + $0x78] sm:$0xf]
        %v4142 = vld [vmem:[%s3754 + $0x7c] sm:$0xf]
        %v4143 = vld [vmem:[%s3754 + $0x80] sm:$0x1]
        %v4144 = vld [vmem:[%s3754 + $0x84] sm:$0xf]
        %v4145 = vld [vmem:[%s3754 + $0x88] sm:$0xf]
        %v4146 = vld [vmem:[%s3754 + $0x8c] sm:$0x1]
        %v4147 = vld [vmem:[%s3754 + $0x90] sm:$0xf]
        %v4148 = vld [vmem:[%s3754 + $0x94] sm:$0xf]
        %v4149 = vld [vmem:[%s3754 + $0x98] sm:$0x1]
        %v4150 = vld [vmem:[%s3754 + $0x9c] sm:$0xf]
        %v4151 = vld [vmem:[%s3754 + $0xa0] sm:$0xf]
        %v4152 = vld [vmem:[%s3754 + $0xa4] sm:$0x1]
        %v4153 = vld [vmem:[%s3754 + $0xa8] sm:$0xf]
        %v4154 = vld [vmem:[%s3754 + $0xac] sm:$0xf]
        %v4155 = vld [vmem:[%s3754 + $0xb0] sm:$0x1]
        %v4156 = vld [vmem:[%s3754 + $0xb4] sm:$0xf]
        %v4157 = vld [vmem:[%s3754 + $0xb8] sm:$0xf]
        %v4158 = vld [vmem:[%s3754 + $0xbc] sm:$0x1]
        %v4160 = vshrl.u32 %v4111, 16
        %v4162 = vrot.slane %v4160, 4
        %v4163 = vshll.u32 %v4111, 16
        %v4165 = vrot.slane %v4163, 5
        %v4166 = vor.u32 %v4162, %v4165
        %v4167 = vrot.slane %v4166, 4
        %v4169 = vshll.u32 %v4112, 16
        %v4171 = vrot.slane %v4169, 5
        %v4172 = vsel %vm812, %v4167, %v4171
        %v4173 = vshrl.u32 %v4112, 16
        %v4175 = vrot.slane %v4173, 4
        %v4176 = vor.u32 %v4175, %v4171
        %v4177 = vrot.slane %v4176, 4
        %v4179 = vshll.u32 %v4113, 16
        %v4181 = vrot.slane %v4179, 5
        %v4182 = vsel %vm812, %v4177, %v4181
        %v4184 = vshrl.u32 %v4114, 16
        %v4186 = vrot.slane %v4184, 4
        %v4187 = vshll.u32 %v4114, 16
        %v4189 = vrot.slane %v4187, 5
        %v4190 = vor.u32 %v4186, %v4189
        %v4191 = vrot.slane %v4190, 4
        %v4193 = vshll.u32 %v4115, 16
        %v4195 = vrot.slane %v4193, 5
        %v4196 = vsel %vm812, %v4191, %v4195
        %v4197 = vshrl.u32 %v4115, 16
        %v4199 = vrot.slane %v4197, 4
        %v4200 = vor.u32 %v4199, %v4195
        %v4201 = vrot.slane %v4200, 4
        %v4203 = vshll.u32 %v4116, 16
        %v4205 = vrot.slane %v4203, 5
        %v4206 = vsel %vm812, %v4201, %v4205
        %v4208 = vshrl.u32 %v4117, 16
        %v4210 = vrot.slane %v4208, 4
        %v4211 = vshll.u32 %v4117, 16
        %v4213 = vrot.slane %v4211, 5
        %v4214 = vor.u32 %v4210, %v4213
        %v4215 = vrot.slane %v4214, 4
        %v4217 = vshll.u32 %v4118, 16
        %v4219 = vrot.slane %v4217, 5
        %v4220 = vsel %vm812, %v4215, %v4219
        %v4221 = vshrl.u32 %v4118, 16
        %v4223 = vrot.slane %v4221, 4
        %v4224 = vor.u32 %v4223, %v4219
        %v4225 = vrot.slane %v4224, 4
        %v4227 = vshll.u32 %v4119, 16
        %v4229 = vrot.slane %v4227, 5
        %v4230 = vsel %vm812, %v4225, %v4229
        %v4232 = vshrl.u32 %v4120, 16
        %v4234 = vrot.slane %v4232, 4
        %v4235 = vshll.u32 %v4120, 16
        %v4237 = vrot.slane %v4235, 5
        %v4238 = vor.u32 %v4234, %v4237
        %v4239 = vrot.slane %v4238, 4
        %v4241 = vshll.u32 %v4121, 16
        %v4243 = vrot.slane %v4241, 5
        %v4244 = vsel %vm812, %v4239, %v4243
        %v4245 = vshrl.u32 %v4121, 16
        %v4247 = vrot.slane %v4245, 4
        %v4248 = vor.u32 %v4247, %v4243
        %v4249 = vrot.slane %v4248, 4
        %v4251 = vshll.u32 %v4122, 16
        %v4253 = vrot.slane %v4251, 5
        %v4254 = vsel %vm812, %v4249, %v4253
        %v4256 = vshrl.u32 %v4123, 16
        %v4258 = vrot.slane %v4256, 4
        %v4259 = vshll.u32 %v4123, 16
        %v4261 = vrot.slane %v4259, 5
        %v4262 = vor.u32 %v4258, %v4261
        %v4263 = vrot.slane %v4262, 4
        %v4265 = vshll.u32 %v4124, 16
        %v4267 = vrot.slane %v4265, 5
        %v4268 = vsel %vm812, %v4263, %v4267
        %v4269 = vshrl.u32 %v4124, 16
        %v4271 = vrot.slane %v4269, 4
        %v4272 = vor.u32 %v4271, %v4267
        %v4273 = vrot.slane %v4272, 4
        %v4275 = vshll.u32 %v4125, 16
        %v4277 = vrot.slane %v4275, 5
        %v4278 = vsel %vm812, %v4273, %v4277
        %v4280 = vshrl.u32 %v4126, 16
        %v4282 = vrot.slane %v4280, 4
        %v4283 = vshll.u32 %v4126, 16
        %v4285 = vrot.slane %v4283, 5
        %v4286 = vor.u32 %v4282, %v4285
        %v4287 = vrot.slane %v4286, 4
        %v4289 = vshll.u32 %v4127, 16
        %v4291 = vrot.slane %v4289, 5
        %v4292 = vsel %vm812, %v4287, %v4291
        %v4293 = vshrl.u32 %v4127, 16
        %v4295 = vrot.slane %v4293, 4
        %v4296 = vor.u32 %v4295, %v4291
        %v4297 = vrot.slane %v4296, 4
        %v4299 = vshll.u32 %v4128, 16
        %v4301 = vrot.slane %v4299, 5
        %v4302 = vsel %vm812, %v4297, %v4301
        %v4304 = vshrl.u32 %v4129, 16
        %v4306 = vrot.slane %v4304, 4
        %v4307 = vshll.u32 %v4129, 16
        %v4309 = vrot.slane %v4307, 5
        %v4310 = vor.u32 %v4306, %v4309
        %v4311 = vrot.slane %v4310, 4
        %v4313 = vshll.u32 %v4130, 16
        %v4315 = vrot.slane %v4313, 5
        %v4316 = vsel %vm812, %v4311, %v4315
        %v4317 = vshrl.u32 %v4130, 16
        %v4319 = vrot.slane %v4317, 4
        %v4320 = vor.u32 %v4319, %v4315
        %v4321 = vrot.slane %v4320, 4
        %v4323 = vshll.u32 %v4131, 16
        %v4325 = vrot.slane %v4323, 5
        %v4326 = vsel %vm812, %v4321, %v4325
        %v4328 = vshrl.u32 %v4132, 16
        %v4330 = vrot.slane %v4328, 4
        %v4331 = vshll.u32 %v4132, 16
        %v4333 = vrot.slane %v4331, 5
        %v4334 = vor.u32 %v4330, %v4333
        %v4335 = vrot.slane %v4334, 4
        %v4337 = vshll.u32 %v4133, 16
        %v4339 = vrot.slane %v4337, 5
        %v4340 = vsel %vm812, %v4335, %v4339
        %v4341 = vshrl.u32 %v4133, 16
        %v4343 = vrot.slane %v4341, 4
        %v4344 = vor.u32 %v4343, %v4339
        %v4345 = vrot.slane %v4344, 4
        %v4347 = vshll.u32 %v4134, 16
        %v4349 = vrot.slane %v4347, 5
        %v4350 = vsel %vm812, %v4345, %v4349
        %v4352 = vshrl.u32 %v4135, 16
        %v4354 = vrot.slane %v4352, 4
        %v4355 = vshll.u32 %v4135, 16
        %v4357 = vrot.slane %v4355, 5
        %v4358 = vor.u32 %v4354, %v4357
        %v4359 = vrot.slane %v4358, 4
        %v4361 = vshll.u32 %v4136, 16
        %v4363 = vrot.slane %v4361, 5
        %v4364 = vsel %vm812, %v4359, %v4363
        %v4365 = vshrl.u32 %v4136, 16
        %v4367 = vrot.slane %v4365, 4
        %v4368 = vor.u32 %v4367, %v4363
        %v4369 = vrot.slane %v4368, 4
        %v4371 = vshll.u32 %v4137, 16
        %v4373 = vrot.slane %v4371, 5
        %v4374 = vsel %vm812, %v4369, %v4373
        %v4376 = vshrl.u32 %v4138, 16
        %v4378 = vrot.slane %v4376, 4
        %v4379 = vshll.u32 %v4138, 16
        %v4381 = vrot.slane %v4379, 5
        %v4382 = vor.u32 %v4378, %v4381
        %v4383 = vrot.slane %v4382, 4
        %v4385 = vshll.u32 %v4139, 16
        %v4387 = vrot.slane %v4385, 5
        %v4388 = vsel %vm812, %v4383, %v4387
        %v4389 = vshrl.u32 %v4139, 16
        %v4391 = vrot.slane %v4389, 4
        %v4392 = vor.u32 %v4391, %v4387
        %v4393 = vrot.slane %v4392, 4
        %v4395 = vshll.u32 %v4140, 16
        %v4397 = vrot.slane %v4395, 5
        %v4398 = vsel %vm812, %v4393, %v4397
        %v4400 = vshrl.u32 %v4141, 16
        %v4402 = vrot.slane %v4400, 4
        %v4403 = vshll.u32 %v4141, 16
        %v4405 = vrot.slane %v4403, 5
        %v4406 = vor.u32 %v4402, %v4405
        %v4407 = vrot.slane %v4406, 4
        %v4409 = vshll.u32 %v4142, 16
        %v4411 = vrot.slane %v4409, 5
        %v4412 = vsel %vm812, %v4407, %v4411
        %v4413 = vshrl.u32 %v4142, 16
        %v4415 = vrot.slane %v4413, 4
        %v4416 = vor.u32 %v4415, %v4411
        %v4417 = vrot.slane %v4416, 4
        %v4419 = vshll.u32 %v4143, 16
        %v4421 = vrot.slane %v4419, 5
        %v4422 = vsel %vm812, %v4417, %v4421
        %v4424 = vshrl.u32 %v4144, 16
        %v4426 = vrot.slane %v4424, 4
        %v4427 = vshll.u32 %v4144, 16
        %v4429 = vrot.slane %v4427, 5
        %v4430 = vor.u32 %v4426, %v4429
        %v4431 = vrot.slane %v4430, 4
        %v4433 = vshll.u32 %v4145, 16
        %v4435 = vrot.slane %v4433, 5
        %v4436 = vsel %vm812, %v4431, %v4435
        %v4437 = vshrl.u32 %v4145, 16
        %v4439 = vrot.slane %v4437, 4
        %v4440 = vor.u32 %v4439, %v4435
        %v4441 = vrot.slane %v4440, 4
        %v4443 = vshll.u32 %v4146, 16
        %v4445 = vrot.slane %v4443, 5
        %v4446 = vsel %vm812, %v4441, %v4445
        %v4448 = vshrl.u32 %v4147, 16
        %v4450 = vrot.slane %v4448, 4
        %v4451 = vshll.u32 %v4147, 16
        %v4453 = vrot.slane %v4451, 5
        %v4454 = vor.u32 %v4450, %v4453
        %v4455 = vrot.slane %v4454, 4
        %v4457 = vshll.u32 %v4148, 16
        %v4459 = vrot.slane %v4457, 5
        %v4460 = vsel %vm812, %v4455, %v4459
        %v4461 = vshrl.u32 %v4148, 16
        %v4463 = vrot.slane %v4461, 4
        %v4464 = vor.u32 %v4463, %v4459
        %v4465 = vrot.slane %v4464, 4
        %v4467 = vshll.u32 %v4149, 16
        %v4469 = vrot.slane %v4467, 5
        %v4470 = vsel %vm812, %v4465, %v4469
        %v4472 = vshrl.u32 %v4150, 16
        %v4474 = vrot.slane %v4472, 4
        %v4475 = vshll.u32 %v4150, 16
        %v4477 = vrot.slane %v4475, 5
        %v4478 = vor.u32 %v4474, %v4477
        %v4479 = vrot.slane %v4478, 4
        %v4481 = vshll.u32 %v4151, 16
        %v4483 = vrot.slane %v4481, 5
        %v4484 = vsel %vm812, %v4479, %v4483
        %v4485 = vshrl.u32 %v4151, 16
        %v4487 = vrot.slane %v4485, 4
        %v4488 = vor.u32 %v4487, %v4483
        %v4489 = vrot.slane %v4488, 4
        %v4491 = vshll.u32 %v4152, 16
        %v4493 = vrot.slane %v4491, 5
        %v4494 = vsel %vm812, %v4489, %v4493
        %v4496 = vshrl.u32 %v4153, 16
        %v4498 = vrot.slane %v4496, 4
        %v4499 = vshll.u32 %v4153, 16
        %v4501 = vrot.slane %v4499, 5
        %v4502 = vor.u32 %v4498, %v4501
        %v4503 = vrot.slane %v4502, 4
        %v4505 = vshll.u32 %v4154, 16
        %v4507 = vrot.slane %v4505, 5
        %v4508 = vsel %vm812, %v4503, %v4507
        %v4509 = vshrl.u32 %v4154, 16
        %v4511 = vrot.slane %v4509, 4
        %v4512 = vor.u32 %v4511, %v4507
        %v4513 = vrot.slane %v4512, 4
        %v4515 = vshll.u32 %v4155, 16
        %v4517 = vrot.slane %v4515, 5
        %v4518 = vsel %vm812, %v4513, %v4517
        %v4520 = vshrl.u32 %v4156, 16
        %v4522 = vrot.slane %v4520, 4
        %v4523 = vshll.u32 %v4156, 16
        %v4525 = vrot.slane %v4523, 5
        %v4526 = vor.u32 %v4522, %v4525
        %v4527 = vrot.slane %v4526, 4
        %v4529 = vshll.u32 %v4157, 16
        %v4531 = vrot.slane %v4529, 5
        %v4532 = vsel %vm812, %v4527, %v4531
        %v4533 = vshrl.u32 %v4157, 16
        %v4535 = vrot.slane %v4533, 4
        %v4536 = vor.u32 %v4535, %v4531
        %v4537 = vrot.slane %v4536, 4
        %v4539 = vshll.u32 %v4158, 16
        %v4541 = vrot.slane %v4539, 5
        %v4542 = vsel %vm812, %v4537, %v4541
        %v4543 = vunpack.c.l.b16 %v4172
        %v4544 = vunpack.c.l.b16 %v4182
        %v4545 = vunpack.c.l.b16 %v4196
        %v4546 = vunpack.c.l.b16 %v4206
        %v4547 = vunpack.c.l.b16 %v4220
        %v4548 = vunpack.c.l.b16 %v4230
        %v4549 = vunpack.c.l.b16 %v4244
        %v4550 = vunpack.c.l.b16 %v4254
        %v4551 = vunpack.c.l.b16 %v4268
        %v4552 = vunpack.c.l.b16 %v4278
        %v4553 = vunpack.c.l.b16 %v4292
        %v4554 = vunpack.c.l.b16 %v4302
        %v4555 = vunpack.c.l.b16 %v4316
        %v4556 = vunpack.c.l.b16 %v4326
        %v4557 = vunpack.c.l.b16 %v4340
        %v4558 = vunpack.c.l.b16 %v4350
        %v4559 = vunpack.c.l.b16 %v4364
        %v4560 = vunpack.c.l.b16 %v4374
        %v4561 = vunpack.c.l.b16 %v4388
        %v4562 = vunpack.c.l.b16 %v4398
        %v4563 = vunpack.c.l.b16 %v4412
        %v4564 = vunpack.c.l.b16 %v4422
        %v4565 = vunpack.c.l.b16 %v4436
        %v4566 = vunpack.c.l.b16 %v4446
        %v4567 = vunpack.c.l.b16 %v4460
        %v4568 = vunpack.c.l.b16 %v4470
        %v4569 = vunpack.c.l.b16 %v4484
        %v4570 = vunpack.c.l.b16 %v4494
        %v4571 = vunpack.c.l.b16 %v4508
        %v4572 = vunpack.c.l.b16 %v4518
        %v4573 = vunpack.c.l.b16 %v4532
        %v4574 = vunpack.c.l.b16 %v4542
        %v4575 = vpack.c.b16 %v4544, %v4543
        %v4576 = vpack.c.b16 %v4546, %v4545
        %v4577 = vpack.c.b16 %v4548, %v4547
        %v4578 = vpack.c.b16 %v4550, %v4549
        %v4579 = vpack.c.b16 %v4552, %v4551
        %v4580 = vpack.c.b16 %v4554, %v4553
        %v4581 = vpack.c.b16 %v4556, %v4555
        %v4582 = vpack.c.b16 %v4558, %v4557
        %v4583 = vpack.c.b16 %v4560, %v4559
        %v4584 = vpack.c.b16 %v4562, %v4561
        %v4585 = vpack.c.b16 %v4564, %v4563
        %v4586 = vpack.c.b16 %v4566, %v4565
        %v4587 = vpack.c.b16 %v4568, %v4567
        %v4588 = vpack.c.b16 %v4570, %v4569
        %v4589 = vpack.c.b16 %v4572, %v4571
        %v4590 = vpack.c.b16 %v4574, %v4573
        %v4592 = vsel %vm1245, %v4575, 0
        %v4595 = vsel %vm1245, %v4576, 0
        %v4598 = vsel %vm1245, %v4577, 0
        %v4601 = vsel %vm1245, %v4578, 0
        %v4604 = vsel %vm1245, %v4579, 0
        %v4607 = vsel %vm1245, %v4580, 0
        %v4610 = vsel %vm1245, %v4581, 0
        %v4613 = vsel %vm1245, %v4582, 0
        %v4616 = vsel %vm1245, %v4583, 0
        %v4619 = vsel %vm1245, %v4584, 0
        %v4622 = vsel %vm1245, %v4585, 0
        %v4625 = vsel %vm1245, %v4586, 0
        %v4628 = vsel %vm1245, %v4587, 0
        %v4631 = vsel %vm1245, %v4588, 0
        %v4634 = vsel %vm1245, %v4589, 0
        %v4637 = vsel %vm1245, %v4590, 0
        %v4640 = vsel %vm1294, %v760, 0
        %4642 = vmatprep.subr.bf16.mxu0 0
        %4643 = vmatpush1.bf16.msra.mxu0 %v4640
        %4644 = vmatprep.subr.bf16.mxu0 0
        %4645 = vmatpush1.bf16.msra.mxu0 0
        %4646 = vmatprep.subr.bf16.mxu0 0
        %4647 = vmatpush1.bf16.msra.mxu0 0
        %4648 = vmatprep.subr.bf16.mxu0 0
        %4649 = vmatpush1.bf16.msra.mxu0 0
        %4650 = vmatprep.subr.bf16.mxu0 0
        %4651 = vmatpush1.bf16.msra.mxu0 0
        %4652 = vmatprep.subr.bf16.mxu0 0
        %4653 = vmatpush1.bf16.msra.mxu0 0
        %4654 = vmatprep.subr.bf16.mxu0 0
        %4655 = vmatpush1.bf16.msra.mxu0 0
        %4656 = vmatprep.subr.bf16.mxu0 0
        %4657 = vmatpush1.bf16.msra.mxu0 0
        %4658 = vmatprep.subr.bf16.mxu0 0
        %4659 = vmatpush1.bf16.msra.mxu0 0
        %4660 = vmatprep.subr.bf16.mxu0 0
        %4661 = vmatpush1.bf16.msra.mxu0 0
        %4662 = vmatprep.subr.bf16.mxu0 0
        %4663 = vmatpush1.bf16.msra.mxu0 0
        %4664 = vmatprep.subr.bf16.mxu0 0
        %4665 = vmatpush1.bf16.msra.mxu0 0
        %4666 = vmatprep.subr.bf16.mxu0 0
        %4667 = vmatpush1.bf16.msra.mxu0 0
        %4668 = vmatprep.subr.bf16.mxu0 0
        %4669 = vmatpush1.bf16.msra.mxu0 0
        %4670 = vmatprep.subr.bf16.mxu0 0
        %4671 = vmatpush1.bf16.msra.mxu0 0
        %4672 = vmatprep.subr.bf16.mxu0 0
        %4673 = vmatpush1.bf16.msra.mxu0 0
        %4674 = vmatprep.mubr.bf16.mxu0 0
        %4675 = vmatmul.mubr.bf16.gmra.mrb[0].mxu0 %v4592
        %v4676 = vpop.f32.mrb[0].mxu0
        %v4677 = vadd.f32 0.0, %v4676
        %v4678 = vpop.f32.mrb[0].mxu0
        %v4679 = vpop.f32.mrb[0].mxu0
        %v4680 = vadd.f32 0.0, %v4679
        %v4681 = vpop.f32.mrb[0].mxu0
        %4682 = vmatprep.mubr.bf16.mxu0 0
        %4683 = vmatmul.mubr.bf16.gmra.mrb[0].mxu0 %v4595
        %v4684 = vpop.f32.mrb[0].mxu0
        %v4685 = vadd.f32 0.0, %v4684
        %v4686 = vpop.f32.mrb[0].mxu0
        %v4687 = vpop.f32.mrb[0].mxu0
        %v4688 = vadd.f32 0.0, %v4687
        %v4689 = vpop.f32.mrb[0].mxu0
        %4690 = vmatprep.mubr.bf16.mxu0 0
        %4691 = vmatmul.mubr.bf16.gmra.mrb[0].mxu0 %v4598
        %v4692 = vpop.f32.mrb[0].mxu0
        %v4693 = vadd.f32 0.0, %v4692
        %v4694 = vpop.f32.mrb[0].mxu0
        %v4695 = vpop.f32.mrb[0].mxu0
        %v4696 = vadd.f32 0.0, %v4695
        %v4697 = vpop.f32.mrb[0].mxu0
        %4698 = vmatprep.mubr.bf16.mxu0 0
        %4699 = vmatmul.mubr.bf16.gmra.mrb[0].mxu0 %v4601
        %v4700 = vpop.f32.mrb[0].mxu0
        %v4701 = vadd.f32 0.0, %v4700
        %v4702 = vpop.f32.mrb[0].mxu0
        %v4703 = vpop.f32.mrb[0].mxu0
        %v4704 = vadd.f32 0.0, %v4703
        %v4705 = vpop.f32.mrb[0].mxu0
        %4706 = vmatprep.mubr.bf16.mxu0 0
        %4707 = vmatmul.mubr.bf16.gmra.mrb[0].mxu0 %v4604
        %v4708 = vpop.f32.mrb[0].mxu0
        %v4709 = vadd.f32 0.0, %v4708
        %v4710 = vpop.f32.mrb[0].mxu0
        %v4711 = vpop.f32.mrb[0].mxu0
        %v4712 = vadd.f32 0.0, %v4711
        %v4713 = vpop.f32.mrb[0].mxu0
        %4714 = vmatprep.mubr.bf16.mxu0 0
        %4715 = vmatmul.mubr.bf16.gmra.mrb[0].mxu0 %v4607
        %v4716 = vpop.f32.mrb[0].mxu0
        %v4717 = vadd.f32 0.0, %v4716
        %v4718 = vpop.f32.mrb[0].mxu0
        %v4719 = vpop.f32.mrb[0].mxu0
        %v4720 = vadd.f32 0.0, %v4719
        %v4721 = vpop.f32.mrb[0].mxu0
        %4722 = vmatprep.mubr.bf16.mxu0 0
        %4723 = vmatmul.mubr.bf16.gmra.mrb[0].mxu0 %v4610
        %v4724 = vpop.f32.mrb[0].mxu0
        %v4725 = vadd.f32 0.0, %v4724
        %v4726 = vpop.f32.mrb[0].mxu0
        %v4727 = vpop.f32.mrb[0].mxu0
        %v4728 = vadd.f32 0.0, %v4727
        %v4729 = vpop.f32.mrb[0].mxu0
        %4730 = vmatprep.mubr.bf16.mxu0 0
        %4731 = vmatmul.mubr.bf16.gmra.mrb[0].mxu0 %v4613
        %v4732 = vpop.f32.mrb[0].mxu0
        %v4733 = vadd.f32 0.0, %v4732
        %v4734 = vpop.f32.mrb[0].mxu0
        %v4735 = vpop.f32.mrb[0].mxu0
        %v4736 = vadd.f32 0.0, %v4735
        %v4737 = vpop.f32.mrb[0].mxu0
        %4738 = vmatprep.mubr.bf16.mxu0 0
        %4739 = vmatmul.mubr.bf16.gmra.mrb[0].mxu0 %v4616
        %v4740 = vpop.f32.mrb[0].mxu0
        %v4741 = vadd.f32 0.0, %v4740
        %v4742 = vpop.f32.mrb[0].mxu0
        %v4743 = vpop.f32.mrb[0].mxu0
        %v4744 = vadd.f32 0.0, %v4743
        %v4745 = vpop.f32.mrb[0].mxu0
        %4746 = vmatprep.mubr.bf16.mxu0 0
        %4747 = vmatmul.mubr.bf16.gmra.mrb[0].mxu0 %v4619
        %v4748 = vpop.f32.mrb[0].mxu0
        %v4749 = vadd.f32 0.0, %v4748
        %v4750 = vpop.f32.mrb[0].mxu0
        %v4751 = vpop.f32.mrb[0].mxu0
        %v4752 = vadd.f32 0.0, %v4751
        %v4753 = vpop.f32.mrb[0].mxu0
        %4754 = vmatprep.mubr.bf16.mxu0 0
        %4755 = vmatmul.mubr.bf16.gmra.mrb[0].mxu0 %v4622
        %v4756 = vpop.f32.mrb[0].mxu0
        %v4757 = vadd.f32 0.0, %v4756
        %v4758 = vpop.f32.mrb[0].mxu0
        %v4759 = vpop.f32.mrb[0].mxu0
        %v4760 = vadd.f32 0.0, %v4759
        %v4761 = vpop.f32.mrb[0].mxu0
        %4762 = vmatprep.mubr.bf16.mxu0 0
        %4763 = vmatmul.mubr.bf16.gmra.mrb[0].mxu0 %v4625
        %v4764 = vpop.f32.mrb[0].mxu0
        %v4765 = vadd.f32 0.0, %v4764
        %v4766 = vpop.f32.mrb[0].mxu0
        %v4767 = vpop.f32.mrb[0].mxu0
        %v4768 = vadd.f32 0.0, %v4767
        %v4769 = vpop.f32.mrb[0].mxu0
        %4770 = vmatprep.mubr.bf16.mxu0 0
        %4771 = vmatmul.mubr.bf16.gmra.mrb[0].mxu0 %v4628
        %v4772 = vpop.f32.mrb[0].mxu0
        %v4773 = vadd.f32 0.0, %v4772
        %v4774 = vpop.f32.mrb[0].mxu0
        %v4775 = vpop.f32.mrb[0].mxu0
        %v4776 = vadd.f32 0.0, %v4775
        %v4777 = vpop.f32.mrb[0].mxu0
        %4778 = vmatprep.mubr.bf16.mxu0 0
        %4779 = vmatmul.mubr.bf16.gmra.mrb[0].mxu0 %v4631
        %v4780 = vpop.f32.mrb[0].mxu0
        %v4781 = vadd.f32 0.0, %v4780
        %v4782 = vpop.f32.mrb[0].mxu0
        %v4783 = vpop.f32.mrb[0].mxu0
        %v4784 = vadd.f32 0.0, %v4783
        %v4785 = vpop.f32.mrb[0].mxu0
        %4786 = vmatprep.mubr.bf16.mxu0 0
        %4787 = vmatmul.mubr.bf16.gmra.mrb[0].mxu0 %v4634
        %v4788 = vpop.f32.mrb[0].mxu0
        %v4789 = vadd.f32 0.0, %v4788
        %v4790 = vpop.f32.mrb[0].mxu0
        %v4791 = vpop.f32.mrb[0].mxu0
        %v4792 = vadd.f32 0.0, %v4791
        %v4793 = vpop.f32.mrb[0].mxu0
        %4794 = vmatprep.mubr.bf16.mxu0 0
        %4795 = vmatmul.mubr.bf16.gmra.mrb[0].mxu0 %v4637
        %v4796 = vpop.f32.mrb[0].mxu0
        %v4797 = vadd.f32 0.0, %v4796
        %v4798 = vpop.f32.mrb[0].mxu0
        %v4799 = vpop.f32.mrb[0].mxu0
        %v4800 = vadd.f32 0.0, %v4799
        %v4801 = vpop.f32.mrb[0].mxu0
        %4802 = vdwg.mxu0
        %v4803 = vadd.f32 %v4079, %v4677
        %v4804 = vadd.f32 %v4080, %v4680
        %v4805 = vadd.f32 %v4081, %v4685
        %v4806 = vadd.f32 %v4082, %v4688
        %v4807 = vadd.f32 %v4083, %v4693
        %v4808 = vadd.f32 %v4084, %v4696
        %v4809 = vadd.f32 %v4085, %v4701
        %v4810 = vadd.f32 %v4086, %v4704
        %v4811 = vadd.f32 %v4087, %v4709
        %v4812 = vadd.f32 %v4088, %v4712
        %v4813 = vadd.f32 %v4089, %v4717
        %v4814 = vadd.f32 %v4090, %v4720
        %v4815 = vadd.f32 %v4091, %v4725
        %v4816 = vadd.f32 %v4092, %v4728
        %v4817 = vadd.f32 %v4093, %v4733
        %v4818 = vadd.f32 %v4094, %v4736
        %v4819 = vadd.f32 %v4095, %v4741
        %v4820 = vadd.f32 %v4096, %v4744
        %v4821 = vadd.f32 %v4097, %v4749
        %v4822 = vadd.f32 %v4098, %v4752
        %v4823 = vadd.f32 %v4099, %v4757
        %v4824 = vadd.f32 %v4100, %v4760
        %v4825 = vadd.f32 %v4101, %v4765
        %v4826 = vadd.f32 %v4102, %v4768
        %v4827 = vadd.f32 %v4103, %v4773
        %v4828 = vadd.f32 %v4104, %v4776
        %v4829 = vadd.f32 %v4105, %v4781
        %v4830 = vadd.f32 %v4106, %v4784
        %v4831 = vadd.f32 %v4107, %v4789
        %v4832 = vadd.f32 %v4108, %v4792
        %v4833 = vadd.f32 %v4109, %v4797
        %v4834 = vadd.f32 %v4110, %v4800
        %v4835 = vld [vmem:[%s3754] sm:$0xe]
        %v4836 = vld [vmem:[%s3754 + $0xc] sm:$0xe]
        %v4837 = vld [vmem:[%s3754 + $0x18] sm:$0xe]
        %v4838 = vld [vmem:[%s3754 + $0x24] sm:$0xe]
        %v4839 = vld [vmem:[%s3754 + $0x30] sm:$0xe]
        %v4840 = vld [vmem:[%s3754 + $0x3c] sm:$0xe]
        %v4841 = vld [vmem:[%s3754 + $0x48] sm:$0xe]
        %v4842 = vld [vmem:[%s3754 + $0x54] sm:$0xe]
        %v4843 = vld [vmem:[%s3754 + $0x60] sm:$0xe]
        %v4844 = vld [vmem:[%s3754 + $0x6c] sm:$0xe]
        %v4845 = vld [vmem:[%s3754 + $0x78] sm:$0xe]
        %v4846 = vld [vmem:[%s3754 + $0x84] sm:$0xe]
        %v4847 = vld [vmem:[%s3754 + $0x90] sm:$0xe]
        %v4848 = vld [vmem:[%s3754 + $0x9c] sm:$0xe]
        %v4849 = vld [vmem:[%s3754 + $0xa8] sm:$0xe]
        %v4850 = vld [vmem:[%s3754 + $0xb4] sm:$0xe]
        %v4899 = vrot.slane %v4835, 5
        %v4900 = vrot.slane %v4899, 4
        %v4901 = vrot.slane %v4112, 5
        %v4902 = vsel %vm1801, %v4900, %v4901
        %v4903 = vrot.slane %v4901, 4
        %v4904 = vrot.slane %v4113, 5
        %v4905 = vsel %vm1801, %v4903, %v4904
        %v4906 = vrot.slane %v4836, 5
        %v4907 = vrot.slane %v4906, 4
        %v4908 = vrot.slane %v4115, 5
        %v4909 = vsel %vm1801, %v4907, %v4908
        %v4910 = vrot.slane %v4908, 4
        %v4911 = vrot.slane %v4116, 5
        %v4912 = vsel %vm1801, %v4910, %v4911
        %v4913 = vrot.slane %v4837, 5
        %v4914 = vrot.slane %v4913, 4
        %v4915 = vrot.slane %v4118, 5
        %v4916 = vsel %vm1801, %v4914, %v4915
        %v4917 = vrot.slane %v4915, 4
        %v4918 = vrot.slane %v4119, 5
        %v4919 = vsel %vm1801, %v4917, %v4918
        %v4920 = vrot.slane %v4838, 5
        %v4921 = vrot.slane %v4920, 4
        %v4922 = vrot.slane %v4121, 5
        %v4923 = vsel %vm1801, %v4921, %v4922
        %v4924 = vrot.slane %v4922, 4
        %v4925 = vrot.slane %v4122, 5
        %v4926 = vsel %vm1801, %v4924, %v4925
        %v4927 = vrot.slane %v4839, 5
        %v4928 = vrot.slane %v4927, 4
        %v4929 = vrot.slane %v4124, 5
        %v4930 = vsel %vm1801, %v4928, %v4929
        %v4931 = vrot.slane %v4929, 4
        %v4932 = vrot.slane %v4125, 5
        %v4933 = vsel %vm1801, %v4931, %v4932
        %v4934 = vrot.slane %v4840, 5
        %v4935 = vrot.slane %v4934, 4
        %v4936 = vrot.slane %v4127, 5
        %v4937 = vsel %vm1801, %v4935, %v4936
        %v4938 = vrot.slane %v4936, 4
        %v4939 = vrot.slane %v4128, 5
        %v4940 = vsel %vm1801, %v4938, %v4939
        %v4941 = vrot.slane %v4841, 5
        %v4942 = vrot.slane %v4941, 4
        %v4943 = vrot.slane %v4130, 5
        %v4944 = vsel %vm1801, %v4942, %v4943
        %v4945 = vrot.slane %v4943, 4
        %v4946 = vrot.slane %v4131, 5
        %v4947 = vsel %vm1801, %v4945, %v4946
        %v4948 = vrot.slane %v4842, 5
        %v4949 = vrot.slane %v4948, 4
        %v4950 = vrot.slane %v4133, 5
        %v4951 = vsel %vm1801, %v4949, %v4950
        %v4952 = vrot.slane %v4950, 4
        %v4953 = vrot.slane %v4134, 5
        %v4954 = vsel %vm1801, %v4952, %v4953
        %v4955 = vrot.slane %v4843, 5
        %v4956 = vrot.slane %v4955, 4
        %v4957 = vrot.slane %v4136, 5
        %v4958 = vsel %vm1801, %v4956, %v4957
        %v4959 = vrot.slane %v4957, 4
        %v4960 = vrot.slane %v4137, 5
        %v4961 = vsel %vm1801, %v4959, %v4960
        %v4962 = vrot.slane %v4844, 5
        %v4963 = vrot.slane %v4962, 4
        %v4964 = vrot.slane %v4139, 5
        %v4965 = vsel %vm1801, %v4963, %v4964
        %v4966 = vrot.slane %v4964, 4
        %v4967 = vrot.slane %v4140, 5
        %v4968 = vsel %vm1801, %v4966, %v4967
        %v4969 = vrot.slane %v4845, 5
        %v4970 = vrot.slane %v4969, 4
        %v4971 = vrot.slane %v4142, 5
        %v4972 = vsel %vm1801, %v4970, %v4971
        %v4973 = vrot.slane %v4971, 4
        %v4974 = vrot.slane %v4143, 5
        %v4975 = vsel %vm1801, %v4973, %v4974
        %v4976 = vrot.slane %v4846, 5
        %v4977 = vrot.slane %v4976, 4
        %v4978 = vrot.slane %v4145, 5
        %v4979 = vsel %vm1801, %v4977, %v4978
        %v4980 = vrot.slane %v4978, 4
        %v4981 = vrot.slane %v4146, 5
        %v4982 = vsel %vm1801, %v4980, %v4981
        %v4983 = vrot.slane %v4847, 5
        %v4984 = vrot.slane %v4983, 4
        %v4985 = vrot.slane %v4148, 5
        %v4986 = vsel %vm1801, %v4984, %v4985
        %v4987 = vrot.slane %v4985, 4
        %v4988 = vrot.slane %v4149, 5
        %v4989 = vsel %vm1801, %v4987, %v4988
        %v4990 = vrot.slane %v4848, 5
        %v4991 = vrot.slane %v4990, 4
        %v4992 = vrot.slane %v4151, 5
        %v4993 = vsel %vm1801, %v4991, %v4992
        %v4994 = vrot.slane %v4992, 4
        %v4995 = vrot.slane %v4152, 5
        %v4996 = vsel %vm1801, %v4994, %v4995
        %v4997 = vrot.slane %v4849, 5
        %v4998 = vrot.slane %v4997, 4
        %v4999 = vrot.slane %v4154, 5
        %v5000 = vsel %vm1801, %v4998, %v4999
        %v5001 = vrot.slane %v4999, 4
        %v5002 = vrot.slane %v4155, 5
        %v5003 = vsel %vm1801, %v5001, %v5002
        %v5004 = vrot.slane %v4850, 5
        %v5005 = vrot.slane %v5004, 4
        %v5006 = vrot.slane %v4157, 5
        %v5007 = vsel %vm1801, %v5005, %v5006
        %v5008 = vrot.slane %v5006, 4
        %v5009 = vrot.slane %v4158, 5
        %v5010 = vsel %vm1801, %v5008, %v5009
        %v5011 = vunpack.c.l.b16 %v4902
        %v5012 = vunpack.c.l.b16 %v4905
        %v5013 = vunpack.c.l.b16 %v4909
        %v5014 = vunpack.c.l.b16 %v4912
        %v5015 = vunpack.c.l.b16 %v4916
        %v5016 = vunpack.c.l.b16 %v4919
        %v5017 = vunpack.c.l.b16 %v4923
        %v5018 = vunpack.c.l.b16 %v4926
        %v5019 = vunpack.c.l.b16 %v4930
        %v5020 = vunpack.c.l.b16 %v4933
        %v5021 = vunpack.c.l.b16 %v4937
        %v5022 = vunpack.c.l.b16 %v4940
        %v5023 = vunpack.c.l.b16 %v4944
        %v5024 = vunpack.c.l.b16 %v4947
        %v5025 = vunpack.c.l.b16 %v4951
        %v5026 = vunpack.c.l.b16 %v4954
        %v5027 = vunpack.c.l.b16 %v4958
        %v5028 = vunpack.c.l.b16 %v4961
        %v5029 = vunpack.c.l.b16 %v4965
        %v5030 = vunpack.c.l.b16 %v4968
        %v5031 = vunpack.c.l.b16 %v4972
        %v5032 = vunpack.c.l.b16 %v4975
        %v5033 = vunpack.c.l.b16 %v4979
        %v5034 = vunpack.c.l.b16 %v4982
        %v5035 = vunpack.c.l.b16 %v4986
        %v5036 = vunpack.c.l.b16 %v4989
        %v5037 = vunpack.c.l.b16 %v4993
        %v5038 = vunpack.c.l.b16 %v4996
        %v5039 = vunpack.c.l.b16 %v5000
        %v5040 = vunpack.c.l.b16 %v5003
        %v5041 = vunpack.c.l.b16 %v5007
        %v5042 = vunpack.c.l.b16 %v5010
        %v5043 = vpack.c.b16 %v5012, %v5011
        %v5044 = vpack.c.b16 %v5014, %v5013
        %v5045 = vpack.c.b16 %v5016, %v5015
        %v5046 = vpack.c.b16 %v5018, %v5017
        %v5047 = vpack.c.b16 %v5020, %v5019
        %v5048 = vpack.c.b16 %v5022, %v5021
        %v5049 = vpack.c.b16 %v5024, %v5023
        %v5050 = vpack.c.b16 %v5026, %v5025
        %v5051 = vpack.c.b16 %v5028, %v5027
        %v5052 = vpack.c.b16 %v5030, %v5029
        %v5053 = vpack.c.b16 %v5032, %v5031
        %v5054 = vpack.c.b16 %v5034, %v5033
        %v5055 = vpack.c.b16 %v5036, %v5035
        %v5056 = vpack.c.b16 %v5038, %v5037
        %v5057 = vpack.c.b16 %v5040, %v5039
        %v5058 = vpack.c.b16 %v5042, %v5041
        %v5060 = vsel %vm1245, %v5043, 0
        %v5063 = vsel %vm1245, %v5044, 0
        %v5066 = vsel %vm1245, %v5045, 0
        %v5069 = vsel %vm1245, %v5046, 0
        %v5072 = vsel %vm1245, %v5047, 0
        %v5075 = vsel %vm1245, %v5048, 0
        %v5078 = vsel %vm1245, %v5049, 0
        %v5081 = vsel %vm1245, %v5050, 0
        %v5084 = vsel %vm1245, %v5051, 0
        %v5087 = vsel %vm1245, %v5052, 0
        %v5090 = vsel %vm1245, %v5053, 0
        %v5093 = vsel %vm1245, %v5054, 0
        %v5096 = vsel %vm1245, %v5055, 0
        %v5099 = vsel %vm1245, %v5056, 0
        %v5102 = vsel %vm1245, %v5057, 0
        %v5105 = vsel %vm1245, %v5058, 0
        %v5108 = vsel %vm1294, %v761, 0
        %5110 = vmatprep.subr.bf16.mxu0 0
        %5111 = vmatpush1.bf16.msra.mxu0 %v5108
        %5112 = vmatprep.subr.bf16.mxu0 0
        %5113 = vmatpush1.bf16.msra.mxu0 0
        %5114 = vmatprep.subr.bf16.mxu0 0
        %5115 = vmatpush1.bf16.msra.mxu0 0
        %5116 = vmatprep.subr.bf16.mxu0 0
        %5117 = vmatpush1.bf16.msra.mxu0 0
        %5118 = vmatprep.subr.bf16.mxu0 0
        %5119 = vmatpush1.bf16.msra.mxu0 0
        %5120 = vmatprep.subr.bf16.mxu0 0
        %5121 = vmatpush1.bf16.msra.mxu0 0
        %5122 = vmatprep.subr.bf16.mxu0 0
        %5123 = vmatpush1.bf16.msra.mxu0 0
        %5124 = vmatprep.subr.bf16.mxu0 0
        %5125 = vmatpush1.bf16.msra.mxu0 0
        %5126 = vmatprep.subr.bf16.mxu0 0
        %5127 = vmatpush1.bf16.msra.mxu0 0
        %5128 = vmatprep.subr.bf16.mxu0 0
        %5129 = vmatpush1.bf16.msra.mxu0 0
        %5130 = vmatprep.subr.bf16.mxu0 0
        %5131 = vmatpush1.bf16.msra.mxu0 0
        %5132 = vmatprep.subr.bf16.mxu0 0
        %5133 = vmatpush1.bf16.msra.mxu0 0
        %5134 = vmatprep.subr.bf16.mxu0 0
        %5135 = vmatpush1.bf16.msra.mxu0 0
        %5136 = vmatprep.subr.bf16.mxu0 0
        %5137 = vmatpush1.bf16.msra.mxu0 0
        %5138 = vmatprep.subr.bf16.mxu0 0
        %5139 = vmatpush1.bf16.msra.mxu0 0
        %5140 = vmatprep.subr.bf16.mxu0 0
        %5141 = vmatpush1.bf16.msra.mxu0 0
        %5142 = vmatprep.mubr.bf16.mxu0 0
        %5143 = vmatmul.mubr.bf16.gmra.mrb[0].mxu0 %v5060
        %v5144 = vpop.f32.mrb[0].mxu0
        %v5145 = vadd.f32 0.0, %v5144
        %v5146 = vpop.f32.mrb[0].mxu0
        %v5147 = vpop.f32.mrb[0].mxu0
        %v5148 = vadd.f32 0.0, %v5147
        %v5149 = vpop.f32.mrb[0].mxu0
        %5150 = vmatprep.mubr.bf16.mxu0 0
        %5151 = vmatmul.mubr.bf16.gmra.mrb[0].mxu0 %v5063
        %v5152 = vpop.f32.mrb[0].mxu0
        %v5153 = vadd.f32 0.0, %v5152
        %v5154 = vpop.f32.mrb[0].mxu0
        %v5155 = vpop.f32.mrb[0].mxu0
        %v5156 = vadd.f32 0.0, %v5155
        %v5157 = vpop.f32.mrb[0].mxu0
        %5158 = vmatprep.mubr.bf16.mxu0 0
        %5159 = vmatmul.mubr.bf16.gmra.mrb[0].mxu0 %v5066
        %v5160 = vpop.f32.mrb[0].mxu0
        %v5161 = vadd.f32 0.0, %v5160
        %v5162 = vpop.f32.mrb[0].mxu0
        %v5163 = vpop.f32.mrb[0].mxu0
        %v5164 = vadd.f32 0.0, %v5163
        %v5165 = vpop.f32.mrb[0].mxu0
        %5166 = vmatprep.mubr.bf16.mxu0 0
        %5167 = vmatmul.mubr.bf16.gmra.mrb[0].mxu0 %v5069
        %v5168 = vpop.f32.mrb[0].mxu0
        %v5169 = vadd.f32 0.0, %v5168
        %v5170 = vpop.f32.mrb[0].mxu0
        %v5171 = vpop.f32.mrb[0].mxu0
        %v5172 = vadd.f32 0.0, %v5171
        %v5173 = vpop.f32.mrb[0].mxu0
        %5174 = vmatprep.mubr.bf16.mxu0 0
        %5175 = vmatmul.mubr.bf16.gmra.mrb[0].mxu0 %v5072
        %v5176 = vpop.f32.mrb[0].mxu0
        %v5177 = vadd.f32 0.0, %v5176
        %v5178 = vpop.f32.mrb[0].mxu0
        %v5179 = vpop.f32.mrb[0].mxu0
        %v5180 = vadd.f32 0.0, %v5179
        %v5181 = vpop.f32.mrb[0].mxu0
        %5182 = vmatprep.mubr.bf16.mxu0 0
        %5183 = vmatmul.mubr.bf16.gmra.mrb[0].mxu0 %v5075
        %v5184 = vpop.f32.mrb[0].mxu0
        %v5185 = vadd.f32 0.0, %v5184
        %v5186 = vpop.f32.mrb[0].mxu0
        %v5187 = vpop.f32.mrb[0].mxu0
        %v5188 = vadd.f32 0.0, %v5187
        %v5189 = vpop.f32.mrb[0].mxu0
        %5190 = vmatprep.mubr.bf16.mxu0 0
        %5191 = vmatmul.mubr.bf16.gmra.mrb[0].mxu0 %v5078
        %v5192 = vpop.f32.mrb[0].mxu0
        %v5193 = vadd.f32 0.0, %v5192
        %v5194 = vpop.f32.mrb[0].mxu0
        %v5195 = vpop.f32.mrb[0].mxu0
        %v5196 = vadd.f32 0.0, %v5195
        %v5197 = vpop.f32.mrb[0].mxu0
        %5198 = vmatprep.mubr.bf16.mxu0 0
        %5199 = vmatmul.mubr.bf16.gmra.mrb[0].mxu0 %v5081
        %v5200 = vpop.f32.mrb[0].mxu0
        %v5201 = vadd.f32 0.0, %v5200
        %v5202 = vpop.f32.mrb[0].mxu0
        %v5203 = vpop.f32.mrb[0].mxu0
        %v5204 = vadd.f32 0.0, %v5203
        %v5205 = vpop.f32.mrb[0].mxu0
        %5206 = vmatprep.mubr.bf16.mxu0 0
        %5207 = vmatmul.mubr.bf16.gmra.mrb[0].mxu0 %v5084
        %v5208 = vpop.f32.mrb[0].mxu0
        %v5209 = vadd.f32 0.0, %v5208
        %v5210 = vpop.f32.mrb[0].mxu0
        %v5211 = vpop.f32.mrb[0].mxu0
        %v5212 = vadd.f32 0.0, %v5211
        %v5213 = vpop.f32.mrb[0].mxu0
        %5214 = vmatprep.mubr.bf16.mxu0 0
        %5215 = vmatmul.mubr.bf16.gmra.mrb[0].mxu0 %v5087
        %v5216 = vpop.f32.mrb[0].mxu0
        %v5217 = vadd.f32 0.0, %v5216
        %v5218 = vpop.f32.mrb[0].mxu0
        %v5219 = vpop.f32.mrb[0].mxu0
        %v5220 = vadd.f32 0.0, %v5219
        %v5221 = vpop.f32.mrb[0].mxu0
        %5222 = vmatprep.mubr.bf16.mxu0 0
        %5223 = vmatmul.mubr.bf16.gmra.mrb[0].mxu0 %v5090
        %v5224 = vpop.f32.mrb[0].mxu0
        %v5225 = vadd.f32 0.0, %v5224
        %v5226 = vpop.f32.mrb[0].mxu0
        %v5227 = vpop.f32.mrb[0].mxu0
        %v5228 = vadd.f32 0.0, %v5227
        %v5229 = vpop.f32.mrb[0].mxu0
        %5230 = vmatprep.mubr.bf16.mxu0 0
        %5231 = vmatmul.mubr.bf16.gmra.mrb[0].mxu0 %v5093
        %v5232 = vpop.f32.mrb[0].mxu0
        %v5233 = vadd.f32 0.0, %v5232
        %v5234 = vpop.f32.mrb[0].mxu0
        %v5235 = vpop.f32.mrb[0].mxu0
        %v5236 = vadd.f32 0.0, %v5235
        %v5237 = vpop.f32.mrb[0].mxu0
        %5238 = vmatprep.mubr.bf16.mxu0 0
        %5239 = vmatmul.mubr.bf16.gmra.mrb[0].mxu0 %v5096
        %v5240 = vpop.f32.mrb[0].mxu0
        %v5241 = vadd.f32 0.0, %v5240
        %v5242 = vpop.f32.mrb[0].mxu0
        %v5243 = vpop.f32.mrb[0].mxu0
        %v5244 = vadd.f32 0.0, %v5243
        %v5245 = vpop.f32.mrb[0].mxu0
        %5246 = vmatprep.mubr.bf16.mxu0 0
        %5247 = vmatmul.mubr.bf16.gmra.mrb[0].mxu0 %v5099
        %v5248 = vpop.f32.mrb[0].mxu0
        %v5249 = vadd.f32 0.0, %v5248
        %v5250 = vpop.f32.mrb[0].mxu0
        %v5251 = vpop.f32.mrb[0].mxu0
        %v5252 = vadd.f32 0.0, %v5251
        %v5253 = vpop.f32.mrb[0].mxu0
        %5254 = vmatprep.mubr.bf16.mxu0 0
        %5255 = vmatmul.mubr.bf16.gmra.mrb[0].mxu0 %v5102
        %v5256 = vpop.f32.mrb[0].mxu0
        %v5257 = vadd.f32 0.0, %v5256
        %v5258 = vpop.f32.mrb[0].mxu0
        %v5259 = vpop.f32.mrb[0].mxu0
        %v5260 = vadd.f32 0.0, %v5259
        %v5261 = vpop.f32.mrb[0].mxu0
        %5262 = vmatprep.mubr.bf16.mxu0 0
        %5263 = vmatmul.mubr.bf16.gmra.mrb[0].mxu0 %v5105
        %v5264 = vpop.f32.mrb[0].mxu0
        %v5265 = vadd.f32 0.0, %v5264
        %v5266 = vpop.f32.mrb[0].mxu0
        %v5267 = vpop.f32.mrb[0].mxu0
        %v5268 = vadd.f32 0.0, %v5267
        %v5269 = vpop.f32.mrb[0].mxu0
        %5270 = vdwg.mxu0
        %v5271 = vadd.f32 %v4803, %v5145
        %v5272 = vadd.f32 %v4804, %v5148
        %v5273 = vadd.f32 %v4805, %v5153
        %v5274 = vadd.f32 %v4806, %v5156
        %v5275 = vadd.f32 %v4807, %v5161
        %v5276 = vadd.f32 %v4808, %v5164
        %v5277 = vadd.f32 %v4809, %v5169
        %v5278 = vadd.f32 %v4810, %v5172
        %v5279 = vadd.f32 %v4811, %v5177
        %v5280 = vadd.f32 %v4812, %v5180
        %v5281 = vadd.f32 %v4813, %v5185
        %v5282 = vadd.f32 %v4814, %v5188
        %v5283 = vadd.f32 %v4815, %v5193
        %v5284 = vadd.f32 %v4816, %v5196
        %v5285 = vadd.f32 %v4817, %v5201
        %v5286 = vadd.f32 %v4818, %v5204
        %v5287 = vadd.f32 %v4819, %v5209
        %v5288 = vadd.f32 %v4820, %v5212
        %v5289 = vadd.f32 %v4821, %v5217
        %v5290 = vadd.f32 %v4822, %v5220
        %v5291 = vadd.f32 %v4823, %v5225
        %v5292 = vadd.f32 %v4824, %v5228
        %v5293 = vadd.f32 %v4825, %v5233
        %v5294 = vadd.f32 %v4826, %v5236
        %v5295 = vadd.f32 %v4827, %v5241
        %v5296 = vadd.f32 %v4828, %v5244
        %v5297 = vadd.f32 %v4829, %v5249
        %v5298 = vadd.f32 %v4830, %v5252
        %v5299 = vadd.f32 %v4831, %v5257
        %v5300 = vadd.f32 %v4832, %v5260
        %v5301 = vadd.f32 %v4833, %v5265
        %v5302 = vadd.f32 %v4834, %v5268
        %v5303 = vld [vmem:[%s3] sm:$0x1]
        %v5305 = vlaneseq
        %v5306 = vshrl.u32 %v5305, 7
        %v5307 = vsub.s32 0, %v5306
        %v5308 = vrot.slane %v5303, %v5307
        %v5310 = vadd.f32 %v5271, %v5308
        %v5311 = vadd.f32 %v5272, %v5308
        %v5312 = vadd.f32 %v5273, %v5308
        %v5313 = vadd.f32 %v5274, %v5308
        %v5314 = vadd.f32 %v5275, %v5308
        %v5315 = vadd.f32 %v5276, %v5308
        %v5316 = vadd.f32 %v5277, %v5308
        %v5317 = vadd.f32 %v5278, %v5308
        %v5318 = vadd.f32 %v5279, %v5308
        %v5319 = vadd.f32 %v5280, %v5308
        %v5320 = vadd.f32 %v5281, %v5308
        %v5321 = vadd.f32 %v5282, %v5308
        %v5322 = vadd.f32 %v5283, %v5308
        %v5323 = vadd.f32 %v5284, %v5308
        %v5324 = vadd.f32 %v5285, %v5308
        %v5325 = vadd.f32 %v5286, %v5308
        %v5326 = vadd.f32 %v5287, %v5308
        %v5327 = vadd.f32 %v5288, %v5308
        %v5328 = vadd.f32 %v5289, %v5308
        %v5329 = vadd.f32 %v5290, %v5308
        %v5330 = vadd.f32 %v5291, %v5308
        %v5331 = vadd.f32 %v5292, %v5308
        %v5332 = vadd.f32 %v5293, %v5308
        %v5333 = vadd.f32 %v5294, %v5308
        %v5334 = vadd.f32 %v5295, %v5308
        %v5335 = vadd.f32 %v5296, %v5308
        %v5336 = vadd.f32 %v5297, %v5308
        %v5337 = vadd.f32 %v5298, %v5308
        %v5338 = vadd.f32 %v5299, %v5308
        %v5339 = vadd.f32 %v5300, %v5308
        %v5340 = vadd.f32 %v5301, %v5308
        %v5341 = vadd.f32 %v5302, %v5308
        %v5342 = vmax.f32 %v5310, 0.0
        %v5343 = vmax.f32 %v5311, 0.0
        %v5344 = vmax.f32 %v5312, 0.0
        %v5345 = vmax.f32 %v5313, 0.0
        %v5346 = vmax.f32 %v5314, 0.0
        %v5347 = vmax.f32 %v5315, 0.0
        %v5348 = vmax.f32 %v5316, 0.0
        %v5349 = vmax.f32 %v5317, 0.0
        %v5350 = vmax.f32 %v5318, 0.0
        %v5351 = vmax.f32 %v5319, 0.0
        %v5352 = vmax.f32 %v5320, 0.0
        %v5353 = vmax.f32 %v5321, 0.0
        %v5354 = vmax.f32 %v5322, 0.0
        %v5355 = vmax.f32 %v5323, 0.0
        %v5356 = vmax.f32 %v5324, 0.0
        %v5357 = vmax.f32 %v5325, 0.0
        %v5358 = vmax.f32 %v5326, 0.0
        %v5359 = vmax.f32 %v5327, 0.0
        %v5360 = vmax.f32 %v5328, 0.0
        %v5361 = vmax.f32 %v5329, 0.0
        %v5362 = vmax.f32 %v5330, 0.0
        %v5363 = vmax.f32 %v5331, 0.0
        %v5364 = vmax.f32 %v5332, 0.0
        %v5365 = vmax.f32 %v5333, 0.0
        %v5366 = vmax.f32 %v5334, 0.0
        %v5367 = vmax.f32 %v5335, 0.0
        %v5368 = vmax.f32 %v5336, 0.0
        %v5369 = vmax.f32 %v5337, 0.0
        %v5370 = vmax.f32 %v5338, 0.0
        %v5371 = vmax.f32 %v5339, 0.0
        %v5372 = vmax.f32 %v5340, 0.0
        %v5373 = vmax.f32 %v5341, 0.0
        %v5406 = vcombine.high %v5342, %v5342
        %v5408 = vunpack.c.l.s4 1983009808
        %v5409 = vunpack.c.0.s8 %v5408
        %v5410 = vlaneseq
        %v5411 = vshrl.u32 %v5410, 7
        %v5412 = vsub.s32 %v5409, %v5411
        %v5413 = vrot.slane %v5342, %v5412
        %v5415 = vunpack.c.l.s4 1983009808
        %v5416 = vunpack.c.0.s8 %v5415
        %v5417 = vlaneseq
        %v5418 = vshrl.u32 %v5417, 7
        %v5419 = vsub.s32 %v5416, %v5418
        %v5420 = vrot.slane %v5406, %v5419
        %v5421 = vcombine.high %v5413, %v5413
        %v5422 = vcombine.high %v5420, %v5420
        %v5423 = vcombine.high %v5343, %v5343
        %v5425 = vunpack.c.l.s4 1983009808
        %v5426 = vunpack.c.0.s8 %v5425
        %v5427 = vlaneseq
        %v5428 = vshrl.u32 %v5427, 7
        %v5429 = vsub.s32 %v5426, %v5428
        %v5430 = vrot.slane %v5343, %v5429
        %v5432 = vunpack.c.l.s4 1983009808
        %v5433 = vunpack.c.0.s8 %v5432
        %v5434 = vlaneseq
        %v5435 = vshrl.u32 %v5434, 7
        %v5436 = vsub.s32 %v5433, %v5435
        %v5437 = vrot.slane %v5423, %v5436
        %v5438 = vcombine.high %v5430, %v5430
        %v5439 = vcombine.high %v5437, %v5437
        %v5440 = vcombine.high %v5344, %v5344
        %v5442 = vunpack.c.l.s4 1983009808
        %v5443 = vunpack.c.0.s8 %v5442
        %v5444 = vlaneseq
        %v5445 = vshrl.u32 %v5444, 7
        %v5446 = vsub.s32 %v5443, %v5445
        %v5447 = vrot.slane %v5344, %v5446
        %v5449 = vunpack.c.l.s4 1983009808
        %v5450 = vunpack.c.0.s8 %v5449
        %v5451 = vlaneseq
        %v5452 = vshrl.u32 %v5451, 7
        %v5453 = vsub.s32 %v5450, %v5452
        %v5454 = vrot.slane %v5440, %v5453
        %v5455 = vcombine.high %v5447, %v5447
        %v5456 = vcombine.high %v5454, %v5454
        %v5457 = vcombine.high %v5345, %v5345
        %v5459 = vunpack.c.l.s4 1983009808
        %v5460 = vunpack.c.0.s8 %v5459
        %v5461 = vlaneseq
        %v5462 = vshrl.u32 %v5461, 7
        %v5463 = vsub.s32 %v5460, %v5462
        %v5464 = vrot.slane %v5345, %v5463
        %v5466 = vunpack.c.l.s4 1983009808
        %v5467 = vunpack.c.0.s8 %v5466
        %v5468 = vlaneseq
        %v5469 = vshrl.u32 %v5468, 7
        %v5470 = vsub.s32 %v5467, %v5469
        %v5471 = vrot.slane %v5457, %v5470
        %v5472 = vcombine.high %v5464, %v5464
        %v5473 = vcombine.high %v5471, %v5471
        %v5474 = vcombine.high %v5346, %v5346
        %v5476 = vunpack.c.l.s4 1983009808
        %v5477 = vunpack.c.0.s8 %v5476
        %v5478 = vlaneseq
        %v5479 = vshrl.u32 %v5478, 7
        %v5480 = vsub.s32 %v5477, %v5479
        %v5481 = vrot.slane %v5346, %v5480
        %v5483 = vunpack.c.l.s4 1983009808
        %v5484 = vunpack.c.0.s8 %v5483
        %v5485 = vlaneseq
        %v5486 = vshrl.u32 %v5485, 7
        %v5487 = vsub.s32 %v5484, %v5486
        %v5488 = vrot.slane %v5474, %v5487
        %v5489 = vcombine.high %v5481, %v5481
        %v5490 = vcombine.high %v5488, %v5488
        %v5491 = vcombine.high %v5347, %v5347
        %v5493 = vunpack.c.l.s4 1983009808
        %v5494 = vunpack.c.0.s8 %v5493
        %v5495 = vlaneseq
        %v5496 = vshrl.u32 %v5495, 7
        %v5497 = vsub.s32 %v5494, %v5496
        %v5498 = vrot.slane %v5347, %v5497
        %v5500 = vunpack.c.l.s4 1983009808
        %v5501 = vunpack.c.0.s8 %v5500
        %v5502 = vlaneseq
        %v5503 = vshrl.u32 %v5502, 7
        %v5504 = vsub.s32 %v5501, %v5503
        %v5505 = vrot.slane %v5491, %v5504
        %v5506 = vcombine.high %v5498, %v5498
        %v5507 = vcombine.high %v5505, %v5505
        %v5508 = vcombine.high %v5348, %v5348
        %v5510 = vunpack.c.l.s4 1983009808
        %v5511 = vunpack.c.0.s8 %v5510
        %v5512 = vlaneseq
        %v5513 = vshrl.u32 %v5512, 7
        %v5514 = vsub.s32 %v5511, %v5513
        %v5515 = vrot.slane %v5348, %v5514
        %v5517 = vunpack.c.l.s4 1983009808
        %v5518 = vunpack.c.0.s8 %v5517
        %v5519 = vlaneseq
        %v5520 = vshrl.u32 %v5519, 7
        %v5521 = vsub.s32 %v5518, %v5520
        %v5522 = vrot.slane %v5508, %v5521
        %v5523 = vcombine.high %v5515, %v5515
        %v5524 = vcombine.high %v5522, %v5522
        %v5525 = vcombine.high %v5349, %v5349
        %v5527 = vunpack.c.l.s4 1983009808
        %v5528 = vunpack.c.0.s8 %v5527
        %v5529 = vlaneseq
        %v5530 = vshrl.u32 %v5529, 7
        %v5531 = vsub.s32 %v5528, %v5530
        %v5532 = vrot.slane %v5349, %v5531
        %v5534 = vunpack.c.l.s4 1983009808
        %v5535 = vunpack.c.0.s8 %v5534
        %v5536 = vlaneseq
        %v5537 = vshrl.u32 %v5536, 7
        %v5538 = vsub.s32 %v5535, %v5537
        %v5539 = vrot.slane %v5525, %v5538
        %v5540 = vcombine.high %v5532, %v5532
        %v5541 = vcombine.high %v5539, %v5539
        %v5542 = vcombine.high %v5350, %v5350
        %v5544 = vunpack.c.l.s4 1983009808
        %v5545 = vunpack.c.0.s8 %v5544
        %v5546 = vlaneseq
        %v5547 = vshrl.u32 %v5546, 7
        %v5548 = vsub.s32 %v5545, %v5547
        %v5549 = vrot.slane %v5350, %v5548
        %v5551 = vunpack.c.l.s4 1983009808
        %v5552 = vunpack.c.0.s8 %v5551
        %v5553 = vlaneseq
        %v5554 = vshrl.u32 %v5553, 7
        %v5555 = vsub.s32 %v5552, %v5554
        %v5556 = vrot.slane %v5542, %v5555
        %v5557 = vcombine.high %v5549, %v5549
        %v5558 = vcombine.high %v5556, %v5556
        %v5559 = vcombine.high %v5351, %v5351
        %v5561 = vunpack.c.l.s4 1983009808
        %v5562 = vunpack.c.0.s8 %v5561
        %v5563 = vlaneseq
        %v5564 = vshrl.u32 %v5563, 7
        %v5565 = vsub.s32 %v5562, %v5564
        %v5566 = vrot.slane %v5351, %v5565
        %v5568 = vunpack.c.l.s4 1983009808
        %v5569 = vunpack.c.0.s8 %v5568
        %v5570 = vlaneseq
        %v5571 = vshrl.u32 %v5570, 7
        %v5572 = vsub.s32 %v5569, %v5571
        %v5573 = vrot.slane %v5559, %v5572
        %v5574 = vcombine.high %v5566, %v5566
        %v5575 = vcombine.high %v5573, %v5573
        %v5576 = vcombine.high %v5352, %v5352
        %v5578 = vunpack.c.l.s4 1983009808
        %v5579 = vunpack.c.0.s8 %v5578
        %v5580 = vlaneseq
        %v5581 = vshrl.u32 %v5580, 7
        %v5582 = vsub.s32 %v5579, %v5581
        %v5583 = vrot.slane %v5352, %v5582
        %v5585 = vunpack.c.l.s4 1983009808
        %v5586 = vunpack.c.0.s8 %v5585
        %v5587 = vlaneseq
        %v5588 = vshrl.u32 %v5587, 7
        %v5589 = vsub.s32 %v5586, %v5588
        %v5590 = vrot.slane %v5576, %v5589
        %v5591 = vcombine.high %v5583, %v5583
        %v5592 = vcombine.high %v5590, %v5590
        %v5593 = vcombine.high %v5353, %v5353
        %v5595 = vunpack.c.l.s4 1983009808
        %v5596 = vunpack.c.0.s8 %v5595
        %v5597 = vlaneseq
        %v5598 = vshrl.u32 %v5597, 7
        %v5599 = vsub.s32 %v5596, %v5598
        %v5600 = vrot.slane %v5353, %v5599
        %v5602 = vunpack.c.l.s4 1983009808
        %v5603 = vunpack.c.0.s8 %v5602
        %v5604 = vlaneseq
        %v5605 = vshrl.u32 %v5604, 7
        %v5606 = vsub.s32 %v5603, %v5605
        %v5607 = vrot.slane %v5593, %v5606
        %v5608 = vcombine.high %v5600, %v5600
        %v5609 = vcombine.high %v5607, %v5607
        %v5610 = vcombine.high %v5354, %v5354
        %v5612 = vunpack.c.l.s4 1983009808
        %v5613 = vunpack.c.0.s8 %v5612
        %v5614 = vlaneseq
        %v5615 = vshrl.u32 %v5614, 7
        %v5616 = vsub.s32 %v5613, %v5615
        %v5617 = vrot.slane %v5354, %v5616
        %v5619 = vunpack.c.l.s4 1983009808
        %v5620 = vunpack.c.0.s8 %v5619
        %v5621 = vlaneseq
        %v5622 = vshrl.u32 %v5621, 7
        %v5623 = vsub.s32 %v5620, %v5622
        %v5624 = vrot.slane %v5610, %v5623
        %v5625 = vcombine.high %v5617, %v5617
        %v5626 = vcombine.high %v5624, %v5624
        %v5627 = vcombine.high %v5355, %v5355
        %v5629 = vunpack.c.l.s4 1983009808
        %v5630 = vunpack.c.0.s8 %v5629
        %v5631 = vlaneseq
        %v5632 = vshrl.u32 %v5631, 7
        %v5633 = vsub.s32 %v5630, %v5632
        %v5634 = vrot.slane %v5355, %v5633
        %v5636 = vunpack.c.l.s4 1983009808
        %v5637 = vunpack.c.0.s8 %v5636
        %v5638 = vlaneseq
        %v5639 = vshrl.u32 %v5638, 7
        %v5640 = vsub.s32 %v5637, %v5639
        %v5641 = vrot.slane %v5627, %v5640
        %v5642 = vcombine.high %v5634, %v5634
        %v5643 = vcombine.high %v5641, %v5641
        %v5644 = vcombine.high %v5356, %v5356
        %v5646 = vunpack.c.l.s4 1983009808
        %v5647 = vunpack.c.0.s8 %v5646
        %v5648 = vlaneseq
        %v5649 = vshrl.u32 %v5648, 7
        %v5650 = vsub.s32 %v5647, %v5649
        %v5651 = vrot.slane %v5356, %v5650
        %v5653 = vunpack.c.l.s4 1983009808
        %v5654 = vunpack.c.0.s8 %v5653
        %v5655 = vlaneseq
        %v5656 = vshrl.u32 %v5655, 7
        %v5657 = vsub.s32 %v5654, %v5656
        %v5658 = vrot.slane %v5644, %v5657
        %v5659 = vcombine.high %v5651, %v5651
        %v5660 = vcombine.high %v5658, %v5658
        %v5661 = vcombine.high %v5357, %v5357
        %v5663 = vunpack.c.l.s4 1983009808
        %v5664 = vunpack.c.0.s8 %v5663
        %v5665 = vlaneseq
        %v5666 = vshrl.u32 %v5665, 7
        %v5667 = vsub.s32 %v5664, %v5666
        %v5668 = vrot.slane %v5357, %v5667
        %v5670 = vunpack.c.l.s4 1983009808
        %v5671 = vunpack.c.0.s8 %v5670
        %v5672 = vlaneseq
        %v5673 = vshrl.u32 %v5672, 7
        %v5674 = vsub.s32 %v5671, %v5673
        %v5675 = vrot.slane %v5661, %v5674
        %v5676 = vcombine.high %v5668, %v5668
        %v5677 = vcombine.high %v5675, %v5675
        %v5678 = vcombine.high %v5358, %v5358
        %v5680 = vunpack.c.l.s4 1983009808
        %v5681 = vunpack.c.0.s8 %v5680
        %v5682 = vlaneseq
        %v5683 = vshrl.u32 %v5682, 7
        %v5684 = vsub.s32 %v5681, %v5683
        %v5685 = vrot.slane %v5358, %v5684
        %v5687 = vunpack.c.l.s4 1983009808
        %v5688 = vunpack.c.0.s8 %v5687
        %v5689 = vlaneseq
        %v5690 = vshrl.u32 %v5689, 7
        %v5691 = vsub.s32 %v5688, %v5690
        %v5692 = vrot.slane %v5678, %v5691
        %v5693 = vcombine.high %v5685, %v5685
        %v5694 = vcombine.high %v5692, %v5692
        %v5695 = vcombine.high %v5359, %v5359
        %v5697 = vunpack.c.l.s4 1983009808
        %v5698 = vunpack.c.0.s8 %v5697
        %v5699 = vlaneseq
        %v5700 = vshrl.u32 %v5699, 7
        %v5701 = vsub.s32 %v5698, %v5700
        %v5702 = vrot.slane %v5359, %v5701
        %v5704 = vunpack.c.l.s4 1983009808
        %v5705 = vunpack.c.0.s8 %v5704
        %v5706 = vlaneseq
        %v5707 = vshrl.u32 %v5706, 7
        %v5708 = vsub.s32 %v5705, %v5707
        %v5709 = vrot.slane %v5695, %v5708
        %v5710 = vcombine.high %v5702, %v5702
        %v5711 = vcombine.high %v5709, %v5709
        %v5712 = vcombine.high %v5360, %v5360
        %v5714 = vunpack.c.l.s4 1983009808
        %v5715 = vunpack.c.0.s8 %v5714
        %v5716 = vlaneseq
        %v5717 = vshrl.u32 %v5716, 7
        %v5718 = vsub.s32 %v5715, %v5717
        %v5719 = vrot.slane %v5360, %v5718
        %v5721 = vunpack.c.l.s4 1983009808
        %v5722 = vunpack.c.0.s8 %v5721
        %v5723 = vlaneseq
        %v5724 = vshrl.u32 %v5723, 7
        %v5725 = vsub.s32 %v5722, %v5724
        %v5726 = vrot.slane %v5712, %v5725
        %v5727 = vcombine.high %v5719, %v5719
        %v5728 = vcombine.high %v5726, %v5726
        %v5729 = vcombine.high %v5361, %v5361
        %v5731 = vunpack.c.l.s4 1983009808
        %v5732 = vunpack.c.0.s8 %v5731
        %v5733 = vlaneseq
        %v5734 = vshrl.u32 %v5733, 7
        %v5735 = vsub.s32 %v5732, %v5734
        %v5736 = vrot.slane %v5361, %v5735
        %v5738 = vunpack.c.l.s4 1983009808
        %v5739 = vunpack.c.0.s8 %v5738
        %v5740 = vlaneseq
        %v5741 = vshrl.u32 %v5740, 7
        %v5742 = vsub.s32 %v5739, %v5741
        %v5743 = vrot.slane %v5729, %v5742
        %v5744 = vcombine.high %v5736, %v5736
        %v5745 = vcombine.high %v5743, %v5743
        %v5746 = vcombine.high %v5362, %v5362
        %v5748 = vunpack.c.l.s4 1983009808
        %v5749 = vunpack.c.0.s8 %v5748
        %v5750 = vlaneseq
        %v5751 = vshrl.u32 %v5750, 7
        %v5752 = vsub.s32 %v5749, %v5751
        %v5753 = vrot.slane %v5362, %v5752
        %v5755 = vunpack.c.l.s4 1983009808
        %v5756 = vunpack.c.0.s8 %v5755
        %v5757 = vlaneseq
        %v5758 = vshrl.u32 %v5757, 7
        %v5759 = vsub.s32 %v5756, %v5758
        %v5760 = vrot.slane %v5746, %v5759
        %v5761 = vcombine.high %v5753, %v5753
        %v5762 = vcombine.high %v5760, %v5760
        %v5763 = vcombine.high %v5363, %v5363
        %v5765 = vunpack.c.l.s4 1983009808
        %v5766 = vunpack.c.0.s8 %v5765
        %v5767 = vlaneseq
        %v5768 = vshrl.u32 %v5767, 7
        %v5769 = vsub.s32 %v5766, %v5768
        %v5770 = vrot.slane %v5363, %v5769
        %v5772 = vunpack.c.l.s4 1983009808
        %v5773 = vunpack.c.0.s8 %v5772
        %v5774 = vlaneseq
        %v5775 = vshrl.u32 %v5774, 7
        %v5776 = vsub.s32 %v5773, %v5775
        %v5777 = vrot.slane %v5763, %v5776
        %v5778 = vcombine.high %v5770, %v5770
        %v5779 = vcombine.high %v5777, %v5777
        %v5780 = vcombine.high %v5364, %v5364
        %v5782 = vunpack.c.l.s4 1983009808
        %v5783 = vunpack.c.0.s8 %v5782
        %v5784 = vlaneseq
        %v5785 = vshrl.u32 %v5784, 7
        %v5786 = vsub.s32 %v5783, %v5785
        %v5787 = vrot.slane %v5364, %v5786
        %v5789 = vunpack.c.l.s4 1983009808
        %v5790 = vunpack.c.0.s8 %v5789
        %v5791 = vlaneseq
        %v5792 = vshrl.u32 %v5791, 7
        %v5793 = vsub.s32 %v5790, %v5792
        %v5794 = vrot.slane %v5780, %v5793
        %v5795 = vcombine.high %v5787, %v5787
        %v5796 = vcombine.high %v5794, %v5794
        %v5797 = vcombine.high %v5365, %v5365
        %v5799 = vunpack.c.l.s4 1983009808
        %v5800 = vunpack.c.0.s8 %v5799
        %v5801 = vlaneseq
        %v5802 = vshrl.u32 %v5801, 7
        %v5803 = vsub.s32 %v5800, %v5802
        %v5804 = vrot.slane %v5365, %v5803
        %v5806 = vunpack.c.l.s4 1983009808
        %v5807 = vunpack.c.0.s8 %v5806
        %v5808 = vlaneseq
        %v5809 = vshrl.u32 %v5808, 7
        %v5810 = vsub.s32 %v5807, %v5809
        %v5811 = vrot.slane %v5797, %v5810
        %v5812 = vcombine.high %v5804, %v5804
        %v5813 = vcombine.high %v5811, %v5811
        %v5814 = vcombine.high %v5366, %v5366
        %v5816 = vunpack.c.l.s4 1983009808
        %v5817 = vunpack.c.0.s8 %v5816
        %v5818 = vlaneseq
        %v5819 = vshrl.u32 %v5818, 7
        %v5820 = vsub.s32 %v5817, %v5819
        %v5821 = vrot.slane %v5366, %v5820
        %v5823 = vunpack.c.l.s4 1983009808
        %v5824 = vunpack.c.0.s8 %v5823
        %v5825 = vlaneseq
        %v5826 = vshrl.u32 %v5825, 7
        %v5827 = vsub.s32 %v5824, %v5826
        %v5828 = vrot.slane %v5814, %v5827
        %v5829 = vcombine.high %v5821, %v5821
        %v5830 = vcombine.high %v5828, %v5828
        %v5831 = vcombine.high %v5367, %v5367
        %v5833 = vunpack.c.l.s4 1983009808
        %v5834 = vunpack.c.0.s8 %v5833
        %v5835 = vlaneseq
        %v5836 = vshrl.u32 %v5835, 7
        %v5837 = vsub.s32 %v5834, %v5836
        %v5838 = vrot.slane %v5367, %v5837
        %v5840 = vunpack.c.l.s4 1983009808
        %v5841 = vunpack.c.0.s8 %v5840
        %v5842 = vlaneseq
        %v5843 = vshrl.u32 %v5842, 7
        %v5844 = vsub.s32 %v5841, %v5843
        %v5845 = vrot.slane %v5831, %v5844
        %v5846 = vcombine.high %v5838, %v5838
        %v5847 = vcombine.high %v5845, %v5845
        %v5848 = vcombine.high %v5368, %v5368
        %v5850 = vunpack.c.l.s4 1983009808
        %v5851 = vunpack.c.0.s8 %v5850
        %v5852 = vlaneseq
        %v5853 = vshrl.u32 %v5852, 7
        %v5854 = vsub.s32 %v5851, %v5853
        %v5855 = vrot.slane %v5368, %v5854
        %v5857 = vunpack.c.l.s4 1983009808
        %v5858 = vunpack.c.0.s8 %v5857
        %v5859 = vlaneseq
        %v5860 = vshrl.u32 %v5859, 7
        %v5861 = vsub.s32 %v5858, %v5860
        %v5862 = vrot.slane %v5848, %v5861
        %v5863 = vcombine.high %v5855, %v5855
        %v5864 = vcombine.high %v5862, %v5862
        %v5865 = vcombine.high %v5369, %v5369
        %v5867 = vunpack.c.l.s4 1983009808
        %v5868 = vunpack.c.0.s8 %v5867
        %v5869 = vlaneseq
        %v5870 = vshrl.u32 %v5869, 7
        %v5871 = vsub.s32 %v5868, %v5870
        %v5872 = vrot.slane %v5369, %v5871
        %v5874 = vunpack.c.l.s4 1983009808
        %v5875 = vunpack.c.0.s8 %v5874
        %v5876 = vlaneseq
        %v5877 = vshrl.u32 %v5876, 7
        %v5878 = vsub.s32 %v5875, %v5877
        %v5879 = vrot.slane %v5865, %v5878
        %v5880 = vcombine.high %v5872, %v5872
        %v5881 = vcombine.high %v5879, %v5879
        %v5882 = vcombine.high %v5370, %v5370
        %v5884 = vunpack.c.l.s4 1983009808
        %v5885 = vunpack.c.0.s8 %v5884
        %v5886 = vlaneseq
        %v5887 = vshrl.u32 %v5886, 7
        %v5888 = vsub.s32 %v5885, %v5887
        %v5889 = vrot.slane %v5370, %v5888
        %v5891 = vunpack.c.l.s4 1983009808
        %v5892 = vunpack.c.0.s8 %v5891
        %v5893 = vlaneseq
        %v5894 = vshrl.u32 %v5893, 7
        %v5895 = vsub.s32 %v5892, %v5894
        %v5896 = vrot.slane %v5882, %v5895
        %v5897 = vcombine.high %v5889, %v5889
        %v5898 = vcombine.high %v5896, %v5896
        %v5899 = vcombine.high %v5371, %v5371
        %v5901 = vunpack.c.l.s4 1983009808
        %v5902 = vunpack.c.0.s8 %v5901
        %v5903 = vlaneseq
        %v5904 = vshrl.u32 %v5903, 7
        %v5905 = vsub.s32 %v5902, %v5904
        %v5906 = vrot.slane %v5371, %v5905
        %v5908 = vunpack.c.l.s4 1983009808
        %v5909 = vunpack.c.0.s8 %v5908
        %v5910 = vlaneseq
        %v5911 = vshrl.u32 %v5910, 7
        %v5912 = vsub.s32 %v5909, %v5911
        %v5913 = vrot.slane %v5899, %v5912
        %v5914 = vcombine.high %v5906, %v5906
        %v5915 = vcombine.high %v5913, %v5913
        %v5916 = vcombine.high %v5372, %v5372
        %v5918 = vunpack.c.l.s4 1983009808
        %v5919 = vunpack.c.0.s8 %v5918
        %v5920 = vlaneseq
        %v5921 = vshrl.u32 %v5920, 7
        %v5922 = vsub.s32 %v5919, %v5921
        %v5923 = vrot.slane %v5372, %v5922
        %v5925 = vunpack.c.l.s4 1983009808
        %v5926 = vunpack.c.0.s8 %v5925
        %v5927 = vlaneseq
        %v5928 = vshrl.u32 %v5927, 7
        %v5929 = vsub.s32 %v5926, %v5928
        %v5930 = vrot.slane %v5916, %v5929
        %v5931 = vcombine.high %v5923, %v5923
        %v5932 = vcombine.high %v5930, %v5930
        %v5933 = vcombine.high %v5373, %v5373
        %v5935 = vunpack.c.l.s4 1983009808
        %v5936 = vunpack.c.0.s8 %v5935
        %v5937 = vlaneseq
        %v5938 = vshrl.u32 %v5937, 7
        %v5939 = vsub.s32 %v5936, %v5938
        %v5940 = vrot.slane %v5373, %v5939
        %v5942 = vunpack.c.l.s4 1983009808
        %v5943 = vunpack.c.0.s8 %v5942
        %v5944 = vlaneseq
        %v5945 = vshrl.u32 %v5944, 7
        %v5946 = vsub.s32 %v5943, %v5945
        %v5947 = vrot.slane %v5933, %v5946
        %v5948 = vcombine.high %v5940, %v5940
        %v5949 = vcombine.high %v5947, %v5947
        %vm6078 = vcmask 123904
        %v6079 = vsel %vm6078, %v5413, -inf
        %v6080 = vrot.slane %v6079, 4
        %v6081 = vmax.f32 %v6079, %v6080
        %v6082 = vrot.slane %v6081, 2
        %v6083 = vmax.f32 %v6081, %v6082
        %v6084 = vrot.slane %v6083, 1
        %v6085 = vmax.f32 %v6083, %v6084
        %v6086 = vsel %vm6078, %v5421, -inf
        %v6087 = vrot.slane %v6086, 4
        %v6088 = vmax.f32 %v6086, %v6087
        %v6089 = vrot.slane %v6088, 2
        %v6090 = vmax.f32 %v6088, %v6089
        %v6091 = vrot.slane %v6090, 1
        %v6092 = vmax.f32 %v6090, %v6091
        %v6093 = vsel %vm6078, %v5420, -inf
        %v6094 = vrot.slane %v6093, 4
        %v6095 = vmax.f32 %v6093, %v6094
        %v6096 = vrot.slane %v6095, 2
        %v6097 = vmax.f32 %v6095, %v6096
        %v6098 = vrot.slane %v6097, 1
        %v6099 = vmax.f32 %v6097, %v6098
        %v6100 = vsel %vm6078, %v5422, -inf
        %v6101 = vrot.slane %v6100, 4
        %v6102 = vmax.f32 %v6100, %v6101
        %v6103 = vrot.slane %v6102, 2
        %v6104 = vmax.f32 %v6102, %v6103
        %v6105 = vrot.slane %v6104, 1
        %v6106 = vmax.f32 %v6104, %v6105
        %v6107 = vsel %vm6078, %v5430, -inf
        %v6108 = vrot.slane %v6107, 4
        %v6109 = vmax.f32 %v6107, %v6108
        %v6110 = vrot.slane %v6109, 2
        %v6111 = vmax.f32 %v6109, %v6110
        %v6112 = vrot.slane %v6111, 1
        %v6113 = vmax.f32 %v6111, %v6112
        %v6114 = vsel %vm6078, %v5438, -inf
        %v6115 = vrot.slane %v6114, 4
        %v6116 = vmax.f32 %v6114, %v6115
        %v6117 = vrot.slane %v6116, 2
        %v6118 = vmax.f32 %v6116, %v6117
        %v6119 = vrot.slane %v6118, 1
        %v6120 = vmax.f32 %v6118, %v6119
        %v6121 = vsel %vm6078, %v5437, -inf
        %v6122 = vrot.slane %v6121, 4
        %v6123 = vmax.f32 %v6121, %v6122
        %v6124 = vrot.slane %v6123, 2
        %v6125 = vmax.f32 %v6123, %v6124
        %v6126 = vrot.slane %v6125, 1
        %v6127 = vmax.f32 %v6125, %v6126
        %v6128 = vsel %vm6078, %v5439, -inf
        %v6129 = vrot.slane %v6128, 4
        %v6130 = vmax.f32 %v6128, %v6129
        %v6131 = vrot.slane %v6130, 2
        %v6132 = vmax.f32 %v6130, %v6131
        %v6133 = vrot.slane %v6132, 1
        %v6134 = vmax.f32 %v6132, %v6133
        %v6135 = vsel %vm6078, %v5447, -inf
        %v6136 = vrot.slane %v6135, 4
        %v6137 = vmax.f32 %v6135, %v6136
        %v6138 = vrot.slane %v6137, 2
        %v6139 = vmax.f32 %v6137, %v6138
        %v6140 = vrot.slane %v6139, 1
        %v6141 = vmax.f32 %v6139, %v6140
        %v6142 = vsel %vm6078, %v5455, -inf
        %v6143 = vrot.slane %v6142, 4
        %v6144 = vmax.f32 %v6142, %v6143
        %v6145 = vrot.slane %v6144, 2
        %v6146 = vmax.f32 %v6144, %v6145
        %v6147 = vrot.slane %v6146, 1
        %v6148 = vmax.f32 %v6146, %v6147
        %v6149 = vsel %vm6078, %v5454, -inf
        %v6150 = vrot.slane %v6149, 4
        %v6151 = vmax.f32 %v6149, %v6150
        %v6152 = vrot.slane %v6151, 2
        %v6153 = vmax.f32 %v6151, %v6152
        %v6154 = vrot.slane %v6153, 1
        %v6155 = vmax.f32 %v6153, %v6154
        %v6156 = vsel %vm6078, %v5456, -inf
        %v6157 = vrot.slane %v6156, 4
        %v6158 = vmax.f32 %v6156, %v6157
        %v6159 = vrot.slane %v6158, 2
        %v6160 = vmax.f32 %v6158, %v6159
        %v6161 = vrot.slane %v6160, 1
        %v6162 = vmax.f32 %v6160, %v6161
        %v6163 = vsel %vm6078, %v5464, -inf
        %v6164 = vrot.slane %v6163, 4
        %v6165 = vmax.f32 %v6163, %v6164
        %v6166 = vrot.slane %v6165, 2
        %v6167 = vmax.f32 %v6165, %v6166
        %v6168 = vrot.slane %v6167, 1
        %v6169 = vmax.f32 %v6167, %v6168
        %v6170 = vsel %vm6078, %v5472, -inf
        %v6171 = vrot.slane %v6170, 4
        %v6172 = vmax.f32 %v6170, %v6171
        %v6173 = vrot.slane %v6172, 2
        %v6174 = vmax.f32 %v6172, %v6173
        %v6175 = vrot.slane %v6174, 1
        %v6176 = vmax.f32 %v6174, %v6175
        %v6177 = vsel %vm6078, %v5471, -inf
        %v6178 = vrot.slane %v6177, 4
        %v6179 = vmax.f32 %v6177, %v6178
        %v6180 = vrot.slane %v6179, 2
        %v6181 = vmax.f32 %v6179, %v6180
        %v6182 = vrot.slane %v6181, 1
        %v6183 = vmax.f32 %v6181, %v6182
        %v6184 = vsel %vm6078, %v5473, -inf
        %v6185 = vrot.slane %v6184, 4
        %v6186 = vmax.f32 %v6184, %v6185
        %v6187 = vrot.slane %v6186, 2
        %v6188 = vmax.f32 %v6186, %v6187
        %v6189 = vrot.slane %v6188, 1
        %v6190 = vmax.f32 %v6188, %v6189
        %v6191 = vsel %vm6078, %v5481, -inf
        %v6192 = vrot.slane %v6191, 4
        %v6193 = vmax.f32 %v6191, %v6192
        %v6194 = vrot.slane %v6193, 2
        %v6195 = vmax.f32 %v6193, %v6194
        %v6196 = vrot.slane %v6195, 1
        %v6197 = vmax.f32 %v6195, %v6196
        %v6198 = vsel %vm6078, %v5489, -inf
        %v6199 = vrot.slane %v6198, 4
        %v6200 = vmax.f32 %v6198, %v6199
        %v6201 = vrot.slane %v6200, 2
        %v6202 = vmax.f32 %v6200, %v6201
        %v6203 = vrot.slane %v6202, 1
        %v6204 = vmax.f32 %v6202, %v6203
        %v6205 = vsel %vm6078, %v5488, -inf
        %v6206 = vrot.slane %v6205, 4
        %v6207 = vmax.f32 %v6205, %v6206
        %v6208 = vrot.slane %v6207, 2
        %v6209 = vmax.f32 %v6207, %v6208
        %v6210 = vrot.slane %v6209, 1
        %v6211 = vmax.f32 %v6209, %v6210
        %v6212 = vsel %vm6078, %v5490, -inf
        %v6213 = vrot.slane %v6212, 4
        %v6214 = vmax.f32 %v6212, %v6213
        %v6215 = vrot.slane %v6214, 2
        %v6216 = vmax.f32 %v6214, %v6215
        %v6217 = vrot.slane %v6216, 1
        %v6218 = vmax.f32 %v6216, %v6217
        %v6219 = vsel %vm6078, %v5498, -inf
        %v6220 = vrot.slane %v6219, 4
        %v6221 = vmax.f32 %v6219, %v6220
        %v6222 = vrot.slane %v6221, 2
        %v6223 = vmax.f32 %v6221, %v6222
        %v6224 = vrot.slane %v6223, 1
        %v6225 = vmax.f32 %v6223, %v6224
        %v6226 = vsel %vm6078, %v5506, -inf
        %v6227 = vrot.slane %v6226, 4
        %v6228 = vmax.f32 %v6226, %v6227
        %v6229 = vrot.slane %v6228, 2
        %v6230 = vmax.f32 %v6228, %v6229
        %v6231 = vrot.slane %v6230, 1
        %v6232 = vmax.f32 %v6230, %v6231
        %v6233 = vsel %vm6078, %v5505, -inf
        %v6234 = vrot.slane %v6233, 4
        %v6235 = vmax.f32 %v6233, %v6234
        %v6236 = vrot.slane %v6235, 2
        %v6237 = vmax.f32 %v6235, %v6236
        %v6238 = vrot.slane %v6237, 1
        %v6239 = vmax.f32 %v6237, %v6238
        %v6240 = vsel %vm6078, %v5507, -inf
        %v6241 = vrot.slane %v6240, 4
        %v6242 = vmax.f32 %v6240, %v6241
        %v6243 = vrot.slane %v6242, 2
        %v6244 = vmax.f32 %v6242, %v6243
        %v6245 = vrot.slane %v6244, 1
        %v6246 = vmax.f32 %v6244, %v6245
        %v6247 = vsel %vm6078, %v5515, -inf
        %v6248 = vrot.slane %v6247, 4
        %v6249 = vmax.f32 %v6247, %v6248
        %v6250 = vrot.slane %v6249, 2
        %v6251 = vmax.f32 %v6249, %v6250
        %v6252 = vrot.slane %v6251, 1
        %v6253 = vmax.f32 %v6251, %v6252
        %v6254 = vsel %vm6078, %v5523, -inf
        %v6255 = vrot.slane %v6254, 4
        %v6256 = vmax.f32 %v6254, %v6255
        %v6257 = vrot.slane %v6256, 2
        %v6258 = vmax.f32 %v6256, %v6257
        %v6259 = vrot.slane %v6258, 1
        %v6260 = vmax.f32 %v6258, %v6259
        %v6261 = vsel %vm6078, %v5522, -inf
        %v6262 = vrot.slane %v6261, 4
        %v6263 = vmax.f32 %v6261, %v6262
        %v6264 = vrot.slane %v6263, 2
        %v6265 = vmax.f32 %v6263, %v6264
        %v6266 = vrot.slane %v6265, 1
        %v6267 = vmax.f32 %v6265, %v6266
        %v6268 = vsel %vm6078, %v5524, -inf
        %v6269 = vrot.slane %v6268, 4
        %v6270 = vmax.f32 %v6268, %v6269
        %v6271 = vrot.slane %v6270, 2
        %v6272 = vmax.f32 %v6270, %v6271
        %v6273 = vrot.slane %v6272, 1
        %v6274 = vmax.f32 %v6272, %v6273
        %v6275 = vsel %vm6078, %v5532, -inf
        %v6276 = vrot.slane %v6275, 4
        %v6277 = vmax.f32 %v6275, %v6276
        %v6278 = vrot.slane %v6277, 2
        %v6279 = vmax.f32 %v6277, %v6278
        %v6280 = vrot.slane %v6279, 1
        %v6281 = vmax.f32 %v6279, %v6280
        %v6282 = vsel %vm6078, %v5540, -inf
        %v6283 = vrot.slane %v6282, 4
        %v6284 = vmax.f32 %v6282, %v6283
        %v6285 = vrot.slane %v6284, 2
        %v6286 = vmax.f32 %v6284, %v6285
        %v6287 = vrot.slane %v6286, 1
        %v6288 = vmax.f32 %v6286, %v6287
        %v6289 = vsel %vm6078, %v5539, -inf
        %v6290 = vrot.slane %v6289, 4
        %v6291 = vmax.f32 %v6289, %v6290
        %v6292 = vrot.slane %v6291, 2
        %v6293 = vmax.f32 %v6291, %v6292
        %v6294 = vrot.slane %v6293, 1
        %v6295 = vmax.f32 %v6293, %v6294
        %v6296 = vsel %vm6078, %v5541, -inf
        %v6297 = vrot.slane %v6296, 4
        %v6298 = vmax.f32 %v6296, %v6297
        %v6299 = vrot.slane %v6298, 2
        %v6300 = vmax.f32 %v6298, %v6299
        %v6301 = vrot.slane %v6300, 1
        %v6302 = vmax.f32 %v6300, %v6301
        %v6303 = vsel %vm6078, %v5549, -inf
        %v6304 = vrot.slane %v6303, 4
        %v6305 = vmax.f32 %v6303, %v6304
        %v6306 = vrot.slane %v6305, 2
        %v6307 = vmax.f32 %v6305, %v6306
        %v6308 = vrot.slane %v6307, 1
        %v6309 = vmax.f32 %v6307, %v6308
        %v6310 = vsel %vm6078, %v5557, -inf
        %v6311 = vrot.slane %v6310, 4
        %v6312 = vmax.f32 %v6310, %v6311
        %v6313 = vrot.slane %v6312, 2
        %v6314 = vmax.f32 %v6312, %v6313
        %v6315 = vrot.slane %v6314, 1
        %v6316 = vmax.f32 %v6314, %v6315
        %v6317 = vsel %vm6078, %v5556, -inf
        %v6318 = vrot.slane %v6317, 4
        %v6319 = vmax.f32 %v6317, %v6318
        %v6320 = vrot.slane %v6319, 2
        %v6321 = vmax.f32 %v6319, %v6320
        %v6322 = vrot.slane %v6321, 1
        %v6323 = vmax.f32 %v6321, %v6322
        %v6324 = vsel %vm6078, %v5558, -inf
        %v6325 = vrot.slane %v6324, 4
        %v6326 = vmax.f32 %v6324, %v6325
        %v6327 = vrot.slane %v6326, 2
        %v6328 = vmax.f32 %v6326, %v6327
        %v6329 = vrot.slane %v6328, 1
        %v6330 = vmax.f32 %v6328, %v6329
        %v6331 = vsel %vm6078, %v5566, -inf
        %v6332 = vrot.slane %v6331, 4
        %v6333 = vmax.f32 %v6331, %v6332
        %v6334 = vrot.slane %v6333, 2
        %v6335 = vmax.f32 %v6333, %v6334
        %v6336 = vrot.slane %v6335, 1
        %v6337 = vmax.f32 %v6335, %v6336
        %v6338 = vsel %vm6078, %v5574, -inf
        %v6339 = vrot.slane %v6338, 4
        %v6340 = vmax.f32 %v6338, %v6339
        %v6341 = vrot.slane %v6340, 2
        %v6342 = vmax.f32 %v6340, %v6341
        %v6343 = vrot.slane %v6342, 1
        %v6344 = vmax.f32 %v6342, %v6343
        %v6345 = vsel %vm6078, %v5573, -inf
        %v6346 = vrot.slane %v6345, 4
        %v6347 = vmax.f32 %v6345, %v6346
        %v6348 = vrot.slane %v6347, 2
        %v6349 = vmax.f32 %v6347, %v6348
        %v6350 = vrot.slane %v6349, 1
        %v6351 = vmax.f32 %v6349, %v6350
        %v6352 = vsel %vm6078, %v5575, -inf
        %v6353 = vrot.slane %v6352, 4
        %v6354 = vmax.f32 %v6352, %v6353
        %v6355 = vrot.slane %v6354, 2
        %v6356 = vmax.f32 %v6354, %v6355
        %v6357 = vrot.slane %v6356, 1
        %v6358 = vmax.f32 %v6356, %v6357
        %v6359 = vsel %vm6078, %v5583, -inf
        %v6360 = vrot.slane %v6359, 4
        %v6361 = vmax.f32 %v6359, %v6360
        %v6362 = vrot.slane %v6361, 2
        %v6363 = vmax.f32 %v6361, %v6362
        %v6364 = vrot.slane %v6363, 1
        %v6365 = vmax.f32 %v6363, %v6364
        %v6366 = vsel %vm6078, %v5591, -inf
        %v6367 = vrot.slane %v6366, 4
        %v6368 = vmax.f32 %v6366, %v6367
        %v6369 = vrot.slane %v6368, 2
        %v6370 = vmax.f32 %v6368, %v6369
        %v6371 = vrot.slane %v6370, 1
        %v6372 = vmax.f32 %v6370, %v6371
        %v6373 = vsel %vm6078, %v5590, -inf
        %v6374 = vrot.slane %v6373, 4
        %v6375 = vmax.f32 %v6373, %v6374
        %v6376 = vrot.slane %v6375, 2
        %v6377 = vmax.f32 %v6375, %v6376
        %v6378 = vrot.slane %v6377, 1
        %v6379 = vmax.f32 %v6377, %v6378
        %v6380 = vsel %vm6078, %v5592, -inf
        %v6381 = vrot.slane %v6380, 4
        %v6382 = vmax.f32 %v6380, %v6381
        %v6383 = vrot.slane %v6382, 2
        %v6384 = vmax.f32 %v6382, %v6383
        %v6385 = vrot.slane %v6384, 1
        %v6386 = vmax.f32 %v6384, %v6385
        %v6387 = vsel %vm6078, %v5600, -inf
        %v6388 = vrot.slane %v6387, 4
        %v6389 = vmax.f32 %v6387, %v6388
        %v6390 = vrot.slane %v6389, 2
        %v6391 = vmax.f32 %v6389, %v6390
        %v6392 = vrot.slane %v6391, 1
        %v6393 = vmax.f32 %v6391, %v6392
        %v6394 = vsel %vm6078, %v5608, -inf
        %v6395 = vrot.slane %v6394, 4
        %v6396 = vmax.f32 %v6394, %v6395
        %v6397 = vrot.slane %v6396, 2
        %v6398 = vmax.f32 %v6396, %v6397
        %v6399 = vrot.slane %v6398, 1
        %v6400 = vmax.f32 %v6398, %v6399
        %v6401 = vsel %vm6078, %v5607, -inf
        %v6402 = vrot.slane %v6401, 4
        %v6403 = vmax.f32 %v6401, %v6402
        %v6404 = vrot.slane %v6403, 2
        %v6405 = vmax.f32 %v6403, %v6404
        %v6406 = vrot.slane %v6405, 1
        %v6407 = vmax.f32 %v6405, %v6406
        %v6408 = vsel %vm6078, %v5609, -inf
        %v6409 = vrot.slane %v6408, 4
        %v6410 = vmax.f32 %v6408, %v6409
        %v6411 = vrot.slane %v6410, 2
        %v6412 = vmax.f32 %v6410, %v6411
        %v6413 = vrot.slane %v6412, 1
        %v6414 = vmax.f32 %v6412, %v6413
        %v6415 = vsel %vm6078, %v5617, -inf
        %v6416 = vrot.slane %v6415, 4
        %v6417 = vmax.f32 %v6415, %v6416
        %v6418 = vrot.slane %v6417, 2
        %v6419 = vmax.f32 %v6417, %v6418
        %v6420 = vrot.slane %v6419, 1
        %v6421 = vmax.f32 %v6419, %v6420
        %v6422 = vsel %vm6078, %v5625, -inf
        %v6423 = vrot.slane %v6422, 4
        %v6424 = vmax.f32 %v6422, %v6423
        %v6425 = vrot.slane %v6424, 2
        %v6426 = vmax.f32 %v6424, %v6425
        %v6427 = vrot.slane %v6426, 1
        %v6428 = vmax.f32 %v6426, %v6427
        %v6429 = vsel %vm6078, %v5624, -inf
        %v6430 = vrot.slane %v6429, 4
        %v6431 = vmax.f32 %v6429, %v6430
        %v6432 = vrot.slane %v6431, 2
        %v6433 = vmax.f32 %v6431, %v6432
        %v6434 = vrot.slane %v6433, 1
        %v6435 = vmax.f32 %v6433, %v6434
        %v6436 = vsel %vm6078, %v5626, -inf
        %v6437 = vrot.slane %v6436, 4
        %v6438 = vmax.f32 %v6436, %v6437
        %v6439 = vrot.slane %v6438, 2
        %v6440 = vmax.f32 %v6438, %v6439
        %v6441 = vrot.slane %v6440, 1
        %v6442 = vmax.f32 %v6440, %v6441
        %v6443 = vsel %vm6078, %v5634, -inf
        %v6444 = vrot.slane %v6443, 4
        %v6445 = vmax.f32 %v6443, %v6444
        %v6446 = vrot.slane %v6445, 2
        %v6447 = vmax.f32 %v6445, %v6446
        %v6448 = vrot.slane %v6447, 1
        %v6449 = vmax.f32 %v6447, %v6448
        %v6450 = vsel %vm6078, %v5642, -inf
        %v6451 = vrot.slane %v6450, 4
        %v6452 = vmax.f32 %v6450, %v6451
        %v6453 = vrot.slane %v6452, 2
        %v6454 = vmax.f32 %v6452, %v6453
        %v6455 = vrot.slane %v6454, 1
        %v6456 = vmax.f32 %v6454, %v6455
        %v6457 = vsel %vm6078, %v5641, -inf
        %v6458 = vrot.slane %v6457, 4
        %v6459 = vmax.f32 %v6457, %v6458
        %v6460 = vrot.slane %v6459, 2
        %v6461 = vmax.f32 %v6459, %v6460
        %v6462 = vrot.slane %v6461, 1
        %v6463 = vmax.f32 %v6461, %v6462
        %v6464 = vsel %vm6078, %v5643, -inf
        %v6465 = vrot.slane %v6464, 4
        %v6466 = vmax.f32 %v6464, %v6465
        %v6467 = vrot.slane %v6466, 2
        %v6468 = vmax.f32 %v6466, %v6467
        %v6469 = vrot.slane %v6468, 1
        %v6470 = vmax.f32 %v6468, %v6469
        %v6471 = vsel %vm6078, %v5651, -inf
        %v6472 = vrot.slane %v6471, 4
        %v6473 = vmax.f32 %v6471, %v6472
        %v6474 = vrot.slane %v6473, 2
        %v6475 = vmax.f32 %v6473, %v6474
        %v6476 = vrot.slane %v6475, 1
        %v6477 = vmax.f32 %v6475, %v6476
        %v6478 = vsel %vm6078, %v5659, -inf
        %v6479 = vrot.slane %v6478, 4
        %v6480 = vmax.f32 %v6478, %v6479
        %v6481 = vrot.slane %v6480, 2
        %v6482 = vmax.f32 %v6480, %v6481
        %v6483 = vrot.slane %v6482, 1
        %v6484 = vmax.f32 %v6482, %v6483
        %v6485 = vsel %vm6078, %v5658, -inf
        %v6486 = vrot.slane %v6485, 4
        %v6487 = vmax.f32 %v6485, %v6486
        %v6488 = vrot.slane %v6487, 2
        %v6489 = vmax.f32 %v6487, %v6488
        %v6490 = vrot.slane %v6489, 1
        %v6491 = vmax.f32 %v6489, %v6490
        %v6492 = vsel %vm6078, %v5660, -inf
        %v6493 = vrot.slane %v6492, 4
        %v6494 = vmax.f32 %v6492, %v6493
        %v6495 = vrot.slane %v6494, 2
        %v6496 = vmax.f32 %v6494, %v6495
        %v6497 = vrot.slane %v6496, 1
        %v6498 = vmax.f32 %v6496, %v6497
        %v6499 = vsel %vm6078, %v5668, -inf
        %v6500 = vrot.slane %v6499, 4
        %v6501 = vmax.f32 %v6499, %v6500
        %v6502 = vrot.slane %v6501, 2
        %v6503 = vmax.f32 %v6501, %v6502
        %v6504 = vrot.slane %v6503, 1
        %v6505 = vmax.f32 %v6503, %v6504
        %v6506 = vsel %vm6078, %v5676, -inf
        %v6507 = vrot.slane %v6506, 4
        %v6508 = vmax.f32 %v6506, %v6507
        %v6509 = vrot.slane %v6508, 2
        %v6510 = vmax.f32 %v6508, %v6509
        %v6511 = vrot.slane %v6510, 1
        %v6512 = vmax.f32 %v6510, %v6511
        %v6513 = vsel %vm6078, %v5675, -inf
        %v6514 = vrot.slane %v6513, 4
        %v6515 = vmax.f32 %v6513, %v6514
        %v6516 = vrot.slane %v6515, 2
        %v6517 = vmax.f32 %v6515, %v6516
        %v6518 = vrot.slane %v6517, 1
        %v6519 = vmax.f32 %v6517, %v6518
        %v6520 = vsel %vm6078, %v5677, -inf
        %v6521 = vrot.slane %v6520, 4
        %v6522 = vmax.f32 %v6520, %v6521
        %v6523 = vrot.slane %v6522, 2
        %v6524 = vmax.f32 %v6522, %v6523
        %v6525 = vrot.slane %v6524, 1
        %v6526 = vmax.f32 %v6524, %v6525
        %v6527 = vsel %vm6078, %v5685, -inf
        %v6528 = vrot.slane %v6527, 4
        %v6529 = vmax.f32 %v6527, %v6528
        %v6530 = vrot.slane %v6529, 2
        %v6531 = vmax.f32 %v6529, %v6530
        %v6532 = vrot.slane %v6531, 1
        %v6533 = vmax.f32 %v6531, %v6532
        %v6534 = vsel %vm6078, %v5693, -inf
        %v6535 = vrot.slane %v6534, 4
        %v6536 = vmax.f32 %v6534, %v6535
        %v6537 = vrot.slane %v6536, 2
        %v6538 = vmax.f32 %v6536, %v6537
        %v6539 = vrot.slane %v6538, 1
        %v6540 = vmax.f32 %v6538, %v6539
        %v6541 = vsel %vm6078, %v5692, -inf
        %v6542 = vrot.slane %v6541, 4
        %v6543 = vmax.f32 %v6541, %v6542
        %v6544 = vrot.slane %v6543, 2
        %v6545 = vmax.f32 %v6543, %v6544
        %v6546 = vrot.slane %v6545, 1
        %v6547 = vmax.f32 %v6545, %v6546
        %v6548 = vsel %vm6078, %v5694, -inf
        %v6549 = vrot.slane %v6548, 4
        %v6550 = vmax.f32 %v6548, %v6549
        %v6551 = vrot.slane %v6550, 2
        %v6552 = vmax.f32 %v6550, %v6551
        %v6553 = vrot.slane %v6552, 1
        %v6554 = vmax.f32 %v6552, %v6553
        %v6555 = vsel %vm6078, %v5702, -inf
        %v6556 = vrot.slane %v6555, 4
        %v6557 = vmax.f32 %v6555, %v6556
        %v6558 = vrot.slane %v6557, 2
        %v6559 = vmax.f32 %v6557, %v6558
        %v6560 = vrot.slane %v6559, 1
        %v6561 = vmax.f32 %v6559, %v6560
        %v6562 = vsel %vm6078, %v5710, -inf
        %v6563 = vrot.slane %v6562, 4
        %v6564 = vmax.f32 %v6562, %v6563
        %v6565 = vrot.slane %v6564, 2
        %v6566 = vmax.f32 %v6564, %v6565
        %v6567 = vrot.slane %v6566, 1
        %v6568 = vmax.f32 %v6566, %v6567
        %v6569 = vsel %vm6078, %v5709, -inf
        %v6570 = vrot.slane %v6569, 4
        %v6571 = vmax.f32 %v6569, %v6570
        %v6572 = vrot.slane %v6571, 2
        %v6573 = vmax.f32 %v6571, %v6572
        %v6574 = vrot.slane %v6573, 1
        %v6575 = vmax.f32 %v6573, %v6574
        %v6576 = vsel %vm6078, %v5711, -inf
        %v6577 = vrot.slane %v6576, 4
        %v6578 = vmax.f32 %v6576, %v6577
        %v6579 = vrot.slane %v6578, 2
        %v6580 = vmax.f32 %v6578, %v6579
        %v6581 = vrot.slane %v6580, 1
        %v6582 = vmax.f32 %v6580, %v6581
        %v6583 = vsel %vm6078, %v5719, -inf
        %v6584 = vrot.slane %v6583, 4
        %v6585 = vmax.f32 %v6583, %v6584
        %v6586 = vrot.slane %v6585, 2
        %v6587 = vmax.f32 %v6585, %v6586
        %v6588 = vrot.slane %v6587, 1
        %v6589 = vmax.f32 %v6587, %v6588
        %v6590 = vsel %vm6078, %v5727, -inf
        %v6591 = vrot.slane %v6590, 4
        %v6592 = vmax.f32 %v6590, %v6591
        %v6593 = vrot.slane %v6592, 2
        %v6594 = vmax.f32 %v6592, %v6593
        %v6595 = vrot.slane %v6594, 1
        %v6596 = vmax.f32 %v6594, %v6595
        %v6597 = vsel %vm6078, %v5726, -inf
        %v6598 = vrot.slane %v6597, 4
        %v6599 = vmax.f32 %v6597, %v6598
        %v6600 = vrot.slane %v6599, 2
        %v6601 = vmax.f32 %v6599, %v6600
        %v6602 = vrot.slane %v6601, 1
        %v6603 = vmax.f32 %v6601, %v6602
        %v6604 = vsel %vm6078, %v5728, -inf
        %v6605 = vrot.slane %v6604, 4
        %v6606 = vmax.f32 %v6604, %v6605
        %v6607 = vrot.slane %v6606, 2
        %v6608 = vmax.f32 %v6606, %v6607
        %v6609 = vrot.slane %v6608, 1
        %v6610 = vmax.f32 %v6608, %v6609
        %v6611 = vsel %vm6078, %v5736, -inf
        %v6612 = vrot.slane %v6611, 4
        %v6613 = vmax.f32 %v6611, %v6612
        %v6614 = vrot.slane %v6613, 2
        %v6615 = vmax.f32 %v6613, %v6614
        %v6616 = vrot.slane %v6615, 1
        %v6617 = vmax.f32 %v6615, %v6616
        %v6618 = vsel %vm6078, %v5744, -inf
        %v6619 = vrot.slane %v6618, 4
        %v6620 = vmax.f32 %v6618, %v6619
        %v6621 = vrot.slane %v6620, 2
        %v6622 = vmax.f32 %v6620, %v6621
        %v6623 = vrot.slane %v6622, 1
        %v6624 = vmax.f32 %v6622, %v6623
        %v6625 = vsel %vm6078, %v5743, -inf
        %v6626 = vrot.slane %v6625, 4
        %v6627 = vmax.f32 %v6625, %v6626
        %v6628 = vrot.slane %v6627, 2
        %v6629 = vmax.f32 %v6627, %v6628
        %v6630 = vrot.slane %v6629, 1
        %v6631 = vmax.f32 %v6629, %v6630
        %v6632 = vsel %vm6078, %v5745, -inf
        %v6633 = vrot.slane %v6632, 4
        %v6634 = vmax.f32 %v6632, %v6633
        %v6635 = vrot.slane %v6634, 2
        %v6636 = vmax.f32 %v6634, %v6635
        %v6637 = vrot.slane %v6636, 1
        %v6638 = vmax.f32 %v6636, %v6637
        %v6639 = vsel %vm6078, %v5753, -inf
        %v6640 = vrot.slane %v6639, 4
        %v6641 = vmax.f32 %v6639, %v6640
        %v6642 = vrot.slane %v6641, 2
        %v6643 = vmax.f32 %v6641, %v6642
        %v6644 = vrot.slane %v6643, 1
        %v6645 = vmax.f32 %v6643, %v6644
        %v6646 = vsel %vm6078, %v5761, -inf
        %v6647 = vrot.slane %v6646, 4
        %v6648 = vmax.f32 %v6646, %v6647
        %v6649 = vrot.slane %v6648, 2
        %v6650 = vmax.f32 %v6648, %v6649
        %v6651 = vrot.slane %v6650, 1
        %v6652 = vmax.f32 %v6650, %v6651
        %v6653 = vsel %vm6078, %v5760, -inf
        %v6654 = vrot.slane %v6653, 4
        %v6655 = vmax.f32 %v6653, %v6654
        %v6656 = vrot.slane %v6655, 2
        %v6657 = vmax.f32 %v6655, %v6656
        %v6658 = vrot.slane %v6657, 1
        %v6659 = vmax.f32 %v6657, %v6658
        %v6660 = vsel %vm6078, %v5762, -inf
        %v6661 = vrot.slane %v6660, 4
        %v6662 = vmax.f32 %v6660, %v6661
        %v6663 = vrot.slane %v6662, 2
        %v6664 = vmax.f32 %v6662, %v6663
        %v6665 = vrot.slane %v6664, 1
        %v6666 = vmax.f32 %v6664, %v6665
        %v6667 = vsel %vm6078, %v5770, -inf
        %v6668 = vrot.slane %v6667, 4
        %v6669 = vmax.f32 %v6667, %v6668
        %v6670 = vrot.slane %v6669, 2
        %v6671 = vmax.f32 %v6669, %v6670
        %v6672 = vrot.slane %v6671, 1
        %v6673 = vmax.f32 %v6671, %v6672
        %v6674 = vsel %vm6078, %v5778, -inf
        %v6675 = vrot.slane %v6674, 4
        %v6676 = vmax.f32 %v6674, %v6675
        %v6677 = vrot.slane %v6676, 2
        %v6678 = vmax.f32 %v6676, %v6677
        %v6679 = vrot.slane %v6678, 1
        %v6680 = vmax.f32 %v6678, %v6679
        %v6681 = vsel %vm6078, %v5777, -inf
        %v6682 = vrot.slane %v6681, 4
        %v6683 = vmax.f32 %v6681, %v6682
        %v6684 = vrot.slane %v6683, 2
        %v6685 = vmax.f32 %v6683, %v6684
        %v6686 = vrot.slane %v6685, 1
        %v6687 = vmax.f32 %v6685, %v6686
        %v6688 = vsel %vm6078, %v5779, -inf
        %v6689 = vrot.slane %v6688, 4
        %v6690 = vmax.f32 %v6688, %v6689
        %v6691 = vrot.slane %v6690, 2
        %v6692 = vmax.f32 %v6690, %v6691
        %v6693 = vrot.slane %v6692, 1
        %v6694 = vmax.f32 %v6692, %v6693
        %v6695 = vsel %vm6078, %v5787, -inf
        %v6696 = vrot.slane %v6695, 4
        %v6697 = vmax.f32 %v6695, %v6696
        %v6698 = vrot.slane %v6697, 2
        %v6699 = vmax.f32 %v6697, %v6698
        %v6700 = vrot.slane %v6699, 1
        %v6701 = vmax.f32 %v6699, %v6700
        %v6702 = vsel %vm6078, %v5795, -inf
        %v6703 = vrot.slane %v6702, 4
        %v6704 = vmax.f32 %v6702, %v6703
        %v6705 = vrot.slane %v6704, 2
        %v6706 = vmax.f32 %v6704, %v6705
        %v6707 = vrot.slane %v6706, 1
        %v6708 = vmax.f32 %v6706, %v6707
        %v6709 = vsel %vm6078, %v5794, -inf
        %v6710 = vrot.slane %v6709, 4
        %v6711 = vmax.f32 %v6709, %v6710
        %v6712 = vrot.slane %v6711, 2
        %v6713 = vmax.f32 %v6711, %v6712
        %v6714 = vrot.slane %v6713, 1
        %v6715 = vmax.f32 %v6713, %v6714
        %v6716 = vsel %vm6078, %v5796, -inf
        %v6717 = vrot.slane %v6716, 4
        %v6718 = vmax.f32 %v6716, %v6717
        %v6719 = vrot.slane %v6718, 2
        %v6720 = vmax.f32 %v6718, %v6719
        %v6721 = vrot.slane %v6720, 1
        %v6722 = vmax.f32 %v6720, %v6721
        %v6723 = vsel %vm6078, %v5804, -inf
        %v6724 = vrot.slane %v6723, 4
        %v6725 = vmax.f32 %v6723, %v6724
        %v6726 = vrot.slane %v6725, 2
        %v6727 = vmax.f32 %v6725, %v6726
        %v6728 = vrot.slane %v6727, 1
        %v6729 = vmax.f32 %v6727, %v6728
        %v6730 = vsel %vm6078, %v5812, -inf
        %v6731 = vrot.slane %v6730, 4
        %v6732 = vmax.f32 %v6730, %v6731
        %v6733 = vrot.slane %v6732, 2
        %v6734 = vmax.f32 %v6732, %v6733
        %v6735 = vrot.slane %v6734, 1
        %v6736 = vmax.f32 %v6734, %v6735
        %v6737 = vsel %vm6078, %v5811, -inf
        %v6738 = vrot.slane %v6737, 4
        %v6739 = vmax.f32 %v6737, %v6738
        %v6740 = vrot.slane %v6739, 2
        %v6741 = vmax.f32 %v6739, %v6740
        %v6742 = vrot.slane %v6741, 1
        %v6743 = vmax.f32 %v6741, %v6742
        %v6744 = vsel %vm6078, %v5813, -inf
        %v6745 = vrot.slane %v6744, 4
        %v6746 = vmax.f32 %v6744, %v6745
        %v6747 = vrot.slane %v6746, 2
        %v6748 = vmax.f32 %v6746, %v6747
        %v6749 = vrot.slane %v6748, 1
        %v6750 = vmax.f32 %v6748, %v6749
        %v6751 = vsel %vm6078, %v5821, -inf
        %v6752 = vrot.slane %v6751, 4
        %v6753 = vmax.f32 %v6751, %v6752
        %v6754 = vrot.slane %v6753, 2
        %v6755 = vmax.f32 %v6753, %v6754
        %v6756 = vrot.slane %v6755, 1
        %v6757 = vmax.f32 %v6755, %v6756
        %v6758 = vsel %vm6078, %v5829, -inf
        %v6759 = vrot.slane %v6758, 4
        %v6760 = vmax.f32 %v6758, %v6759
        %v6761 = vrot.slane %v6760, 2
        %v6762 = vmax.f32 %v6760, %v6761
        %v6763 = vrot.slane %v6762, 1
        %v6764 = vmax.f32 %v6762, %v6763
        %v6765 = vsel %vm6078, %v5828, -inf
        %v6766 = vrot.slane %v6765, 4
        %v6767 = vmax.f32 %v6765, %v6766
        %v6768 = vrot.slane %v6767, 2
        %v6769 = vmax.f32 %v6767, %v6768
        %v6770 = vrot.slane %v6769, 1
        %v6771 = vmax.f32 %v6769, %v6770
        %v6772 = vsel %vm6078, %v5830, -inf
        %v6773 = vrot.slane %v6772, 4
        %v6774 = vmax.f32 %v6772, %v6773
        %v6775 = vrot.slane %v6774, 2
        %v6776 = vmax.f32 %v6774, %v6775
        %v6777 = vrot.slane %v6776, 1
        %v6778 = vmax.f32 %v6776, %v6777
        %v6779 = vsel %vm6078, %v5838, -inf
        %v6780 = vrot.slane %v6779, 4
        %v6781 = vmax.f32 %v6779, %v6780
        %v6782 = vrot.slane %v6781, 2
        %v6783 = vmax.f32 %v6781, %v6782
        %v6784 = vrot.slane %v6783, 1
        %v6785 = vmax.f32 %v6783, %v6784
        %v6786 = vsel %vm6078, %v5846, -inf
        %v6787 = vrot.slane %v6786, 4
        %v6788 = vmax.f32 %v6786, %v6787
        %v6789 = vrot.slane %v6788, 2
        %v6790 = vmax.f32 %v6788, %v6789
        %v6791 = vrot.slane %v6790, 1
        %v6792 = vmax.f32 %v6790, %v6791
        %v6793 = vsel %vm6078, %v5845, -inf
        %v6794 = vrot.slane %v6793, 4
        %v6795 = vmax.f32 %v6793, %v6794
        %v6796 = vrot.slane %v6795, 2
        %v6797 = vmax.f32 %v6795, %v6796
        %v6798 = vrot.slane %v6797, 1
        %v6799 = vmax.f32 %v6797, %v6798
        %v6800 = vsel %vm6078, %v5847, -inf
        %v6801 = vrot.slane %v6800, 4
        %v6802 = vmax.f32 %v6800, %v6801
        %v6803 = vrot.slane %v6802, 2
        %v6804 = vmax.f32 %v6802, %v6803
        %v6805 = vrot.slane %v6804, 1
        %v6806 = vmax.f32 %v6804, %v6805
        %v6807 = vsel %vm6078, %v5855, -inf
        %v6808 = vrot.slane %v6807, 4
        %v6809 = vmax.f32 %v6807, %v6808
        %v6810 = vrot.slane %v6809, 2
        %v6811 = vmax.f32 %v6809, %v6810
        %v6812 = vrot.slane %v6811, 1
        %v6813 = vmax.f32 %v6811, %v6812
        %v6814 = vsel %vm6078, %v5863, -inf
        %v6815 = vrot.slane %v6814, 4
        %v6816 = vmax.f32 %v6814, %v6815
        %v6817 = vrot.slane %v6816, 2
        %v6818 = vmax.f32 %v6816, %v6817
        %v6819 = vrot.slane %v6818, 1
        %v6820 = vmax.f32 %v6818, %v6819
        %v6821 = vsel %vm6078, %v5862, -inf
        %v6822 = vrot.slane %v6821, 4
        %v6823 = vmax.f32 %v6821, %v6822
        %v6824 = vrot.slane %v6823, 2
        %v6825 = vmax.f32 %v6823, %v6824
        %v6826 = vrot.slane %v6825, 1
        %v6827 = vmax.f32 %v6825, %v6826
        %v6828 = vsel %vm6078, %v5864, -inf
        %v6829 = vrot.slane %v6828, 4
        %v6830 = vmax.f32 %v6828, %v6829
        %v6831 = vrot.slane %v6830, 2
        %v6832 = vmax.f32 %v6830, %v6831
        %v6833 = vrot.slane %v6832, 1
        %v6834 = vmax.f32 %v6832, %v6833
        %v6835 = vsel %vm6078, %v5872, -inf
        %v6836 = vrot.slane %v6835, 4
        %v6837 = vmax.f32 %v6835, %v6836
        %v6838 = vrot.slane %v6837, 2
        %v6839 = vmax.f32 %v6837, %v6838
        %v6840 = vrot.slane %v6839, 1
        %v6841 = vmax.f32 %v6839, %v6840
        %v6842 = vsel %vm6078, %v5880, -inf
        %v6843 = vrot.slane %v6842, 4
        %v6844 = vmax.f32 %v6842, %v6843
        %v6845 = vrot.slane %v6844, 2
        %v6846 = vmax.f32 %v6844, %v6845
        %v6847 = vrot.slane %v6846, 1
        %v6848 = vmax.f32 %v6846, %v6847
        %v6849 = vsel %vm6078, %v5879, -inf
        %v6850 = vrot.slane %v6849, 4
        %v6851 = vmax.f32 %v6849, %v6850
        %v6852 = vrot.slane %v6851, 2
        %v6853 = vmax.f32 %v6851, %v6852
        %v6854 = vrot.slane %v6853, 1
        %v6855 = vmax.f32 %v6853, %v6854
        %v6856 = vsel %vm6078, %v5881, -inf
        %v6857 = vrot.slane %v6856, 4
        %v6858 = vmax.f32 %v6856, %v6857
        %v6859 = vrot.slane %v6858, 2
        %v6860 = vmax.f32 %v6858, %v6859
        %v6861 = vrot.slane %v6860, 1
        %v6862 = vmax.f32 %v6860, %v6861
        %v6863 = vsel %vm6078, %v5889, -inf
        %v6864 = vrot.slane %v6863, 4
        %v6865 = vmax.f32 %v6863, %v6864
        %v6866 = vrot.slane %v6865, 2
        %v6867 = vmax.f32 %v6865, %v6866
        %v6868 = vrot.slane %v6867, 1
        %v6869 = vmax.f32 %v6867, %v6868
        %v6870 = vsel %vm6078, %v5897, -inf
        %v6871 = vrot.slane %v6870, 4
        %v6872 = vmax.f32 %v6870, %v6871
        %v6873 = vrot.slane %v6872, 2
        %v6874 = vmax.f32 %v6872, %v6873
        %v6875 = vrot.slane %v6874, 1
        %v6876 = vmax.f32 %v6874, %v6875
        %v6877 = vsel %vm6078, %v5896, -inf
        %v6878 = vrot.slane %v6877, 4
        %v6879 = vmax.f32 %v6877, %v6878
        %v6880 = vrot.slane %v6879, 2
        %v6881 = vmax.f32 %v6879, %v6880
        %v6882 = vrot.slane %v6881, 1
        %v6883 = vmax.f32 %v6881, %v6882
        %v6884 = vsel %vm6078, %v5898, -inf
        %v6885 = vrot.slane %v6884, 4
        %v6886 = vmax.f32 %v6884, %v6885
        %v6887 = vrot.slane %v6886, 2
        %v6888 = vmax.f32 %v6886, %v6887
        %v6889 = vrot.slane %v6888, 1
        %v6890 = vmax.f32 %v6888, %v6889
        %v6891 = vsel %vm6078, %v5906, -inf
        %v6892 = vrot.slane %v6891, 4
        %v6893 = vmax.f32 %v6891, %v6892
        %v6894 = vrot.slane %v6893, 2
        %v6895 = vmax.f32 %v6893, %v6894
        %v6896 = vrot.slane %v6895, 1
        %v6897 = vmax.f32 %v6895, %v6896
        %v6898 = vsel %vm6078, %v5914, -inf
        %v6899 = vrot.slane %v6898, 4
        %v6900 = vmax.f32 %v6898, %v6899
        %v6901 = vrot.slane %v6900, 2
        %v6902 = vmax.f32 %v6900, %v6901
        %v6903 = vrot.slane %v6902, 1
        %v6904 = vmax.f32 %v6902, %v6903
        %v6905 = vsel %vm6078, %v5913, -inf
        %v6906 = vrot.slane %v6905, 4
        %v6907 = vmax.f32 %v6905, %v6906
        %v6908 = vrot.slane %v6907, 2
        %v6909 = vmax.f32 %v6907, %v6908
        %v6910 = vrot.slane %v6909, 1
        %v6911 = vmax.f32 %v6909, %v6910
        %v6912 = vsel %vm6078, %v5915, -inf
        %v6913 = vrot.slane %v6912, 4
        %v6914 = vmax.f32 %v6912, %v6913
        %v6915 = vrot.slane %v6914, 2
        %v6916 = vmax.f32 %v6914, %v6915
        %v6917 = vrot.slane %v6916, 1
        %v6918 = vmax.f32 %v6916, %v6917
        %v6919 = vsel %vm6078, %v5923, -inf
        %v6920 = vrot.slane %v6919, 4
        %v6921 = vmax.f32 %v6919, %v6920
        %v6922 = vrot.slane %v6921, 2
        %v6923 = vmax.f32 %v6921, %v6922
        %v6924 = vrot.slane %v6923, 1
        %v6925 = vmax.f32 %v6923, %v6924
        %v6926 = vsel %vm6078, %v5931, -inf
        %v6927 = vrot.slane %v6926, 4
        %v6928 = vmax.f32 %v6926, %v6927
        %v6929 = vrot.slane %v6928, 2
        %v6930 = vmax.f32 %v6928, %v6929
        %v6931 = vrot.slane %v6930, 1
        %v6932 = vmax.f32 %v6930, %v6931
        %v6933 = vsel %vm6078, %v5930, -inf
        %v6934 = vrot.slane %v6933, 4
        %v6935 = vmax.f32 %v6933, %v6934
        %v6936 = vrot.slane %v6935, 2
        %v6937 = vmax.f32 %v6935, %v6936
        %v6938 = vrot.slane %v6937, 1
        %v6939 = vmax.f32 %v6937, %v6938
        %v6940 = vsel %vm6078, %v5932, -inf
        %v6941 = vrot.slane %v6940, 4
        %v6942 = vmax.f32 %v6940, %v6941
        %v6943 = vrot.slane %v6942, 2
        %v6944 = vmax.f32 %v6942, %v6943
        %v6945 = vrot.slane %v6944, 1
        %v6946 = vmax.f32 %v6944, %v6945
        %v6947 = vsel %vm6078, %v5940, -inf
        %v6948 = vrot.slane %v6947, 4
        %v6949 = vmax.f32 %v6947, %v6948
        %v6950 = vrot.slane %v6949, 2
        %v6951 = vmax.f32 %v6949, %v6950
        %v6952 = vrot.slane %v6951, 1
        %v6953 = vmax.f32 %v6951, %v6952
        %v6954 = vsel %vm6078, %v5948, -inf
        %v6955 = vrot.slane %v6954, 4
        %v6956 = vmax.f32 %v6954, %v6955
        %v6957 = vrot.slane %v6956, 2
        %v6958 = vmax.f32 %v6956, %v6957
        %v6959 = vrot.slane %v6958, 1
        %v6960 = vmax.f32 %v6958, %v6959
        %v6961 = vsel %vm6078, %v5947, -inf
        %v6962 = vrot.slane %v6961, 4
        %v6963 = vmax.f32 %v6961, %v6962
        %v6964 = vrot.slane %v6963, 2
        %v6965 = vmax.f32 %v6963, %v6964
        %v6966 = vrot.slane %v6965, 1
        %v6967 = vmax.f32 %v6965, %v6966
        %v6968 = vsel %vm6078, %v5949, -inf
        %v6969 = vrot.slane %v6968, 4
        %v6970 = vmax.f32 %v6968, %v6969
        %v6971 = vrot.slane %v6970, 2
        %v6972 = vmax.f32 %v6970, %v6971
        %v6973 = vrot.slane %v6972, 1
        %v6974 = vmax.f32 %v6972, %v6973
        %vm6975 = vcmask 130048
        %v6976 = vsel %vm6975, %v6085, -inf
        %v6977 = vsel %vm6975, %v6141, -inf
        %v6978 = vmax.f32 %v6976, %v6977
        %v6979 = vsel %vm6975, %v6092, -inf
        %v6980 = vsel %vm6975, %v6148, -inf
        %v6981 = vmax.f32 %v6979, %v6980
        %v6982 = vsel %vm6975, %v6099, -inf
        %v6983 = vsel %vm6975, %v6155, -inf
        %v6984 = vmax.f32 %v6982, %v6983
        %v6985 = vsel %vm6975, %v6106, -inf
        %v6986 = vsel %vm6975, %v6162, -inf
        %v6987 = vmax.f32 %v6985, %v6986
        %v6988 = vsel %vm6975, %v6113, -inf
        %v6989 = vsel %vm6975, %v6169, -inf
        %v6990 = vmax.f32 %v6988, %v6989
        %v6991 = vsel %vm6975, %v6120, -inf
        %v6992 = vsel %vm6975, %v6176, -inf
        %v6993 = vmax.f32 %v6991, %v6992
        %v6994 = vsel %vm6975, %v6127, -inf
        %v6995 = vsel %vm6975, %v6183, -inf
        %v6996 = vmax.f32 %v6994, %v6995
        %v6997 = vsel %vm6975, %v6134, -inf
        %v6998 = vsel %vm6975, %v6190, -inf
        %v6999 = vmax.f32 %v6997, %v6998
        %v7000 = vsel %vm6975, %v6197, -inf
        %v7001 = vsel %vm6975, %v6253, -inf
        %v7002 = vmax.f32 %v7000, %v7001
        %v7003 = vsel %vm6975, %v6204, -inf
        %v7004 = vsel %vm6975, %v6260, -inf
        %v7005 = vmax.f32 %v7003, %v7004
        %v7006 = vsel %vm6975, %v6211, -inf
        %v7007 = vsel %vm6975, %v6267, -inf
        %v7008 = vmax.f32 %v7006, %v7007
        %v7009 = vsel %vm6975, %v6218, -inf
        %v7010 = vsel %vm6975, %v6274, -inf
        %v7011 = vmax.f32 %v7009, %v7010
        %v7012 = vsel %vm6975, %v6225, -inf
        %v7013 = vsel %vm6975, %v6281, -inf
        %v7014 = vmax.f32 %v7012, %v7013
        %v7015 = vsel %vm6975, %v6232, -inf
        %v7016 = vsel %vm6975, %v6288, -inf
        %v7017 = vmax.f32 %v7015, %v7016
        %v7018 = vsel %vm6975, %v6239, -inf
        %v7019 = vsel %vm6975, %v6295, -inf
        %v7020 = vmax.f32 %v7018, %v7019
        %v7021 = vsel %vm6975, %v6246, -inf
        %v7022 = vsel %vm6975, %v6302, -inf
        %v7023 = vmax.f32 %v7021, %v7022
        %v7024 = vsel %vm6975, %v6309, -inf
        %v7025 = vsel %vm6975, %v6365, -inf
        %v7026 = vmax.f32 %v7024, %v7025
        %v7027 = vsel %vm6975, %v6316, -inf
        %v7028 = vsel %vm6975, %v6372, -inf
        %v7029 = vmax.f32 %v7027, %v7028
        %v7030 = vsel %vm6975, %v6323, -inf
        %v7031 = vsel %vm6975, %v6379, -inf
        %v7032 = vmax.f32 %v7030, %v7031
        %v7033 = vsel %vm6975, %v6330, -inf
        %v7034 = vsel %vm6975, %v6386, -inf
        %v7035 = vmax.f32 %v7033, %v7034
        %v7036 = vsel %vm6975, %v6337, -inf
        %v7037 = vsel %vm6975, %v6393, -inf
        %v7038 = vmax.f32 %v7036, %v7037
        %v7039 = vsel %vm6975, %v6344, -inf
        %v7040 = vsel %vm6975, %v6400, -inf
        %v7041 = vmax.f32 %v7039, %v7040
        %v7042 = vsel %vm6975, %v6351, -inf
        %v7043 = vsel %vm6975, %v6407, -inf
        %v7044 = vmax.f32 %v7042, %v7043
        %v7045 = vsel %vm6975, %v6358, -inf
        %v7046 = vsel %vm6975, %v6414, -inf
        %v7047 = vmax.f32 %v7045, %v7046
        %v7048 = vsel %vm6975, %v6421, -inf
        %v7049 = vsel %vm6975, %v6477, -inf
        %v7050 = vmax.f32 %v7048, %v7049
        %v7051 = vsel %vm6975, %v6428, -inf
        %v7052 = vsel %vm6975, %v6484, -inf
        %v7053 = vmax.f32 %v7051, %v7052
        %v7054 = vsel %vm6975, %v6435, -inf
        %v7055 = vsel %vm6975, %v6491, -inf
        %v7056 = vmax.f32 %v7054, %v7055
        %v7057 = vsel %vm6975, %v6442, -inf
        %v7058 = vsel %vm6975, %v6498, -inf
        %v7059 = vmax.f32 %v7057, %v7058
        %v7060 = vsel %vm6975, %v6449, -inf
        %v7061 = vsel %vm6975, %v6505, -inf
        %v7062 = vmax.f32 %v7060, %v7061
        %v7063 = vsel %vm6975, %v6456, -inf
        %v7064 = vsel %vm6975, %v6512, -inf
        %v7065 = vmax.f32 %v7063, %v7064
        %v7066 = vsel %vm6975, %v6463, -inf
        %v7067 = vsel %vm6975, %v6519, -inf
        %v7068 = vmax.f32 %v7066, %v7067
        %v7069 = vsel %vm6975, %v6470, -inf
        %v7070 = vsel %vm6975, %v6526, -inf
        %v7071 = vmax.f32 %v7069, %v7070
        %v7072 = vsel %vm6975, %v6533, -inf
        %v7073 = vsel %vm6975, %v6589, -inf
        %v7074 = vmax.f32 %v7072, %v7073
        %v7075 = vsel %vm6975, %v6540, -inf
        %v7076 = vsel %vm6975, %v6596, -inf
        %v7077 = vmax.f32 %v7075, %v7076
        %v7078 = vsel %vm6975, %v6547, -inf
        %v7079 = vsel %vm6975, %v6603, -inf
        %v7080 = vmax.f32 %v7078, %v7079
        %v7081 = vsel %vm6975, %v6554, -inf
        %v7082 = vsel %vm6975, %v6610, -inf
        %v7083 = vmax.f32 %v7081, %v7082
        %v7084 = vsel %vm6975, %v6561, -inf
        %v7085 = vsel %vm6975, %v6617, -inf
        %v7086 = vmax.f32 %v7084, %v7085
        %v7087 = vsel %vm6975, %v6568, -inf
        %v7088 = vsel %vm6975, %v6624, -inf
        %v7089 = vmax.f32 %v7087, %v7088
        %v7090 = vsel %vm6975, %v6575, -inf
        %v7091 = vsel %vm6975, %v6631, -inf
        %v7092 = vmax.f32 %v7090, %v7091
        %v7093 = vsel %vm6975, %v6582, -inf
        %v7094 = vsel %vm6975, %v6638, -inf
        %v7095 = vmax.f32 %v7093, %v7094
        %v7096 = vsel %vm6975, %v6645, -inf
        %v7097 = vsel %vm6975, %v6701, -inf
        %v7098 = vmax.f32 %v7096, %v7097
        %v7099 = vsel %vm6975, %v6652, -inf
        %v7100 = vsel %vm6975, %v6708, -inf
        %v7101 = vmax.f32 %v7099, %v7100
        %v7102 = vsel %vm6975, %v6659, -inf
        %v7103 = vsel %vm6975, %v6715, -inf
        %v7104 = vmax.f32 %v7102, %v7103
        %v7105 = vsel %vm6975, %v6666, -inf
        %v7106 = vsel %vm6975, %v6722, -inf
        %v7107 = vmax.f32 %v7105, %v7106
        %v7108 = vsel %vm6975, %v6673, -inf
        %v7109 = vsel %vm6975, %v6729, -inf
        %v7110 = vmax.f32 %v7108, %v7109
        %v7111 = vsel %vm6975, %v6680, -inf
        %v7112 = vsel %vm6975, %v6736, -inf
        %v7113 = vmax.f32 %v7111, %v7112
        %v7114 = vsel %vm6975, %v6687, -inf
        %v7115 = vsel %vm6975, %v6743, -inf
        %v7116 = vmax.f32 %v7114, %v7115
        %v7117 = vsel %vm6975, %v6694, -inf
        %v7118 = vsel %vm6975, %v6750, -inf
        %v7119 = vmax.f32 %v7117, %v7118
        %v7120 = vsel %vm6975, %v6757, -inf
        %v7121 = vsel %vm6975, %v6813, -inf
        %v7122 = vmax.f32 %v7120, %v7121
        %v7123 = vsel %vm6975, %v6764, -inf
        %v7124 = vsel %vm6975, %v6820, -inf
        %v7125 = vmax.f32 %v7123, %v7124
        %v7126 = vsel %vm6975, %v6771, -inf
        %v7127 = vsel %vm6975, %v6827, -inf
        %v7128 = vmax.f32 %v7126, %v7127
        %v7129 = vsel %vm6975, %v6778, -inf
        %v7130 = vsel %vm6975, %v6834, -inf
        %v7131 = vmax.f32 %v7129, %v7130
        %v7132 = vsel %vm6975, %v6785, -inf
        %v7133 = vsel %vm6975, %v6841, -inf
        %v7134 = vmax.f32 %v7132, %v7133
        %v7135 = vsel %vm6975, %v6792, -inf
        %v7136 = vsel %vm6975, %v6848, -inf
        %v7137 = vmax.f32 %v7135, %v7136
        %v7138 = vsel %vm6975, %v6799, -inf
        %v7139 = vsel %vm6975, %v6855, -inf
        %v7140 = vmax.f32 %v7138, %v7139
        %v7141 = vsel %vm6975, %v6806, -inf
        %v7142 = vsel %vm6975, %v6862, -inf
        %v7143 = vmax.f32 %v7141, %v7142
        %v7144 = vsel %vm6975, %v6869, -inf
        %v7145 = vsel %vm6975, %v6925, -inf
        %v7146 = vmax.f32 %v7144, %v7145
        %v7147 = vsel %vm6975, %v6876, -inf
        %v7148 = vsel %vm6975, %v6932, -inf
        %v7149 = vmax.f32 %v7147, %v7148
        %v7150 = vsel %vm6975, %v6883, -inf
        %v7151 = vsel %vm6975, %v6939, -inf
        %v7152 = vmax.f32 %v7150, %v7151
        %v7153 = vsel %vm6975, %v6890, -inf
        %v7154 = vsel %vm6975, %v6946, -inf
        %v7155 = vmax.f32 %v7153, %v7154
        %v7156 = vsel %vm6975, %v6897, -inf
        %v7157 = vsel %vm6975, %v6953, -inf
        %v7158 = vmax.f32 %v7156, %v7157
        %v7159 = vsel %vm6975, %v6904, -inf
        %v7160 = vsel %vm6975, %v6960, -inf
        %v7161 = vmax.f32 %v7159, %v7160
        %v7162 = vsel %vm6975, %v6911, -inf
        %v7163 = vsel %vm6975, %v6967, -inf
        %v7164 = vmax.f32 %v7162, %v7163
        %v7165 = vsel %vm6975, %v6918, -inf
        %v7166 = vsel %vm6975, %v6974, -inf
        %v7167 = vmax.f32 %v7165, %v7166
        %v7168 = vpack.c.bf16 %v6978, %v6978
        %v7169 = vpack.c.bf16 %v6981, %v6981
        %v7170 = vpack.c.bf16 %v6984, %v6984
        %v7171 = vpack.c.bf16 %v6987, %v6987
        %v7172 = vpack.c.bf16 %v6990, %v6990
        %v7173 = vpack.c.bf16 %v6993, %v6993
        %v7174 = vpack.c.bf16 %v6996, %v6996
        %v7175 = vpack.c.bf16 %v6999, %v6999
        %v7176 = vpack.c.bf16 %v7002, %v7002
        %v7177 = vpack.c.bf16 %v7005, %v7005
        %v7178 = vpack.c.bf16 %v7008, %v7008
        %v7179 = vpack.c.bf16 %v7011, %v7011
        %v7180 = vpack.c.bf16 %v7014, %v7014
        %v7181 = vpack.c.bf16 %v7017, %v7017
        %v7182 = vpack.c.bf16 %v7020, %v7020
        %v7183 = vpack.c.bf16 %v7023, %v7023
        %v7184 = vpack.c.bf16 %v7026, %v7026
        %v7185 = vpack.c.bf16 %v7029, %v7029
        %v7186 = vpack.c.bf16 %v7032, %v7032
        %v7187 = vpack.c.bf16 %v7035, %v7035
        %v7188 = vpack.c.bf16 %v7038, %v7038
        %v7189 = vpack.c.bf16 %v7041, %v7041
        %v7190 = vpack.c.bf16 %v7044, %v7044
        %v7191 = vpack.c.bf16 %v7047, %v7047
        %v7192 = vpack.c.bf16 %v7050, %v7050
        %v7193 = vpack.c.bf16 %v7053, %v7053
        %v7194 = vpack.c.bf16 %v7056, %v7056
        %v7195 = vpack.c.bf16 %v7059, %v7059
        %v7196 = vpack.c.bf16 %v7062, %v7062
        %v7197 = vpack.c.bf16 %v7065, %v7065
        %v7198 = vpack.c.bf16 %v7068, %v7068
        %v7199 = vpack.c.bf16 %v7071, %v7071
        %v7200 = vpack.c.bf16 %v7074, %v7074
        %v7201 = vpack.c.bf16 %v7077, %v7077
        %v7202 = vpack.c.bf16 %v7080, %v7080
        %v7203 = vpack.c.bf16 %v7083, %v7083
        %v7204 = vpack.c.bf16 %v7086, %v7086
        %v7205 = vpack.c.bf16 %v7089, %v7089
        %v7206 = vpack.c.bf16 %v7092, %v7092
        %v7207 = vpack.c.bf16 %v7095, %v7095
        %v7208 = vpack.c.bf16 %v7098, %v7098
        %v7209 = vpack.c.bf16 %v7101, %v7101
        %v7210 = vpack.c.bf16 %v7104, %v7104
        %v7211 = vpack.c.bf16 %v7107, %v7107
        %v7212 = vpack.c.bf16 %v7110, %v7110
        %v7213 = vpack.c.bf16 %v7113, %v7113
        %v7214 = vpack.c.bf16 %v7116, %v7116
        %v7215 = vpack.c.bf16 %v7119, %v7119
        %v7216 = vpack.c.bf16 %v7122, %v7122
        %v7217 = vpack.c.bf16 %v7125, %v7125
        %v7218 = vpack.c.bf16 %v7128, %v7128
        %v7219 = vpack.c.bf16 %v7131, %v7131
        %v7220 = vpack.c.bf16 %v7134, %v7134
        %v7221 = vpack.c.bf16 %v7137, %v7137
        %v7222 = vpack.c.bf16 %v7140, %v7140
        %v7223 = vpack.c.bf16 %v7143, %v7143
        %v7224 = vpack.c.bf16 %v7146, %v7146
        %v7225 = vpack.c.bf16 %v7149, %v7149
        %v7226 = vpack.c.bf16 %v7152, %v7152
        %v7227 = vpack.c.bf16 %v7155, %v7155
        %v7228 = vpack.c.bf16 %v7158, %v7158
        %v7229 = vpack.c.bf16 %v7161, %v7161
        %v7230 = vpack.c.bf16 %v7164, %v7164
        %v7231 = vpack.c.bf16 %v7167, %v7167
        %vm7232 = vcmask 125952
        %7233 = vst.msk [vmem:[#allocation3] sm:$0xf] %vm7232, 0
        %vm7234 = vcmask 122880
        %7235 = vst.msk [vmem:[#allocation3 + $0x4] sm:$0x1] %vm7234, 0
        %7236 = vst.msk [vmem:[#allocation3 + $0x8] sm:$0xf] %vm7232, 0
        %7237 = vst.msk [vmem:[#allocation3 + $0xc] sm:$0x1] %vm7234, 0
        %7238 = vst.msk [vmem:[#allocation3 + $0x10] sm:$0xf] %vm7232, 0
        %7239 = vst.msk [vmem:[#allocation3 + $0x14] sm:$0x1] %vm7234, 0
        %7240 = vst.msk [vmem:[#allocation3 + $0x18] sm:$0xf] %vm7232, 0
        %7241 = vst.msk [vmem:[#allocation3 + $0x1c] sm:$0x1] %vm7234, 0
        %7242 = vst.msk [vmem:[#allocation3 + $0x20] sm:$0xf] %vm7232, 0
        %7243 = vst.msk [vmem:[#allocation3 + $0x24] sm:$0x1] %vm7234, 0
        %7244 = vst.msk [vmem:[#allocation3 + $0x28] sm:$0xf] %vm7232, 0
        %7245 = vst.msk [vmem:[#allocation3 + $0x2c] sm:$0x1] %vm7234, 0
        %7246 = vst.msk [vmem:[#allocation3 + $0x30] sm:$0xf] %vm7232, 0
        %7247 = vst.msk [vmem:[#allocation3 + $0x34] sm:$0x1] %vm7234, 0
        %7248 = vst.msk [vmem:[#allocation3 + $0x38] sm:$0xf] %vm7232, 0
        %7249 = vst.msk [vmem:[#allocation3 + $0x3c] sm:$0x1] %vm7234, 0
        %7250 = vst.msk [vmem:[#allocation3 + $0x40] sm:$0xf] %vm7232, 0
        %7251 = vst.msk [vmem:[#allocation3 + $0x44] sm:$0x1] %vm7234, 0
        %7252 = vst.msk [vmem:[#allocation3 + $0x48] sm:$0xf] %vm7232, 0
        %7253 = vst.msk [vmem:[#allocation3 + $0x4c] sm:$0x1] %vm7234, 0
        %v7318 = vunpack.c.l.b16 %v7168
        %v7319 = vunpack.c.l.b16 %v7169
        %v7320 = vunpack.c.l.b16 %v7170
        %v7321 = vunpack.c.l.b16 %v7171
        %v7322 = vunpack.c.l.b16 %v7172
        %v7323 = vunpack.c.l.b16 %v7173
        %v7324 = vunpack.c.l.b16 %v7174
        %v7325 = vunpack.c.l.b16 %v7175
        %v7326 = vunpack.c.l.b16 %v7176
        %v7327 = vunpack.c.l.b16 %v7177
        %v7328 = vunpack.c.l.b16 %v7178
        %v7329 = vunpack.c.l.b16 %v7179
        %v7330 = vunpack.c.l.b16 %v7180
        %v7331 = vunpack.c.l.b16 %v7181
        %v7332 = vunpack.c.l.b16 %v7182
        %v7333 = vunpack.c.l.b16 %v7183
        %v7334 = vunpack.c.l.b16 %v7184
        %v7335 = vunpack.c.l.b16 %v7185
        %v7336 = vunpack.c.l.b16 %v7186
        %v7337 = vunpack.c.l.b16 %v7187
        %v7338 = vunpack.c.l.b16 %v7188
        %v7339 = vunpack.c.l.b16 %v7189
        %v7340 = vunpack.c.l.b16 %v7190
        %v7341 = vunpack.c.l.b16 %v7191
        %v7342 = vunpack.c.l.b16 %v7192
        %v7343 = vunpack.c.l.b16 %v7193
        %v7344 = vunpack.c.l.b16 %v7194
        %v7345 = vunpack.c.l.b16 %v7195
        %v7346 = vunpack.c.l.b16 %v7196
        %v7347 = vunpack.c.l.b16 %v7197
        %v7348 = vunpack.c.l.b16 %v7198
        %v7349 = vunpack.c.l.b16 %v7199
        %v7350 = vunpack.c.l.b16 %v7200
        %v7351 = vunpack.c.l.b16 %v7201
        %v7352 = vunpack.c.l.b16 %v7202
        %v7353 = vunpack.c.l.b16 %v7203
        %v7354 = vunpack.c.l.b16 %v7204
        %v7355 = vunpack.c.l.b16 %v7205
        %v7356 = vunpack.c.l.b16 %v7206
        %v7357 = vunpack.c.l.b16 %v7207
        %v7358 = vunpack.c.l.b16 %v7208
        %v7359 = vunpack.c.l.b16 %v7209
        %v7360 = vunpack.c.l.b16 %v7210
        %v7361 = vunpack.c.l.b16 %v7211
        %v7362 = vunpack.c.l.b16 %v7212
        %v7363 = vunpack.c.l.b16 %v7213
        %v7364 = vunpack.c.l.b16 %v7214
        %v7365 = vunpack.c.l.b16 %v7215
        %v7366 = vunpack.c.l.b16 %v7216
        %v7367 = vunpack.c.l.b16 %v7217
        %v7368 = vunpack.c.l.b16 %v7218
        %v7369 = vunpack.c.l.b16 %v7219
        %v7370 = vunpack.c.l.b16 %v7220
        %v7371 = vunpack.c.l.b16 %v7221
        %v7372 = vunpack.c.l.b16 %v7222
        %v7373 = vunpack.c.l.b16 %v7223
        %v7374 = vunpack.c.l.b16 %v7224
        %v7375 = vunpack.c.l.b16 %v7225
        %v7376 = vunpack.c.l.b16 %v7226
        %v7377 = vunpack.c.l.b16 %v7227
        %v7378 = vunpack.c.l.b16 %v7228
        %v7379 = vunpack.c.l.b16 %v7229
        %v7380 = vunpack.c.l.b16 %v7230
        %v7381 = vunpack.c.l.b16 %v7231
        %v7382 = vpack.c.b16 %v7318, %v7318
        %v7383 = vpack.c.b16 %v7319, %v7319
        %v7384 = vpack.c.b16 %v7320, %v7320
        %v7385 = vpack.c.b16 %v7321, %v7321
        %v7386 = vpack.c.b16 %v7322, %v7322
        %v7387 = vpack.c.b16 %v7323, %v7323
        %v7388 = vpack.c.b16 %v7324, %v7324
        %v7389 = vpack.c.b16 %v7325, %v7325
        %v7390 = vpack.c.b16 %v7326, %v7326
        %v7391 = vpack.c.b16 %v7327, %v7327
        %v7392 = vpack.c.b16 %v7328, %v7328
        %v7393 = vpack.c.b16 %v7329, %v7329
        %v7394 = vpack.c.b16 %v7330, %v7330
        %v7395 = vpack.c.b16 %v7331, %v7331
        %v7396 = vpack.c.b16 %v7332, %v7332
        %v7397 = vpack.c.b16 %v7333, %v7333
        %v7398 = vpack.c.b16 %v7334, %v7334
        %v7399 = vpack.c.b16 %v7335, %v7335
        %v7400 = vpack.c.b16 %v7336, %v7336
        %v7401 = vpack.c.b16 %v7337, %v7337
        %v7402 = vpack.c.b16 %v7338, %v7338
        %v7403 = vpack.c.b16 %v7339, %v7339
        %v7404 = vpack.c.b16 %v7340, %v7340
        %v7405 = vpack.c.b16 %v7341, %v7341
        %v7406 = vpack.c.b16 %v7342, %v7342
        %v7407 = vpack.c.b16 %v7343, %v7343
        %v7408 = vpack.c.b16 %v7344, %v7344
        %v7409 = vpack.c.b16 %v7345, %v7345
        %v7410 = vpack.c.b16 %v7346, %v7346
        %v7411 = vpack.c.b16 %v7347, %v7347
        %v7412 = vpack.c.b16 %v7348, %v7348
        %v7413 = vpack.c.b16 %v7349, %v7349
        %v7414 = vpack.c.b16 %v7350, %v7350
        %v7415 = vpack.c.b16 %v7351, %v7351
        %v7416 = vpack.c.b16 %v7352, %v7352
        %v7417 = vpack.c.b16 %v7353, %v7353
        %v7418 = vpack.c.b16 %v7354, %v7354
        %v7419 = vpack.c.b16 %v7355, %v7355
        %v7420 = vpack.c.b16 %v7356, %v7356
        %v7421 = vpack.c.b16 %v7357, %v7357
        %v7422 = vpack.c.b16 %v7358, %v7358
        %v7423 = vpack.c.b16 %v7359, %v7359
        %v7424 = vpack.c.b16 %v7360, %v7360
        %v7425 = vpack.c.b16 %v7361, %v7361
        %v7426 = vpack.c.b16 %v7362, %v7362
        %v7427 = vpack.c.b16 %v7363, %v7363
        %v7428 = vpack.c.b16 %v7364, %v7364
        %v7429 = vpack.c.b16 %v7365, %v7365
        %v7430 = vpack.c.b16 %v7366, %v7366
        %v7431 = vpack.c.b16 %v7367, %v7367
        %v7432 = vpack.c.b16 %v7368, %v7368
        %v7433 = vpack.c.b16 %v7369, %v7369
        %v7434 = vpack.c.b16 %v7370, %v7370
        %v7435 = vpack.c.b16 %v7371, %v7371
        %v7436 = vpack.c.b16 %v7372, %v7372
        %v7437 = vpack.c.b16 %v7373, %v7373
        %v7438 = vpack.c.b16 %v7374, %v7374
        %v7439 = vpack.c.b16 %v7375, %v7375
        %v7440 = vpack.c.b16 %v7376, %v7376
        %v7441 = vpack.c.b16 %v7377, %v7377
        %v7442 = vpack.c.b16 %v7378, %v7378
        %v7443 = vpack.c.b16 %v7379, %v7379
        %v7444 = vpack.c.b16 %v7380, %v7380
        %v7445 = vpack.c.b16 %v7381, %v7381
        %v7446 = vunpack.c.l.b16 %v7382
        %v7447 = vunpack.c.l.b16 %v7383
        %v7448 = vunpack.c.l.b16 %v7384
        %v7449 = vunpack.c.l.b16 %v7385
        %v7450 = vunpack.c.l.b16 %v7386
        %v7451 = vunpack.c.l.b16 %v7387
        %v7452 = vunpack.c.l.b16 %v7388
        %v7453 = vunpack.c.l.b16 %v7389
        %v7454 = vunpack.c.l.b16 %v7390
        %v7455 = vunpack.c.l.b16 %v7391
        %v7456 = vunpack.c.l.b16 %v7392
        %v7457 = vunpack.c.l.b16 %v7393
        %v7458 = vunpack.c.l.b16 %v7394
        %v7459 = vunpack.c.l.b16 %v7395
        %v7460 = vunpack.c.l.b16 %v7396
        %v7461 = vunpack.c.l.b16 %v7397
        %v7462 = vunpack.c.l.b16 %v7398
        %v7463 = vunpack.c.l.b16 %v7399
        %v7464 = vunpack.c.l.b16 %v7400
        %v7465 = vunpack.c.l.b16 %v7401
        %v7466 = vunpack.c.l.b16 %v7402
        %v7467 = vunpack.c.l.b16 %v7403
        %v7468 = vunpack.c.l.b16 %v7404
        %v7469 = vunpack.c.l.b16 %v7405
        %v7470 = vunpack.c.l.b16 %v7406
        %v7471 = vunpack.c.l.b16 %v7407
        %v7472 = vunpack.c.l.b16 %v7408
        %v7473 = vunpack.c.l.b16 %v7409
        %v7474 = vunpack.c.l.b16 %v7410
        %v7475 = vunpack.c.l.b16 %v7411
        %v7476 = vunpack.c.l.b16 %v7412
        %v7477 = vunpack.c.l.b16 %v7413
        %v7478 = vunpack.c.l.b16 %v7414
        %v7479 = vunpack.c.l.b16 %v7415
        %v7480 = vunpack.c.l.b16 %v7416
        %v7481 = vunpack.c.l.b16 %v7417
        %v7482 = vunpack.c.l.b16 %v7418
        %v7483 = vunpack.c.l.b16 %v7419
        %v7484 = vunpack.c.l.b16 %v7420
        %v7485 = vunpack.c.l.b16 %v7421
        %v7486 = vunpack.c.l.b16 %v7422
        %v7487 = vunpack.c.l.b16 %v7423
        %v7488 = vunpack.c.l.b16 %v7424
        %v7489 = vunpack.c.l.b16 %v7425
        %v7490 = vunpack.c.l.b16 %v7426
        %v7491 = vunpack.c.l.b16 %v7427
        %v7492 = vunpack.c.l.b16 %v7428
        %v7493 = vunpack.c.l.b16 %v7429
        %v7494 = vunpack.c.l.b16 %v7430
        %v7495 = vunpack.c.l.b16 %v7431
        %v7496 = vunpack.c.l.b16 %v7432
        %v7497 = vunpack.c.l.b16 %v7433
        %v7498 = vunpack.c.l.b16 %v7434
        %v7499 = vunpack.c.l.b16 %v7435
        %v7500 = vunpack.c.l.b16 %v7436
        %v7501 = vunpack.c.l.b16 %v7437
        %v7502 = vunpack.c.l.b16 %v7438
        %v7503 = vunpack.c.l.b16 %v7439
        %v7504 = vunpack.c.l.b16 %v7440
        %v7505 = vunpack.c.l.b16 %v7441
        %v7506 = vunpack.c.l.b16 %v7442
        %v7507 = vunpack.c.l.b16 %v7443
        %v7508 = vunpack.c.l.b16 %v7444
        %v7509 = vunpack.c.l.b16 %v7445
        %vm7510 = vcmask 1042434
        %v7511 = vsel %vm7510, %v7447, %v7446
        %vm7512 = vcmask 1043459
        %v7513 = vsel %vm7512, %v7448, %v7511
        %vm7514 = vcmask 1044484
        %v7515 = vsel %vm7514, %v7449, %v7513
        %vm7516 = vcmask 1045509
        %v7517 = vsel %vm7516, %v7450, %v7515
        %vm7518 = vcmask 1046534
        %v7519 = vsel %vm7518, %v7451, %v7517
        %vm7520 = vcmask 1047559
        %v7521 = vsel %vm7520, %v7452, %v7519
        %v7522 = vsel %vm7510, %v7455, %v7454
        %v7523 = vsel %vm7512, %v7456, %v7522
        %v7524 = vsel %vm7514, %v7457, %v7523
        %v7525 = vsel %vm7516, %v7458, %v7524
        %v7526 = vsel %vm7518, %v7459, %v7525
        %v7527 = vsel %vm7520, %v7460, %v7526
        %v7528 = vsel %vm7510, %v7463, %v7462
        %v7529 = vsel %vm7512, %v7464, %v7528
        %v7530 = vsel %vm7514, %v7465, %v7529
        %v7531 = vsel %vm7516, %v7466, %v7530
        %v7532 = vsel %vm7518, %v7467, %v7531
        %v7533 = vsel %vm7520, %v7468, %v7532
        %v7534 = vsel %vm7510, %v7471, %v7470
        %v7535 = vsel %vm7512, %v7472, %v7534
        %v7536 = vsel %vm7514, %v7473, %v7535
        %v7537 = vsel %vm7516, %v7474, %v7536
        %v7538 = vsel %vm7518, %v7475, %v7537
        %v7539 = vsel %vm7520, %v7476, %v7538
        %v7540 = vsel %vm7510, %v7479, %v7478
        %v7541 = vsel %vm7512, %v7480, %v7540
        %v7542 = vsel %vm7514, %v7481, %v7541
        %v7543 = vsel %vm7516, %v7482, %v7542
        %v7544 = vsel %vm7518, %v7483, %v7543
        %v7545 = vsel %vm7520, %v7484, %v7544
        %v7546 = vsel %vm7510, %v7487, %v7486
        %v7547 = vsel %vm7512, %v7488, %v7546
        %v7548 = vsel %vm7514, %v7489, %v7547
        %v7549 = vsel %vm7516, %v7490, %v7548
        %v7550 = vsel %vm7518, %v7491, %v7549
        %v7551 = vsel %vm7520, %v7492, %v7550
        %v7552 = vsel %vm7510, %v7495, %v7494
        %v7553 = vsel %vm7512, %v7496, %v7552
        %v7554 = vsel %vm7514, %v7497, %v7553
        %v7555 = vsel %vm7516, %v7498, %v7554
        %v7556 = vsel %vm7518, %v7499, %v7555
        %v7557 = vsel %vm7520, %v7500, %v7556
        %v7558 = vsel %vm7510, %v7503, %v7502
        %v7559 = vsel %vm7512, %v7504, %v7558
        %v7560 = vsel %vm7514, %v7505, %v7559
        %v7561 = vsel %vm7516, %v7506, %v7560
        %v7562 = vsel %vm7518, %v7507, %v7561
        %v7563 = vsel %vm7520, %v7508, %v7562
        %v7564 = vpack.c.b16 %v7521, %v7521
        %v7565 = vpack.c.b16 %v7453, %v7453
        %v7566 = vpack.c.b16 %v7527, %v7527
        %v7567 = vpack.c.b16 %v7461, %v7461
        %v7568 = vpack.c.b16 %v7533, %v7533
        %v7569 = vpack.c.b16 %v7469, %v7469
        %v7570 = vpack.c.b16 %v7539, %v7539
        %v7571 = vpack.c.b16 %v7477, %v7477
        %v7572 = vpack.c.b16 %v7545, %v7545
        %v7573 = vpack.c.b16 %v7485, %v7485
        %v7574 = vpack.c.b16 %v7551, %v7551
        %v7575 = vpack.c.b16 %v7493, %v7493
        %v7576 = vpack.c.b16 %v7557, %v7557
        %v7577 = vpack.c.b16 %v7501, %v7501
        %v7578 = vpack.c.b16 %v7563, %v7563
        %v7579 = vpack.c.b16 %v7509, %v7509
        %s7596 = scalar_lea.vmem [#allocation3], 8
        %vm7597 = vcmask 125952
        %vm7598 = vmand %vm7597, %vm637
        %v7599 = vld [vmem:[%s7596] sm:$0xf]
        %v7600 = vsel %vm7598, %v7564, %v7599
        %7601 = vst [vmem:[%s7596] sm:$0xf] %v7600
        %vm7602 = vcmask 122880
        %vm7603 = vmand %vm7602, %vm312
        %v7604 = vld [vmem:[%s7596 + $0x4] sm:$0x1]
        %v7605 = vsel %vm7603, %v7565, %v7604
        %7606 = vst [vmem:[%s7596 + $0x4] sm:$0x1] %v7605
        %v7607 = vld [vmem:[%s7596 + $0x8] sm:$0xf]
        %v7608 = vsel %vm7598, %v7566, %v7607
        %7609 = vst [vmem:[%s7596 + $0x8] sm:$0xf] %v7608
        %v7610 = vld [vmem:[%s7596 + $0xc] sm:$0x1]
        %v7611 = vsel %vm7603, %v7567, %v7610
        %7612 = vst [vmem:[%s7596 + $0xc] sm:$0x1] %v7611
        %v7613 = vld [vmem:[%s7596 + $0x10] sm:$0xf]
        %v7614 = vsel %vm7598, %v7568, %v7613
        %7615 = vst [vmem:[%s7596 + $0x10] sm:$0xf] %v7614
        %v7616 = vld [vmem:[%s7596 + $0x14] sm:$0x1]
        %v7617 = vsel %vm7603, %v7569, %v7616
        %7618 = vst [vmem:[%s7596 + $0x14] sm:$0x1] %v7617
        %v7619 = vld [vmem:[%s7596 + $0x18] sm:$0xf]
        %v7620 = vsel %vm7598, %v7570, %v7619
        %7621 = vst [vmem:[%s7596 + $0x18] sm:$0xf] %v7620
        %v7622 = vld [vmem:[%s7596 + $0x1c] sm:$0x1]
        %v7623 = vsel %vm7603, %v7571, %v7622
        %7624 = vst [vmem:[%s7596 + $0x1c] sm:$0x1] %v7623
        %v7625 = vld [vmem:[%s7596 + $0x20] sm:$0xf]
        %v7626 = vsel %vm7598, %v7572, %v7625
        %7627 = vst [vmem:[%s7596 + $0x20] sm:$0xf] %v7626
        %v7628 = vld [vmem:[%s7596 + $0x24] sm:$0x1]
        %v7629 = vsel %vm7603, %v7573, %v7628
        %7630 = vst [vmem:[%s7596 + $0x24] sm:$0x1] %v7629
        %v7631 = vld [vmem:[%s7596 + $0x28] sm:$0xf]
        %v7632 = vsel %vm7598, %v7574, %v7631
        %7633 = vst [vmem:[%s7596 + $0x28] sm:$0xf] %v7632
        %v7634 = vld [vmem:[%s7596 + $0x2c] sm:$0x1]
        %v7635 = vsel %vm7603, %v7575, %v7634
        %7636 = vst [vmem:[%s7596 + $0x2c] sm:$0x1] %v7635
        %v7637 = vld [vmem:[%s7596 + $0x30] sm:$0xf]
        %v7638 = vsel %vm7598, %v7576, %v7637
        %7639 = vst [vmem:[%s7596 + $0x30] sm:$0xf] %v7638
        %v7640 = vld [vmem:[%s7596 + $0x34] sm:$0x1]
        %v7641 = vsel %vm7603, %v7577, %v7640
        %7642 = vst [vmem:[%s7596 + $0x34] sm:$0x1] %v7641
        %v7643 = vld [vmem:[%s7596 + $0x38] sm:$0xf]
        %v7644 = vsel %vm7598, %v7578, %v7643
        %7645 = vst [vmem:[%s7596 + $0x38] sm:$0xf] %v7644
        %v7646 = vld [vmem:[%s7596 + $0x3c] sm:$0x1]
        %v7647 = vsel %vm7603, %v7579, %v7646
        %7648 = vst [vmem:[%s7596 + $0x3c] sm:$0x1] %v7647
        %v7649 = vld [vmem:[%s2] sm:$0xf]
        %v7650 = vld [vmem:[%s2 + $0x4] sm:$0xf]
        %v7651 = vld [vmem:[%s2 + $0x8] sm:$0xf]
        %v7652 = vld [vmem:[%s2 + $0xc] sm:$0xf]
        %v7653 = vld [vmem:[%s2 + $0x10] sm:$0xf]
        %v7654 = vld [vmem:[%s2 + $0x14] sm:$0xf]
        %v7655 = vld [vmem:[%s2 + $0x18] sm:$0xf]
        %v7656 = vld [vmem:[%s2 + $0x1c] sm:$0xf]
        %v7657 = vld [vmem:[%s2 + $0x20] sm:$0xf]
        %v7658 = vld [vmem:[%s2 + $0x24] sm:$0xf]
        %v7659 = vld [vmem:[%s2 + $0x28] sm:$0xf]
        %v7660 = vld [vmem:[%s2 + $0x2c] sm:$0xf]
        %v7661 = vld [vmem:[%s2 + $0x30] sm:$0xf]
        %v7662 = vld [vmem:[%s2 + $0x34] sm:$0xf]
        %v7663 = vld [vmem:[%s2 + $0x38] sm:$0xf]
        %v7664 = vld [vmem:[%s2 + $0x3c] sm:$0xf]
        %v7665 = vld [vmem:[%s2 + $0x40] sm:$0xf]
        %v7666 = vld [vmem:[%s2 + $0x44] sm:$0xf]
        %v7667 = vld [vmem:[#allocation3] sm:$0xf]
        %v7668 = vld [vmem:[#allocation3 + $0x8] sm:$0xf]
        %v7669 = vld [vmem:[#allocation3 + $0x10] sm:$0xf]
        %v7670 = vld [vmem:[#allocation3 + $0x18] sm:$0xf]
        %v7671 = vld [vmem:[#allocation3 + $0x20] sm:$0xf]
        %v7672 = vld [vmem:[#allocation3 + $0x28] sm:$0xf]
        %v7673 = vld [vmem:[#allocation3 + $0x30] sm:$0xf]
        %v7674 = vld [vmem:[#allocation3 + $0x38] sm:$0xf]
        %v7675 = vld [vmem:[#allocation3 + $0x4] sm:$0x1]
        %v7676 = vld [vmem:[#allocation3 + $0xc] sm:$0x1]
        %v7677 = vld [vmem:[#allocation3 + $0x14] sm:$0x1]
        %v7678 = vld [vmem:[#allocation3 + $0x1c] sm:$0x1]
        %v7679 = vld [vmem:[#allocation3 + $0x24] sm:$0x1]
        %v7680 = vld [vmem:[#allocation3 + $0x2c] sm:$0x1]
        %v7681 = vld [vmem:[#allocation3 + $0x34] sm:$0x1]
        %v7682 = vld [vmem:[#allocation3 + $0x3c] sm:$0x1]
        %v7684 = vshrl.u32 %v7667, 16
        %v7686 = vrot.slane %v7684, 4
        %v7687 = vshll.u32 %v7667, 16
        %v7689 = vrot.slane %v7687, 5
        %v7690 = vor.u32 %v7686, %v7689
        %v7691 = vrot.slane %v7690, 4
        %v7693 = vshll.u32 %v7675, 16
        %v7695 = vrot.slane %v7693, 5
        %v7696 = vsel %vm812, %v7691, %v7695
        %v7698 = vshrl.u32 %v7668, 16
        %v7700 = vrot.slane %v7698, 4
        %v7701 = vshll.u32 %v7668, 16
        %v7703 = vrot.slane %v7701, 5
        %v7704 = vor.u32 %v7700, %v7703
        %v7705 = vrot.slane %v7704, 4
        %v7707 = vshll.u32 %v7676, 16
        %v7709 = vrot.slane %v7707, 5
        %v7710 = vsel %vm812, %v7705, %v7709
        %v7712 = vshrl.u32 %v7669, 16
        %v7714 = vrot.slane %v7712, 4
        %v7715 = vshll.u32 %v7669, 16
        %v7717 = vrot.slane %v7715, 5
        %v7718 = vor.u32 %v7714, %v7717
        %v7719 = vrot.slane %v7718, 4
        %v7721 = vshll.u32 %v7677, 16
        %v7723 = vrot.slane %v7721, 5
        %v7724 = vsel %vm812, %v7719, %v7723
        %v7726 = vshrl.u32 %v7670, 16
        %v7728 = vrot.slane %v7726, 4
        %v7729 = vshll.u32 %v7670, 16
        %v7731 = vrot.slane %v7729, 5
        %v7732 = vor.u32 %v7728, %v7731
        %v7733 = vrot.slane %v7732, 4
        %v7735 = vshll.u32 %v7678, 16
        %v7737 = vrot.slane %v7735, 5
        %v7738 = vsel %vm812, %v7733, %v7737
        %v7740 = vshrl.u32 %v7671, 16
        %v7742 = vrot.slane %v7740, 4
        %v7743 = vshll.u32 %v7671, 16
        %v7745 = vrot.slane %v7743, 5
        %v7746 = vor.u32 %v7742, %v7745
        %v7747 = vrot.slane %v7746, 4
        %v7749 = vshll.u32 %v7679, 16
        %v7751 = vrot.slane %v7749, 5
        %v7752 = vsel %vm812, %v7747, %v7751
        %v7754 = vshrl.u32 %v7672, 16
        %v7756 = vrot.slane %v7754, 4
        %v7757 = vshll.u32 %v7672, 16
        %v7759 = vrot.slane %v7757, 5
        %v7760 = vor.u32 %v7756, %v7759
        %v7761 = vrot.slane %v7760, 4
        %v7763 = vshll.u32 %v7680, 16
        %v7765 = vrot.slane %v7763, 5
        %v7766 = vsel %vm812, %v7761, %v7765
        %v7768 = vshrl.u32 %v7673, 16
        %v7770 = vrot.slane %v7768, 4
        %v7771 = vshll.u32 %v7673, 16
        %v7773 = vrot.slane %v7771, 5
        %v7774 = vor.u32 %v7770, %v7773
        %v7775 = vrot.slane %v7774, 4
        %v7777 = vshll.u32 %v7681, 16
        %v7779 = vrot.slane %v7777, 5
        %v7780 = vsel %vm812, %v7775, %v7779
        %v7782 = vshrl.u32 %v7674, 16
        %v7784 = vrot.slane %v7782, 4
        %v7785 = vshll.u32 %v7674, 16
        %v7787 = vrot.slane %v7785, 5
        %v7788 = vor.u32 %v7784, %v7787
        %v7789 = vrot.slane %v7788, 4
        %v7791 = vshll.u32 %v7682, 16
        %v7793 = vrot.slane %v7791, 5
        %v7794 = vsel %vm812, %v7789, %v7793
        %v7795 = vunpack.c.l.b16 %v7696
        %v7796 = vunpack.c.l.b16 %v7710
        %v7797 = vunpack.c.l.b16 %v7724
        %v7798 = vunpack.c.l.b16 %v7738
        %v7799 = vunpack.c.l.b16 %v7752
        %v7800 = vunpack.c.l.b16 %v7766
        %v7801 = vunpack.c.l.b16 %v7780
        %v7802 = vunpack.c.l.b16 %v7794
        %v7803 = vpack.c.b16 %v7796, %v7795
        %v7804 = vpack.c.b16 %v7798, %v7797
        %v7805 = vpack.c.b16 %v7800, %v7799
        %v7806 = vpack.c.b16 %v7802, %v7801
        %v7809 = vunpack.c.l.b16 %v7651
        %v7810 = vunpack.c.l.b16 %v7652
        %v7811 = vpack.c.b16 %v7810, %v7809
        %v7814 = vsel %vm6975, %v7803, 0
        %v7817 = vsel %vm6975, %v7804, 0
        %v7820 = vsel %vm6975, %v7805, 0
        %v7823 = vsel %vm6975, %v7806, 0
        %7825 = vmatprep.subr.bf16.mxu0 0
        %7826 = vmatpush1.bf16.msra.mxu0 %v7811
        %7827 = vmatprep.subr.bf16.mxu0 0
        %7828 = vmatpush1.bf16.msra.mxu0 0
        %7829 = vmatprep.subr.bf16.mxu0 0
        %7830 = vmatpush1.bf16.msra.mxu0 0
        %7831 = vmatprep.subr.bf16.mxu0 0
        %7832 = vmatpush1.bf16.msra.mxu0 0
        %7833 = vmatprep.subr.bf16.mxu0 0
        %7834 = vmatpush1.bf16.msra.mxu0 0
        %7835 = vmatprep.subr.bf16.mxu0 0
        %7836 = vmatpush1.bf16.msra.mxu0 0
        %7837 = vmatprep.subr.bf16.mxu0 0
        %7838 = vmatpush1.bf16.msra.mxu0 0
        %7839 = vmatprep.subr.bf16.mxu0 0
        %7840 = vmatpush1.bf16.msra.mxu0 0
        %7841 = vmatprep.subr.bf16.mxu0 0
        %7842 = vmatpush1.bf16.msra.mxu0 0
        %7843 = vmatprep.subr.bf16.mxu0 0
        %7844 = vmatpush1.bf16.msra.mxu0 0
        %7845 = vmatprep.subr.bf16.mxu0 0
        %7846 = vmatpush1.bf16.msra.mxu0 0
        %7847 = vmatprep.subr.bf16.mxu0 0
        %7848 = vmatpush1.bf16.msra.mxu0 0
        %7849 = vmatprep.subr.bf16.mxu0 0
        %7850 = vmatpush1.bf16.msra.mxu0 0
        %7851 = vmatprep.subr.bf16.mxu0 0
        %7852 = vmatpush1.bf16.msra.mxu0 0
        %7853 = vmatprep.subr.bf16.mxu0 0
        %7854 = vmatpush1.bf16.msra.mxu0 0
        %7855 = vmatprep.subr.bf16.mxu0 0
        %7856 = vmatpush1.bf16.msra.mxu0 0
        %7857 = vmatprep.mubr.bf16.mxu0 0
        %7858 = vmatmul.mubr.bf16.gmra.mrb[0].mxu0 %v7814
        %v7859 = vpop.f32.mrb[0].mxu0
        %v7860 = vadd.f32 0.0, %v7859
        %v7861 = vpop.f32.mrb[0].mxu0
        %v7862 = vpop.f32.mrb[0].mxu0
        %v7863 = vadd.f32 0.0, %v7862
        %v7864 = vpop.f32.mrb[0].mxu0
        %7865 = vmatprep.mubr.bf16.mxu0 0
        %7866 = vmatmul.mubr.bf16.gmra.mrb[0].mxu0 %v7817
        %v7867 = vpop.f32.mrb[0].mxu0
        %v7868 = vadd.f32 0.0, %v7867
        %v7869 = vpop.f32.mrb[0].mxu0
        %v7870 = vpop.f32.mrb[0].mxu0
        %v7871 = vadd.f32 0.0, %v7870
        %v7872 = vpop.f32.mrb[0].mxu0
        %7873 = vmatprep.mubr.bf16.mxu0 0
        %7874 = vmatmul.mubr.bf16.gmra.mrb[0].mxu0 %v7820
        %v7875 = vpop.f32.mrb[0].mxu0
        %v7876 = vadd.f32 0.0, %v7875
        %v7877 = vpop.f32.mrb[0].mxu0
        %v7878 = vpop.f32.mrb[0].mxu0
        %v7879 = vadd.f32 0.0, %v7878
        %v7880 = vpop.f32.mrb[0].mxu0
        %7881 = vmatprep.mubr.bf16.mxu0 0
        %7882 = vmatmul.mubr.bf16.gmra.mrb[0].mxu0 %v7823
        %v7883 = vpop.f32.mrb[0].mxu0
        %v7884 = vadd.f32 0.0, %v7883
        %v7885 = vpop.f32.mrb[0].mxu0
        %v7886 = vpop.f32.mrb[0].mxu0
        %v7887 = vadd.f32 0.0, %v7886
        %v7888 = vpop.f32.mrb[0].mxu0
        %7889 = vdwg.mxu0
        %v7898 = vunpack.c.l.b16 %v7667
        %v7899 = vunpack.c.l.b16 %v7668
        %v7900 = vunpack.c.l.b16 %v7669
        %v7901 = vunpack.c.l.b16 %v7670
        %v7902 = vunpack.c.l.b16 %v7671
        %v7903 = vunpack.c.l.b16 %v7672
        %v7904 = vunpack.c.l.b16 %v7673
        %v7905 = vunpack.c.l.b16 %v7674
        %v7906 = vpack.c.b16 %v7899, %v7898
        %v7907 = vpack.c.b16 %v7901, %v7900
        %v7908 = vpack.c.b16 %v7903, %v7902
        %v7909 = vpack.c.b16 %v7905, %v7904
        %v7912 = vunpack.c.l.b16 %v7649
        %v7913 = vunpack.c.l.b16 %v7650
        %v7914 = vpack.c.b16 %v7913, %v7912
        %v7917 = vsel %vm6975, %v7906, 0
        %v7920 = vsel %vm6975, %v7907, 0
        %v7923 = vsel %vm6975, %v7908, 0
        %v7926 = vsel %vm6975, %v7909, 0
        %7928 = vmatprep.subr.bf16.mxu0 0
        %7929 = vmatpush1.bf16.msra.mxu0 %v7914
        %7930 = vmatprep.subr.bf16.mxu0 0
        %7931 = vmatpush1.bf16.msra.mxu0 0
        %7932 = vmatprep.subr.bf16.mxu0 0
        %7933 = vmatpush1.bf16.msra.mxu0 0
        %7934 = vmatprep.subr.bf16.mxu0 0
        %7935 = vmatpush1.bf16.msra.mxu0 0
        %7936 = vmatprep.subr.bf16.mxu0 0
        %7937 = vmatpush1.bf16.msra.mxu0 0
        %7938 = vmatprep.subr.bf16.mxu0 0
        %7939 = vmatpush1.bf16.msra.mxu0 0
        %7940 = vmatprep.subr.bf16.mxu0 0
        %7941 = vmatpush1.bf16.msra.mxu0 0
        %7942 = vmatprep.subr.bf16.mxu0 0
        %7943 = vmatpush1.bf16.msra.mxu0 0
        %7944 = vmatprep.subr.bf16.mxu0 0
        %7945 = vmatpush1.bf16.msra.mxu0 0
        %7946 = vmatprep.subr.bf16.mxu0 0
        %7947 = vmatpush1.bf16.msra.mxu0 0
        %7948 = vmatprep.subr.bf16.mxu0 0
        %7949 = vmatpush1.bf16.msra.mxu0 0
        %7950 = vmatprep.subr.bf16.mxu0 0
        %7951 = vmatpush1.bf16.msra.mxu0 0
        %7952 = vmatprep.subr.bf16.mxu0 0
        %7953 = vmatpush1.bf16.msra.mxu0 0
        %7954 = vmatprep.subr.bf16.mxu0 0
        %7955 = vmatpush1.bf16.msra.mxu0 0
        %7956 = vmatprep.subr.bf16.mxu0 0
        %7957 = vmatpush1.bf16.msra.mxu0 0
        %7958 = vmatprep.subr.bf16.mxu0 0
        %7959 = vmatpush1.bf16.msra.mxu0 0
        %7960 = vmatprep.mubr.bf16.mxu0 0
        %7961 = vmatmul.mubr.bf16.gmra.mrb[0].mxu0 %v7917
        %v7962 = vpop.f32.mrb[0].mxu0
        %v7963 = vadd.f32 %v7860, %v7962
        %v7964 = vpop.f32.mrb[0].mxu0
        %v7965 = vpop.f32.mrb[0].mxu0
        %v7966 = vadd.f32 %v7863, %v7965
        %v7967 = vpop.f32.mrb[0].mxu0
        %7968 = vmatprep.mubr.bf16.mxu0 0
        %7969 = vmatmul.mubr.bf16.gmra.mrb[0].mxu0 %v7920
        %v7970 = vpop.f32.mrb[0].mxu0
        %v7971 = vadd.f32 %v7868, %v7970
        %v7972 = vpop.f32.mrb[0].mxu0
        %v7973 = vpop.f32.mrb[0].mxu0
        %v7974 = vadd.f32 %v7871, %v7973
        %v7975 = vpop.f32.mrb[0].mxu0
        %7976 = vmatprep.mubr.bf16.mxu0 0
        %7977 = vmatmul.mubr.bf16.gmra.mrb[0].mxu0 %v7923
        %v7978 = vpop.f32.mrb[0].mxu0
        %v7979 = vadd.f32 %v7876, %v7978
        %v7980 = vpop.f32.mrb[0].mxu0
        %v7981 = vpop.f32.mrb[0].mxu0
        %v7982 = vadd.f32 %v7879, %v7981
        %v7983 = vpop.f32.mrb[0].mxu0
        %7984 = vmatprep.mubr.bf16.mxu0 0
        %7985 = vmatmul.mubr.bf16.gmra.mrb[0].mxu0 %v7926
        %v7986 = vpop.f32.mrb[0].mxu0
        %v7987 = vadd.f32 %v7884, %v7986
        %v7988 = vpop.f32.mrb[0].mxu0
        %v7989 = vpop.f32.mrb[0].mxu0
        %v7990 = vadd.f32 %v7887, %v7989
        %v7991 = vpop.f32.mrb[0].mxu0
        %7992 = vdwg.mxu0
        %v7993 = vld [vmem:[#allocation3] sm:$0xe]
        %v7994 = vld [vmem:[#allocation3 + $0x8] sm:$0xe]
        %v7995 = vld [vmem:[#allocation3 + $0x10] sm:$0xe]
        %v7996 = vld [vmem:[#allocation3 + $0x18] sm:$0xe]
        %v7997 = vld [vmem:[#allocation3 + $0x20] sm:$0xe]
        %v7998 = vld [vmem:[#allocation3 + $0x28] sm:$0xe]
        %v7999 = vld [vmem:[#allocation3 + $0x30] sm:$0xe]
        %v8000 = vld [vmem:[#allocation3 + $0x38] sm:$0xe]
        %v8017 = vrot.slane %v7993, 5
        %v8018 = vrot.slane %v8017, 4
        %v8019 = vrot.slane %v7675, 5
        %v8020 = vsel %vm1801, %v8018, %v8019
        %v8021 = vrot.slane %v7994, 5
        %v8022 = vrot.slane %v8021, 4
        %v8023 = vrot.slane %v7676, 5
        %v8024 = vsel %vm1801, %v8022, %v8023
        %v8025 = vrot.slane %v7995, 5
        %v8026 = vrot.slane %v8025, 4
        %v8027 = vrot.slane %v7677, 5
        %v8028 = vsel %vm1801, %v8026, %v8027
        %v8029 = vrot.slane %v7996, 5
        %v8030 = vrot.slane %v8029, 4
        %v8031 = vrot.slane %v7678, 5
        %v8032 = vsel %vm1801, %v8030, %v8031
        %v8033 = vrot.slane %v7997, 5
        %v8034 = vrot.slane %v8033, 4
        %v8035 = vrot.slane %v7679, 5
        %v8036 = vsel %vm1801, %v8034, %v8035
        %v8037 = vrot.slane %v7998, 5
        %v8038 = vrot.slane %v8037, 4
        %v8039 = vrot.slane %v7680, 5
        %v8040 = vsel %vm1801, %v8038, %v8039
        %v8041 = vrot.slane %v7999, 5
        %v8042 = vrot.slane %v8041, 4
        %v8043 = vrot.slane %v7681, 5
        %v8044 = vsel %vm1801, %v8042, %v8043
        %v8045 = vrot.slane %v8000, 5
        %v8046 = vrot.slane %v8045, 4
        %v8047 = vrot.slane %v7682, 5
        %v8048 = vsel %vm1801, %v8046, %v8047
        %v8049 = vunpack.c.l.b16 %v8020
        %v8050 = vunpack.c.l.b16 %v8024
        %v8051 = vunpack.c.l.b16 %v8028
        %v8052 = vunpack.c.l.b16 %v8032
        %v8053 = vunpack.c.l.b16 %v8036
        %v8054 = vunpack.c.l.b16 %v8040
        %v8055 = vunpack.c.l.b16 %v8044
        %v8056 = vunpack.c.l.b16 %v8048
        %v8057 = vpack.c.b16 %v8050, %v8049
        %v8058 = vpack.c.b16 %v8052, %v8051
        %v8059 = vpack.c.b16 %v8054, %v8053
        %v8060 = vpack.c.b16 %v8056, %v8055
        %v8063 = vunpack.c.l.b16 %v7653
        %v8064 = vunpack.c.l.b16 %v7654
        %v8065 = vpack.c.b16 %v8064, %v8063
        %v8068 = vsel %vm6975, %v8057, 0
        %v8071 = vsel %vm6975, %v8058, 0
        %v8074 = vsel %vm6975, %v8059, 0
        %v8077 = vsel %vm6975, %v8060, 0
        %8079 = vmatprep.subr.bf16.mxu0 0
        %8080 = vmatpush1.bf16.msra.mxu0 %v8065
        %8081 = vmatprep.subr.bf16.mxu0 0
        %8082 = vmatpush1.bf16.msra.mxu0 0
        %8083 = vmatprep.subr.bf16.mxu0 0
        %8084 = vmatpush1.bf16.msra.mxu0 0
        %8085 = vmatprep.subr.bf16.mxu0 0
        %8086 = vmatpush1.bf16.msra.mxu0 0
        %8087 = vmatprep.subr.bf16.mxu0 0
        %8088 = vmatpush1.bf16.msra.mxu0 0
        %8089 = vmatprep.subr.bf16.mxu0 0
        %8090 = vmatpush1.bf16.msra.mxu0 0
        %8091 = vmatprep.subr.bf16.mxu0 0
        %8092 = vmatpush1.bf16.msra.mxu0 0
        %8093 = vmatprep.subr.bf16.mxu0 0
        %8094 = vmatpush1.bf16.msra.mxu0 0
        %8095 = vmatprep.subr.bf16.mxu0 0
        %8096 = vmatpush1.bf16.msra.mxu0 0
        %8097 = vmatprep.subr.bf16.mxu0 0
        %8098 = vmatpush1.bf16.msra.mxu0 0
        %8099 = vmatprep.subr.bf16.mxu0 0
        %8100 = vmatpush1.bf16.msra.mxu0 0
        %8101 = vmatprep.subr.bf16.mxu0 0
        %8102 = vmatpush1.bf16.msra.mxu0 0
        %8103 = vmatprep.subr.bf16.mxu0 0
        %8104 = vmatpush1.bf16.msra.mxu0 0
        %8105 = vmatprep.subr.bf16.mxu0 0
        %8106 = vmatpush1.bf16.msra.mxu0 0
        %8107 = vmatprep.subr.bf16.mxu0 0
        %8108 = vmatpush1.bf16.msra.mxu0 0
        %8109 = vmatprep.subr.bf16.mxu0 0
        %8110 = vmatpush1.bf16.msra.mxu0 0
        %8111 = vmatprep.mubr.bf16.mxu0 0
        %8112 = vmatmul.mubr.bf16.gmra.mrb[0].mxu0 %v8068
        %v8113 = vpop.f32.mrb[0].mxu0
        %v8114 = vadd.f32 0.0, %v8113
        %v8115 = vpop.f32.mrb[0].mxu0
        %v8116 = vpop.f32.mrb[0].mxu0
        %v8117 = vadd.f32 0.0, %v8116
        %v8118 = vpop.f32.mrb[0].mxu0
        %8119 = vmatprep.mubr.bf16.mxu0 0
        %8120 = vmatmul.mubr.bf16.gmra.mrb[0].mxu0 %v8071
        %v8121 = vpop.f32.mrb[0].mxu0
        %v8122 = vadd.f32 0.0, %v8121
        %v8123 = vpop.f32.mrb[0].mxu0
        %v8124 = vpop.f32.mrb[0].mxu0
        %v8125 = vadd.f32 0.0, %v8124
        %v8126 = vpop.f32.mrb[0].mxu0
        %8127 = vmatprep.mubr.bf16.mxu0 0
        %8128 = vmatmul.mubr.bf16.gmra.mrb[0].mxu0 %v8074
        %v8129 = vpop.f32.mrb[0].mxu0
        %v8130 = vadd.f32 0.0, %v8129
        %v8131 = vpop.f32.mrb[0].mxu0
        %v8132 = vpop.f32.mrb[0].mxu0
        %v8133 = vadd.f32 0.0, %v8132
        %v8134 = vpop.f32.mrb[0].mxu0
        %8135 = vmatprep.mubr.bf16.mxu0 0
        %8136 = vmatmul.mubr.bf16.gmra.mrb[0].mxu0 %v8077
        %v8137 = vpop.f32.mrb[0].mxu0
        %v8138 = vadd.f32 0.0, %v8137
        %v8139 = vpop.f32.mrb[0].mxu0
        %v8140 = vpop.f32.mrb[0].mxu0
        %v8141 = vadd.f32 0.0, %v8140
        %v8142 = vpop.f32.mrb[0].mxu0
        %8143 = vdwg.mxu0
        %v8144 = vadd.f32 %v7963, %v8114
        %v8145 = vadd.f32 %v7966, %v8117
        %v8146 = vadd.f32 %v7971, %v8122
        %v8147 = vadd.f32 %v7974, %v8125
        %v8148 = vadd.f32 %v7979, %v8130
        %v8149 = vadd.f32 %v7982, %v8133
        %v8150 = vadd.f32 %v7987, %v8138
        %v8151 = vadd.f32 %v7990, %v8141
        %v8152 = vld [vmem:[%s7596] sm:$0xf]
        %v8153 = vld [vmem:[%s7596 + $0x8] sm:$0xf]
        %v8154 = vld [vmem:[%s7596 + $0x10] sm:$0xf]
        %v8155 = vld [vmem:[%s7596 + $0x18] sm:$0xf]
        %v8156 = vld [vmem:[%s7596 + $0x20] sm:$0xf]
        %v8157 = vld [vmem:[%s7596 + $0x28] sm:$0xf]
        %v8158 = vld [vmem:[%s7596 + $0x30] sm:$0xf]
        %v8159 = vld [vmem:[%s7596 + $0x38] sm:$0xf]
        %v8168 = vunpack.c.l.b16 %v8152
        %v8169 = vunpack.c.l.b16 %v8153
        %v8170 = vunpack.c.l.b16 %v8154
        %v8171 = vunpack.c.l.b16 %v8155
        %v8172 = vunpack.c.l.b16 %v8156
        %v8173 = vunpack.c.l.b16 %v8157
        %v8174 = vunpack.c.l.b16 %v8158
        %v8175 = vunpack.c.l.b16 %v8159
        %v8176 = vpack.c.b16 %v8169, %v8168
        %v8177 = vpack.c.b16 %v8171, %v8170
        %v8178 = vpack.c.b16 %v8173, %v8172
        %v8179 = vpack.c.b16 %v8175, %v8174
        %v8182 = vunpack.c.l.b16 %v7655
        %v8183 = vunpack.c.l.b16 %v7656
        %v8184 = vpack.c.b16 %v8183, %v8182
        %v8187 = vsel %vm6975, %v8176, 0
        %v8190 = vsel %vm6975, %v8177, 0
        %v8193 = vsel %vm6975, %v8178, 0
        %v8196 = vsel %vm6975, %v8179, 0
        %8198 = vmatprep.subr.bf16.mxu0 0
        %8199 = vmatpush1.bf16.msra.mxu0 %v8184
        %8200 = vmatprep.subr.bf16.mxu0 0
        %8201 = vmatpush1.bf16.msra.mxu0 0
        %8202 = vmatprep.subr.bf16.mxu0 0
        %8203 = vmatpush1.bf16.msra.mxu0 0
        %8204 = vmatprep.subr.bf16.mxu0 0
        %8205 = vmatpush1.bf16.msra.mxu0 0
        %8206 = vmatprep.subr.bf16.mxu0 0
        %8207 = vmatpush1.bf16.msra.mxu0 0
        %8208 = vmatprep.subr.bf16.mxu0 0
        %8209 = vmatpush1.bf16.msra.mxu0 0
        %8210 = vmatprep.subr.bf16.mxu0 0
        %8211 = vmatpush1.bf16.msra.mxu0 0
        %8212 = vmatprep.subr.bf16.mxu0 0
        %8213 = vmatpush1.bf16.msra.mxu0 0
        %8214 = vmatprep.subr.bf16.mxu0 0
        %8215 = vmatpush1.bf16.msra.mxu0 0
        %8216 = vmatprep.subr.bf16.mxu0 0
        %8217 = vmatpush1.bf16.msra.mxu0 0
        %8218 = vmatprep.subr.bf16.mxu0 0
        %8219 = vmatpush1.bf16.msra.mxu0 0
        %8220 = vmatprep.subr.bf16.mxu0 0
        %8221 = vmatpush1.bf16.msra.mxu0 0
        %8222 = vmatprep.subr.bf16.mxu0 0
        %8223 = vmatpush1.bf16.msra.mxu0 0
        %8224 = vmatprep.subr.bf16.mxu0 0
        %8225 = vmatpush1.bf16.msra.mxu0 0
        %8226 = vmatprep.subr.bf16.mxu0 0
        %8227 = vmatpush1.bf16.msra.mxu0 0
        %8228 = vmatprep.subr.bf16.mxu0 0
        %8229 = vmatpush1.bf16.msra.mxu0 0
        %8230 = vmatprep.mubr.bf16.mxu0 0
        %8231 = vmatmul.mubr.bf16.gmra.mrb[0].mxu0 %v8187
        %v8232 = vpop.f32.mrb[0].mxu0
        %v8233 = vadd.f32 0.0, %v8232
        %v8234 = vpop.f32.mrb[0].mxu0
        %v8235 = vpop.f32.mrb[0].mxu0
        %v8236 = vadd.f32 0.0, %v8235
        %v8237 = vpop.f32.mrb[0].mxu0
        %8238 = vmatprep.mubr.bf16.mxu0 0
        %8239 = vmatmul.mubr.bf16.gmra.mrb[0].mxu0 %v8190
        %v8240 = vpop.f32.mrb[0].mxu0
        %v8241 = vadd.f32 0.0, %v8240
        %v8242 = vpop.f32.mrb[0].mxu0
        %v8243 = vpop.f32.mrb[0].mxu0
        %v8244 = vadd.f32 0.0, %v8243
        %v8245 = vpop.f32.mrb[0].mxu0
        %8246 = vmatprep.mubr.bf16.mxu0 0
        %8247 = vmatmul.mubr.bf16.gmra.mrb[0].mxu0 %v8193
        %v8248 = vpop.f32.mrb[0].mxu0
        %v8249 = vadd.f32 0.0, %v8248
        %v8250 = vpop.f32.mrb[0].mxu0
        %v8251 = vpop.f32.mrb[0].mxu0
        %v8252 = vadd.f32 0.0, %v8251
        %v8253 = vpop.f32.mrb[0].mxu0
        %8254 = vmatprep.mubr.bf16.mxu0 0
        %8255 = vmatmul.mubr.bf16.gmra.mrb[0].mxu0 %v8196
        %v8256 = vpop.f32.mrb[0].mxu0
        %v8257 = vadd.f32 0.0, %v8256
        %v8258 = vpop.f32.mrb[0].mxu0
        %v8259 = vpop.f32.mrb[0].mxu0
        %v8260 = vadd.f32 0.0, %v8259
        %v8261 = vpop.f32.mrb[0].mxu0
        %8262 = vdwg.mxu0
        %v8263 = vadd.f32 %v8144, %v8233
        %v8264 = vadd.f32 %v8145, %v8236
        %v8265 = vadd.f32 %v8146, %v8241
        %v8266 = vadd.f32 %v8147, %v8244
        %v8267 = vadd.f32 %v8148, %v8249
        %v8268 = vadd.f32 %v8149, %v8252
        %v8269 = vadd.f32 %v8150, %v8257
        %v8270 = vadd.f32 %v8151, %v8260
        %v8271 = vld [vmem:[%s7596] sm:$0xf]
        %v8272 = vld [vmem:[%s7596 + $0x4] sm:$0x1]
        %v8273 = vld [vmem:[%s7596 + $0x8] sm:$0xf]
        %v8274 = vld [vmem:[%s7596 + $0xc] sm:$0x1]
        %v8275 = vld [vmem:[%s7596 + $0x10] sm:$0xf]
        %v8276 = vld [vmem:[%s7596 + $0x14] sm:$0x1]
        %v8277 = vld [vmem:[%s7596 + $0x18] sm:$0xf]
        %v8278 = vld [vmem:[%s7596 + $0x1c] sm:$0x1]
        %v8279 = vld [vmem:[%s7596 + $0x20] sm:$0xf]
        %v8280 = vld [vmem:[%s7596 + $0x24] sm:$0x1]
        %v8281 = vld [vmem:[%s7596 + $0x28] sm:$0xf]
        %v8282 = vld [vmem:[%s7596 + $0x2c] sm:$0x1]
        %v8283 = vld [vmem:[%s7596 + $0x30] sm:$0xf]
        %v8284 = vld [vmem:[%s7596 + $0x34] sm:$0x1]
        %v8285 = vld [vmem:[%s7596 + $0x38] sm:$0xf]
        %v8286 = vld [vmem:[%s7596 + $0x3c] sm:$0x1]
        %v8288 = vshrl.u32 %v8271, 16
        %v8290 = vrot.slane %v8288, 4
        %v8291 = vshll.u32 %v8271, 16
        %v8293 = vrot.slane %v8291, 5
        %v8294 = vor.u32 %v8290, %v8293
        %v8295 = vrot.slane %v8294, 4
        %v8297 = vshll.u32 %v8272, 16
        %v8299 = vrot.slane %v8297, 5
        %v8300 = vsel %vm812, %v8295, %v8299
        %v8302 = vshrl.u32 %v8273, 16
        %v8304 = vrot.slane %v8302, 4
        %v8305 = vshll.u32 %v8273, 16
        %v8307 = vrot.slane %v8305, 5
        %v8308 = vor.u32 %v8304, %v8307
        %v8309 = vrot.slane %v8308, 4
        %v8311 = vshll.u32 %v8274, 16
        %v8313 = vrot.slane %v8311, 5
        %v8314 = vsel %vm812, %v8309, %v8313
        %v8316 = vshrl.u32 %v8275, 16
        %v8318 = vrot.slane %v8316, 4
        %v8319 = vshll.u32 %v8275, 16
        %v8321 = vrot.slane %v8319, 5
        %v8322 = vor.u32 %v8318, %v8321
        %v8323 = vrot.slane %v8322, 4
        %v8325 = vshll.u32 %v8276, 16
        %v8327 = vrot.slane %v8325, 5
        %v8328 = vsel %vm812, %v8323, %v8327
        %v8330 = vshrl.u32 %v8277, 16
        %v8332 = vrot.slane %v8330, 4
        %v8333 = vshll.u32 %v8277, 16
        %v8335 = vrot.slane %v8333, 5
        %v8336 = vor.u32 %v8332, %v8335
        %v8337 = vrot.slane %v8336, 4
        %v8339 = vshll.u32 %v8278, 16
        %v8341 = vrot.slane %v8339, 5
        %v8342 = vsel %vm812, %v8337, %v8341
        %v8344 = vshrl.u32 %v8279, 16
        %v8346 = vrot.slane %v8344, 4
        %v8347 = vshll.u32 %v8279, 16
        %v8349 = vrot.slane %v8347, 5
        %v8350 = vor.u32 %v8346, %v8349
        %v8351 = vrot.slane %v8350, 4
        %v8353 = vshll.u32 %v8280, 16
        %v8355 = vrot.slane %v8353, 5
        %v8356 = vsel %vm812, %v8351, %v8355
        %v8358 = vshrl.u32 %v8281, 16
        %v8360 = vrot.slane %v8358, 4
        %v8361 = vshll.u32 %v8281, 16
        %v8363 = vrot.slane %v8361, 5
        %v8364 = vor.u32 %v8360, %v8363
        %v8365 = vrot.slane %v8364, 4
        %v8367 = vshll.u32 %v8282, 16
        %v8369 = vrot.slane %v8367, 5
        %v8370 = vsel %vm812, %v8365, %v8369
        %v8372 = vshrl.u32 %v8283, 16
        %v8374 = vrot.slane %v8372, 4
        %v8375 = vshll.u32 %v8283, 16
        %v8377 = vrot.slane %v8375, 5
        %v8378 = vor.u32 %v8374, %v8377
        %v8379 = vrot.slane %v8378, 4
        %v8381 = vshll.u32 %v8284, 16
        %v8383 = vrot.slane %v8381, 5
        %v8384 = vsel %vm812, %v8379, %v8383
        %v8386 = vshrl.u32 %v8285, 16
        %v8388 = vrot.slane %v8386, 4
        %v8389 = vshll.u32 %v8285, 16
        %v8391 = vrot.slane %v8389, 5
        %v8392 = vor.u32 %v8388, %v8391
        %v8393 = vrot.slane %v8392, 4
        %v8395 = vshll.u32 %v8286, 16
        %v8397 = vrot.slane %v8395, 5
        %v8398 = vsel %vm812, %v8393, %v8397
        %v8399 = vunpack.c.l.b16 %v8300
        %v8400 = vunpack.c.l.b16 %v8314
        %v8401 = vunpack.c.l.b16 %v8328
        %v8402 = vunpack.c.l.b16 %v8342
        %v8403 = vunpack.c.l.b16 %v8356
        %v8404 = vunpack.c.l.b16 %v8370
        %v8405 = vunpack.c.l.b16 %v8384
        %v8406 = vunpack.c.l.b16 %v8398
        %v8407 = vpack.c.b16 %v8400, %v8399
        %v8408 = vpack.c.b16 %v8402, %v8401
        %v8409 = vpack.c.b16 %v8404, %v8403
        %v8410 = vpack.c.b16 %v8406, %v8405
        %v8413 = vunpack.c.l.b16 %v7657
        %v8414 = vunpack.c.l.b16 %v7658
        %v8415 = vpack.c.b16 %v8414, %v8413
        %v8418 = vsel %vm6975, %v8407, 0
        %v8421 = vsel %vm6975, %v8408, 0
        %v8424 = vsel %vm6975, %v8409, 0
        %v8427 = vsel %vm6975, %v8410, 0
        %8429 = vmatprep.subr.bf16.mxu0 0
        %8430 = vmatpush1.bf16.msra.mxu0 %v8415
        %8431 = vmatprep.subr.bf16.mxu0 0
        %8432 = vmatpush1.bf16.msra.mxu0 0
        %8433 = vmatprep.subr.bf16.mxu0 0
        %8434 = vmatpush1.bf16.msra.mxu0 0
        %8435 = vmatprep.subr.bf16.mxu0 0
        %8436 = vmatpush1.bf16.msra.mxu0 0
        %8437 = vmatprep.subr.bf16.mxu0 0
        %8438 = vmatpush1.bf16.msra.mxu0 0
        %8439 = vmatprep.subr.bf16.mxu0 0
        %8440 = vmatpush1.bf16.msra.mxu0 0
        %8441 = vmatprep.subr.bf16.mxu0 0
        %8442 = vmatpush1.bf16.msra.mxu0 0
        %8443 = vmatprep.subr.bf16.mxu0 0
        %8444 = vmatpush1.bf16.msra.mxu0 0
        %8445 = vmatprep.subr.bf16.mxu0 0
        %8446 = vmatpush1.bf16.msra.mxu0 0
        %8447 = vmatprep.subr.bf16.mxu0 0
        %8448 = vmatpush1.bf16.msra.mxu0 0
        %8449 = vmatprep.subr.bf16.mxu0 0
        %8450 = vmatpush1.bf16.msra.mxu0 0
        %8451 = vmatprep.subr.bf16.mxu0 0
        %8452 = vmatpush1.bf16.msra.mxu0 0
        %8453 = vmatprep.subr.bf16.mxu0 0
        %8454 = vmatpush1.bf16.msra.mxu0 0
        %8455 = vmatprep.subr.bf16.mxu0 0
        %8456 = vmatpush1.bf16.msra.mxu0 0
        %8457 = vmatprep.subr.bf16.mxu0 0
        %8458 = vmatpush1.bf16.msra.mxu0 0
        %8459 = vmatprep.subr.bf16.mxu0 0
        %8460 = vmatpush1.bf16.msra.mxu0 0
        %8461 = vmatprep.mubr.bf16.mxu0 0
        %8462 = vmatmul.mubr.bf16.gmra.mrb[0].mxu0 %v8418
        %v8463 = vpop.f32.mrb[0].mxu0
        %v8464 = vadd.f32 0.0, %v8463
        %v8465 = vpop.f32.mrb[0].mxu0
        %v8466 = vpop.f32.mrb[0].mxu0
        %v8467 = vadd.f32 0.0, %v8466
        %v8468 = vpop.f32.mrb[0].mxu0
        %8469 = vmatprep.mubr.bf16.mxu0 0
        %8470 = vmatmul.mubr.bf16.gmra.mrb[0].mxu0 %v8421
        %v8471 = vpop.f32.mrb[0].mxu0
        %v8472 = vadd.f32 0.0, %v8471
        %v8473 = vpop.f32.mrb[0].mxu0
        %v8474 = vpop.f32.mrb[0].mxu0
        %v8475 = vadd.f32 0.0, %v8474
        %v8476 = vpop.f32.mrb[0].mxu0
        %8477 = vmatprep.mubr.bf16.mxu0 0
        %8478 = vmatmul.mubr.bf16.gmra.mrb[0].mxu0 %v8424
        %v8479 = vpop.f32.mrb[0].mxu0
        %v8480 = vadd.f32 0.0, %v8479
        %v8481 = vpop.f32.mrb[0].mxu0
        %v8482 = vpop.f32.mrb[0].mxu0
        %v8483 = vadd.f32 0.0, %v8482
        %v8484 = vpop.f32.mrb[0].mxu0
        %8485 = vmatprep.mubr.bf16.mxu0 0
        %8486 = vmatmul.mubr.bf16.gmra.mrb[0].mxu0 %v8427
        %v8487 = vpop.f32.mrb[0].mxu0
        %v8488 = vadd.f32 0.0, %v8487
        %v8489 = vpop.f32.mrb[0].mxu0
        %v8490 = vpop.f32.mrb[0].mxu0
        %v8491 = vadd.f32 0.0, %v8490
        %v8492 = vpop.f32.mrb[0].mxu0
        %8493 = vdwg.mxu0
        %v8494 = vadd.f32 %v8263, %v8464
        %v8495 = vadd.f32 %v8264, %v8467
        %v8496 = vadd.f32 %v8265, %v8472
        %v8497 = vadd.f32 %v8266, %v8475
        %v8498 = vadd.f32 %v8267, %v8480
        %v8499 = vadd.f32 %v8268, %v8483
        %v8500 = vadd.f32 %v8269, %v8488
        %v8501 = vadd.f32 %v8270, %v8491
        %v8502 = vld [vmem:[%s7596] sm:$0xe]
        %v8503 = vld [vmem:[%s7596 + $0x8] sm:$0xe]
        %v8504 = vld [vmem:[%s7596 + $0x10] sm:$0xe]
        %v8505 = vld [vmem:[%s7596 + $0x18] sm:$0xe]
        %v8506 = vld [vmem:[%s7596 + $0x20] sm:$0xe]
        %v8507 = vld [vmem:[%s7596 + $0x28] sm:$0xe]
        %v8508 = vld [vmem:[%s7596 + $0x30] sm:$0xe]
        %v8509 = vld [vmem:[%s7596 + $0x38] sm:$0xe]
        %v8526 = vrot.slane %v8502, 5
        %v8527 = vrot.slane %v8526, 4
        %v8528 = vrot.slane %v8272, 5
        %v8529 = vsel %vm1801, %v8527, %v8528
        %v8530 = vrot.slane %v8503, 5
        %v8531 = vrot.slane %v8530, 4
        %v8532 = vrot.slane %v8274, 5
        %v8533 = vsel %vm1801, %v8531, %v8532
        %v8534 = vrot.slane %v8504, 5
        %v8535 = vrot.slane %v8534, 4
        %v8536 = vrot.slane %v8276, 5
        %v8537 = vsel %vm1801, %v8535, %v8536
        %v8538 = vrot.slane %v8505, 5
        %v8539 = vrot.slane %v8538, 4
        %v8540 = vrot.slane %v8278, 5
        %v8541 = vsel %vm1801, %v8539, %v8540
        %v8542 = vrot.slane %v8506, 5
        %v8543 = vrot.slane %v8542, 4
        %v8544 = vrot.slane %v8280, 5
        %v8545 = vsel %vm1801, %v8543, %v8544
        %v8546 = vrot.slane %v8507, 5
        %v8547 = vrot.slane %v8546, 4
        %v8548 = vrot.slane %v8282, 5
        %v8549 = vsel %vm1801, %v8547, %v8548
        %v8550 = vrot.slane %v8508, 5
        %v8551 = vrot.slane %v8550, 4
        %v8552 = vrot.slane %v8284, 5
        %v8553 = vsel %vm1801, %v8551, %v8552
        %v8554 = vrot.slane %v8509, 5
        %v8555 = vrot.slane %v8554, 4
        %v8556 = vrot.slane %v8286, 5
        %v8557 = vsel %vm1801, %v8555, %v8556
        %v8558 = vunpack.c.l.b16 %v8529
        %v8559 = vunpack.c.l.b16 %v8533
        %v8560 = vunpack.c.l.b16 %v8537
        %v8561 = vunpack.c.l.b16 %v8541
        %v8562 = vunpack.c.l.b16 %v8545
        %v8563 = vunpack.c.l.b16 %v8549
        %v8564 = vunpack.c.l.b16 %v8553
        %v8565 = vunpack.c.l.b16 %v8557
        %v8566 = vpack.c.b16 %v8559, %v8558
        %v8567 = vpack.c.b16 %v8561, %v8560
        %v8568 = vpack.c.b16 %v8563, %v8562
        %v8569 = vpack.c.b16 %v8565, %v8564
        %v8572 = vunpack.c.l.b16 %v7659
        %v8573 = vunpack.c.l.b16 %v7660
        %v8574 = vpack.c.b16 %v8573, %v8572
        %v8577 = vsel %vm6975, %v8566, 0
        %v8580 = vsel %vm6975, %v8567, 0
        %v8583 = vsel %vm6975, %v8568, 0
        %v8586 = vsel %vm6975, %v8569, 0
        %8588 = vmatprep.subr.bf16.mxu0 0
        %8589 = vmatpush1.bf16.msra.mxu0 %v8574
        %8590 = vmatprep.subr.bf16.mxu0 0
        %8591 = vmatpush1.bf16.msra.mxu0 0
        %8592 = vmatprep.subr.bf16.mxu0 0
        %8593 = vmatpush1.bf16.msra.mxu0 0
        %8594 = vmatprep.subr.bf16.mxu0 0
        %8595 = vmatpush1.bf16.msra.mxu0 0
        %8596 = vmatprep.subr.bf16.mxu0 0
        %8597 = vmatpush1.bf16.msra.mxu0 0
        %8598 = vmatprep.subr.bf16.mxu0 0
        %8599 = vmatpush1.bf16.msra.mxu0 0
        %8600 = vmatprep.subr.bf16.mxu0 0
        %8601 = vmatpush1.bf16.msra.mxu0 0
        %8602 = vmatprep.subr.bf16.mxu0 0
        %8603 = vmatpush1.bf16.msra.mxu0 0
        %8604 = vmatprep.subr.bf16.mxu0 0
        %8605 = vmatpush1.bf16.msra.mxu0 0
        %8606 = vmatprep.subr.bf16.mxu0 0
        %8607 = vmatpush1.bf16.msra.mxu0 0
        %8608 = vmatprep.subr.bf16.mxu0 0
        %8609 = vmatpush1.bf16.msra.mxu0 0
        %8610 = vmatprep.subr.bf16.mxu0 0
        %8611 = vmatpush1.bf16.msra.mxu0 0
        %8612 = vmatprep.subr.bf16.mxu0 0
        %8613 = vmatpush1.bf16.msra.mxu0 0
        %8614 = vmatprep.subr.bf16.mxu0 0
        %8615 = vmatpush1.bf16.msra.mxu0 0
        %8616 = vmatprep.subr.bf16.mxu0 0
        %8617 = vmatpush1.bf16.msra.mxu0 0
        %8618 = vmatprep.subr.bf16.mxu0 0
        %8619 = vmatpush1.bf16.msra.mxu0 0
        %8620 = vmatprep.mubr.bf16.mxu0 0
        %8621 = vmatmul.mubr.bf16.gmra.mrb[0].mxu0 %v8577
        %v8622 = vpop.f32.mrb[0].mxu0
        %v8623 = vadd.f32 0.0, %v8622
        %v8624 = vpop.f32.mrb[0].mxu0
        %v8625 = vpop.f32.mrb[0].mxu0
        %v8626 = vadd.f32 0.0, %v8625
        %v8627 = vpop.f32.mrb[0].mxu0
        %8628 = vmatprep.mubr.bf16.mxu0 0
        %8629 = vmatmul.mubr.bf16.gmra.mrb[0].mxu0 %v8580
        %v8630 = vpop.f32.mrb[0].mxu0
        %v8631 = vadd.f32 0.0, %v8630
        %v8632 = vpop.f32.mrb[0].mxu0
        %v8633 = vpop.f32.mrb[0].mxu0
        %v8634 = vadd.f32 0.0, %v8633
        %v8635 = vpop.f32.mrb[0].mxu0
        %8636 = vmatprep.mubr.bf16.mxu0 0
        %8637 = vmatmul.mubr.bf16.gmra.mrb[0].mxu0 %v8583
        %v8638 = vpop.f32.mrb[0].mxu0
        %v8639 = vadd.f32 0.0, %v8638
        %v8640 = vpop.f32.mrb[0].mxu0
        %v8641 = vpop.f32.mrb[0].mxu0
        %v8642 = vadd.f32 0.0, %v8641
        %v8643 = vpop.f32.mrb[0].mxu0
        %8644 = vmatprep.mubr.bf16.mxu0 0
        %8645 = vmatmul.mubr.bf16.gmra.mrb[0].mxu0 %v8586
        %v8646 = vpop.f32.mrb[0].mxu0
        %v8647 = vadd.f32 0.0, %v8646
        %v8648 = vpop.f32.mrb[0].mxu0
        %v8649 = vpop.f32.mrb[0].mxu0
        %v8650 = vadd.f32 0.0, %v8649
        %v8651 = vpop.f32.mrb[0].mxu0
        %8652 = vdwg.mxu0
        %v8653 = vadd.f32 %v8494, %v8623
        %v8654 = vadd.f32 %v8495, %v8626
        %v8655 = vadd.f32 %v8496, %v8631
        %v8656 = vadd.f32 %v8497, %v8634
        %v8657 = vadd.f32 %v8498, %v8639
        %v8658 = vadd.f32 %v8499, %v8642
        %v8659 = vadd.f32 %v8500, %v8647
        %v8660 = vadd.f32 %v8501, %v8650
        %s8661 = scalar_lea.vmem [#allocation3], 16
        %v8662 = vld [vmem:[%s8661] sm:$0xf]
        %v8663 = vld [vmem:[%s8661 + $0x8] sm:$0xf]
        %v8664 = vld [vmem:[%s8661 + $0x10] sm:$0xf]
        %v8665 = vld [vmem:[%s8661 + $0x18] sm:$0xf]
        %v8666 = vld [vmem:[%s8661 + $0x20] sm:$0xf]
        %v8667 = vld [vmem:[%s8661 + $0x28] sm:$0xf]
        %v8668 = vld [vmem:[%s8661 + $0x30] sm:$0xf]
        %v8669 = vld [vmem:[%s8661 + $0x38] sm:$0xf]
        %v8678 = vunpack.c.l.b16 %v8662
        %v8679 = vunpack.c.l.b16 %v8663
        %v8680 = vunpack.c.l.b16 %v8664
        %v8681 = vunpack.c.l.b16 %v8665
        %v8682 = vunpack.c.l.b16 %v8666
        %v8683 = vunpack.c.l.b16 %v8667
        %v8684 = vunpack.c.l.b16 %v8668
        %v8685 = vunpack.c.l.b16 %v8669
        %v8686 = vpack.c.b16 %v8679, %v8678
        %v8687 = vpack.c.b16 %v8681, %v8680
        %v8688 = vpack.c.b16 %v8683, %v8682
        %v8689 = vpack.c.b16 %v8685, %v8684
        %v8692 = vunpack.c.l.b16 %v7661
        %v8693 = vunpack.c.l.b16 %v7662
        %v8694 = vpack.c.b16 %v8693, %v8692
        %v8697 = vsel %vm6975, %v8686, 0
        %v8700 = vsel %vm6975, %v8687, 0
        %v8703 = vsel %vm6975, %v8688, 0
        %v8706 = vsel %vm6975, %v8689, 0
        %8708 = vmatprep.subr.bf16.mxu0 0
        %8709 = vmatpush1.bf16.msra.mxu0 %v8694
        %8710 = vmatprep.subr.bf16.mxu0 0
        %8711 = vmatpush1.bf16.msra.mxu0 0
        %8712 = vmatprep.subr.bf16.mxu0 0
        %8713 = vmatpush1.bf16.msra.mxu0 0
        %8714 = vmatprep.subr.bf16.mxu0 0
        %8715 = vmatpush1.bf16.msra.mxu0 0
        %8716 = vmatprep.subr.bf16.mxu0 0
        %8717 = vmatpush1.bf16.msra.mxu0 0
        %8718 = vmatprep.subr.bf16.mxu0 0
        %8719 = vmatpush1.bf16.msra.mxu0 0
        %8720 = vmatprep.subr.bf16.mxu0 0
        %8721 = vmatpush1.bf16.msra.mxu0 0
        %8722 = vmatprep.subr.bf16.mxu0 0
        %8723 = vmatpush1.bf16.msra.mxu0 0
        %8724 = vmatprep.subr.bf16.mxu0 0
        %8725 = vmatpush1.bf16.msra.mxu0 0
        %8726 = vmatprep.subr.bf16.mxu0 0
        %8727 = vmatpush1.bf16.msra.mxu0 0
        %8728 = vmatprep.subr.bf16.mxu0 0
        %8729 = vmatpush1.bf16.msra.mxu0 0
        %8730 = vmatprep.subr.bf16.mxu0 0
        %8731 = vmatpush1.bf16.msra.mxu0 0
        %8732 = vmatprep.subr.bf16.mxu0 0
        %8733 = vmatpush1.bf16.msra.mxu0 0
        %8734 = vmatprep.subr.bf16.mxu0 0
        %8735 = vmatpush1.bf16.msra.mxu0 0
        %8736 = vmatprep.subr.bf16.mxu0 0
        %8737 = vmatpush1.bf16.msra.mxu0 0
        %8738 = vmatprep.subr.bf16.mxu0 0
        %8739 = vmatpush1.bf16.msra.mxu0 0
        %8740 = vmatprep.mubr.bf16.mxu0 0
        %8741 = vmatmul.mubr.bf16.gmra.mrb[0].mxu0 %v8697
        %v8742 = vpop.f32.mrb[0].mxu0
        %v8743 = vadd.f32 0.0, %v8742
        %v8744 = vpop.f32.mrb[0].mxu0
        %v8745 = vpop.f32.mrb[0].mxu0
        %v8746 = vadd.f32 0.0, %v8745
        %v8747 = vpop.f32.mrb[0].mxu0
        %8748 = vmatprep.mubr.bf16.mxu0 0
        %8749 = vmatmul.mubr.bf16.gmra.mrb[0].mxu0 %v8700
        %v8750 = vpop.f32.mrb[0].mxu0
        %v8751 = vadd.f32 0.0, %v8750
        %v8752 = vpop.f32.mrb[0].mxu0
        %v8753 = vpop.f32.mrb[0].mxu0
        %v8754 = vadd.f32 0.0, %v8753
        %v8755 = vpop.f32.mrb[0].mxu0
        %8756 = vmatprep.mubr.bf16.mxu0 0
        %8757 = vmatmul.mubr.bf16.gmra.mrb[0].mxu0 %v8703
        %v8758 = vpop.f32.mrb[0].mxu0
        %v8759 = vadd.f32 0.0, %v8758
        %v8760 = vpop.f32.mrb[0].mxu0
        %v8761 = vpop.f32.mrb[0].mxu0
        %v8762 = vadd.f32 0.0, %v8761
        %v8763 = vpop.f32.mrb[0].mxu0
        %8764 = vmatprep.mubr.bf16.mxu0 0
        %8765 = vmatmul.mubr.bf16.gmra.mrb[0].mxu0 %v8706
        %v8766 = vpop.f32.mrb[0].mxu0
        %v8767 = vadd.f32 0.0, %v8766
        %v8768 = vpop.f32.mrb[0].mxu0
        %v8769 = vpop.f32.mrb[0].mxu0
        %v8770 = vadd.f32 0.0, %v8769
        %v8771 = vpop.f32.mrb[0].mxu0
        %8772 = vdwg.mxu0
        %v8773 = vadd.f32 %v8653, %v8743
        %v8774 = vadd.f32 %v8654, %v8746
        %v8775 = vadd.f32 %v8655, %v8751
        %v8776 = vadd.f32 %v8656, %v8754
        %v8777 = vadd.f32 %v8657, %v8759
        %v8778 = vadd.f32 %v8658, %v8762
        %v8779 = vadd.f32 %v8659, %v8767
        %v8780 = vadd.f32 %v8660, %v8770
        %v8781 = vld [vmem:[%s8661] sm:$0xf]
        %v8782 = vld [vmem:[%s8661 + $0x4] sm:$0x1]
        %v8783 = vld [vmem:[%s8661 + $0x8] sm:$0xf]
        %v8784 = vld [vmem:[%s8661 + $0xc] sm:$0x1]
        %v8785 = vld [vmem:[%s8661 + $0x10] sm:$0xf]
        %v8786 = vld [vmem:[%s8661 + $0x14] sm:$0x1]
        %v8787 = vld [vmem:[%s8661 + $0x18] sm:$0xf]
        %v8788 = vld [vmem:[%s8661 + $0x1c] sm:$0x1]
        %v8789 = vld [vmem:[%s8661 + $0x20] sm:$0xf]
        %v8790 = vld [vmem:[%s8661 + $0x24] sm:$0x1]
        %v8791 = vld [vmem:[%s8661 + $0x28] sm:$0xf]
        %v8792 = vld [vmem:[%s8661 + $0x2c] sm:$0x1]
        %v8793 = vld [vmem:[%s8661 + $0x30] sm:$0xf]
        %v8794 = vld [vmem:[%s8661 + $0x34] sm:$0x1]
        %v8795 = vld [vmem:[%s8661 + $0x38] sm:$0xf]
        %v8796 = vld [vmem:[%s8661 + $0x3c] sm:$0x1]
        %v8798 = vshrl.u32 %v8781, 16
        %v8800 = vrot.slane %v8798, 4
        %v8801 = vshll.u32 %v8781, 16
        %v8803 = vrot.slane %v8801, 5
        %v8804 = vor.u32 %v8800, %v8803
        %v8805 = vrot.slane %v8804, 4
        %v8807 = vshll.u32 %v8782, 16
        %v8809 = vrot.slane %v8807, 5
        %v8810 = vsel %vm812, %v8805, %v8809
        %v8812 = vshrl.u32 %v8783, 16
        %v8814 = vrot.slane %v8812, 4
        %v8815 = vshll.u32 %v8783, 16
        %v8817 = vrot.slane %v8815, 5
        %v8818 = vor.u32 %v8814, %v8817
        %v8819 = vrot.slane %v8818, 4
        %v8821 = vshll.u32 %v8784, 16
        %v8823 = vrot.slane %v8821, 5
        %v8824 = vsel %vm812, %v8819, %v8823
        %v8826 = vshrl.u32 %v8785, 16
        %v8828 = vrot.slane %v8826, 4
        %v8829 = vshll.u32 %v8785, 16
        %v8831 = vrot.slane %v8829, 5
        %v8832 = vor.u32 %v8828, %v8831
        %v8833 = vrot.slane %v8832, 4
        %v8835 = vshll.u32 %v8786, 16
        %v8837 = vrot.slane %v8835, 5
        %v8838 = vsel %vm812, %v8833, %v8837
        %v8840 = vshrl.u32 %v8787, 16
        %v8842 = vrot.slane %v8840, 4
        %v8843 = vshll.u32 %v8787, 16
        %v8845 = vrot.slane %v8843, 5
        %v8846 = vor.u32 %v8842, %v8845
        %v8847 = vrot.slane %v8846, 4
        %v8849 = vshll.u32 %v8788, 16
        %v8851 = vrot.slane %v8849, 5
        %v8852 = vsel %vm812, %v8847, %v8851
        %v8854 = vshrl.u32 %v8789, 16
        %v8856 = vrot.slane %v8854, 4
        %v8857 = vshll.u32 %v8789, 16
        %v8859 = vrot.slane %v8857, 5
        %v8860 = vor.u32 %v8856, %v8859
        %v8861 = vrot.slane %v8860, 4
        %v8863 = vshll.u32 %v8790, 16
        %v8865 = vrot.slane %v8863, 5
        %v8866 = vsel %vm812, %v8861, %v8865
        %v8868 = vshrl.u32 %v8791, 16
        %v8870 = vrot.slane %v8868, 4
        %v8871 = vshll.u32 %v8791, 16
        %v8873 = vrot.slane %v8871, 5
        %v8874 = vor.u32 %v8870, %v8873
        %v8875 = vrot.slane %v8874, 4
        %v8877 = vshll.u32 %v8792, 16
        %v8879 = vrot.slane %v8877, 5
        %v8880 = vsel %vm812, %v8875, %v8879
        %v8882 = vshrl.u32 %v8793, 16
        %v8884 = vrot.slane %v8882, 4
        %v8885 = vshll.u32 %v8793, 16
        %v8887 = vrot.slane %v8885, 5
        %v8888 = vor.u32 %v8884, %v8887
        %v8889 = vrot.slane %v8888, 4
        %v8891 = vshll.u32 %v8794, 16
        %v8893 = vrot.slane %v8891, 5
        %v8894 = vsel %vm812, %v8889, %v8893
        %v8896 = vshrl.u32 %v8795, 16
        %v8898 = vrot.slane %v8896, 4
        %v8899 = vshll.u32 %v8795, 16
        %v8901 = vrot.slane %v8899, 5
        %v8902 = vor.u32 %v8898, %v8901
        %v8903 = vrot.slane %v8902, 4
        %v8905 = vshll.u32 %v8796, 16
        %v8907 = vrot.slane %v8905, 5
        %v8908 = vsel %vm812, %v8903, %v8907
        %v8909 = vunpack.c.l.b16 %v8810
        %v8910 = vunpack.c.l.b16 %v8824
        %v8911 = vunpack.c.l.b16 %v8838
        %v8912 = vunpack.c.l.b16 %v8852
        %v8913 = vunpack.c.l.b16 %v8866
        %v8914 = vunpack.c.l.b16 %v8880
        %v8915 = vunpack.c.l.b16 %v8894
        %v8916 = vunpack.c.l.b16 %v8908
        %v8917 = vpack.c.b16 %v8910, %v8909
        %v8918 = vpack.c.b16 %v8912, %v8911
        %v8919 = vpack.c.b16 %v8914, %v8913
        %v8920 = vpack.c.b16 %v8916, %v8915
        %v8923 = vunpack.c.l.b16 %v7663
        %v8924 = vunpack.c.l.b16 %v7664
        %v8925 = vpack.c.b16 %v8924, %v8923
        %v8928 = vsel %vm6975, %v8917, 0
        %v8931 = vsel %vm6975, %v8918, 0
        %v8934 = vsel %vm6975, %v8919, 0
        %v8937 = vsel %vm6975, %v8920, 0
        %8939 = vmatprep.subr.bf16.mxu0 0
        %8940 = vmatpush1.bf16.msra.mxu0 %v8925
        %8941 = vmatprep.subr.bf16.mxu0 0
        %8942 = vmatpush1.bf16.msra.mxu0 0
        %8943 = vmatprep.subr.bf16.mxu0 0
        %8944 = vmatpush1.bf16.msra.mxu0 0
        %8945 = vmatprep.subr.bf16.mxu0 0
        %8946 = vmatpush1.bf16.msra.mxu0 0
        %8947 = vmatprep.subr.bf16.mxu0 0
        %8948 = vmatpush1.bf16.msra.mxu0 0
        %8949 = vmatprep.subr.bf16.mxu0 0
        %8950 = vmatpush1.bf16.msra.mxu0 0
        %8951 = vmatprep.subr.bf16.mxu0 0
        %8952 = vmatpush1.bf16.msra.mxu0 0
        %8953 = vmatprep.subr.bf16.mxu0 0
        %8954 = vmatpush1.bf16.msra.mxu0 0
        %8955 = vmatprep.subr.bf16.mxu0 0
        %8956 = vmatpush1.bf16.msra.mxu0 0
        %8957 = vmatprep.subr.bf16.mxu0 0
        %8958 = vmatpush1.bf16.msra.mxu0 0
        %8959 = vmatprep.subr.bf16.mxu0 0
        %8960 = vmatpush1.bf16.msra.mxu0 0
        %8961 = vmatprep.subr.bf16.mxu0 0
        %8962 = vmatpush1.bf16.msra.mxu0 0
        %8963 = vmatprep.subr.bf16.mxu0 0
        %8964 = vmatpush1.bf16.msra.mxu0 0
        %8965 = vmatprep.subr.bf16.mxu0 0
        %8966 = vmatpush1.bf16.msra.mxu0 0
        %8967 = vmatprep.subr.bf16.mxu0 0
        %8968 = vmatpush1.bf16.msra.mxu0 0
        %8969 = vmatprep.subr.bf16.mxu0 0
        %8970 = vmatpush1.bf16.msra.mxu0 0
        %8971 = vmatprep.mubr.bf16.mxu0 0
        %8972 = vmatmul.mubr.bf16.gmra.mrb[0].mxu0 %v8928
        %v8973 = vpop.f32.mrb[0].mxu0
        %v8974 = vadd.f32 0.0, %v8973
        %v8975 = vpop.f32.mrb[0].mxu0
        %v8976 = vpop.f32.mrb[0].mxu0
        %v8977 = vadd.f32 0.0, %v8976
        %v8978 = vpop.f32.mrb[0].mxu0
        %8979 = vmatprep.mubr.bf16.mxu0 0
        %8980 = vmatmul.mubr.bf16.gmra.mrb[0].mxu0 %v8931
        %v8981 = vpop.f32.mrb[0].mxu0
        %v8982 = vadd.f32 0.0, %v8981
        %v8983 = vpop.f32.mrb[0].mxu0
        %v8984 = vpop.f32.mrb[0].mxu0
        %v8985 = vadd.f32 0.0, %v8984
        %v8986 = vpop.f32.mrb[0].mxu0
        %8987 = vmatprep.mubr.bf16.mxu0 0
        %8988 = vmatmul.mubr.bf16.gmra.mrb[0].mxu0 %v8934
        %v8989 = vpop.f32.mrb[0].mxu0
        %v8990 = vadd.f32 0.0, %v8989
        %v8991 = vpop.f32.mrb[0].mxu0
        %v8992 = vpop.f32.mrb[0].mxu0
        %v8993 = vadd.f32 0.0, %v8992
        %v8994 = vpop.f32.mrb[0].mxu0
        %8995 = vmatprep.mubr.bf16.mxu0 0
        %8996 = vmatmul.mubr.bf16.gmra.mrb[0].mxu0 %v8937
        %v8997 = vpop.f32.mrb[0].mxu0
        %v8998 = vadd.f32 0.0, %v8997
        %v8999 = vpop.f32.mrb[0].mxu0
        %v9000 = vpop.f32.mrb[0].mxu0
        %v9001 = vadd.f32 0.0, %v9000
        %v9002 = vpop.f32.mrb[0].mxu0
        %9003 = vdwg.mxu0
        %v9004 = vadd.f32 %v8773, %v8974
        %v9005 = vadd.f32 %v8774, %v8977
        %v9006 = vadd.f32 %v8775, %v8982
        %v9007 = vadd.f32 %v8776, %v8985
        %v9008 = vadd.f32 %v8777, %v8990
        %v9009 = vadd.f32 %v8778, %v8993
        %v9010 = vadd.f32 %v8779, %v8998
        %v9011 = vadd.f32 %v8780, %v9001
        %v9012 = vld [vmem:[%s8661] sm:$0xe]
        %v9013 = vld [vmem:[%s8661 + $0x8] sm:$0xe]
        %v9014 = vld [vmem:[%s8661 + $0x10] sm:$0xe]
        %v9015 = vld [vmem:[%s8661 + $0x18] sm:$0xe]
        %v9016 = vld [vmem:[%s8661 + $0x20] sm:$0xe]
        %v9017 = vld [vmem:[%s8661 + $0x28] sm:$0xe]
        %v9018 = vld [vmem:[%s8661 + $0x30] sm:$0xe]
        %v9019 = vld [vmem:[%s8661 + $0x38] sm:$0xe]
        %v9036 = vrot.slane %v9012, 5
        %v9037 = vrot.slane %v9036, 4
        %v9038 = vrot.slane %v8782, 5
        %v9039 = vsel %vm1801, %v9037, %v9038
        %v9040 = vrot.slane %v9013, 5
        %v9041 = vrot.slane %v9040, 4
        %v9042 = vrot.slane %v8784, 5
        %v9043 = vsel %vm1801, %v9041, %v9042
        %v9044 = vrot.slane %v9014, 5
        %v9045 = vrot.slane %v9044, 4
        %v9046 = vrot.slane %v8786, 5
        %v9047 = vsel %vm1801, %v9045, %v9046
        %v9048 = vrot.slane %v9015, 5
        %v9049 = vrot.slane %v9048, 4
        %v9050 = vrot.slane %v8788, 5
        %v9051 = vsel %vm1801, %v9049, %v9050
        %v9052 = vrot.slane %v9016, 5
        %v9053 = vrot.slane %v9052, 4
        %v9054 = vrot.slane %v8790, 5
        %v9055 = vsel %vm1801, %v9053, %v9054
        %v9056 = vrot.slane %v9017, 5
        %v9057 = vrot.slane %v9056, 4
        %v9058 = vrot.slane %v8792, 5
        %v9059 = vsel %vm1801, %v9057, %v9058
        %v9060 = vrot.slane %v9018, 5
        %v9061 = vrot.slane %v9060, 4
        %v9062 = vrot.slane %v8794, 5
        %v9063 = vsel %vm1801, %v9061, %v9062
        %v9064 = vrot.slane %v9019, 5
        %v9065 = vrot.slane %v9064, 4
        %v9066 = vrot.slane %v8796, 5
        %v9067 = vsel %vm1801, %v9065, %v9066
        %v9068 = vunpack.c.l.b16 %v9039
        %v9069 = vunpack.c.l.b16 %v9043
        %v9070 = vunpack.c.l.b16 %v9047
        %v9071 = vunpack.c.l.b16 %v9051
        %v9072 = vunpack.c.l.b16 %v9055
        %v9073 = vunpack.c.l.b16 %v9059
        %v9074 = vunpack.c.l.b16 %v9063
        %v9075 = vunpack.c.l.b16 %v9067
        %v9076 = vpack.c.b16 %v9069, %v9068
        %v9077 = vpack.c.b16 %v9071, %v9070
        %v9078 = vpack.c.b16 %v9073, %v9072
        %v9079 = vpack.c.b16 %v9075, %v9074
        %v9082 = vunpack.c.l.b16 %v7665
        %v9083 = vunpack.c.l.b16 %v7666
        %v9084 = vpack.c.b16 %v9083, %v9082
        %v9087 = vsel %vm6975, %v9076, 0
        %v9090 = vsel %vm6975, %v9077, 0
        %v9093 = vsel %vm6975, %v9078, 0
        %v9096 = vsel %vm6975, %v9079, 0
        %9098 = vmatprep.subr.bf16.mxu0 0
        %9099 = vmatpush1.bf16.msra.mxu0 %v9084
        %9100 = vmatprep.subr.bf16.mxu0 0
        %9101 = vmatpush1.bf16.msra.mxu0 0
        %9102 = vmatprep.subr.bf16.mxu0 0
        %9103 = vmatpush1.bf16.msra.mxu0 0
        %9104 = vmatprep.subr.bf16.mxu0 0
        %9105 = vmatpush1.bf16.msra.mxu0 0
        %9106 = vmatprep.subr.bf16.mxu0 0
        %9107 = vmatpush1.bf16.msra.mxu0 0
        %9108 = vmatprep.subr.bf16.mxu0 0
        %9109 = vmatpush1.bf16.msra.mxu0 0
        %9110 = vmatprep.subr.bf16.mxu0 0
        %9111 = vmatpush1.bf16.msra.mxu0 0
        %9112 = vmatprep.subr.bf16.mxu0 0
        %9113 = vmatpush1.bf16.msra.mxu0 0
        %9114 = vmatprep.subr.bf16.mxu0 0
        %9115 = vmatpush1.bf16.msra.mxu0 0
        %9116 = vmatprep.subr.bf16.mxu0 0
        %9117 = vmatpush1.bf16.msra.mxu0 0
        %9118 = vmatprep.subr.bf16.mxu0 0
        %9119 = vmatpush1.bf16.msra.mxu0 0
        %9120 = vmatprep.subr.bf16.mxu0 0
        %9121 = vmatpush1.bf16.msra.mxu0 0
        %9122 = vmatprep.subr.bf16.mxu0 0
        %9123 = vmatpush1.bf16.msra.mxu0 0
        %9124 = vmatprep.subr.bf16.mxu0 0
        %9125 = vmatpush1.bf16.msra.mxu0 0
        %9126 = vmatprep.subr.bf16.mxu0 0
        %9127 = vmatpush1.bf16.msra.mxu0 0
        %9128 = vmatprep.subr.bf16.mxu0 0
        %9129 = vmatpush1.bf16.msra.mxu0 0
        %9130 = vmatprep.mubr.bf16.mxu0 0
        %9131 = vmatmul.mubr.bf16.gmra.mrb[0].mxu0 %v9087
        %v9132 = vpop.f32.mrb[0].mxu0
        %v9133 = vadd.f32 0.0, %v9132
        %v9134 = vpop.f32.mrb[0].mxu0
        %v9135 = vpop.f32.mrb[0].mxu0
        %v9136 = vadd.f32 0.0, %v9135
        %v9137 = vpop.f32.mrb[0].mxu0
        %9138 = vmatprep.mubr.bf16.mxu0 0
        %9139 = vmatmul.mubr.bf16.gmra.mrb[0].mxu0 %v9090
        %v9140 = vpop.f32.mrb[0].mxu0
        %v9141 = vadd.f32 0.0, %v9140
        %v9142 = vpop.f32.mrb[0].mxu0
        %v9143 = vpop.f32.mrb[0].mxu0
        %v9144 = vadd.f32 0.0, %v9143
        %v9145 = vpop.f32.mrb[0].mxu0
        %9146 = vmatprep.mubr.bf16.mxu0 0
        %9147 = vmatmul.mubr.bf16.gmra.mrb[0].mxu0 %v9093
        %v9148 = vpop.f32.mrb[0].mxu0
        %v9149 = vadd.f32 0.0, %v9148
        %v9150 = vpop.f32.mrb[0].mxu0
        %v9151 = vpop.f32.mrb[0].mxu0
        %v9152 = vadd.f32 0.0, %v9151
        %v9153 = vpop.f32.mrb[0].mxu0
        %9154 = vmatprep.mubr.bf16.mxu0 0
        %9155 = vmatmul.mubr.bf16.gmra.mrb[0].mxu0 %v9096
        %v9156 = vpop.f32.mrb[0].mxu0
        %v9157 = vadd.f32 0.0, %v9156
        %v9158 = vpop.f32.mrb[0].mxu0
        %v9159 = vpop.f32.mrb[0].mxu0
        %v9160 = vadd.f32 0.0, %v9159
        %v9161 = vpop.f32.mrb[0].mxu0
        %9162 = vdwg.mxu0
        %v9163 = vadd.f32 %v9004, %v9133
        %v9164 = vadd.f32 %v9005, %v9136
        %v9165 = vadd.f32 %v9006, %v9141
        %v9166 = vadd.f32 %v9007, %v9144
        %v9167 = vadd.f32 %v9008, %v9149
        %v9168 = vadd.f32 %v9009, %v9152
        %v9169 = vadd.f32 %v9010, %v9157
        %v9170 = vadd.f32 %v9011, %v9160
        %v9171 = vld [vmem:[%s4] sm:$0x1]
        %v9173 = vlaneseq
        %v9174 = vshrl.u32 %v9173, 7
        %v9175 = vsub.s32 0, %v9174
        %v9176 = vrot.slane %v9171, %v9175
        %v9178 = vadd.f32 %v9163, %v9176
        %v9179 = vadd.f32 %v9164, %v9176
        %v9180 = vadd.f32 %v9165, %v9176
        %v9181 = vadd.f32 %v9166, %v9176
        %v9182 = vadd.f32 %v9167, %v9176
        %v9183 = vadd.f32 %v9168, %v9176
        %v9184 = vadd.f32 %v9169, %v9176
        %v9185 = vadd.f32 %v9170, %v9176
        %v9186 = vmax.f32 %v9178, 0.0
        %v9187 = vmax.f32 %v9179, 0.0
        %v9188 = vmax.f32 %v9180, 0.0
        %v9189 = vmax.f32 %v9181, 0.0
        %v9190 = vmax.f32 %v9182, 0.0
        %v9191 = vmax.f32 %v9183, 0.0
        %v9192 = vmax.f32 %v9184, 0.0
        %v9193 = vmax.f32 %v9185, 0.0
        %v9202 = vcombine.high %v9186, %v9186
        %v9204 = vunpack.c.l.s4 1983009808
        %v9205 = vunpack.c.0.s8 %v9204
        %v9206 = vlaneseq
        %v9207 = vshrl.u32 %v9206, 7
        %v9208 = vsub.s32 %v9205, %v9207
        %v9209 = vrot.slane %v9186, %v9208
        %v9211 = vunpack.c.l.s4 1983009808
        %v9212 = vunpack.c.0.s8 %v9211
        %v9213 = vlaneseq
        %v9214 = vshrl.u32 %v9213, 7
        %v9215 = vsub.s32 %v9212, %v9214
        %v9216 = vrot.slane %v9202, %v9215
        %v9217 = vcombine.high %v9209, %v9209
        %v9218 = vcombine.high %v9216, %v9216
        %v9219 = vcombine.high %v9187, %v9187
        %v9221 = vunpack.c.l.s4 1983009808
        %v9222 = vunpack.c.0.s8 %v9221
        %v9223 = vlaneseq
        %v9224 = vshrl.u32 %v9223, 7
        %v9225 = vsub.s32 %v9222, %v9224
        %v9226 = vrot.slane %v9187, %v9225
        %v9228 = vunpack.c.l.s4 1983009808
        %v9229 = vunpack.c.0.s8 %v9228
        %v9230 = vlaneseq
        %v9231 = vshrl.u32 %v9230, 7
        %v9232 = vsub.s32 %v9229, %v9231
        %v9233 = vrot.slane %v9219, %v9232
        %v9234 = vcombine.high %v9226, %v9226
        %v9235 = vcombine.high %v9233, %v9233
        %v9236 = vcombine.high %v9188, %v9188
        %v9238 = vunpack.c.l.s4 1983009808
        %v9239 = vunpack.c.0.s8 %v9238
        %v9240 = vlaneseq
        %v9241 = vshrl.u32 %v9240, 7
        %v9242 = vsub.s32 %v9239, %v9241
        %v9243 = vrot.slane %v9188, %v9242
        %v9245 = vunpack.c.l.s4 1983009808
        %v9246 = vunpack.c.0.s8 %v9245
        %v9247 = vlaneseq
        %v9248 = vshrl.u32 %v9247, 7
        %v9249 = vsub.s32 %v9246, %v9248
        %v9250 = vrot.slane %v9236, %v9249
        %v9251 = vcombine.high %v9243, %v9243
        %v9252 = vcombine.high %v9250, %v9250
        %v9253 = vcombine.high %v9189, %v9189
        %v9255 = vunpack.c.l.s4 1983009808
        %v9256 = vunpack.c.0.s8 %v9255
        %v9257 = vlaneseq
        %v9258 = vshrl.u32 %v9257, 7
        %v9259 = vsub.s32 %v9256, %v9258
        %v9260 = vrot.slane %v9189, %v9259
        %v9262 = vunpack.c.l.s4 1983009808
        %v9263 = vunpack.c.0.s8 %v9262
        %v9264 = vlaneseq
        %v9265 = vshrl.u32 %v9264, 7
        %v9266 = vsub.s32 %v9263, %v9265
        %v9267 = vrot.slane %v9253, %v9266
        %v9268 = vcombine.high %v9260, %v9260
        %v9269 = vcombine.high %v9267, %v9267
        %v9270 = vcombine.high %v9190, %v9190
        %v9272 = vunpack.c.l.s4 1983009808
        %v9273 = vunpack.c.0.s8 %v9272
        %v9274 = vlaneseq
        %v9275 = vshrl.u32 %v9274, 7
        %v9276 = vsub.s32 %v9273, %v9275
        %v9277 = vrot.slane %v9190, %v9276
        %v9279 = vunpack.c.l.s4 1983009808
        %v9280 = vunpack.c.0.s8 %v9279
        %v9281 = vlaneseq
        %v9282 = vshrl.u32 %v9281, 7
        %v9283 = vsub.s32 %v9280, %v9282
        %v9284 = vrot.slane %v9270, %v9283
        %v9285 = vcombine.high %v9277, %v9277
        %v9286 = vcombine.high %v9284, %v9284
        %v9287 = vcombine.high %v9191, %v9191
        %v9289 = vunpack.c.l.s4 1983009808
        %v9290 = vunpack.c.0.s8 %v9289
        %v9291 = vlaneseq
        %v9292 = vshrl.u32 %v9291, 7
        %v9293 = vsub.s32 %v9290, %v9292
        %v9294 = vrot.slane %v9191, %v9293
        %v9296 = vunpack.c.l.s4 1983009808
        %v9297 = vunpack.c.0.s8 %v9296
        %v9298 = vlaneseq
        %v9299 = vshrl.u32 %v9298, 7
        %v9300 = vsub.s32 %v9297, %v9299
        %v9301 = vrot.slane %v9287, %v9300
        %v9302 = vcombine.high %v9294, %v9294
        %v9303 = vcombine.high %v9301, %v9301
        %v9304 = vcombine.high %v9192, %v9192
        %v9306 = vunpack.c.l.s4 1983009808
        %v9307 = vunpack.c.0.s8 %v9306
        %v9308 = vlaneseq
        %v9309 = vshrl.u32 %v9308, 7
        %v9310 = vsub.s32 %v9307, %v9309
        %v9311 = vrot.slane %v9192, %v9310
        %v9313 = vunpack.c.l.s4 1983009808
        %v9314 = vunpack.c.0.s8 %v9313
        %v9315 = vlaneseq
        %v9316 = vshrl.u32 %v9315, 7
        %v9317 = vsub.s32 %v9314, %v9316
        %v9318 = vrot.slane %v9304, %v9317
        %v9319 = vcombine.high %v9311, %v9311
        %v9320 = vcombine.high %v9318, %v9318
        %v9321 = vcombine.high %v9193, %v9193
        %v9323 = vunpack.c.l.s4 1983009808
        %v9324 = vunpack.c.0.s8 %v9323
        %v9325 = vlaneseq
        %v9326 = vshrl.u32 %v9325, 7
        %v9327 = vsub.s32 %v9324, %v9326
        %v9328 = vrot.slane %v9193, %v9327
        %v9330 = vunpack.c.l.s4 1983009808
        %v9331 = vunpack.c.0.s8 %v9330
        %v9332 = vlaneseq
        %v9333 = vshrl.u32 %v9332, 7
        %v9334 = vsub.s32 %v9331, %v9333
        %v9335 = vrot.slane %v9321, %v9334
        %v9336 = vcombine.high %v9328, %v9328
        %v9337 = vcombine.high %v9335, %v9335
        %vm9370 = vcmask 254976
        %v9371 = vsel %vm9370, %v9209, -inf
        %v9372 = vrot.slane %v9371, 4
        %v9373 = vmax.f32 %v9371, %v9372
        %v9374 = vrot.slane %v9373, 2
        %v9375 = vmax.f32 %v9373, %v9374
        %v9376 = vrot.slane %v9375, 1
        %v9377 = vmax.f32 %v9375, %v9376
        %v9378 = vsel %vm9370, %v9217, -inf
        %v9379 = vrot.slane %v9378, 4
        %v9380 = vmax.f32 %v9378, %v9379
        %v9381 = vrot.slane %v9380, 2
        %v9382 = vmax.f32 %v9380, %v9381
        %v9383 = vrot.slane %v9382, 1
        %v9384 = vmax.f32 %v9382, %v9383
        %v9385 = vsel %vm9370, %v9216, -inf
        %v9386 = vrot.slane %v9385, 4
        %v9387 = vmax.f32 %v9385, %v9386
        %v9388 = vrot.slane %v9387, 2
        %v9389 = vmax.f32 %v9387, %v9388
        %v9390 = vrot.slane %v9389, 1
        %v9391 = vmax.f32 %v9389, %v9390
        %v9392 = vsel %vm9370, %v9218, -inf
        %v9393 = vrot.slane %v9392, 4
        %v9394 = vmax.f32 %v9392, %v9393
        %v9395 = vrot.slane %v9394, 2
        %v9396 = vmax.f32 %v9394, %v9395
        %v9397 = vrot.slane %v9396, 1
        %v9398 = vmax.f32 %v9396, %v9397
        %v9399 = vsel %vm9370, %v9226, -inf
        %v9400 = vrot.slane %v9399, 4
        %v9401 = vmax.f32 %v9399, %v9400
        %v9402 = vrot.slane %v9401, 2
        %v9403 = vmax.f32 %v9401, %v9402
        %v9404 = vrot.slane %v9403, 1
        %v9405 = vmax.f32 %v9403, %v9404
        %v9406 = vsel %vm9370, %v9234, -inf
        %v9407 = vrot.slane %v9406, 4
        %v9408 = vmax.f32 %v9406, %v9407
        %v9409 = vrot.slane %v9408, 2
        %v9410 = vmax.f32 %v9408, %v9409
        %v9411 = vrot.slane %v9410, 1
        %v9412 = vmax.f32 %v9410, %v9411
        %v9413 = vsel %vm9370, %v9233, -inf
        %v9414 = vrot.slane %v9413, 4
        %v9415 = vmax.f32 %v9413, %v9414
        %v9416 = vrot.slane %v9415, 2
        %v9417 = vmax.f32 %v9415, %v9416
        %v9418 = vrot.slane %v9417, 1
        %v9419 = vmax.f32 %v9417, %v9418
        %v9420 = vsel %vm9370, %v9235, -inf
        %v9421 = vrot.slane %v9420, 4
        %v9422 = vmax.f32 %v9420, %v9421
        %v9423 = vrot.slane %v9422, 2
        %v9424 = vmax.f32 %v9422, %v9423
        %v9425 = vrot.slane %v9424, 1
        %v9426 = vmax.f32 %v9424, %v9425
        %v9427 = vsel %vm9370, %v9243, -inf
        %v9428 = vrot.slane %v9427, 4
        %v9429 = vmax.f32 %v9427, %v9428
        %v9430 = vrot.slane %v9429, 2
        %v9431 = vmax.f32 %v9429, %v9430
        %v9432 = vrot.slane %v9431, 1
        %v9433 = vmax.f32 %v9431, %v9432
        %v9434 = vsel %vm9370, %v9251, -inf
        %v9435 = vrot.slane %v9434, 4
        %v9436 = vmax.f32 %v9434, %v9435
        %v9437 = vrot.slane %v9436, 2
        %v9438 = vmax.f32 %v9436, %v9437
        %v9439 = vrot.slane %v9438, 1
        %v9440 = vmax.f32 %v9438, %v9439
        %v9441 = vsel %vm9370, %v9250, -inf
        %v9442 = vrot.slane %v9441, 4
        %v9443 = vmax.f32 %v9441, %v9442
        %v9444 = vrot.slane %v9443, 2
        %v9445 = vmax.f32 %v9443, %v9444
        %v9446 = vrot.slane %v9445, 1
        %v9447 = vmax.f32 %v9445, %v9446
        %v9448 = vsel %vm9370, %v9252, -inf
        %v9449 = vrot.slane %v9448, 4
        %v9450 = vmax.f32 %v9448, %v9449
        %v9451 = vrot.slane %v9450, 2
        %v9452 = vmax.f32 %v9450, %v9451
        %v9453 = vrot.slane %v9452, 1
        %v9454 = vmax.f32 %v9452, %v9453
        %v9455 = vsel %vm9370, %v9260, -inf
        %v9456 = vrot.slane %v9455, 4
        %v9457 = vmax.f32 %v9455, %v9456
        %v9458 = vrot.slane %v9457, 2
        %v9459 = vmax.f32 %v9457, %v9458
        %v9460 = vrot.slane %v9459, 1
        %v9461 = vmax.f32 %v9459, %v9460
        %v9462 = vsel %vm9370, %v9268, -inf
        %v9463 = vrot.slane %v9462, 4
        %v9464 = vmax.f32 %v9462, %v9463
        %v9465 = vrot.slane %v9464, 2
        %v9466 = vmax.f32 %v9464, %v9465
        %v9467 = vrot.slane %v9466, 1
        %v9468 = vmax.f32 %v9466, %v9467
        %v9469 = vsel %vm9370, %v9267, -inf
        %v9470 = vrot.slane %v9469, 4
        %v9471 = vmax.f32 %v9469, %v9470
        %v9472 = vrot.slane %v9471, 2
        %v9473 = vmax.f32 %v9471, %v9472
        %v9474 = vrot.slane %v9473, 1
        %v9475 = vmax.f32 %v9473, %v9474
        %v9476 = vsel %vm9370, %v9269, -inf
        %v9477 = vrot.slane %v9476, 4
        %v9478 = vmax.f32 %v9476, %v9477
        %v9479 = vrot.slane %v9478, 2
        %v9480 = vmax.f32 %v9478, %v9479
        %v9481 = vrot.slane %v9480, 1
        %v9482 = vmax.f32 %v9480, %v9481
        %v9483 = vsel %vm9370, %v9277, -inf
        %v9484 = vrot.slane %v9483, 4
        %v9485 = vmax.f32 %v9483, %v9484
        %v9486 = vrot.slane %v9485, 2
        %v9487 = vmax.f32 %v9485, %v9486
        %v9488 = vrot.slane %v9487, 1
        %v9489 = vmax.f32 %v9487, %v9488
        %v9490 = vsel %vm9370, %v9285, -inf
        %v9491 = vrot.slane %v9490, 4
        %v9492 = vmax.f32 %v9490, %v9491
        %v9493 = vrot.slane %v9492, 2
        %v9494 = vmax.f32 %v9492, %v9493
        %v9495 = vrot.slane %v9494, 1
        %v9496 = vmax.f32 %v9494, %v9495
        %v9497 = vsel %vm9370, %v9284, -inf
        %v9498 = vrot.slane %v9497, 4
        %v9499 = vmax.f32 %v9497, %v9498
        %v9500 = vrot.slane %v9499, 2
        %v9501 = vmax.f32 %v9499, %v9500
        %v9502 = vrot.slane %v9501, 1
        %v9503 = vmax.f32 %v9501, %v9502
        %v9504 = vsel %vm9370, %v9286, -inf
        %v9505 = vrot.slane %v9504, 4
        %v9506 = vmax.f32 %v9504, %v9505
        %v9507 = vrot.slane %v9506, 2
        %v9508 = vmax.f32 %v9506, %v9507
        %v9509 = vrot.slane %v9508, 1
        %v9510 = vmax.f32 %v9508, %v9509
        %v9511 = vsel %vm9370, %v9294, -inf
        %v9512 = vrot.slane %v9511, 4
        %v9513 = vmax.f32 %v9511, %v9512
        %v9514 = vrot.slane %v9513, 2
        %v9515 = vmax.f32 %v9513, %v9514
        %v9516 = vrot.slane %v9515, 1
        %v9517 = vmax.f32 %v9515, %v9516
        %v9518 = vsel %vm9370, %v9302, -inf
        %v9519 = vrot.slane %v9518, 4
        %v9520 = vmax.f32 %v9518, %v9519
        %v9521 = vrot.slane %v9520, 2
        %v9522 = vmax.f32 %v9520, %v9521
        %v9523 = vrot.slane %v9522, 1
        %v9524 = vmax.f32 %v9522, %v9523
        %v9525 = vsel %vm9370, %v9301, -inf
        %v9526 = vrot.slane %v9525, 4
        %v9527 = vmax.f32 %v9525, %v9526
        %v9528 = vrot.slane %v9527, 2
        %v9529 = vmax.f32 %v9527, %v9528
        %v9530 = vrot.slane %v9529, 1
        %v9531 = vmax.f32 %v9529, %v9530
        %v9532 = vsel %vm9370, %v9303, -inf
        %v9533 = vrot.slane %v9532, 4
        %v9534 = vmax.f32 %v9532, %v9533
        %v9535 = vrot.slane %v9534, 2
        %v9536 = vmax.f32 %v9534, %v9535
        %v9537 = vrot.slane %v9536, 1
        %v9538 = vmax.f32 %v9536, %v9537
        %v9539 = vsel %vm9370, %v9311, -inf
        %v9540 = vrot.slane %v9539, 4
        %v9541 = vmax.f32 %v9539, %v9540
        %v9542 = vrot.slane %v9541, 2
        %v9543 = vmax.f32 %v9541, %v9542
        %v9544 = vrot.slane %v9543, 1
        %v9545 = vmax.f32 %v9543, %v9544
        %v9546 = vsel %vm9370, %v9319, -inf
        %v9547 = vrot.slane %v9546, 4
        %v9548 = vmax.f32 %v9546, %v9547
        %v9549 = vrot.slane %v9548, 2
        %v9550 = vmax.f32 %v9548, %v9549
        %v9551 = vrot.slane %v9550, 1
        %v9552 = vmax.f32 %v9550, %v9551
        %v9553 = vsel %vm9370, %v9318, -inf
        %v9554 = vrot.slane %v9553, 4
        %v9555 = vmax.f32 %v9553, %v9554
        %v9556 = vrot.slane %v9555, 2
        %v9557 = vmax.f32 %v9555, %v9556
        %v9558 = vrot.slane %v9557, 1
        %v9559 = vmax.f32 %v9557, %v9558
        %v9560 = vsel %vm9370, %v9320, -inf
        %v9561 = vrot.slane %v9560, 4
        %v9562 = vmax.f32 %v9560, %v9561
        %v9563 = vrot.slane %v9562, 2
        %v9564 = vmax.f32 %v9562, %v9563
        %v9565 = vrot.slane %v9564, 1
        %v9566 = vmax.f32 %v9564, %v9565
        %v9567 = vsel %vm9370, %v9328, -inf
        %v9568 = vrot.slane %v9567, 4
        %v9569 = vmax.f32 %v9567, %v9568
        %v9570 = vrot.slane %v9569, 2
        %v9571 = vmax.f32 %v9569, %v9570
        %v9572 = vrot.slane %v9571, 1
        %v9573 = vmax.f32 %v9571, %v9572
        %v9574 = vsel %vm9370, %v9336, -inf
        %v9575 = vrot.slane %v9574, 4
        %v9576 = vmax.f32 %v9574, %v9575
        %v9577 = vrot.slane %v9576, 2
        %v9578 = vmax.f32 %v9576, %v9577
        %v9579 = vrot.slane %v9578, 1
        %v9580 = vmax.f32 %v9578, %v9579
        %v9581 = vsel %vm9370, %v9335, -inf
        %v9582 = vrot.slane %v9581, 4
        %v9583 = vmax.f32 %v9581, %v9582
        %v9584 = vrot.slane %v9583, 2
        %v9585 = vmax.f32 %v9583, %v9584
        %v9586 = vrot.slane %v9585, 1
        %v9587 = vmax.f32 %v9585, %v9586
        %v9588 = vsel %vm9370, %v9337, -inf
        %v9589 = vrot.slane %v9588, 4
        %v9590 = vmax.f32 %v9588, %v9589
        %v9591 = vrot.slane %v9590, 2
        %v9592 = vmax.f32 %v9590, %v9591
        %v9593 = vrot.slane %v9592, 1
        %v9594 = vmax.f32 %v9592, %v9593
        %vm9595 = vcmask 261120
        %v9596 = vsel %vm9595, %v9377, -inf
        %v9597 = vsel %vm9595, %v9405, -inf
        %v9598 = vmax.f32 %v9596, %v9597
        %v9599 = vsel %vm9595, %v9384, -inf
        %v9600 = vsel %vm9595, %v9412, -inf
        %v9601 = vmax.f32 %v9599, %v9600
        %v9602 = vsel %vm9595, %v9391, -inf
        %v9603 = vsel %vm9595, %v9419, -inf
        %v9604 = vmax.f32 %v9602, %v9603
        %v9605 = vsel %vm9595, %v9398, -inf
        %v9606 = vsel %vm9595, %v9426, -inf
        %v9607 = vmax.f32 %v9605, %v9606
        %v9608 = vsel %vm9595, %v9433, -inf
        %v9609 = vsel %vm9595, %v9461, -inf
        %v9610 = vmax.f32 %v9608, %v9609
        %v9611 = vsel %vm9595, %v9440, -inf
        %v9612 = vsel %vm9595, %v9468, -inf
        %v9613 = vmax.f32 %v9611, %v9612
        %v9614 = vsel %vm9595, %v9447, -inf
        %v9615 = vsel %vm9595, %v9475, -inf
        %v9616 = vmax.f32 %v9614, %v9615
        %v9617 = vsel %vm9595, %v9454, -inf
        %v9618 = vsel %vm9595, %v9482, -inf
        %v9619 = vmax.f32 %v9617, %v9618
        %v9620 = vsel %vm9595, %v9489, -inf
        %v9621 = vsel %vm9595, %v9517, -inf
        %v9622 = vmax.f32 %v9620, %v9621
        %v9623 = vsel %vm9595, %v9496, -inf
        %v9624 = vsel %vm9595, %v9524, -inf
        %v9625 = vmax.f32 %v9623, %v9624
        %v9626 = vsel %vm9595, %v9503, -inf
        %v9627 = vsel %vm9595, %v9531, -inf
        %v9628 = vmax.f32 %v9626, %v9627
        %v9629 = vsel %vm9595, %v9510, -inf
        %v9630 = vsel %vm9595, %v9538, -inf
        %v9631 = vmax.f32 %v9629, %v9630
        %v9632 = vsel %vm9595, %v9545, -inf
        %v9633 = vsel %vm9595, %v9573, -inf
        %v9634 = vmax.f32 %v9632, %v9633
        %v9635 = vsel %vm9595, %v9552, -inf
        %v9636 = vsel %vm9595, %v9580, -inf
        %v9637 = vmax.f32 %v9635, %v9636
        %v9638 = vsel %vm9595, %v9559, -inf
        %v9639 = vsel %vm9595, %v9587, -inf
        %v9640 = vmax.f32 %v9638, %v9639
        %v9641 = vsel %vm9595, %v9566, -inf
        %v9642 = vsel %vm9595, %v9594, -inf
        %v9643 = vmax.f32 %v9641, %v9642
        %vm9660 = vcmask 1041409
        %v9661 = vsel %vm9660, %v9601, %v9598
        %v9662 = vsel %vm7510, %v9604, %v9661
        %v9663 = vsel %vm7512, %v9607, %v9662
        %v9664 = vsel %vm7514, %v9610, %v9663
        %v9665 = vsel %vm7516, %v9613, %v9664
        %v9666 = vsel %vm7518, %v9616, %v9665
        %v9667 = vsel %vm7520, %v9619, %v9666
        %v9668 = vsel %vm9660, %v9625, %v9622
        %v9669 = vsel %vm7510, %v9628, %v9668
        %v9670 = vsel %vm7512, %v9631, %v9669
        %v9671 = vsel %vm7514, %v9634, %v9670
        %v9672 = vsel %vm7516, %v9637, %v9671
        %v9673 = vsel %vm7518, %v9640, %v9672
        %v9674 = vsel %vm7520, %v9643, %v9673
        %9677 = vst.msk [vmem:[%s217] sm:$0xff] %vm9595, %v9667
        %9678 = vst.msk [vmem:[%s217 + $0x8] sm:$0xff] %vm9595, %v9674
        %s9679 = sand.u32 %s137, 1
        %s9680 = scalar_lea.sflag [#allocation5], %s9679
        %s9681 = sand.u32 %s137, 1
        %s9682 = smul.addr %s9681, 16
        %s9683 = scalar_lea.vmem [#allocation4], %s9682
        // Predicated region
        $region41: #{conv_patch_embedding.1} parent=39 // pred_check
          %p9684 = pneg %p147
        $region42: #{conv_patch_embedding.1} parent=39 // pred_check_branch
          %9686 = sbr.rel (%p9684) target = $region44
        $region43: #{conv_patch_embedding.1} parent=39 // pred_region
          %s9688 = ssub.s32 256, 256
          %9689 = vsyncadd %s9680, %s9688
          %s9690 = smul.addr %s19, 2
          %s9691 = smul.addr %s9690, 128
          %s9692 = scalar_lea.hbm %s5, %s9691
          %s9693 = sshll.u32 %s9683, 4
          %s9694 = int_to_ptr.vmem [resolvable:$true] %s9693
          %9699 = dma.vmem_to_hbm [thread:$0]  %s9694, 256, %s9692, %s9680, 128, 128, 8
        $region44: #{conv_patch_embedding.1} parent=39 // pred_fallthru
          _
      $region40: #{conv_patch_embedding.1} parent=5 // pred_fallthru
        _
      %p9700 = scmp.le.s32.totalorder 2, %s14
      // Predicated region
      $region45: #{conv_patch_embedding.1} parent=5 // pred_check
        %p9701 = pneg %p9700
      $region46: #{conv_patch_embedding.1} parent=5 // pred_check_branch
        %9703 = sbr.rel (%p9701) target = $region48
      $region47: #{conv_patch_embedding.1} parent=5 // pred_region
        %s9704 = ssub.s32 %s14, 2
        // Predicated region
        $region49: #{conv_patch_embedding.1} parent=47 // pred_check
          %p9705 = pneg %p153
        $region50: #{conv_patch_embedding.1} parent=47 // pred_check_branch
          %9707 = sbr.rel (%p9705) target = $region52
        $region51: #{conv_patch_embedding.1} parent=47 // pred_region
          %s9708 = sand.u32 %s138, 1
          %s9709 = scalar_lea.sflag [#allocation5], %s9708
          %s9710 = sand.u32 %s138, 1
          %s9711 = smul.addr %s9710, 16
          %s9712 = scalar_lea.vmem [#allocation4], %s9711
          %9713 = dma.done %s9709, 256
        $region52: #{conv_patch_embedding.1} parent=47 // pred_fallthru
          _
      $region48: #{conv_patch_embedding.1} parent=5 // pred_fallthru
        _
    $region6: #{conv_patch_embedding.1} parent=1 // loop_footer
      %s18 = sadd.s32 1, %s14
    $region7: #{conv_patch_embedding.1} parent=1 // loop_footer_branch
      %13 = sbr.rel target = $region3
    $region8: #{conv_patch_embedding.1} parent=1 // loop_exit
      _
    %9714 = vsyncpa [#allocation5], 1
    %s9715 = scalar_lea.sflag [#allocation5], 1
    %9716 = vsyncpa %s9715, 1

</llo_original>
